<compile_context>
chip_gen: v6e
topology: v6e:2x2x1
jax: 0.10.0
libtpu: 0.0.40
codegen_flags: <defaults>
</compile_context>

<pallas_src>
import functools

import jax
import jax.numpy as jnp
from jax.experimental import pallas as pl
from jax.experimental.pallas import tpu as pltpu


def _round_up(x, m):
    return ((x + m - 1) // m) * m


def _const_block_spec(shape):
    """BlockSpec for a block whose index never changes across the grid.

    Such blocks are DMA'd once, so the default second pipeline buffer is pure
    wasted VMEM (matters most under v7x's 64 MiB).  Use pl.Buffered(1) when the
    running JAX supports the pipeline_mode kwarg, otherwise fall back silently.
    """
    index_map = lambda ib: (0,) * len(shape)
    try:
        return pl.BlockSpec(shape, index_map, pipeline_mode=pl.Buffered(1))
    except (TypeError, AttributeError):
        return pl.BlockSpec(shape, index_map)


# ----------------------------------------------------------------------------
# Fused kernel: 2-layer LSTM (interleaved recurrences) + final Linear.
#   Per batch block (Bb rows), row layout: row = t * Bb + b.
#   Gate order is [i | f | o | g] (sigmoid gates contiguous, tanh last).
#
#   Padded hidden lanes [H:Hp] stay exactly zero because (a) initial h/c are
#   zero and (b) every padded weight column / bias entry is zero, so padded
#   gates are sigmoid(0)/tanh(0) acting on a zero cell state.  This relies on
#   zero initial states; nonzero (h0, c0) support would need masking.
# ----------------------------------------------------------------------------
def _lstm2_fc_kernel(x_ref, w0x_ref, b0_ref, w0h_ref, w1x_ref, b1_ref,
                     w1h_ref, wfc_ref, bfc_ref, out_ref, xg_sc, h1_sc,
                     *, seq_len, batch_block, hidden_pad):
    T, Bb, Hp = seq_len, batch_block, hidden_pad
    G = 4 * Hp

    # Phase A: layer-0 input projection hoisted off the serial recurrence as
    # ONE bf16-in / f32-acc MXU matmul over the whole (T*Bb) sequence block.
    xg_sc[...] = (jnp.dot(x_ref[...], w0x_ref[...],
                          preferred_element_type=jnp.float32) + b0_ref[...])

    # Hoist the layer-1 bias broadcast out of the loop (JAX doesn't CSE it).
    b1_full = jnp.broadcast_to(b1_ref[...], (Bb, G))

    zeros = jnp.zeros((Bb, Hp), jnp.float32)

    def nonlin(gates, c_prev):
        # [i | f | o | g]: one contiguous sigmoid range + one tanh block.
        sig = jax.nn.sigmoid(gates[:, :3 * Hp])
        g_g = jnp.tanh(gates[:, 3 * Hp:])
        i_g = sig[:, 0 * Hp:1 * Hp]
        f_g = sig[:, 1 * Hp:2 * Hp]
        o_g = sig[:, 2 * Hp:3 * Hp]
        c_new = f_g * c_prev + i_g * g_g
        h_new = o_g * jnp.tanh(c_new)
        return h_new, c_new

    def body(t, carry):
        h0, c0, h1, c1 = carry
        row = pl.multiple_of(t * Bb, Bb)
        # Layer-0 cell: only the small recurrent matmul sits on the serial path.
        g0 = xg_sc[pl.ds(row, Bb), :] + jnp.dot(
            h0.astype(jnp.bfloat16), w0h_ref[...],
            preferred_element_type=jnp.float32)
        h0, c0 = nonlin(g0, c0)
        # Layer-1 cell, interleaved: depends on h0(t) but is independent of
        # cell0(t+1), so under the partial unroll the scheduler overlaps the
        # two layers' dependent MXU->EUP->VPU chains.
        h0b = h0.astype(jnp.bfloat16)
        g1 = (jnp.dot(h0b, w1x_ref[...], preferred_element_type=jnp.float32)
              + jnp.dot(h1.astype(jnp.bfloat16), w1h_ref[...],
                        preferred_element_type=jnp.float32)
              + b1_full)
        h1, c1 = nonlin(g1, c1)
        h1_sc[pl.ds(row, Bb), :] = h1
        return h0, c0, h1, c1

    # TODO(synk): hold W_hh resident in MXU weight staging via
    # pltpu.matmul_push_rhs/matmul_acc_lhs to skip per-step weight pushes.
    unroll = T if T <= 16 else 8
    jax.lax.fori_loop(0, T, body, (zeros, zeros, zeros, zeros), unroll=unroll)

    # Phase E: fused final Linear over the whole sequence block -> the hidden
    # states never round-trip through HBM; lane-dense (T*Bb, Vp) store.
    out_ref[...] = (jnp.dot(h1_sc[...], wfc_ref[...],
                            preferred_element_type=jnp.float32)
                    + bfc_ref[...]).astype(out_ref.dtype)


def fused_lstm2_fc(x, w0x, b0, w0h, w1x, b1, w1h, wfc, bfc, *, seq_len,
                   batch_block, hidden_pad, vocab_pad):
    """x: (nb, T*Bb, Ep) bf16 -> logits (nb, T*Bb, Vp) f32."""
    T, Bb, Hp, Vp = seq_len, batch_block, hidden_pad, vocab_pad
    nb, R, Ep = x.shape
    G = 4 * Hp
    assert R == T * Bb

    kernel = functools.partial(_lstm2_fc_kernel, seq_len=T, batch_block=Bb,
                               hidden_pad=Hp)

    # Per-core VMEM budget: scratch + pipelined x/out blocks + weights (worst
    # case 2x if single-buffering is unavailable), plus headroom.
    weight_bytes = ((w0x.size + w0h.size + w1x.size + w1h.size) * 2
                    + (b0.size + b1.size + wfc.size + bfc.size) * 4)
    est = (R * G * 4 + R * Hp * 4          # xg_sc + h1_sc scratch
           + 2 * R * Ep * 2                # x block, double-buffered bf16
           + 2 * R * Vp * 4                # out block, double-buffered f32
           + 2 * weight_bytes)
    vmem_limit = int(min(max(est * 3 // 2 + (8 << 20), 32 << 20), 100 << 20))

    grid_spec = pltpu.PrefetchScalarGridSpec(
        num_scalar_prefetch=0,
        grid=(nb,),                                    # batch blocks
        in_specs=[
            pl.BlockSpec((None, R, Ep), lambda ib: (ib, 0, 0)),  # x (per block)
            _const_block_spec((Ep, G)),                # W0_ih^T   (bf16)
            _const_block_spec((1, G)),                 # b0        (f32)
            _const_block_spec((Hp, G)),                # W0_hh^T   (bf16)
            _const_block_spec((Hp, G)),                # W1_ih^T   (bf16)
            _const_block_spec((1, G)),                 # b1        (f32)
            _const_block_spec((Hp, G)),                # W1_hh^T   (bf16)
            _const_block_spec((Hp, Vp)),               # fc W^T    (f32)
            _const_block_spec((1, Vp)),                # fc b      (f32)
        ],
        out_specs=pl.BlockSpec((None, R, Vp), lambda ib: (ib, 0, 0)),
        scratch_shapes=[
            pltpu.VMEM((R, G), jnp.float32),    # hoisted layer-0 gate proj
            pltpu.VMEM((R, Hp), jnp.float32),   # layer-1 hidden states (VMEM only)
        ],
    )
    return pl.pallas_call(
        kernel,
        out_shape=jax.ShapeDtypeStruct((nb, R, Vp), jnp.float32),
        grid_spec=grid_spec,
        compiler_params=pltpu.CompilerParams(
            dimension_semantics=("parallel",),         # batch blocks -> both cores
            vmem_limit_bytes=vmem_limit),
    )(x, w0x, b0, w0h, w1x, b1, w1h, wfc, bfc)


# ----------------------------------------------------------------------------
# One-time weight re-layout (cached at parameter-prep time, NOT per forward):
#   PyTorch rows are [i | f | g | o] blocks of size H.  Reorder to [i | f | o | g]
#   (sigmoid gates contiguous), transpose, pad H -> Hp and in_dim -> in_dim_pad.
# ----------------------------------------------------------------------------
def _prep_lstm_weights(w_ih, w_hh, b_ih, b_hh, H, Hp, in_dim_pad):
    in_dim = w_ih.shape[1]
    order = (0, 1, 3, 2)                         # i, f, o, g
    bias = b_ih + b_hh

    def blk_x(k):
        blk = w_ih[k * H:(k + 1) * H, :].T       # (in_dim, H)
        return jnp.pad(blk, ((0, in_dim_pad - in_dim), (0, Hp - H)))

    def blk_h(k):
        blk = w_hh[k * H:(k + 1) * H, :].T       # (H, H)
        return jnp.pad(blk, ((0, Hp - H), (0, Hp - H)))

    def blk_b(k):
        return jnp.pad(bias[k * H:(k + 1) * H], (0, Hp - H))

    w_x = jnp.concatenate([blk_x(k) for k in order], axis=1)   # (in_pad, 4Hp)
    w_h = jnp.concatenate([blk_h(k) for k in order], axis=1)   # (Hp, 4Hp)
    b = jnp.concatenate([blk_b(k) for k in order]).reshape(1, 4 * Hp)
    return w_x.astype(jnp.float32), w_h.astype(jnp.float32), b.astype(jnp.float32)


def prepare_params(params, hidden_size):
    """One-time re-layout / padding / dtype cast of all weights."""
    H = hidden_size
    E = params["emb"].shape[1]
    V = params["fc_w"].shape[0]
    Hp = _round_up(H, 128)          # lane-pad hidden (gate slices lane-aligned)
    Vp = _round_up(V, 128)          # lane-pad vocab (unmasked lane-dense stores)
    Ep = _round_up(E, 16)           # bf16 sublane-pad the tiny embedding dim

    w0x, w0h, b0 = _prep_lstm_weights(params["w_ih_l0"], params["w_hh_l0"],
                                      params["b_ih_l0"], params["b_hh_l0"],
                                      H, Hp, in_dim_pad=Ep)
    w1x, w1h, b1 = _prep_lstm_weights(params["w_ih_l1"], params["w_hh_l1"],
                                      params["b_ih_l1"], params["b_hh_l1"],
                                      H, Hp, in_dim_pad=Hp)
    wfc = jnp.zeros((Hp, Vp), jnp.float32).at[:H, :V].set(params["fc_w"].T)
    bfc = jnp.zeros((1, Vp), jnp.float32).at[:, :V].set(params["fc_b"])

    return {
        "emb": params["emb"].astype(jnp.float32),
        "w0x": w0x.astype(jnp.bfloat16), "w0h": w0h.astype(jnp.bfloat16),
        "w1x": w1x.astype(jnp.bfloat16), "w1h": w1h.astype(jnp.bfloat16),
        "b0": b0, "b1": b1,
        "wfc": wfc, "bfc": bfc,
    }


# ----------------------------------------------------------------------------
# Full model forward
# ----------------------------------------------------------------------------
def rnn_original_fedavg_forward(input_seq, prep, vocab_size):
    """input_seq: (B, T) int32 token ids -> logits (B, V, T) float32."""
    B, T = input_seq.shape
    V = vocab_size
    E = prep["emb"].shape[1]
    Ep = prep["w0x"].shape[0]
    Hp = prep["w0h"].shape[0]
    Vp = prep["wfc"].shape[1]

    # Batch blocking: 16 rows per block when the batch allows it (better MXU
    # row occupancy on 256-wide MXUs without spilling), else 8.
    if B <= 8:
        Bp, Bb = 8, 8
    else:
        Bp = _round_up(B, 16)
        Bb = 16
    nb = Bp // Bb

    # Embedding gather (glue; padding_idx=0 row is zero in the table itself).
    embeds = jnp.take(prep["emb"], input_seq, axis=0)              # (B, T, E)
    x = jnp.transpose(embeds, (1, 0, 2))                           # (T, B, E)
    x = jnp.pad(x, ((0, 0), (0, Bp - B), (0, Ep - E)))             # (T, Bp, Ep)
    x = x.reshape(T, nb, Bb, Ep).transpose(1, 0, 2, 3)             # (nb, T, Bb, Ep)
    x = x.reshape(nb, T * Bb, Ep).astype(jnp.bfloat16)             # row = t*Bb + b

    logits_p = fused_lstm2_fc(x, prep["w0x"], prep["b0"], prep["w0h"],
                              prep["w1x"], prep["b1"], prep["w1h"],
                              prep["wfc"], prep["bfc"],
                              seq_len=T, batch_block=Bb, hidden_pad=Hp,
                              vocab_pad=Vp)                        # (nb, T*Bb, Vp)

    logits = logits_p.reshape(nb, T, Bb, Vp).transpose(1, 0, 2, 3)
    logits = logits.reshape(T, Bp, Vp)[:, :B, :V]                  # (T, B, V)
    # einops: 'batch length vocab -> batch vocab length'  =>  (B, V, T)
    return jnp.transpose(logits, (1, 2, 0))


# ----------------------------------------------------------------------------
# Pure-JAX reference (lax.scan LSTM, original PyTorch [i|f|g|o] layout, f32
# with scoped HIGHEST matmul precision -- no global config side effect).
# ----------------------------------------------------------------------------
def _lstm_layer_ref(x_tbe, w_ih, w_hh, b_ih, b_hh, H):
    B = x_tbe.shape[1]
    hi = jax.lax.Precision.HIGHEST

    def step(carry, x_t):
        h, c = carry
        gates = (jnp.dot(x_t, w_ih.T, precision=hi) + b_ih
                 + jnp.dot(h, w_hh.T, precision=hi) + b_hh)
        i = jax.nn.sigmoid(gates[:, 0 * H:1 * H])
        f = jax.nn.sigmoid(gates[:, 1 * H:2 * H])
        g = jnp.tanh(gates[:, 2 * H:3 * H])
        o = jax.nn.sigmoid(gates[:, 3 * H:4 * H])
        c = f * c + i * g
        h = o * jnp.tanh(c)
        return (h, c), h

    init = (jnp.zeros((B, H), jnp.float32), jnp.zeros((B, H), jnp.float32))
    _, hs = jax.lax.scan(step, init, x_tbe)
    return hs


def _forward_ref(input_seq, params, H):
    hi = jax.lax.Precision.HIGHEST
    embeds = jnp.take(params["emb"], input_seq, axis=0)
    x_tbe = jnp.transpose(embeds, (1, 0, 2)).astype(jnp.float32)
    h1 = _lstm_layer_ref(x_tbe, params["w_ih_l0"], params["w_hh_l0"],
                         params["b_ih_l0"], params["b_hh_l0"], H)
    h2 = _lstm_layer_ref(h1, params["w_ih_l1"], params["w_hh_l1"],
                         params["b_ih_l1"], params["b_hh_l1"], H)
    logits = jnp.dot(h2, params["fc_w"].T, precision=hi) + params["fc_b"]
    return jnp.transpose(logits, (1, 2, 0))                        # (B, V, T)


# ----------------------------------------------------------------------------
# Deterministic parameter init (shapes follow nn.Embedding / nn.LSTM / nn.Linear)
# ----------------------------------------------------------------------------
def init_params(key, vocab_size, embedding_dim, hidden_size):
    ks = jax.random.split(key, 12)
    H, E, V = hidden_size, embedding_dim, vocab_size
    s = 0.1
    emb = s * jax.random.normal(ks[0], (V, E), jnp.float32)
    emb = emb.at[0].set(0.0)                                       # padding_idx=0
    return {
        "emb": emb,
        "w_ih_l0": s * jax.random.normal(ks[1], (4 * H, E), jnp.float32),
        "w_hh_l0": s * jax.random.normal(ks[2], (4 * H, H), jnp.float32),
        "b_ih_l0": s * jax.random.normal(ks[3], (4 * H,), jnp.float32),
        "b_hh_l0": s * jax.random.normal(ks[4], (4 * H,), jnp.float32),
        "w_ih_l1": s * jax.random.normal(ks[5], (4 * H, H), jnp.float32),
        "w_hh_l1": s * jax.random.normal(ks[6], (4 * H, H), jnp.float32),
        "b_ih_l1": s * jax.random.normal(ks[7], (4 * H,), jnp.float32),
        "b_hh_l1": s * jax.random.normal(ks[8], (4 * H,), jnp.float32),
        "fc_w": s * jax.random.normal(ks[9], (V, H), jnp.float32),
        "fc_b": s * jax.random.normal(ks[10], (V,), jnp.float32),
    }


if __name__ == "__main__":
    # Small shapes consistent with the module (embedding_dim=8, vocab=90).
    BATCH, SEQ = 4, 8
    VOCAB, EMBED, HIDDEN = 90, 8, 32

    key = jax.random.PRNGKey(0)
    k_tok, k_par = jax.random.split(key)
    input_seq = jax.random.randint(k_tok, (BATCH, SEQ), 0, VOCAB, dtype=jnp.int32)
    params = init_params(k_par, VOCAB, EMBED, HIDDEN)

    # One-time weight re-layout, cached outside the forward call.
    prep = prepare_params(params, HIDDEN)

    fwd = jax.jit(rnn_original_fedavg_forward, static_argnums=(2,))
    out = jax.block_until_ready(fwd(input_seq, prep, VOCAB))

    assert out.shape == (BATCH, VOCAB, SEQ), out.shape
    ref = jax.block_until_ready(_forward_ref(input_seq, params, HIDDEN))
    max_err = float(jnp.max(jnp.abs(out - ref)))
    # bf16-in / f32-acc matmuls in the kernel vs f32 HIGHEST reference.
    assert max_err < 1e-2, f"mismatch vs reference: max abs diff = {max_err}"

    print("KERNEL_OK")
</pallas_src>

<mosaic_0001>
module attributes {stable_mosaic.version = 11 : i64} {
  func.func @_lstm2_fc_kernel(%arg0: i32, %arg1: memref<1x64x16xbf16, #tpu.memory_space<vmem>>, %arg2: memref<16x512xbf16, #tpu.memory_space<vmem>>, %arg3: memref<1x512xf32, #tpu.memory_space<vmem>>, %arg4: memref<128x512xbf16, #tpu.memory_space<vmem>>, %arg5: memref<128x512xbf16, #tpu.memory_space<vmem>>, %arg6: memref<1x512xf32, #tpu.memory_space<vmem>>, %arg7: memref<128x512xbf16, #tpu.memory_space<vmem>>, %arg8: memref<128x128xf32, #tpu.memory_space<vmem>>, %arg9: memref<1x128xf32, #tpu.memory_space<vmem>>, %arg10: memref<1x64x128xf32, #tpu.memory_space<vmem>>, %arg11: memref<64x512xf32, #tpu.memory_space<vmem>>, %arg12: memref<64x128xf32, #tpu.memory_space<vmem>>) attributes {dimension_semantics = [#tpu.dimension_semantics<parallel>], iteration_bounds = array<i64: 1>, scalar_prefetch = 0 : i64, scratch_operands = 2 : i64, tpu.core_type = #tpu.core_type<tc>, window_params = [{transform_indices = @transform_0, window_bounds = array<i64: 1, 64, 16>}, {pipeline_mode = #tpu.pipeline_mode<synchronous>, transform_indices = @transform_1, window_bounds = array<i64: 16, 512>}, {pipeline_mode = #tpu.pipeline_mode<synchronous>, transform_indices = @transform_2, window_bounds = array<i64: 1, 512>}, {pipeline_mode = #tpu.pipeline_mode<synchronous>, transform_indices = @transform_3, window_bounds = array<i64: 128, 512>}, {pipeline_mode = #tpu.pipeline_mode<synchronous>, transform_indices = @transform_4, window_bounds = array<i64: 128, 512>}, {pipeline_mode = #tpu.pipeline_mode<synchronous>, transform_indices = @transform_5, window_bounds = array<i64: 1, 512>}, {pipeline_mode = #tpu.pipeline_mode<synchronous>, transform_indices = @transform_6, window_bounds = array<i64: 128, 512>}, {pipeline_mode = #tpu.pipeline_mode<synchronous>, transform_indices = @transform_7, window_bounds = array<i64: 128, 128>}, {pipeline_mode = #tpu.pipeline_mode<synchronous>, transform_indices = @transform_8, window_bounds = array<i64: 1, 128>}, {transform_indices = @transform_9, window_bounds = array<i64: 1, 64, 128>}]} {
    %c0 = arith.constant 0 : index
    %c0_0 = arith.constant 0 : index
    %c0_1 = arith.constant 0 : index
    %0 = vector.load %arg1[%c0, %c0_0, %c0_1] : memref<1x64x16xbf16, #tpu.memory_space<vmem>>, vector<1x64x16xbf16>
    %1 = vector.shape_cast %0 : vector<1x64x16xbf16> to vector<64x16xbf16>
    %c0_2 = arith.constant 0 : index
    %c0_3 = arith.constant 0 : index
    %2 = vector.load %arg2[%c0_2, %c0_3] : memref<16x512xbf16, #tpu.memory_space<vmem>>, vector<16x512xbf16>
    %cst = arith.constant dense<0.000000e+00> : vector<64x512xf32>
    %3 = tpu.matmul %1, %2, %cst {dimension_numbers = #tpu.dot_dimension_numbers<[1], [0], [0], [1], [0, 0, 1, 1], [], []>} : vector<64x16xbf16>, vector<16x512xbf16>, vector<64x512xf32> -> vector<64x512xf32>
    %c0_4 = arith.constant 0 : index
    %c0_5 = arith.constant 0 : index
    %4 = vector.load %arg3[%c0_4, %c0_5] : memref<1x512xf32, #tpu.memory_space<vmem>>, vector<1x512xf32>
    %5 = vector.broadcast %4 : vector<1x512xf32> to vector<64x512xf32>
    %6 = arith.addf %3, %5 : vector<64x512xf32>
    %c0_6 = arith.constant 0 : index
    %c0_7 = arith.constant 0 : index
    %7 = vector.load %arg11[%c0_6, %c0_7] : memref<64x512xf32, #tpu.memory_space<vmem>>, vector<64x512xf32>
    tpu.vector_store %arg11[%c0_6, %c0_7], %6 {strides = array<i32>} : memref<64x512xf32, #tpu.memory_space<vmem>>, vector<64x512xf32>,
    %c0_8 = arith.constant 0 : index
    %c0_9 = arith.constant 0 : index
    %8 = vector.load %arg6[%c0_8, %c0_9] : memref<1x512xf32, #tpu.memory_space<vmem>>, vector<1x512xf32>
    %9 = vector.shape_cast %8 : vector<1x512xf32> to vector<1x512xf32>
    %10 = vector.broadcast %9 : vector<1x512xf32> to vector<8x512xf32>
    %cst_10 = arith.constant 0.000000e+00 : f32
    %11 = vector.broadcast %cst_10 : f32 to vector<8x128xf32>
    %c0_i32 = arith.constant 0 : i32
    %c8_i32 = arith.constant 8 : i32
    %12 = arith.muli %c0_i32, %c8_i32 : i32
    %13 = tpu.assume_multiple %12, 8 : i32
    %14 = arith.index_cast %13 : i32 to index
    %c0_11 = arith.constant 0 : index
    %15 = vector.load %arg11[%14, %c0_11] : memref<64x512xf32, #tpu.memory_space<vmem>>, vector<8x512xf32>
    %16 = arith.truncf %11 : vector<8x128xf32> to vector<8x128xbf16>
    %c0_12 = arith.constant 0 : index
    %c0_13 = arith.constant 0 : index
    %17 = vector.load %arg4[%c0_12, %c0_13] : memref<128x512xbf16, #tpu.memory_space<vmem>>, vector<128x512xbf16>
    %cst_14 = arith.constant dense<0.000000e+00> : vector<8x512xf32>
    %18 = tpu.matmul %16, %17, %cst_14 {dimension_numbers = #tpu.dot_dimension_numbers<[1], [0], [0], [1], [0, 0, 1, 1], [], []>} : vector<8x128xbf16>, vector<128x512xbf16>, vector<8x512xf32> -> vector<8x512xf32>
    %19 = arith.addf %15, %18 : vector<8x512xf32>
    %20 = vector.extract_strided_slice %19 {offsets = [0, 0], sizes = [8, 384], strides = [1, 1]} : vector<8x512xf32> to vector<8x384xf32>
    %21 = arith.negf %20 : vector<8x384xf32>
    %22 = math.exp %21 : vector<8x384xf32>
    %cst_15 = arith.constant 1.000000e+00 : f32
    %23 = vector.broadcast %cst_15 : f32 to vector<8x384xf32>
    %24 = arith.addf %23, %22 : vector<8x384xf32>
    %25 = arith.divf %23, %24 : vector<8x384xf32>
    %26 = vector.extract_strided_slice %19 {offsets = [0, 384], sizes = [8, 128], strides = [1, 1]} : vector<8x512xf32> to vector<8x128xf32>
    %27 = math.tanh %26 : vector<8x128xf32>
    %28 = vector.extract_strided_slice %25 {offsets = [0, 0], sizes = [8, 128], strides = [1, 1]} : vector<8x384xf32> to vector<8x128xf32>
    %29 = vector.extract_strided_slice %25 {offsets = [0, 128], sizes = [8, 128], strides = [1, 1]} : vector<8x384xf32> to vector<8x128xf32>
    %30 = vector.extract_strided_slice %25 {offsets = [0, 256], sizes = [8, 128], strides = [1, 1]} : vector<8x384xf32> to vector<8x128xf32>
    %31 = arith.mulf %29, %11 : vector<8x128xf32>
    %32 = arith.mulf %28, %27 : vector<8x128xf32>
    %33 = arith.addf %31, %32 : vector<8x128xf32>
    %34 = math.tanh %33 : vector<8x128xf32>
    %35 = arith.mulf %30, %34 : vector<8x128xf32>
    %36 = arith.truncf %35 : vector<8x128xf32> to vector<8x128xbf16>
    %c0_16 = arith.constant 0 : index
    %c0_17 = arith.constant 0 : index
    %37 = vector.load %arg5[%c0_16, %c0_17] : memref<128x512xbf16, #tpu.memory_space<vmem>>, vector<128x512xbf16>
    %cst_18 = arith.constant dense<0.000000e+00> : vector<8x512xf32>
    %38 = tpu.matmul %36, %37, %cst_18 {dimension_numbers = #tpu.dot_dimension_numbers<[1], [0], [0], [1], [0, 0, 1, 1], [], []>} : vector<8x128xbf16>, vector<128x512xbf16>, vector<8x512xf32> -> vector<8x512xf32>
    %39 = arith.truncf %11 : vector<8x128xf32> to vector<8x128xbf16>
    %c0_19 = arith.constant 0 : index
    %c0_20 = arith.constant 0 : index
    %40 = vector.load %arg7[%c0_19, %c0_20] : memref<128x512xbf16, #tpu.memory_space<vmem>>, vector<128x512xbf16>
    %cst_21 = arith.constant dense<0.000000e+00> : vector<8x512xf32>
    %41 = tpu.matmul %39, %40, %cst_21 {dimension_numbers = #tpu.dot_dimension_numbers<[1], [0], [0], [1], [0, 0, 1, 1], [], []>} : vector<8x128xbf16>, vector<128x512xbf16>, vector<8x512xf32> -> vector<8x512xf32>
    %42 = arith.addf %38, %41 : vector<8x512xf32>
    %43 = arith.addf %42, %10 : vector<8x512xf32>
    %44 = vector.extract_strided_slice %43 {offsets = [0, 0], sizes = [8, 384], strides = [1, 1]} : vector<8x512xf32> to vector<8x384xf32>
    %45 = arith.negf %44 : vector<8x384xf32>
    %46 = math.exp %45 : vector<8x384xf32>
    %cst_22 = arith.constant 1.000000e+00 : f32
    %47 = vector.broadcast %cst_22 : f32 to vector<8x384xf32>
    %48 = arith.addf %47, %46 : vector<8x384xf32>
    %49 = arith.divf %47, %48 : vector<8x384xf32>
    %50 = vector.extract_strided_slice %43 {offsets = [0, 384], sizes = [8, 128], strides = [1, 1]} : vector<8x512xf32> to vector<8x128xf32>
    %51 = math.tanh %50 : vector<8x128xf32>
    %52 = vector.extract_strided_slice %49 {offsets = [0, 0], sizes = [8, 128], strides = [1, 1]} : vector<8x384xf32> to vector<8x128xf32>
    %53 = vector.extract_strided_slice %49 {offsets = [0, 128], sizes = [8, 128], strides = [1, 1]} : vector<8x384xf32> to vector<8x128xf32>
    %54 = vector.extract_strided_slice %49 {offsets = [0, 256], sizes = [8, 128], strides = [1, 1]} : vector<8x384xf32> to vector<8x128xf32>
    %55 = arith.mulf %53, %11 : vector<8x128xf32>
    %56 = arith.mulf %52, %51 : vector<8x128xf32>
    %57 = arith.addf %55, %56 : vector<8x128xf32>
    %58 = math.tanh %57 : vector<8x128xf32>
    %59 = arith.mulf %54, %58 : vector<8x128xf32>
    %60 = arith.index_cast %13 : i32 to index
    %c0_23 = arith.constant 0 : index
    %61 = vector.load %arg12[%60, %c0_23] : memref<64x128xf32, #tpu.memory_space<vmem>>, vector<8x128xf32>
    tpu.vector_store %arg12[%60, %c0_23], %59 {strides = array<i32>} : memref<64x128xf32, #tpu.memory_space<vmem>>, vector<8x128xf32>,
    %c1_i32 = arith.constant 1 : i32
    %c8_i32_24 = arith.constant 8 : i32
    %62 = arith.muli %c1_i32, %c8_i32_24 : i32
    %63 = tpu.assume_multiple %62, 8 : i32
    %64 = arith.index_cast %63 : i32 to index
    %c0_25 = arith.constant 0 : index
    %65 = vector.load %arg11[%64, %c0_25] : memref<64x512xf32, #tpu.memory_space<vmem>>, vector<8x512xf32>
    %66 = arith.truncf %35 : vector<8x128xf32> to vector<8x128xbf16>
    %c0_26 = arith.constant 0 : index
    %c0_27 = arith.constant 0 : index
    %67 = vector.load %arg4[%c0_26, %c0_27] : memref<128x512xbf16, #tpu.memory_space<vmem>>, vector<128x512xbf16>
    %cst_28 = arith.constant dense<0.000000e+00> : vector<8x512xf32>
    %68 = tpu.matmul %66, %67, %cst_28 {dimension_numbers = #tpu.dot_dimension_numbers<[1], [0], [0], [1], [0, 0, 1, 1], [], []>} : vector<8x128xbf16>, vector<128x512xbf16>, vector<8x512xf32> -> vector<8x512xf32>
    %69 = arith.addf %65, %68 : vector<8x512xf32>
    %70 = vector.extract_strided_slice %69 {offsets = [0, 0], sizes = [8, 384], strides = [1, 1]} : vector<8x512xf32> to vector<8x384xf32>
    %71 = arith.negf %70 : vector<8x384xf32>
    %72 = math.exp %71 : vector<8x384xf32>
    %cst_29 = arith.constant 1.000000e+00 : f32
    %73 = vector.broadcast %cst_29 : f32 to vector<8x384xf32>
    %74 = arith.addf %73, %72 : vector<8x384xf32>
    %75 = arith.divf %73, %74 : vector<8x384xf32>
    %76 = vector.extract_strided_slice %69 {offsets = [0, 384], sizes = [8, 128], strides = [1, 1]} : vector<8x512xf32> to vector<8x128xf32>
    %77 = math.tanh %76 : vector<8x128xf32>
    %78 = vector.extract_strided_slice %75 {offsets = [0, 0], sizes = [8, 128], strides = [1, 1]} : vector<8x384xf32> to vector<8x128xf32>
    %79 = vector.extract_strided_slice %75 {offsets = [0, 128], sizes = [8, 128], strides = [1, 1]} : vector<8x384xf32> to vector<8x128xf32>
    %80 = vector.extract_strided_slice %75 {offsets = [0, 256], sizes = [8, 128], strides = [1, 1]} : vector<8x384xf32> to vector<8x128xf32>
    %81 = arith.mulf %79, %33 : vector<8x128xf32>
    %82 = arith.mulf %78, %77 : vector<8x128xf32>
    %83 = arith.addf %81, %82 : vector<8x128xf32>
    %84 = math.tanh %83 : vector<8x128xf32>
    %85 = arith.mulf %80, %84 : vector<8x128xf32>
    %86 = arith.truncf %85 : vector<8x128xf32> to vector<8x128xbf16>
    %c0_30 = arith.constant 0 : index
    %c0_31 = arith.constant 0 : index
    %87 = vector.load %arg5[%c0_30, %c0_31] : memref<128x512xbf16, #tpu.memory_space<vmem>>, vector<128x512xbf16>
    %cst_32 = arith.constant dense<0.000000e+00> : vector<8x512xf32>
    %88 = tpu.matmul %86, %87, %cst_32 {dimension_numbers = #tpu.dot_dimension_numbers<[1], [0], [0], [1], [0, 0, 1, 1], [], []>} : vector<8x128xbf16>, vector<128x512xbf16>, vector<8x512xf32> -> vector<8x512xf32>
    %89 = arith.truncf %59 : vector<8x128xf32> to vector<8x128xbf16>
    %c0_33 = arith.constant 0 : index
    %c0_34 = arith.constant 0 : index
    %90 = vector.load %arg7[%c0_33, %c0_34] : memref<128x512xbf16, #tpu.memory_space<vmem>>, vector<128x512xbf16>
    %cst_35 = arith.constant dense<0.000000e+00> : vector<8x512xf32>
    %91 = tpu.matmul %89, %90, %cst_35 {dimension_numbers = #tpu.dot_dimension_numbers<[1], [0], [0], [1], [0, 0, 1, 1], [], []>} : vector<8x128xbf16>, vector<128x512xbf16>, vector<8x512xf32> -> vector<8x512xf32>
    %92 = arith.addf %88, %91 : vector<8x512xf32>
    %93 = arith.addf %92, %10 : vector<8x512xf32>
    %94 = vector.extract_strided_slice %93 {offsets = [0, 0], sizes = [8, 384], strides = [1, 1]} : vector<8x512xf32> to vector<8x384xf32>
    %95 = arith.negf %94 : vector<8x384xf32>
    %96 = math.exp %95 : vector<8x384xf32>
    %cst_36 = arith.constant 1.000000e+00 : f32
    %97 = vector.broadcast %cst_36 : f32 to vector<8x384xf32>
    %98 = arith.addf %97, %96 : vector<8x384xf32>
    %99 = arith.divf %97, %98 : vector<8x384xf32>
    %100 = vector.extract_strided_slice %93 {offsets = [0, 384], sizes = [8, 128], strides = [1, 1]} : vector<8x512xf32> to vector<8x128xf32>
    %101 = math.tanh %100 : vector<8x128xf32>
    %102 = vector.extract_strided_slice %99 {offsets = [0, 0], sizes = [8, 128], strides = [1, 1]} : vector<8x384xf32> to vector<8x128xf32>
    %103 = vector.extract_strided_slice %99 {offsets = [0, 128], sizes = [8, 128], strides = [1, 1]} : vector<8x384xf32> to vector<8x128xf32>
    %104 = vector.extract_strided_slice %99 {offsets = [0, 256], sizes = [8, 128], strides = [1, 1]} : vector<8x384xf32> to vector<8x128xf32>
    %105 = arith.mulf %103, %57 : vector<8x128xf32>
    %106 = arith.mulf %102, %101 : vector<8x128xf32>
    %107 = arith.addf %105, %106 : vector<8x128xf32>
    %108 = math.tanh %107 : vector<8x128xf32>
    %109 = arith.mulf %104, %108 : vector<8x128xf32>
    %110 = arith.index_cast %63 : i32 to index
    %c0_37 = arith.constant 0 : index
    %111 = vector.load %arg12[%110, %c0_37] : memref<64x128xf32, #tpu.memory_space<vmem>>, vector<8x128xf32>
    tpu.vector_store %arg12[%110, %c0_37], %109 {strides = array<i32>} : memref<64x128xf32, #tpu.memory_space<vmem>>, vector<8x128xf32>,
    %c2_i32 = arith.constant 2 : i32
    %c8_i32_38 = arith.constant 8 : i32
    %112 = arith.muli %c2_i32, %c8_i32_38 : i32
    %113 = tpu.assume_multiple %112, 8 : i32
    %114 = arith.index_cast %113 : i32 to index
    %c0_39 = arith.constant 0 : index
    %115 = vector.load %arg11[%114, %c0_39] : memref<64x512xf32, #tpu.memory_space<vmem>>, vector<8x512xf32>
    %116 = arith.truncf %85 : vector<8x128xf32> to vector<8x128xbf16>
    %c0_40 = arith.constant 0 : index
    %c0_41 = arith.constant 0 : index
    %117 = vector.load %arg4[%c0_40, %c0_41] : memref<128x512xbf16, #tpu.memory_space<vmem>>, vector<128x512xbf16>
    %cst_42 = arith.constant dense<0.000000e+00> : vector<8x512xf32>
    %118 = tpu.matmul %116, %117, %cst_42 {dimension_numbers = #tpu.dot_dimension_numbers<[1], [0], [0], [1], [0, 0, 1, 1], [], []>} : vector<8x128xbf16>, vector<128x512xbf16>, vector<8x512xf32> -> vector<8x512xf32>
    %119 = arith.addf %115, %118 : vector<8x512xf32>
    %120 = vector.extract_strided_slice %119 {offsets = [0, 0], sizes = [8, 384], strides = [1, 1]} : vector<8x512xf32> to vector<8x384xf32>
    %121 = arith.negf %120 : vector<8x384xf32>
    %122 = math.exp %121 : vector<8x384xf32>
    %cst_43 = arith.constant 1.000000e+00 : f32
    %123 = vector.broadcast %cst_43 : f32 to vector<8x384xf32>
    %124 = arith.addf %123, %122 : vector<8x384xf32>
    %125 = arith.divf %123, %124 : vector<8x384xf32>
    %126 = vector.extract_strided_slice %119 {offsets = [0, 384], sizes = [8, 128], strides = [1, 1]} : vector<8x512xf32> to vector<8x128xf32>
    %127 = math.tanh %126 : vector<8x128xf32>
    %128 = vector.extract_strided_slice %125 {offsets = [0, 0], sizes = [8, 128], strides = [1, 1]} : vector<8x384xf32> to vector<8x128xf32>
    %129 = vector.extract_strided_slice %125 {offsets = [0, 128], sizes = [8, 128], strides = [1, 1]} : vector<8x384xf32> to vector<8x128xf32>
    %130 = vector.extract_strided_slice %125 {offsets = [0, 256], sizes = [8, 128], strides = [1, 1]} : vector<8x384xf32> to vector<8x128xf32>
    %131 = arith.mulf %129, %83 : vector<8x128xf32>
    %132 = arith.mulf %128, %127 : vector<8x128xf32>
    %133 = arith.addf %131, %132 : vector<8x128xf32>
    %134 = math.tanh %133 : vector<8x128xf32>
    %135 = arith.mulf %130, %134 : vector<8x128xf32>
    %136 = arith.truncf %135 : vector<8x128xf32> to vector<8x128xbf16>
    %c0_44 = arith.constant 0 : index
    %c0_45 = arith.constant 0 : index
    %137 = vector.load %arg5[%c0_44, %c0_45] : memref<128x512xbf16, #tpu.memory_space<vmem>>, vector<128x512xbf16>
    %cst_46 = arith.constant dense<0.000000e+00> : vector<8x512xf32>
    %138 = tpu.matmul %136, %137, %cst_46 {dimension_numbers = #tpu.dot_dimension_numbers<[1], [0], [0], [1], [0, 0, 1, 1], [], []>} : vector<8x128xbf16>, vector<128x512xbf16>, vector<8x512xf32> -> vector<8x512xf32>
    %139 = arith.truncf %109 : vector<8x128xf32> to vector<8x128xbf16>
    %c0_47 = arith.constant 0 : index
    %c0_48 = arith.constant 0 : index
    %140 = vector.load %arg7[%c0_47, %c0_48] : memref<128x512xbf16, #tpu.memory_space<vmem>>, vector<128x512xbf16>
    %cst_49 = arith.constant dense<0.000000e+00> : vector<8x512xf32>
    %141 = tpu.matmul %139, %140, %cst_49 {dimension_numbers = #tpu.dot_dimension_numbers<[1], [0], [0], [1], [0, 0, 1, 1], [], []>} : vector<8x128xbf16>, vector<128x512xbf16>, vector<8x512xf32> -> vector<8x512xf32>
    %142 = arith.addf %138, %141 : vector<8x512xf32>
    %143 = arith.addf %142, %10 : vector<8x512xf32>
    %144 = vector.extract_strided_slice %143 {offsets = [0, 0], sizes = [8, 384], strides = [1, 1]} : vector<8x512xf32> to vector<8x384xf32>
    %145 = arith.negf %144 : vector<8x384xf32>
    %146 = math.exp %145 : vector<8x384xf32>
    %cst_50 = arith.constant 1.000000e+00 : f32
    %147 = vector.broadcast %cst_50 : f32 to vector<8x384xf32>
    %148 = arith.addf %147, %146 : vector<8x384xf32>
    %149 = arith.divf %147, %148 : vector<8x384xf32>
    %150 = vector.extract_strided_slice %143 {offsets = [0, 384], sizes = [8, 128], strides = [1, 1]} : vector<8x512xf32> to vector<8x128xf32>
    %151 = math.tanh %150 : vector<8x128xf32>
    %152 = vector.extract_strided_slice %149 {offsets = [0, 0], sizes = [8, 128], strides = [1, 1]} : vector<8x384xf32> to vector<8x128xf32>
    %153 = vector.extract_strided_slice %149 {offsets = [0, 128], sizes = [8, 128], strides = [1, 1]} : vector<8x384xf32> to vector<8x128xf32>
    %154 = vector.extract_strided_slice %149 {offsets = [0, 256], sizes = [8, 128], strides = [1, 1]} : vector<8x384xf32> to vector<8x128xf32>
    %155 = arith.mulf %153, %107 : vector<8x128xf32>
    %156 = arith.mulf %152, %151 : vector<8x128xf32>
    %157 = arith.addf %155, %156 : vector<8x128xf32>
    %158 = math.tanh %157 : vector<8x128xf32>
    %159 = arith.mulf %154, %158 : vector<8x128xf32>
    %160 = arith.index_cast %113 : i32 to index
    %c0_51 = arith.constant 0 : index
    %161 = vector.load %arg12[%160, %c0_51] : memref<64x128xf32, #tpu.memory_space<vmem>>, vector<8x128xf32>
    tpu.vector_store %arg12[%160, %c0_51], %159 {strides = array<i32>} : memref<64x128xf32, #tpu.memory_space<vmem>>, vector<8x128xf32>,
    %c3_i32 = arith.constant 3 : i32
    %c8_i32_52 = arith.constant 8 : i32
    %162 = arith.muli %c3_i32, %c8_i32_52 : i32
    %163 = tpu.assume_multiple %162, 8 : i32
    %164 = arith.index_cast %163 : i32 to index
    %c0_53 = arith.constant 0 : index
    %165 = vector.load %arg11[%164, %c0_53] : memref<64x512xf32, #tpu.memory_space<vmem>>, vector<8x512xf32>
    %166 = arith.truncf %135 : vector<8x128xf32> to vector<8x128xbf16>
    %c0_54 = arith.constant 0 : index
    %c0_55 = arith.constant 0 : index
    %167 = vector.load %arg4[%c0_54, %c0_55] : memref<128x512xbf16, #tpu.memory_space<vmem>>, vector<128x512xbf16>
    %cst_56 = arith.constant dense<0.000000e+00> : vector<8x512xf32>
    %168 = tpu.matmul %166, %167, %cst_56 {dimension_numbers = #tpu.dot_dimension_numbers<[1], [0], [0], [1], [0, 0, 1, 1], [], []>} : vector<8x128xbf16>, vector<128x512xbf16>, vector<8x512xf32> -> vector<8x512xf32>
    %169 = arith.addf %165, %168 : vector<8x512xf32>
    %170 = vector.extract_strided_slice %169 {offsets = [0, 0], sizes = [8, 384], strides = [1, 1]} : vector<8x512xf32> to vector<8x384xf32>
    %171 = arith.negf %170 : vector<8x384xf32>
    %172 = math.exp %171 : vector<8x384xf32>
    %cst_57 = arith.constant 1.000000e+00 : f32
    %173 = vector.broadcast %cst_57 : f32 to vector<8x384xf32>
    %174 = arith.addf %173, %172 : vector<8x384xf32>
    %175 = arith.divf %173, %174 : vector<8x384xf32>
    %176 = vector.extract_strided_slice %169 {offsets = [0, 384], sizes = [8, 128], strides = [1, 1]} : vector<8x512xf32> to vector<8x128xf32>
    %177 = math.tanh %176 : vector<8x128xf32>
    %178 = vector.extract_strided_slice %175 {offsets = [0, 0], sizes = [8, 128], strides = [1, 1]} : vector<8x384xf32> to vector<8x128xf32>
    %179 = vector.extract_strided_slice %175 {offsets = [0, 128], sizes = [8, 128], strides = [1, 1]} : vector<8x384xf32> to vector<8x128xf32>
    %180 = vector.extract_strided_slice %175 {offsets = [0, 256], sizes = [8, 128], strides = [1, 1]} : vector<8x384xf32> to vector<8x128xf32>
    %181 = arith.mulf %179, %133 : vector<8x128xf32>
    %182 = arith.mulf %178, %177 : vector<8x128xf32>
    %183 = arith.addf %181, %182 : vector<8x128xf32>
    %184 = math.tanh %183 : vector<8x128xf32>
    %185 = arith.mulf %180, %184 : vector<8x128xf32>
    %186 = arith.truncf %185 : vector<8x128xf32> to vector<8x128xbf16>
    %c0_58 = arith.constant 0 : index
    %c0_59 = arith.constant 0 : index
    %187 = vector.load %arg5[%c0_58, %c0_59] : memref<128x512xbf16, #tpu.memory_space<vmem>>, vector<128x512xbf16>
    %cst_60 = arith.constant dense<0.000000e+00> : vector<8x512xf32>
    %188 = tpu.matmul %186, %187, %cst_60 {dimension_numbers = #tpu.dot_dimension_numbers<[1], [0], [0], [1], [0, 0, 1, 1], [], []>} : vector<8x128xbf16>, vector<128x512xbf16>, vector<8x512xf32> -> vector<8x512xf32>
    %189 = arith.truncf %159 : vector<8x128xf32> to vector<8x128xbf16>
    %c0_61 = arith.constant 0 : index
    %c0_62 = arith.constant 0 : index
    %190 = vector.load %arg7[%c0_61, %c0_62] : memref<128x512xbf16, #tpu.memory_space<vmem>>, vector<128x512xbf16>
    %cst_63 = arith.constant dense<0.000000e+00> : vector<8x512xf32>
    %191 = tpu.matmul %189, %190, %cst_63 {dimension_numbers = #tpu.dot_dimension_numbers<[1], [0], [0], [1], [0, 0, 1, 1], [], []>} : vector<8x128xbf16>, vector<128x512xbf16>, vector<8x512xf32> -> vector<8x512xf32>
    %192 = arith.addf %188, %191 : vector<8x512xf32>
    %193 = arith.addf %192, %10 : vector<8x512xf32>
    %194 = vector.extract_strided_slice %193 {offsets = [0, 0], sizes = [8, 384], strides = [1, 1]} : vector<8x512xf32> to vector<8x384xf32>
    %195 = arith.negf %194 : vector<8x384xf32>
    %196 = math.exp %195 : vector<8x384xf32>
    %cst_64 = arith.constant 1.000000e+00 : f32
    %197 = vector.broadcast %cst_64 : f32 to vector<8x384xf32>
    %198 = arith.addf %197, %196 : vector<8x384xf32>
    %199 = arith.divf %197, %198 : vector<8x384xf32>
    %200 = vector.extract_strided_slice %193 {offsets = [0, 384], sizes = [8, 128], strides = [1, 1]} : vector<8x512xf32> to vector<8x128xf32>
    %201 = math.tanh %200 : vector<8x128xf32>
    %202 = vector.extract_strided_slice %199 {offsets = [0, 0], sizes = [8, 128], strides = [1, 1]} : vector<8x384xf32> to vector<8x128xf32>
    %203 = vector.extract_strided_slice %199 {offsets = [0, 128], sizes = [8, 128], strides = [1, 1]} : vector<8x384xf32> to vector<8x128xf32>
    %204 = vector.extract_strided_slice %199 {offsets = [0, 256], sizes = [8, 128], strides = [1, 1]} : vector<8x384xf32> to vector<8x128xf32>
    %205 = arith.mulf %203, %157 : vector<8x128xf32>
    %206 = arith.mulf %202, %201 : vector<8x128xf32>
    %207 = arith.addf %205, %206 : vector<8x128xf32>
    %208 = math.tanh %207 : vector<8x128xf32>
    %209 = arith.mulf %204, %208 : vector<8x128xf32>
    %210 = arith.index_cast %163 : i32 to index
    %c0_65 = arith.constant 0 : index
    %211 = vector.load %arg12[%210, %c0_65] : memref<64x128xf32, #tpu.memory_space<vmem>>, vector<8x128xf32>
    tpu.vector_store %arg12[%210, %c0_65], %209 {strides = array<i32>} : memref<64x128xf32, #tpu.memory_space<vmem>>, vector<8x128xf32>,
    %c4_i32 = arith.constant 4 : i32
    %c8_i32_66 = arith.constant 8 : i32
    %212 = arith.muli %c4_i32, %c8_i32_66 : i32
    %213 = tpu.assume_multiple %212, 8 : i32
    %214 = arith.index_cast %213 : i32 to index
    %c0_67 = arith.constant 0 : index
    %215 = vector.load %arg11[%214, %c0_67] : memref<64x512xf32, #tpu.memory_space<vmem>>, vector<8x512xf32>
    %216 = arith.truncf %185 : vector<8x128xf32> to vector<8x128xbf16>
    %c0_68 = arith.constant 0 : index
    %c0_69 = arith.constant 0 : index
    %217 = vector.load %arg4[%c0_68, %c0_69] : memref<128x512xbf16, #tpu.memory_space<vmem>>, vector<128x512xbf16>
    %cst_70 = arith.constant dense<0.000000e+00> : vector<8x512xf32>
    %218 = tpu.matmul %216, %217, %cst_70 {dimension_numbers = #tpu.dot_dimension_numbers<[1], [0], [0], [1], [0, 0, 1, 1], [], []>} : vector<8x128xbf16>, vector<128x512xbf16>, vector<8x512xf32> -> vector<8x512xf32>
    %219 = arith.addf %215, %218 : vector<8x512xf32>
    %220 = vector.extract_strided_slice %219 {offsets = [0, 0], sizes = [8, 384], strides = [1, 1]} : vector<8x512xf32> to vector<8x384xf32>
    %221 = arith.negf %220 : vector<8x384xf32>
    %222 = math.exp %221 : vector<8x384xf32>
    %cst_71 = arith.constant 1.000000e+00 : f32
    %223 = vector.broadcast %cst_71 : f32 to vector<8x384xf32>
    %224 = arith.addf %223, %222 : vector<8x384xf32>
    %225 = arith.divf %223, %224 : vector<8x384xf32>
    %226 = vector.extract_strided_slice %219 {offsets = [0, 384], sizes = [8, 128], strides = [1, 1]} : vector<8x512xf32> to vector<8x128xf32>
    %227 = math.tanh %226 : vector<8x128xf32>
    %228 = vector.extract_strided_slice %225 {offsets = [0, 0], sizes = [8, 128], strides = [1, 1]} : vector<8x384xf32> to vector<8x128xf32>
    %229 = vector.extract_strided_slice %225 {offsets = [0, 128], sizes = [8, 128], strides = [1, 1]} : vector<8x384xf32> to vector<8x128xf32>
    %230 = vector.extract_strided_slice %225 {offsets = [0, 256], sizes = [8, 128], strides = [1, 1]} : vector<8x384xf32> to vector<8x128xf32>
    %231 = arith.mulf %229, %183 : vector<8x128xf32>
    %232 = arith.mulf %228, %227 : vector<8x128xf32>
    %233 = arith.addf %231, %232 : vector<8x128xf32>
    %234 = math.tanh %233 : vector<8x128xf32>
    %235 = arith.mulf %230, %234 : vector<8x128xf32>
    %236 = arith.truncf %235 : vector<8x128xf32> to vector<8x128xbf16>
    %c0_72 = arith.constant 0 : index
    %c0_73 = arith.constant 0 : index
    %237 = vector.load %arg5[%c0_72, %c0_73] : memref<128x512xbf16, #tpu.memory_space<vmem>>, vector<128x512xbf16>
    %cst_74 = arith.constant dense<0.000000e+00> : vector<8x512xf32>
    %238 = tpu.matmul %236, %237, %cst_74 {dimension_numbers = #tpu.dot_dimension_numbers<[1], [0], [0], [1], [0, 0, 1, 1], [], []>} : vector<8x128xbf16>, vector<128x512xbf16>, vector<8x512xf32> -> vector<8x512xf32>
    %239 = arith.truncf %209 : vector<8x128xf32> to vector<8x128xbf16>
    %c0_75 = arith.constant 0 : index
    %c0_76 = arith.constant 0 : index
    %240 = vector.load %arg7[%c0_75, %c0_76] : memref<128x512xbf16, #tpu.memory_space<vmem>>, vector<128x512xbf16>
    %cst_77 = arith.constant dense<0.000000e+00> : vector<8x512xf32>
    %241 = tpu.matmul %239, %240, %cst_77 {dimension_numbers = #tpu.dot_dimension_numbers<[1], [0], [0], [1], [0, 0, 1, 1], [], []>} : vector<8x128xbf16>, vector<128x512xbf16>, vector<8x512xf32> -> vector<8x512xf32>
    %242 = arith.addf %238, %241 : vector<8x512xf32>
    %243 = arith.addf %242, %10 : vector<8x512xf32>
    %244 = vector.extract_strided_slice %243 {offsets = [0, 0], sizes = [8, 384], strides = [1, 1]} : vector<8x512xf32> to vector<8x384xf32>
    %245 = arith.negf %244 : vector<8x384xf32>
    %246 = math.exp %245 : vector<8x384xf32>
    %cst_78 = arith.constant 1.000000e+00 : f32
    %247 = vector.broadcast %cst_78 : f32 to vector<8x384xf32>
    %248 = arith.addf %247, %246 : vector<8x384xf32>
    %249 = arith.divf %247, %248 : vector<8x384xf32>
    %250 = vector.extract_strided_slice %243 {offsets = [0, 384], sizes = [8, 128], strides = [1, 1]} : vector<8x512xf32> to vector<8x128xf32>
    %251 = math.tanh %250 : vector<8x128xf32>
    %252 = vector.extract_strided_slice %249 {offsets = [0, 0], sizes = [8, 128], strides = [1, 1]} : vector<8x384xf32> to vector<8x128xf32>
    %253 = vector.extract_strided_slice %249 {offsets = [0, 128], sizes = [8, 128], strides = [1, 1]} : vector<8x384xf32> to vector<8x128xf32>
    %254 = vector.extract_strided_slice %249 {offsets = [0, 256], sizes = [8, 128], strides = [1, 1]} : vector<8x384xf32> to vector<8x128xf32>
    %255 = arith.mulf %253, %207 : vector<8x128xf32>
    %256 = arith.mulf %252, %251 : vector<8x128xf32>
    %257 = arith.addf %255, %256 : vector<8x128xf32>
    %258 = math.tanh %257 : vector<8x128xf32>
    %259 = arith.mulf %254, %258 : vector<8x128xf32>
    %260 = arith.index_cast %213 : i32 to index
    %c0_79 = arith.constant 0 : index
    %261 = vector.load %arg12[%260, %c0_79] : memref<64x128xf32, #tpu.memory_space<vmem>>, vector<8x128xf32>
    tpu.vector_store %arg12[%260, %c0_79], %259 {strides = array<i32>} : memref<64x128xf32, #tpu.memory_space<vmem>>, vector<8x128xf32>,
    %c5_i32 = arith.constant 5 : i32
    %c8_i32_80 = arith.constant 8 : i32
    %262 = arith.muli %c5_i32, %c8_i32_80 : i32
    %263 = tpu.assume_multiple %262, 8 : i32
    %264 = arith.index_cast %263 : i32 to index
    %c0_81 = arith.constant 0 : index
    %265 = vector.load %arg11[%264, %c0_81] : memref<64x512xf32, #tpu.memory_space<vmem>>, vector<8x512xf32>
    %266 = arith.truncf %235 : vector<8x128xf32> to vector<8x128xbf16>
    %c0_82 = arith.constant 0 : index
    %c0_83 = arith.constant 0 : index
    %267 = vector.load %arg4[%c0_82, %c0_83] : memref<128x512xbf16, #tpu.memory_space<vmem>>, vector<128x512xbf16>
    %cst_84 = arith.constant dense<0.000000e+00> : vector<8x512xf32>
    %268 = tpu.matmul %266, %267, %cst_84 {dimension_numbers = #tpu.dot_dimension_numbers<[1], [0], [0], [1], [0, 0, 1, 1], [], []>} : vector<8x128xbf16>, vector<128x512xbf16>, vector<8x512xf32> -> vector<8x512xf32>
    %269 = arith.addf %265, %268 : vector<8x512xf32>
    %270 = vector.extract_strided_slice %269 {offsets = [0, 0], sizes = [8, 384], strides = [1, 1]} : vector<8x512xf32> to vector<8x384xf32>
    %271 = arith.negf %270 : vector<8x384xf32>
    %272 = math.exp %271 : vector<8x384xf32>
    %cst_85 = arith.constant 1.000000e+00 : f32
    %273 = vector.broadcast %cst_85 : f32 to vector<8x384xf32>
    %274 = arith.addf %273, %272 : vector<8x384xf32>
    %275 = arith.divf %273, %274 : vector<8x384xf32>
    %276 = vector.extract_strided_slice %269 {offsets = [0, 384], sizes = [8, 128], strides = [1, 1]} : vector<8x512xf32> to vector<8x128xf32>
    %277 = math.tanh %276 : vector<8x128xf32>
    %278 = vector.extract_strided_slice %275 {offsets = [0, 0], sizes = [8, 128], strides = [1, 1]} : vector<8x384xf32> to vector<8x128xf32>
    %279 = vector.extract_strided_slice %275 {offsets = [0, 128], sizes = [8, 128], strides = [1, 1]} : vector<8x384xf32> to vector<8x128xf32>
    %280 = vector.extract_strided_slice %275 {offsets = [0, 256], sizes = [8, 128], strides = [1, 1]} : vector<8x384xf32> to vector<8x128xf32>
    %281 = arith.mulf %279, %233 : vector<8x128xf32>
    %282 = arith.mulf %278, %277 : vector<8x128xf32>
    %283 = arith.addf %281, %282 : vector<8x128xf32>
    %284 = math.tanh %283 : vector<8x128xf32>
    %285 = arith.mulf %280, %284 : vector<8x128xf32>
    %286 = arith.truncf %285 : vector<8x128xf32> to vector<8x128xbf16>
    %c0_86 = arith.constant 0 : index
    %c0_87 = arith.constant 0 : index
    %287 = vector.load %arg5[%c0_86, %c0_87] : memref<128x512xbf16, #tpu.memory_space<vmem>>, vector<128x512xbf16>
    %cst_88 = arith.constant dense<0.000000e+00> : vector<8x512xf32>
    %288 = tpu.matmul %286, %287, %cst_88 {dimension_numbers = #tpu.dot_dimension_numbers<[1], [0], [0], [1], [0, 0, 1, 1], [], []>} : vector<8x128xbf16>, vector<128x512xbf16>, vector<8x512xf32> -> vector<8x512xf32>
    %289 = arith.truncf %259 : vector<8x128xf32> to vector<8x128xbf16>
    %c0_89 = arith.constant 0 : index
    %c0_90 = arith.constant 0 : index
    %290 = vector.load %arg7[%c0_89, %c0_90] : memref<128x512xbf16, #tpu.memory_space<vmem>>, vector<128x512xbf16>
    %cst_91 = arith.constant dense<0.000000e+00> : vector<8x512xf32>
    %291 = tpu.matmul %289, %290, %cst_91 {dimension_numbers = #tpu.dot_dimension_numbers<[1], [0], [0], [1], [0, 0, 1, 1], [], []>} : vector<8x128xbf16>, vector<128x512xbf16>, vector<8x512xf32> -> vector<8x512xf32>
    %292 = arith.addf %288, %291 : vector<8x512xf32>
    %293 = arith.addf %292, %10 : vector<8x512xf32>
    %294 = vector.extract_strided_slice %293 {offsets = [0, 0], sizes = [8, 384], strides = [1, 1]} : vector<8x512xf32> to vector<8x384xf32>
    %295 = arith.negf %294 : vector<8x384xf32>
    %296 = math.exp %295 : vector<8x384xf32>
    %cst_92 = arith.constant 1.000000e+00 : f32
    %297 = vector.broadcast %cst_92 : f32 to vector<8x384xf32>
    %298 = arith.addf %297, %296 : vector<8x384xf32>
    %299 = arith.divf %297, %298 : vector<8x384xf32>
    %300 = vector.extract_strided_slice %293 {offsets = [0, 384], sizes = [8, 128], strides = [1, 1]} : vector<8x512xf32> to vector<8x128xf32>
    %301 = math.tanh %300 : vector<8x128xf32>
    %302 = vector.extract_strided_slice %299 {offsets = [0, 0], sizes = [8, 128], strides = [1, 1]} : vector<8x384xf32> to vector<8x128xf32>
    %303 = vector.extract_strided_slice %299 {offsets = [0, 128], sizes = [8, 128], strides = [1, 1]} : vector<8x384xf32> to vector<8x128xf32>
    %304 = vector.extract_strided_slice %299 {offsets = [0, 256], sizes = [8, 128], strides = [1, 1]} : vector<8x384xf32> to vector<8x128xf32>
    %305 = arith.mulf %303, %257 : vector<8x128xf32>
    %306 = arith.mulf %302, %301 : vector<8x128xf32>
    %307 = arith.addf %305, %306 : vector<8x128xf32>
    %308 = math.tanh %307 : vector<8x128xf32>
    %309 = arith.mulf %304, %308 : vector<8x128xf32>
    %310 = arith.index_cast %263 : i32 to index
    %c0_93 = arith.constant 0 : index
    %311 = vector.load %arg12[%310, %c0_93] : memref<64x128xf32, #tpu.memory_space<vmem>>, vector<8x128xf32>
    tpu.vector_store %arg12[%310, %c0_93], %309 {strides = array<i32>} : memref<64x128xf32, #tpu.memory_space<vmem>>, vector<8x128xf32>,
    %c6_i32 = arith.constant 6 : i32
    %c8_i32_94 = arith.constant 8 : i32
    %312 = arith.muli %c6_i32, %c8_i32_94 : i32
    %313 = tpu.assume_multiple %312, 8 : i32
    %314 = arith.index_cast %313 : i32 to index
    %c0_95 = arith.constant 0 : index
    %315 = vector.load %arg11[%314, %c0_95] : memref<64x512xf32, #tpu.memory_space<vmem>>, vector<8x512xf32>
    %316 = arith.truncf %285 : vector<8x128xf32> to vector<8x128xbf16>
    %c0_96 = arith.constant 0 : index
    %c0_97 = arith.constant 0 : index
    %317 = vector.load %arg4[%c0_96, %c0_97] : memref<128x512xbf16, #tpu.memory_space<vmem>>, vector<128x512xbf16>
    %cst_98 = arith.constant dense<0.000000e+00> : vector<8x512xf32>
    %318 = tpu.matmul %316, %317, %cst_98 {dimension_numbers = #tpu.dot_dimension_numbers<[1], [0], [0], [1], [0, 0, 1, 1], [], []>} : vector<8x128xbf16>, vector<128x512xbf16>, vector<8x512xf32> -> vector<8x512xf32>
    %319 = arith.addf %315, %318 : vector<8x512xf32>
    %320 = vector.extract_strided_slice %319 {offsets = [0, 0], sizes = [8, 384], strides = [1, 1]} : vector<8x512xf32> to vector<8x384xf32>
    %321 = arith.negf %320 : vector<8x384xf32>
    %322 = math.exp %321 : vector<8x384xf32>
    %cst_99 = arith.constant 1.000000e+00 : f32
    %323 = vector.broadcast %cst_99 : f32 to vector<8x384xf32>
    %324 = arith.addf %323, %322 : vector<8x384xf32>
    %325 = arith.divf %323, %324 : vector<8x384xf32>
    %326 = vector.extract_strided_slice %319 {offsets = [0, 384], sizes = [8, 128], strides = [1, 1]} : vector<8x512xf32> to vector<8x128xf32>
    %327 = math.tanh %326 : vector<8x128xf32>
    %328 = vector.extract_strided_slice %325 {offsets = [0, 0], sizes = [8, 128], strides = [1, 1]} : vector<8x384xf32> to vector<8x128xf32>
    %329 = vector.extract_strided_slice %325 {offsets = [0, 128], sizes = [8, 128], strides = [1, 1]} : vector<8x384xf32> to vector<8x128xf32>
    %330 = vector.extract_strided_slice %325 {offsets = [0, 256], sizes = [8, 128], strides = [1, 1]} : vector<8x384xf32> to vector<8x128xf32>
    %331 = arith.mulf %329, %283 : vector<8x128xf32>
    %332 = arith.mulf %328, %327 : vector<8x128xf32>
    %333 = arith.addf %331, %332 : vector<8x128xf32>
    %334 = math.tanh %333 : vector<8x128xf32>
    %335 = arith.mulf %330, %334 : vector<8x128xf32>
    %336 = arith.truncf %335 : vector<8x128xf32> to vector<8x128xbf16>
    %c0_100 = arith.constant 0 : index
    %c0_101 = arith.constant 0 : index
    %337 = vector.load %arg5[%c0_100, %c0_101] : memref<128x512xbf16, #tpu.memory_space<vmem>>, vector<128x512xbf16>
    %cst_102 = arith.constant dense<0.000000e+00> : vector<8x512xf32>
    %338 = tpu.matmul %336, %337, %cst_102 {dimension_numbers = #tpu.dot_dimension_numbers<[1], [0], [0], [1], [0, 0, 1, 1], [], []>} : vector<8x128xbf16>, vector<128x512xbf16>, vector<8x512xf32> -> vector<8x512xf32>
    %339 = arith.truncf %309 : vector<8x128xf32> to vector<8x128xbf16>
    %c0_103 = arith.constant 0 : index
    %c0_104 = arith.constant 0 : index
    %340 = vector.load %arg7[%c0_103, %c0_104] : memref<128x512xbf16, #tpu.memory_space<vmem>>, vector<128x512xbf16>
    %cst_105 = arith.constant dense<0.000000e+00> : vector<8x512xf32>
    %341 = tpu.matmul %339, %340, %cst_105 {dimension_numbers = #tpu.dot_dimension_numbers<[1], [0], [0], [1], [0, 0, 1, 1], [], []>} : vector<8x128xbf16>, vector<128x512xbf16>, vector<8x512xf32> -> vector<8x512xf32>
    %342 = arith.addf %338, %341 : vector<8x512xf32>
    %343 = arith.addf %342, %10 : vector<8x512xf32>
    %344 = vector.extract_strided_slice %343 {offsets = [0, 0], sizes = [8, 384], strides = [1, 1]} : vector<8x512xf32> to vector<8x384xf32>
    %345 = arith.negf %344 : vector<8x384xf32>
    %346 = math.exp %345 : vector<8x384xf32>
    %cst_106 = arith.constant 1.000000e+00 : f32
    %347 = vector.broadcast %cst_106 : f32 to vector<8x384xf32>
    %348 = arith.addf %347, %346 : vector<8x384xf32>
    %349 = arith.divf %347, %348 : vector<8x384xf32>
    %350 = vector.extract_strided_slice %343 {offsets = [0, 384], sizes = [8, 128], strides = [1, 1]} : vector<8x512xf32> to vector<8x128xf32>
    %351 = math.tanh %350 : vector<8x128xf32>
    %352 = vector.extract_strided_slice %349 {offsets = [0, 0], sizes = [8, 128], strides = [1, 1]} : vector<8x384xf32> to vector<8x128xf32>
    %353 = vector.extract_strided_slice %349 {offsets = [0, 128], sizes = [8, 128], strides = [1, 1]} : vector<8x384xf32> to vector<8x128xf32>
    %354 = vector.extract_strided_slice %349 {offsets = [0, 256], sizes = [8, 128], strides = [1, 1]} : vector<8x384xf32> to vector<8x128xf32>
    %355 = arith.mulf %353, %307 : vector<8x128xf32>
    %356 = arith.mulf %352, %351 : vector<8x128xf32>
    %357 = arith.addf %355, %356 : vector<8x128xf32>
    %358 = math.tanh %357 : vector<8x128xf32>
    %359 = arith.mulf %354, %358 : vector<8x128xf32>
    %360 = arith.index_cast %313 : i32 to index
    %c0_107 = arith.constant 0 : index
    %361 = vector.load %arg12[%360, %c0_107] : memref<64x128xf32, #tpu.memory_space<vmem>>, vector<8x128xf32>
    tpu.vector_store %arg12[%360, %c0_107], %359 {strides = array<i32>} : memref<64x128xf32, #tpu.memory_space<vmem>>, vector<8x128xf32>,
    %c7_i32 = arith.constant 7 : i32
    %c8_i32_108 = arith.constant 8 : i32
    %362 = arith.muli %c7_i32, %c8_i32_108 : i32
    %363 = tpu.assume_multiple %362, 8 : i32
    %364 = arith.index_cast %363 : i32 to index
    %c0_109 = arith.constant 0 : index
    %365 = vector.load %arg11[%364, %c0_109] : memref<64x512xf32, #tpu.memory_space<vmem>>, vector<8x512xf32>
    %366 = arith.truncf %335 : vector<8x128xf32> to vector<8x128xbf16>
    %c0_110 = arith.constant 0 : index
    %c0_111 = arith.constant 0 : index
    %367 = vector.load %arg4[%c0_110, %c0_111] : memref<128x512xbf16, #tpu.memory_space<vmem>>, vector<128x512xbf16>
    %cst_112 = arith.constant dense<0.000000e+00> : vector<8x512xf32>
    %368 = tpu.matmul %366, %367, %cst_112 {dimension_numbers = #tpu.dot_dimension_numbers<[1], [0], [0], [1], [0, 0, 1, 1], [], []>} : vector<8x128xbf16>, vector<128x512xbf16>, vector<8x512xf32> -> vector<8x512xf32>
    %369 = arith.addf %365, %368 : vector<8x512xf32>
    %370 = vector.extract_strided_slice %369 {offsets = [0, 0], sizes = [8, 384], strides = [1, 1]} : vector<8x512xf32> to vector<8x384xf32>
    %371 = arith.negf %370 : vector<8x384xf32>
    %372 = math.exp %371 : vector<8x384xf32>
    %cst_113 = arith.constant 1.000000e+00 : f32
    %373 = vector.broadcast %cst_113 : f32 to vector<8x384xf32>
    %374 = arith.addf %373, %372 : vector<8x384xf32>
    %375 = arith.divf %373, %374 : vector<8x384xf32>
    %376 = vector.extract_strided_slice %369 {offsets = [0, 384], sizes = [8, 128], strides = [1, 1]} : vector<8x512xf32> to vector<8x128xf32>
    %377 = math.tanh %376 : vector<8x128xf32>
    %378 = vector.extract_strided_slice %375 {offsets = [0, 0], sizes = [8, 128], strides = [1, 1]} : vector<8x384xf32> to vector<8x128xf32>
    %379 = vector.extract_strided_slice %375 {offsets = [0, 128], sizes = [8, 128], strides = [1, 1]} : vector<8x384xf32> to vector<8x128xf32>
    %380 = vector.extract_strided_slice %375 {offsets = [0, 256], sizes = [8, 128], strides = [1, 1]} : vector<8x384xf32> to vector<8x128xf32>
    %381 = arith.mulf %379, %333 : vector<8x128xf32>
    %382 = arith.mulf %378, %377 : vector<8x128xf32>
    %383 = arith.addf %381, %382 : vector<8x128xf32>
    %384 = math.tanh %383 : vector<8x128xf32>
    %385 = arith.mulf %380, %384 : vector<8x128xf32>
    %386 = arith.truncf %385 : vector<8x128xf32> to vector<8x128xbf16>
    %c0_114 = arith.constant 0 : index
    %c0_115 = arith.constant 0 : index
    %387 = vector.load %arg5[%c0_114, %c0_115] : memref<128x512xbf16, #tpu.memory_space<vmem>>, vector<128x512xbf16>
    %cst_116 = arith.constant dense<0.000000e+00> : vector<8x512xf32>
    %388 = tpu.matmul %386, %387, %cst_116 {dimension_numbers = #tpu.dot_dimension_numbers<[1], [0], [0], [1], [0, 0, 1, 1], [], []>} : vector<8x128xbf16>, vector<128x512xbf16>, vector<8x512xf32> -> vector<8x512xf32>
    %389 = arith.truncf %359 : vector<8x128xf32> to vector<8x128xbf16>
    %c0_117 = arith.constant 0 : index
    %c0_118 = arith.constant 0 : index
    %390 = vector.load %arg7[%c0_117, %c0_118] : memref<128x512xbf16, #tpu.memory_space<vmem>>, vector<128x512xbf16>
    %cst_119 = arith.constant dense<0.000000e+00> : vector<8x512xf32>
    %391 = tpu.matmul %389, %390, %cst_119 {dimension_numbers = #tpu.dot_dimension_numbers<[1], [0], [0], [1], [0, 0, 1, 1], [], []>} : vector<8x128xbf16>, vector<128x512xbf16>, vector<8x512xf32> -> vector<8x512xf32>
    %392 = arith.addf %388, %391 : vector<8x512xf32>
    %393 = arith.addf %392, %10 : vector<8x512xf32>
    %394 = vector.extract_strided_slice %393 {offsets = [0, 0], sizes = [8, 384], strides = [1, 1]} : vector<8x512xf32> to vector<8x384xf32>
    %395 = arith.negf %394 : vector<8x384xf32>
    %396 = math.exp %395 : vector<8x384xf32>
    %cst_120 = arith.constant 1.000000e+00 : f32
    %397 = vector.broadcast %cst_120 : f32 to vector<8x384xf32>
    %398 = arith.addf %397, %396 : vector<8x384xf32>
    %399 = arith.divf %397, %398 : vector<8x384xf32>
    %400 = vector.extract_strided_slice %393 {offsets = [0, 384], sizes = [8, 128], strides = [1, 1]} : vector<8x512xf32> to vector<8x128xf32>
    %401 = math.tanh %400 : vector<8x128xf32>
    %402 = vector.extract_strided_slice %399 {offsets = [0, 0], sizes = [8, 128], strides = [1, 1]} : vector<8x384xf32> to vector<8x128xf32>
    %403 = vector.extract_strided_slice %399 {offsets = [0, 128], sizes = [8, 128], strides = [1, 1]} : vector<8x384xf32> to vector<8x128xf32>
    %404 = vector.extract_strided_slice %399 {offsets = [0, 256], sizes = [8, 128], strides = [1, 1]} : vector<8x384xf32> to vector<8x128xf32>
    %405 = arith.mulf %403, %357 : vector<8x128xf32>
    %406 = arith.mulf %402, %401 : vector<8x128xf32>
    %407 = arith.addf %405, %406 : vector<8x128xf32>
    %408 = math.tanh %407 : vector<8x128xf32>
    %409 = arith.mulf %404, %408 : vector<8x128xf32>
    %410 = arith.index_cast %363 : i32 to index
    %c0_121 = arith.constant 0 : index
    %411 = vector.load %arg12[%410, %c0_121] : memref<64x128xf32, #tpu.memory_space<vmem>>, vector<8x128xf32>
    tpu.vector_store %arg12[%410, %c0_121], %409 {strides = array<i32>} : memref<64x128xf32, #tpu.memory_space<vmem>>, vector<8x128xf32>,
    %c8_i32_122 = arith.constant 8 : i32
    %c0_123 = arith.constant 0 : index
    %c0_124 = arith.constant 0 : index
    %412 = vector.load %arg12[%c0_123, %c0_124] : memref<64x128xf32, #tpu.memory_space<vmem>>, vector<64x128xf32>
    %c0_125 = arith.constant 0 : index
    %c0_126 = arith.constant 0 : index
    %413 = vector.load %arg8[%c0_125, %c0_126] : memref<128x128xf32, #tpu.memory_space<vmem>>, vector<128x128xf32>
    %cst_127 = arith.constant dense<0.000000e+00> : vector<64x128xf32>
    %414 = tpu.matmul %412, %413, %cst_127 {dimension_numbers = #tpu.dot_dimension_numbers<[1], [0], [0], [1], [0, 0, 1, 1], [], []>} : vector<64x128xf32>, vector<128x128xf32>, vector<64x128xf32> -> vector<64x128xf32>
    %c0_128 = arith.constant 0 : index
    %c0_129 = arith.constant 0 : index
    %415 = vector.load %arg9[%c0_128, %c0_129] : memref<1x128xf32, #tpu.memory_space<vmem>>, vector<1x128xf32>
    %416 = vector.broadcast %415 : vector<1x128xf32> to vector<64x128xf32>
    %417 = arith.addf %414, %416 : vector<64x128xf32>
    %c0_130 = arith.constant 0 : index
    %c0_131 = arith.constant 0 : index
    %c0_132 = arith.constant 0 : index
    %418 = vector.load %arg10[%c0_130, %c0_131, %c0_132] : memref<1x64x128xf32, #tpu.memory_space<vmem>>, vector<1x64x128xf32>
    %419 = vector.shape_cast %418 : vector<1x64x128xf32> to vector<64x128xf32>
    %420 = vector.shape_cast %417 : vector<64x128xf32> to vector<1x64x128xf32>
    tpu.vector_store %arg10[%c0_130, %c0_131, %c0_132], %420 {strides = array<i32>} : memref<1x64x128xf32, #tpu.memory_space<vmem>>, vector<1x64x128xf32>,
    return
  }
  func.func @transform_0(%arg0: i32) -> (i32, i32, i32) {
    %c0_i32 = arith.constant 0 : i32
    %c0_i32_0 = arith.constant 0 : i32
    %c0_i32_1 = arith.constant 0 : i32
    return %arg0, %c0_i32, %c0_i32_0 : i32, i32, i32
  }
  func.func @transform_1(%arg0: i32) -> (i32, i32) {
    %c0_i32 = arith.constant 0 : i32
    %c0_i32_0 = arith.constant 0 : i32
    %c0_i32_1 = arith.constant 0 : i32
    return %c0_i32, %c0_i32_0 : i32, i32
  }
  func.func @transform_2(%arg0: i32) -> (i32, i32) {
    %c0_i32 = arith.constant 0 : i32
    %c0_i32_0 = arith.constant 0 : i32
    %c0_i32_1 = arith.constant 0 : i32
    return %c0_i32, %c0_i32_0 : i32, i32
  }
  func.func @transform_3(%arg0: i32) -> (i32, i32) {
    %c0_i32 = arith.constant 0 : i32
    %c0_i32_0 = arith.constant 0 : i32
    %c0_i32_1 = arith.constant 0 : i32
    return %c0_i32, %c0_i32_0 : i32, i32
  }
  func.func @transform_4(%arg0: i32) -> (i32, i32) {
    %c0_i32 = arith.constant 0 : i32
    %c0_i32_0 = arith.constant 0 : i32
    %c0_i32_1 = arith.constant 0 : i32
    return %c0_i32, %c0_i32_0 : i32, i32
  }
  func.func @transform_5(%arg0: i32) -> (i32, i32) {
    %c0_i32 = arith.constant 0 : i32
    %c0_i32_0 = arith.constant 0 : i32
    %c0_i32_1 = arith.constant 0 : i32
    return %c0_i32, %c0_i32_0 : i32, i32
  }
  func.func @transform_6(%arg0: i32) -> (i32, i32) {
    %c0_i32 = arith.constant 0 : i32
    %c0_i32_0 = arith.constant 0 : i32
    %c0_i32_1 = arith.constant 0 : i32
    return %c0_i32, %c0_i32_0 : i32, i32
  }
  func.func @transform_7(%arg0: i32) -> (i32, i32) {
    %c0_i32 = arith.constant 0 : i32
    %c0_i32_0 = arith.constant 0 : i32
    %c0_i32_1 = arith.constant 0 : i32
    return %c0_i32, %c0_i32_0 : i32, i32
  }
  func.func @transform_8(%arg0: i32) -> (i32, i32) {
    %c0_i32 = arith.constant 0 : i32
    %c0_i32_0 = arith.constant 0 : i32
    %c0_i32_1 = arith.constant 0 : i32
    return %c0_i32, %c0_i32_0 : i32, i32
  }
  func.func @transform_9(%arg0: i32) -> (i32, i32, i32) {
    %c0_i32 = arith.constant 0 : i32
    %c0_i32_0 = arith.constant 0 : i32
    %c0_i32_1 = arith.constant 0 : i32
    return %arg0, %c0_i32, %c0_i32_0 : i32, i32, i32
  }
}

</mosaic_0001>

<llo_original>
// kernel: rnn_original_fedavg_forward.1
$region0: #{rnn_original_fedavg_forward.1}
  #allocation0 [shape = 'u32[]', space=smem, size = 0x4, offset = 0x4, fixed_abs, tag = 'smem constant byte address 0x4 - core index']
  #allocation1 [shape = 'u32[144,128]{1,0:T(1,128)}', space=vmem, size = 0x12000, scoped, tag = 'internal scratch']
  #allocation2 [shape = 'f32[64,512]{1,0:T(8,128)}', space=vmem, size = 0x20000, scoped, tag = 'scratch operand']
  #allocation3 [shape = 'f32[64,128]{1,0:T(8,128)}', space=vmem, size = 0x8000, scoped, tag = 'scratch operand']
  %s0 = inlined_call_operand.vmem [shape: bf16[1,64,16], index: 0, kind: input, shape index: {}]
  %s1 = inlined_call_operand.vmem [shape: bf16[16,512], index: 1, kind: input, shape index: {}]
  %s2 = inlined_call_operand.vmem [shape: f32[1,512], index: 2, kind: input, shape index: {}]
  %s3 = inlined_call_operand.vmem [shape: bf16[128,512], index: 3, kind: input, shape index: {}]
  %s4 = inlined_call_operand.hbm [shape: bf16[128,512], index: 4, kind: input, shape index: {}]
  %s5 = inlined_call_operand.vmem [shape: f32[1,512], index: 5, kind: input, shape index: {}]
  %s6 = inlined_call_operand.hbm [shape: bf16[128,512], index: 6, kind: input, shape index: {}]
  %s7 = inlined_call_operand.hbm [shape: f32[128,128], index: 7, kind: input, shape index: {}]
  %s8 = inlined_call_operand.vmem [shape: f32[1,128], index: 8, kind: input, shape index: {}]
  %s9 = inlined_call_operand.vmem [shape: f32[1,64,128], index: 9, kind: output, shape index: {}]
  %s10 = sld [smem:[#allocation0]]
  $region58: #{rnn_original_fedavg_forward.1} parent=0
    _
  %s12 = ssub.s32 1, %s10
  %s13 = scalar_select 0, %s12, %s10
  $region1: #{rnn_original_fedavg_forward.1} parent=0
    #allocation4 [shape = 'u8[131072]{0}', space=vmem, size = 0x20000, scoped, tag = 'input window, operand 4, single buffered']
    #allocation5 [shape = 's32[1]{0}', space=sflag, size = 0x4, scoped, tag = 'scoped memory for rnn_original_fedavg_forward.1']
    #allocation6 [shape = 'u8[131072]{0}', space=vmem, size = 0x20000, scoped, tag = 'input window, operand 6, single buffered']
    #allocation7 [shape = 's32[1]{0}', space=sflag, size = 0x4, scoped, tag = 'scoped memory for rnn_original_fedavg_forward.1']
    #allocation8 [shape = 'u8[65536]{0}', space=vmem, size = 0x10000, scoped, tag = 'input window, operand 7, single buffered']
    %14 = vsyncpa [#allocation5], 0
    %15 = vsyncpa [#allocation7], 0
    // Predicated region
    $region2: #{rnn_original_fedavg_forward.1} parent=1 // pred_check
      _
    $region3: #{rnn_original_fedavg_forward.1} parent=1 // pred_check_branch
      %17 = sbr.rel (0) target = $region5
    $region4: #{rnn_original_fedavg_forward.1} parent=1 // pred_region
      _
    $region5: #{rnn_original_fedavg_forward.1} parent=1 // pred_fallthru
      _
    // Predicated region
    $region6: #{rnn_original_fedavg_forward.1} parent=1 // pred_check
      _
    $region7: #{rnn_original_fedavg_forward.1} parent=1 // pred_check_branch
      %19 = sbr.rel (0) target = $region9
    $region8: #{rnn_original_fedavg_forward.1} parent=1 // pred_region
      _
    $region9: #{rnn_original_fedavg_forward.1} parent=1 // pred_fallthru
      _
    // Predicated region
    $region10: #{rnn_original_fedavg_forward.1} parent=1 // pred_check
      _
    $region11: #{rnn_original_fedavg_forward.1} parent=1 // pred_check_branch
      %21 = sbr.rel (0) target = $region13
    $region12: #{rnn_original_fedavg_forward.1} parent=1 // pred_region
      _
    $region13: #{rnn_original_fedavg_forward.1} parent=1 // pred_fallthru
      _
    // Predicated region
    $region14: #{rnn_original_fedavg_forward.1} parent=1 // pred_check
      _
    $region15: #{rnn_original_fedavg_forward.1} parent=1 // pred_check_branch
      %23 = sbr.rel (0) target = $region17
    $region16: #{rnn_original_fedavg_forward.1} parent=1 // pred_region
      _
    $region17: #{rnn_original_fedavg_forward.1} parent=1 // pred_fallthru
      _
    // Predicated region
    $region18: #{rnn_original_fedavg_forward.1} parent=1 // pred_check
      _
    $region19: #{rnn_original_fedavg_forward.1} parent=1 // pred_check_branch
      %25 = sbr.rel (0) target = $region21
    $region20: #{rnn_original_fedavg_forward.1} parent=1 // pred_region
      %s27 = ssub.s32 4096, 4096
      %28 = vsyncadd [#allocation5], %s27
      %s29 = sshll.u32 [#allocation4], 4
      %s30 = int_to_ptr.vmem [resolvable:$true] %s29
      %35 = dma.hbm_to_vmem [thread:$0]  %s4, 4096, %s30, [#allocation5], 256, 256, 16
    $region21: #{rnn_original_fedavg_forward.1} parent=1 // pred_fallthru
      _
    // Predicated region
    $region22: #{rnn_original_fedavg_forward.1} parent=1 // pred_check
      _
    $region23: #{rnn_original_fedavg_forward.1} parent=1 // pred_check_branch
      %37 = sbr.rel (0) target = $region25
    $region24: #{rnn_original_fedavg_forward.1} parent=1 // pred_region
      _
    $region25: #{rnn_original_fedavg_forward.1} parent=1 // pred_fallthru
      _
    // Predicated region
    $region26: #{rnn_original_fedavg_forward.1} parent=1 // pred_check
      _
    $region27: #{rnn_original_fedavg_forward.1} parent=1 // pred_check_branch
      %39 = sbr.rel (0) target = $region29
    $region28: #{rnn_original_fedavg_forward.1} parent=1 // pred_region
      %s41 = ssub.s32 4096, 4096
      %42 = vsyncadd [#allocation7], %s41
      %s43 = sshll.u32 [#allocation6], 4
      %s44 = int_to_ptr.vmem [resolvable:$true] %s43
      %49 = dma.hbm_to_vmem [thread:$0]  %s6, 4096, %s44, [#allocation7], 256, 256, 16
    $region29: #{rnn_original_fedavg_forward.1} parent=1 // pred_fallthru
      _
    // Predicated region
    $region30: #{rnn_original_fedavg_forward.1} parent=1 // pred_check
      _
    $region31: #{rnn_original_fedavg_forward.1} parent=1 // pred_check_branch
      %51 = sbr.rel (0) target = $region33
    $region32: #{rnn_original_fedavg_forward.1} parent=1 // pred_region
      %s53 = ssub.s32 2048, 2048
      %54 = vsyncadd [#allocation7], %s53
      %s55 = sshll.u32 [#allocation8], 4
      %s56 = int_to_ptr.vmem [resolvable:$true] %s55
      %61 = dma.hbm_to_vmem [thread:$0]  %s7, 2048, %s56, [#allocation7], 128, 128, 8
    $region33: #{rnn_original_fedavg_forward.1} parent=1 // pred_fallthru
      _
    // Predicated region
    $region34: #{rnn_original_fedavg_forward.1} parent=1 // pred_check
      _
    $region35: #{rnn_original_fedavg_forward.1} parent=1 // pred_check_branch
      %63 = sbr.rel (0) target = $region37
    $region36: #{rnn_original_fedavg_forward.1} parent=1 // pred_region
      _
    $region37: #{rnn_original_fedavg_forward.1} parent=1 // pred_fallthru
      _
    // Predicated region
    $region38: #{rnn_original_fedavg_forward.1} parent=1 // pred_check
      _
    $region39: #{rnn_original_fedavg_forward.1} parent=1 // pred_check_branch
      %65 = sbr.rel (0) target = $region41
    $region40: #{rnn_original_fedavg_forward.1} parent=1 // pred_region
      %66 = dma.done [#allocation5], 4096
    $region41: #{rnn_original_fedavg_forward.1} parent=1 // pred_fallthru
      _
    // Predicated region
    $region42: #{rnn_original_fedavg_forward.1} parent=1 // pred_check
      _
    $region43: #{rnn_original_fedavg_forward.1} parent=1 // pred_check_branch
      %68 = sbr.rel (0) target = $region45
    $region44: #{rnn_original_fedavg_forward.1} parent=1 // pred_region
      %69 = dma.done [#allocation7], 4096
    $region45: #{rnn_original_fedavg_forward.1} parent=1 // pred_fallthru
      _
    // Predicated region
    $region46: #{rnn_original_fedavg_forward.1} parent=1 // pred_check
      _
    $region47: #{rnn_original_fedavg_forward.1} parent=1 // pred_check_branch
      %71 = sbr.rel (0) target = $region49
    $region48: #{rnn_original_fedavg_forward.1} parent=1 // pred_region
      %72 = dma.done [#allocation7], 2048
    $region49: #{rnn_original_fedavg_forward.1} parent=1 // pred_fallthru
      _
    %v74 = vld [vmem:[%s0] sm:$0xf]
    %v75 = vld [vmem:[%s0 + $0x4] sm:$0xf]
    %v76 = vld [vmem:[%s0 + $0x8] sm:$0xf]
    %v77 = vld [vmem:[%s0 + $0xc] sm:$0xf]
    %v78 = vld [vmem:[%s0 + $0x10] sm:$0xf]
    %v79 = vld [vmem:[%s0 + $0x14] sm:$0xf]
    %v80 = vld [vmem:[%s0 + $0x18] sm:$0xf]
    %v81 = vld [vmem:[%s0 + $0x1c] sm:$0xf]
    %v82 = vld [vmem:[%s1] sm:$0xff]
    %v83 = vld [vmem:[%s1 + $0x8] sm:$0xff]
    %v84 = vld [vmem:[%s1 + $0x10] sm:$0xff]
    %v85 = vld [vmem:[%s1 + $0x18] sm:$0xff]
    %v86 = vld [vmem:[%s2] sm:$0xf]
    %v88 = vlaneseq
    %v89 = vshrl.u32 %v88, 7
    %v90 = vsub.s32 0, %v89
    %v91 = vrot.slane %v86, %v90
    %v92 = vlaneseq
    %v93 = vshrl.u32 %v92, 7
    %v94 = vsub.s32 1, %v93
    %v95 = vrot.slane %v86, %v94
    %v96 = vlaneseq
    %v97 = vshrl.u32 %v96, 7
    %v98 = vsub.s32 2, %v97
    %v99 = vrot.slane %v86, %v98
    %v100 = vlaneseq
    %v101 = vshrl.u32 %v100, 7
    %v102 = vsub.s32 3, %v101
    %v103 = vrot.slane %v86, %v102
    %v116 = vunpack.c.l.b16 %v74
    %v117 = vunpack.c.l.b16 %v75
    %v118 = vunpack.c.l.b16 %v76
    %v119 = vunpack.c.l.b16 %v77
    %v120 = vunpack.c.l.b16 %v78
    %v121 = vunpack.c.l.b16 %v79
    %v122 = vunpack.c.l.b16 %v80
    %v123 = vunpack.c.l.b16 %v81
    %v124 = vpack.c.b16 %v117, %v116
    %v125 = vpack.c.b16 %v119, %v118
    %v126 = vpack.c.b16 %v121, %v120
    %v127 = vpack.c.b16 %v123, %v122
    %v132 = vunpack.c.l.b16 %v82
    %v133 = vunpack.c.h.b16 %v82
    %v134 = vunpack.c.l.b16 %v83
    %v135 = vunpack.c.h.b16 %v83
    %v136 = vunpack.c.l.b16 %v84
    %v137 = vunpack.c.h.b16 %v84
    %v138 = vunpack.c.l.b16 %v85
    %v139 = vunpack.c.h.b16 %v85
    %v140 = vpack.c.b16 %v136, %v132
    %v141 = vpack.c.b16 %v137, %v133
    %v142 = vpack.c.b16 %v138, %v134
    %v143 = vpack.c.b16 %v139, %v135
    %vm148 = vcmask 130048
    %v150 = vsel %vm148, %v124, 0
    %v153 = vsel %vm148, %v125, 0
    %v156 = vsel %vm148, %v126, 0
    %v159 = vsel %vm148, %v127, 0
    %161 = vmatprep.subr.bf16.mxu0 0
    %162 = vmatpush1.bf16.msra.mxu0 0
    %163 = vmatprep.subr.bf16.mxu0 0
    %164 = vmatpush1.bf16.msra.mxu0 0
    %165 = vmatprep.subr.bf16.mxu0 0
    %166 = vmatpush1.bf16.msra.mxu0 0
    %167 = vmatprep.subr.bf16.mxu0 0
    %168 = vmatpush1.bf16.msra.mxu0 0
    %169 = vmatprep.subr.bf16.mxu0 0
    %170 = vmatpush1.bf16.msra.mxu0 0
    %171 = vmatprep.subr.bf16.mxu0 0
    %172 = vmatpush1.bf16.msra.mxu0 0
    %173 = vmatprep.subr.bf16.mxu0 0
    %174 = vmatpush1.bf16.msra.mxu0 0
    %175 = vmatprep.subr.bf16.mxu0 %v141
    %176 = vmatpush1.bf16.msra.mxu0 %v140
    %177 = vmatprep.subr.bf16.mxu0 0
    %178 = vmatpush2.bf16.msra.mxu0 0
    %179 = vmatprep.subr.bf16.mxu0 0
    %180 = vmatpush2.bf16.msra.mxu0 0
    %181 = vmatprep.subr.bf16.mxu0 0
    %182 = vmatpush2.bf16.msra.mxu0 0
    %183 = vmatprep.subr.bf16.mxu0 0
    %184 = vmatpush2.bf16.msra.mxu0 0
    %185 = vmatprep.subr.bf16.mxu0 0
    %186 = vmatpush2.bf16.msra.mxu0 0
    %187 = vmatprep.subr.bf16.mxu0 0
    %188 = vmatpush2.bf16.msra.mxu0 0
    %189 = vmatprep.subr.bf16.mxu0 0
    %190 = vmatpush2.bf16.msra.mxu0 0
    %191 = vmatprep.subr.bf16.mxu0 0
    %192 = vmatpush2.bf16.msra.mxu0 0
    %193 = vmatprep.mubr.bf16.mxu0 0
    %194 = vmatmul.mubr.bf16.gmra.mxu0 %v150
    %v195 = vpop.f32.mrf.mxu0
    %v196 = vadd.f32 %v91, %v195
    %v197 = vpop.f32.mrf.mxu0
    %v198 = vadd.f32 %v95, %v197
    %v199 = vpop.f32.mrf.mxu0
    %v200 = vadd.f32 %v91, %v199
    %v201 = vpop.f32.mrf.mxu0
    %v202 = vadd.f32 %v95, %v201
    %203 = vmatprep.mubr.bf16.mxu0 0
    %204 = vmatmul.mubr.bf16.gmra.mxu0 %v153
    %v205 = vpop.f32.mrf.mxu0
    %v206 = vadd.f32 %v91, %v205
    %v207 = vpop.f32.mrf.mxu0
    %v208 = vadd.f32 %v95, %v207
    %v209 = vpop.f32.mrf.mxu0
    %v210 = vadd.f32 %v91, %v209
    %v211 = vpop.f32.mrf.mxu0
    %v212 = vadd.f32 %v95, %v211
    %213 = vmatprep.mubr.bf16.mxu0 0
    %214 = vmatmul.mubr.bf16.gmra.mxu0 %v156
    %v215 = vpop.f32.mrf.mxu0
    %v216 = vadd.f32 %v91, %v215
    %v217 = vpop.f32.mrf.mxu0
    %v218 = vadd.f32 %v95, %v217
    %v219 = vpop.f32.mrf.mxu0
    %v220 = vadd.f32 %v91, %v219
    %v221 = vpop.f32.mrf.mxu0
    %v222 = vadd.f32 %v95, %v221
    %223 = vmatprep.mubr.bf16.mxu0 0
    %224 = vmatmul.mubr.bf16.gmra.mxu0 %v159
    %v225 = vpop.f32.mrf.mxu0
    %v226 = vadd.f32 %v91, %v225
    %v227 = vpop.f32.mrf.mxu0
    %v228 = vadd.f32 %v95, %v227
    %v229 = vpop.f32.mrf.mxu0
    %v230 = vadd.f32 %v91, %v229
    %v231 = vpop.f32.mrf.mxu0
    %v232 = vadd.f32 %v95, %v231
    %233 = vdwg.mxu0
    %234 = vmatprep.subr.bf16.mxu0 0
    %235 = vmatpush1.bf16.msra.mxu0 0
    %236 = vmatprep.subr.bf16.mxu0 0
    %237 = vmatpush1.bf16.msra.mxu0 0
    %238 = vmatprep.subr.bf16.mxu0 0
    %239 = vmatpush1.bf16.msra.mxu0 0
    %240 = vmatprep.subr.bf16.mxu0 0
    %241 = vmatpush1.bf16.msra.mxu0 0
    %242 = vmatprep.subr.bf16.mxu0 0
    %243 = vmatpush1.bf16.msra.mxu0 0
    %244 = vmatprep.subr.bf16.mxu0 0
    %245 = vmatpush1.bf16.msra.mxu0 0
    %246 = vmatprep.subr.bf16.mxu0 0
    %247 = vmatpush1.bf16.msra.mxu0 0
    %248 = vmatprep.subr.bf16.mxu0 %v143
    %249 = vmatpush1.bf16.msra.mxu0 %v142
    %250 = vmatprep.subr.bf16.mxu0 0
    %251 = vmatpush2.bf16.msra.mxu0 0
    %252 = vmatprep.subr.bf16.mxu0 0
    %253 = vmatpush2.bf16.msra.mxu0 0
    %254 = vmatprep.subr.bf16.mxu0 0
    %255 = vmatpush2.bf16.msra.mxu0 0
    %256 = vmatprep.subr.bf16.mxu0 0
    %257 = vmatpush2.bf16.msra.mxu0 0
    %258 = vmatprep.subr.bf16.mxu0 0
    %259 = vmatpush2.bf16.msra.mxu0 0
    %260 = vmatprep.subr.bf16.mxu0 0
    %261 = vmatpush2.bf16.msra.mxu0 0
    %262 = vmatprep.subr.bf16.mxu0 0
    %263 = vmatpush2.bf16.msra.mxu0 0
    %264 = vmatprep.subr.bf16.mxu0 0
    %265 = vmatpush2.bf16.msra.mxu0 0
    %266 = vmatprep.mubr.bf16.mxu0 0
    %267 = vmatmul.mubr.bf16.gmra.mxu0 %v150
    %v268 = vpop.f32.mrf.mxu0
    %v269 = vadd.f32 %v99, %v268
    %v270 = vpop.f32.mrf.mxu0
    %v271 = vadd.f32 %v103, %v270
    %v272 = vpop.f32.mrf.mxu0
    %v273 = vadd.f32 %v99, %v272
    %v274 = vpop.f32.mrf.mxu0
    %v275 = vadd.f32 %v103, %v274
    %276 = vmatprep.mubr.bf16.mxu0 0
    %277 = vmatmul.mubr.bf16.gmra.mxu0 %v153
    %v278 = vpop.f32.mrf.mxu0
    %v279 = vadd.f32 %v99, %v278
    %v280 = vpop.f32.mrf.mxu0
    %v281 = vadd.f32 %v103, %v280
    %v282 = vpop.f32.mrf.mxu0
    %v283 = vadd.f32 %v99, %v282
    %v284 = vpop.f32.mrf.mxu0
    %v285 = vadd.f32 %v103, %v284
    %286 = vmatprep.mubr.bf16.mxu0 0
    %287 = vmatmul.mubr.bf16.gmra.mxu0 %v156
    %v288 = vpop.f32.mrf.mxu0
    %v289 = vadd.f32 %v99, %v288
    %v290 = vpop.f32.mrf.mxu0
    %v291 = vadd.f32 %v103, %v290
    %v292 = vpop.f32.mrf.mxu0
    %v293 = vadd.f32 %v99, %v292
    %v294 = vpop.f32.mrf.mxu0
    %v295 = vadd.f32 %v103, %v294
    %296 = vmatprep.mubr.bf16.mxu0 0
    %297 = vmatmul.mubr.bf16.gmra.mxu0 %v159
    %v298 = vpop.f32.mrf.mxu0
    %v299 = vadd.f32 %v99, %v298
    %v300 = vpop.f32.mrf.mxu0
    %v301 = vadd.f32 %v103, %v300
    %v302 = vpop.f32.mrf.mxu0
    %v303 = vadd.f32 %v99, %v302
    %v304 = vpop.f32.mrf.mxu0
    %v305 = vadd.f32 %v103, %v304
    %306 = vdwg.mxu0
    %307 = vst [vmem:[#allocation2] sm:$0xff] %v196
    %308 = vst [vmem:[#allocation2 + $0x8] sm:$0xff] %v198
    %309 = vst [vmem:[#allocation2 + $0x10] sm:$0xff] %v269
    %310 = vst [vmem:[#allocation2 + $0x18] sm:$0xff] %v271
    %311 = vst [vmem:[#allocation2 + $0x20] sm:$0xff] %v200
    %312 = vst [vmem:[#allocation2 + $0x28] sm:$0xff] %v202
    %313 = vst [vmem:[#allocation2 + $0x30] sm:$0xff] %v273
    %314 = vst [vmem:[#allocation2 + $0x38] sm:$0xff] %v275
    %315 = vst [vmem:[#allocation2 + $0x40] sm:$0xff] %v206
    %316 = vst [vmem:[#allocation2 + $0x48] sm:$0xff] %v208
    %317 = vst [vmem:[#allocation2 + $0x50] sm:$0xff] %v279
    %318 = vst [vmem:[#allocation2 + $0x58] sm:$0xff] %v281
    %319 = vst [vmem:[#allocation2 + $0x60] sm:$0xff] %v210
    %320 = vst [vmem:[#allocation2 + $0x68] sm:$0xff] %v212
    %321 = vst [vmem:[#allocation2 + $0x70] sm:$0xff] %v283
    %322 = vst [vmem:[#allocation2 + $0x78] sm:$0xff] %v285
    %323 = vst [vmem:[#allocation2 + $0x80] sm:$0xff] %v216
    %324 = vst [vmem:[#allocation2 + $0x88] sm:$0xff] %v218
    %325 = vst [vmem:[#allocation2 + $0x90] sm:$0xff] %v289
    %326 = vst [vmem:[#allocation2 + $0x98] sm:$0xff] %v291
    %327 = vst [vmem:[#allocation2 + $0xa0] sm:$0xff] %v220
    %328 = vst [vmem:[#allocation2 + $0xa8] sm:$0xff] %v222
    %329 = vst [vmem:[#allocation2 + $0xb0] sm:$0xff] %v293
    %330 = vst [vmem:[#allocation2 + $0xb8] sm:$0xff] %v295
    %331 = vst [vmem:[#allocation2 + $0xc0] sm:$0xff] %v226
    %332 = vst [vmem:[#allocation2 + $0xc8] sm:$0xff] %v228
    %333 = vst [vmem:[#allocation2 + $0xd0] sm:$0xff] %v299
    %334 = vst [vmem:[#allocation2 + $0xd8] sm:$0xff] %v301
    %335 = vst [vmem:[#allocation2 + $0xe0] sm:$0xff] %v230
    %336 = vst [vmem:[#allocation2 + $0xe8] sm:$0xff] %v232
    %337 = vst [vmem:[#allocation2 + $0xf0] sm:$0xff] %v303
    %338 = vst [vmem:[#allocation2 + $0xf8] sm:$0xff] %v305
    %v339 = vld [vmem:[%s5] sm:$0xf]
    %v341 = vlaneseq
    %v342 = vshrl.u32 %v341, 7
    %v343 = vsub.s32 0, %v342
    %v344 = vrot.slane %v339, %v343
    %v345 = vlaneseq
    %v346 = vshrl.u32 %v345, 7
    %v347 = vsub.s32 1, %v346
    %v348 = vrot.slane %v339, %v347
    %v349 = vlaneseq
    %v350 = vshrl.u32 %v349, 7
    %v351 = vsub.s32 2, %v350
    %v352 = vrot.slane %v339, %v351
    %v353 = vlaneseq
    %v354 = vshrl.u32 %v353, 7
    %v355 = vsub.s32 3, %v354
    %v356 = vrot.slane %v339, %v355
    %s361 = smul.u32 0, 4
    %s362 = smul.addr %s361, 8
    %s363 = scalar_lea.vmem [#allocation2], %s362
    %v364 = vld [vmem:[%s363] sm:$0xff]
    %v365 = vld [vmem:[%s363 + $0x8] sm:$0xff]
    %v366 = vld [vmem:[%s363 + $0x10] sm:$0xff]
    %v367 = vld [vmem:[%s363 + $0x18] sm:$0xff]
    %v368 = vld [vmem:[%s3] sm:$0xff]
    %v369 = vld [vmem:[%s3 + $0x8] sm:$0xff]
    %v370 = vld [vmem:[%s3 + $0x10] sm:$0xff]
    %v371 = vld [vmem:[%s3 + $0x18] sm:$0xff]
    %v372 = vld [vmem:[%s3 + $0x20] sm:$0xff]
    %v373 = vld [vmem:[%s3 + $0x28] sm:$0xff]
    %v374 = vld [vmem:[%s3 + $0x30] sm:$0xff]
    %v375 = vld [vmem:[%s3 + $0x38] sm:$0xff]
    %v376 = vld [vmem:[%s3 + $0x40] sm:$0xff]
    %v377 = vld [vmem:[%s3 + $0x48] sm:$0xff]
    %v378 = vld [vmem:[%s3 + $0x50] sm:$0xff]
    %v379 = vld [vmem:[%s3 + $0x58] sm:$0xff]
    %v380 = vld [vmem:[%s3 + $0x60] sm:$0xff]
    %v381 = vld [vmem:[%s3 + $0x68] sm:$0xff]
    %v382 = vld [vmem:[%s3 + $0x70] sm:$0xff]
    %v383 = vld [vmem:[%s3 + $0x78] sm:$0xff]
    %v384 = vld [vmem:[%s3 + $0x80] sm:$0xff]
    %v385 = vld [vmem:[%s3 + $0x88] sm:$0xff]
    %v386 = vld [vmem:[%s3 + $0x90] sm:$0xff]
    %v387 = vld [vmem:[%s3 + $0x98] sm:$0xff]
    %v388 = vld [vmem:[%s3 + $0xa0] sm:$0xff]
    %v389 = vld [vmem:[%s3 + $0xa8] sm:$0xff]
    %v390 = vld [vmem:[%s3 + $0xb0] sm:$0xff]
    %v391 = vld [vmem:[%s3 + $0xb8] sm:$0xff]
    %v392 = vld [vmem:[%s3 + $0xc0] sm:$0xff]
    %v393 = vld [vmem:[%s3 + $0xc8] sm:$0xff]
    %v394 = vld [vmem:[%s3 + $0xd0] sm:$0xff]
    %v395 = vld [vmem:[%s3 + $0xd8] sm:$0xff]
    %v396 = vld [vmem:[%s3 + $0xe0] sm:$0xff]
    %v397 = vld [vmem:[%s3 + $0xe8] sm:$0xff]
    %v398 = vld [vmem:[%s3 + $0xf0] sm:$0xff]
    %v399 = vld [vmem:[%s3 + $0xf8] sm:$0xff]
    %v432 = vunpack.c.l.b16 %v368
    %v433 = vunpack.c.h.b16 %v368
    %v434 = vunpack.c.l.b16 %v369
    %v435 = vunpack.c.h.b16 %v369
    %v436 = vunpack.c.l.b16 %v370
    %v437 = vunpack.c.h.b16 %v370
    %v438 = vunpack.c.l.b16 %v371
    %v439 = vunpack.c.h.b16 %v371
    %v440 = vunpack.c.l.b16 %v372
    %v441 = vunpack.c.h.b16 %v372
    %v442 = vunpack.c.l.b16 %v373
    %v443 = vunpack.c.h.b16 %v373
    %v444 = vunpack.c.l.b16 %v374
    %v445 = vunpack.c.h.b16 %v374
    %v446 = vunpack.c.l.b16 %v375
    %v447 = vunpack.c.h.b16 %v375
    %v448 = vunpack.c.l.b16 %v376
    %v449 = vunpack.c.h.b16 %v376
    %v450 = vunpack.c.l.b16 %v377
    %v451 = vunpack.c.h.b16 %v377
    %v452 = vunpack.c.l.b16 %v378
    %v453 = vunpack.c.h.b16 %v378
    %v454 = vunpack.c.l.b16 %v379
    %v455 = vunpack.c.h.b16 %v379
    %v456 = vunpack.c.l.b16 %v380
    %v457 = vunpack.c.h.b16 %v380
    %v458 = vunpack.c.l.b16 %v381
    %v459 = vunpack.c.h.b16 %v381
    %v460 = vunpack.c.l.b16 %v382
    %v461 = vunpack.c.h.b16 %v382
    %v462 = vunpack.c.l.b16 %v383
    %v463 = vunpack.c.h.b16 %v383
    %v464 = vunpack.c.l.b16 %v384
    %v465 = vunpack.c.h.b16 %v384
    %v466 = vunpack.c.l.b16 %v385
    %v467 = vunpack.c.h.b16 %v385
    %v468 = vunpack.c.l.b16 %v386
    %v469 = vunpack.c.h.b16 %v386
    %v470 = vunpack.c.l.b16 %v387
    %v471 = vunpack.c.h.b16 %v387
    %v472 = vunpack.c.l.b16 %v388
    %v473 = vunpack.c.h.b16 %v388
    %v474 = vunpack.c.l.b16 %v389
    %v475 = vunpack.c.h.b16 %v389
    %v476 = vunpack.c.l.b16 %v390
    %v477 = vunpack.c.h.b16 %v390
    %v478 = vunpack.c.l.b16 %v391
    %v479 = vunpack.c.h.b16 %v391
    %v480 = vunpack.c.l.b16 %v392
    %v481 = vunpack.c.h.b16 %v392
    %v482 = vunpack.c.l.b16 %v393
    %v483 = vunpack.c.h.b16 %v393
    %v484 = vunpack.c.l.b16 %v394
    %v485 = vunpack.c.h.b16 %v394
    %v486 = vunpack.c.l.b16 %v395
    %v487 = vunpack.c.h.b16 %v395
    %v488 = vunpack.c.l.b16 %v396
    %v489 = vunpack.c.h.b16 %v396
    %v490 = vunpack.c.l.b16 %v397
    %v491 = vunpack.c.h.b16 %v397
    %v492 = vunpack.c.l.b16 %v398
    %v493 = vunpack.c.h.b16 %v398
    %v494 = vunpack.c.l.b16 %v399
    %v495 = vunpack.c.h.b16 %v399
    %v496 = vpack.c.b16 %v436, %v432
    %v497 = vpack.c.b16 %v437, %v433
    %v498 = vpack.c.b16 %v438, %v434
    %v499 = vpack.c.b16 %v439, %v435
    %v500 = vpack.c.b16 %v444, %v440
    %v501 = vpack.c.b16 %v445, %v441
    %v502 = vpack.c.b16 %v446, %v442
    %v503 = vpack.c.b16 %v447, %v443
    %v504 = vpack.c.b16 %v452, %v448
    %v505 = vpack.c.b16 %v453, %v449
    %v506 = vpack.c.b16 %v454, %v450
    %v507 = vpack.c.b16 %v455, %v451
    %v508 = vpack.c.b16 %v460, %v456
    %v509 = vpack.c.b16 %v461, %v457
    %v510 = vpack.c.b16 %v462, %v458
    %v511 = vpack.c.b16 %v463, %v459
    %v512 = vpack.c.b16 %v468, %v464
    %v513 = vpack.c.b16 %v469, %v465
    %v514 = vpack.c.b16 %v470, %v466
    %v515 = vpack.c.b16 %v471, %v467
    %v516 = vpack.c.b16 %v476, %v472
    %v517 = vpack.c.b16 %v477, %v473
    %v518 = vpack.c.b16 %v478, %v474
    %v519 = vpack.c.b16 %v479, %v475
    %v520 = vpack.c.b16 %v484, %v480
    %v521 = vpack.c.b16 %v485, %v481
    %v522 = vpack.c.b16 %v486, %v482
    %v523 = vpack.c.b16 %v487, %v483
    %v524 = vpack.c.b16 %v492, %v488
    %v525 = vpack.c.b16 %v493, %v489
    %v526 = vpack.c.b16 %v494, %v490
    %v527 = vpack.c.b16 %v495, %v491
    %560 = vmatprep.subr.bf16.mxu0 %v525
    %561 = vmatpush1.bf16.msra.mxu0 %v524
    %562 = vmatprep.subr.bf16.mxu0 %v521
    %563 = vmatpush1.bf16.msra.mxu0 %v520
    %564 = vmatprep.subr.bf16.mxu0 %v517
    %565 = vmatpush1.bf16.msra.mxu0 %v516
    %566 = vmatprep.subr.bf16.mxu0 %v513
    %567 = vmatpush1.bf16.msra.mxu0 %v512
    %568 = vmatprep.subr.bf16.mxu0 %v509
    %569 = vmatpush1.bf16.msra.mxu0 %v508
    %570 = vmatprep.subr.bf16.mxu0 %v505
    %571 = vmatpush1.bf16.msra.mxu0 %v504
    %572 = vmatprep.subr.bf16.mxu0 %v501
    %573 = vmatpush1.bf16.msra.mxu0 %v500
    %574 = vmatprep.subr.bf16.mxu0 %v497
    %575 = vmatpush1.bf16.msra.mxu0 %v496
    %576 = vmatprep.subr.bf16.mxu0 0
    %577 = vmatpush2.bf16.msra.mxu0 0
    %578 = vmatprep.subr.bf16.mxu0 0
    %579 = vmatpush2.bf16.msra.mxu0 0
    %580 = vmatprep.subr.bf16.mxu0 0
    %581 = vmatpush2.bf16.msra.mxu0 0
    %582 = vmatprep.subr.bf16.mxu0 0
    %583 = vmatpush2.bf16.msra.mxu0 0
    %584 = vmatprep.subr.bf16.mxu0 0
    %585 = vmatpush2.bf16.msra.mxu0 0
    %586 = vmatprep.subr.bf16.mxu0 0
    %587 = vmatpush2.bf16.msra.mxu0 0
    %588 = vmatprep.subr.bf16.mxu0 0
    %589 = vmatpush2.bf16.msra.mxu0 0
    %590 = vmatprep.subr.bf16.mxu0 0
    %591 = vmatpush2.bf16.msra.mxu0 0
    %592 = vmatprep.mubr.bf16.mxu0 0
    %593 = vmatmul.mubr.bf16.gmra.mxu0 0
    %v594 = vpop.f32.mrf.mxu0
    %v595 = vadd.f32 0.0, %v594
    %v596 = vpop.f32.mrf.mxu0
    %v597 = vadd.f32 0.0, %v596
    %v598 = vpop.f32.mrf.mxu0
    %v599 = vpop.f32.mrf.mxu0
    %600 = vdwg.mxu0
    %601 = vmatprep.subr.bf16.mxu0 %v527
    %602 = vmatpush1.bf16.msra.mxu0 %v526
    %603 = vmatprep.subr.bf16.mxu0 %v523
    %604 = vmatpush1.bf16.msra.mxu0 %v522
    %605 = vmatprep.subr.bf16.mxu0 %v519
    %606 = vmatpush1.bf16.msra.mxu0 %v518
    %607 = vmatprep.subr.bf16.mxu0 %v515
    %608 = vmatpush1.bf16.msra.mxu0 %v514
    %609 = vmatprep.subr.bf16.mxu0 %v511
    %610 = vmatpush1.bf16.msra.mxu0 %v510
    %611 = vmatprep.subr.bf16.mxu0 %v507
    %612 = vmatpush1.bf16.msra.mxu0 %v506
    %613 = vmatprep.subr.bf16.mxu0 %v503
    %614 = vmatpush1.bf16.msra.mxu0 %v502
    %615 = vmatprep.subr.bf16.mxu0 %v499
    %616 = vmatpush1.bf16.msra.mxu0 %v498
    %617 = vmatprep.subr.bf16.mxu0 0
    %618 = vmatpush2.bf16.msra.mxu0 0
    %619 = vmatprep.subr.bf16.mxu0 0
    %620 = vmatpush2.bf16.msra.mxu0 0
    %621 = vmatprep.subr.bf16.mxu0 0
    %622 = vmatpush2.bf16.msra.mxu0 0
    %623 = vmatprep.subr.bf16.mxu0 0
    %624 = vmatpush2.bf16.msra.mxu0 0
    %625 = vmatprep.subr.bf16.mxu0 0
    %626 = vmatpush2.bf16.msra.mxu0 0
    %627 = vmatprep.subr.bf16.mxu0 0
    %628 = vmatpush2.bf16.msra.mxu0 0
    %629 = vmatprep.subr.bf16.mxu0 0
    %630 = vmatpush2.bf16.msra.mxu0 0
    %631 = vmatprep.subr.bf16.mxu0 0
    %632 = vmatpush2.bf16.msra.mxu0 0
    %633 = vmatprep.mubr.bf16.mxu0 0
    %634 = vmatmul.mubr.bf16.gmra.mxu0 0
    %v635 = vpop.f32.mrf.mxu0
    %v636 = vadd.f32 0.0, %v635
    %v637 = vpop.f32.mrf.mxu0
    %v638 = vadd.f32 0.0, %v637
    %v639 = vpop.f32.mrf.mxu0
    %v640 = vpop.f32.mrf.mxu0
    %641 = vdwg.mxu0
    %v642 = vadd.f32 %v364, %v595
    %v643 = vadd.f32 %v365, %v597
    %v644 = vadd.f32 %v366, %v636
    %v645 = vadd.f32 %v367, %v638
    %v646 = vxor.u32 %v642, 2147483648
    %v647 = vxor.u32 %v643, 2147483648
    %v648 = vxor.u32 %v644, 2147483648
    %v649 = vmul.f32 %v646, 1.442695
    %v650 = vpow.pop %v649
    %v651 = vmul.f32 %v647, 1.442695
    %v652 = vpow.pop %v651
    %v653 = vmul.f32 %v648, 1.442695
    %v654 = vpow.pop %v653
    %v655 = vadd.f32 %v650, 1.0
    %v656 = vadd.f32 %v652, 1.0
    %v657 = vadd.f32 %v654, 1.0
    %v658 = vrcp.pop %v655
    %v659 = vmul.f32 1.0, %v658
    %v660 = vrcp.pop %v656
    %v661 = vmul.f32 1.0, %v660
    %v662 = vrcp.pop %v657
    %v663 = vmul.f32 1.0, %v662
    %v664 = vtanh.pop %v645
    %v665 = vmul.f32 %v661, 0.0
    %v666 = vmul.f32 %v659, %v664
    %v667 = vadd.f32 %v665, %v666
    %v668 = vtanh.pop %v667
    %v669 = vmul.f32 %v663, %v668
    %v670 = vpack.c.bf16 %v669, %v669
    %v671 = vld [vmem:[#allocation4] sm:$0xff]
    %v672 = vld [vmem:[#allocation4 + $0x8] sm:$0xff]
    %v673 = vld [vmem:[#allocation4 + $0x10] sm:$0xff]
    %v674 = vld [vmem:[#allocation4 + $0x18] sm:$0xff]
    %v675 = vld [vmem:[#allocation4 + $0x20] sm:$0xff]
    %v676 = vld [vmem:[#allocation4 + $0x28] sm:$0xff]
    %v677 = vld [vmem:[#allocation4 + $0x30] sm:$0xff]
    %v678 = vld [vmem:[#allocation4 + $0x38] sm:$0xff]
    %v679 = vld [vmem:[#allocation4 + $0x40] sm:$0xff]
    %v680 = vld [vmem:[#allocation4 + $0x48] sm:$0xff]
    %v681 = vld [vmem:[#allocation4 + $0x50] sm:$0xff]
    %v682 = vld [vmem:[#allocation4 + $0x58] sm:$0xff]
    %v683 = vld [vmem:[#allocation4 + $0x60] sm:$0xff]
    %v684 = vld [vmem:[#allocation4 + $0x68] sm:$0xff]
    %v685 = vld [vmem:[#allocation4 + $0x70] sm:$0xff]
    %v686 = vld [vmem:[#allocation4 + $0x78] sm:$0xff]
    %v687 = vld [vmem:[#allocation4 + $0x80] sm:$0xff]
    %v688 = vld [vmem:[#allocation4 + $0x88] sm:$0xff]
    %v689 = vld [vmem:[#allocation4 + $0x90] sm:$0xff]
    %v690 = vld [vmem:[#allocation4 + $0x98] sm:$0xff]
    %v691 = vld [vmem:[#allocation4 + $0xa0] sm:$0xff]
    %v692 = vld [vmem:[#allocation4 + $0xa8] sm:$0xff]
    %v693 = vld [vmem:[#allocation4 + $0xb0] sm:$0xff]
    %v694 = vld [vmem:[#allocation4 + $0xb8] sm:$0xff]
    %v695 = vld [vmem:[#allocation4 + $0xc0] sm:$0xff]
    %v696 = vld [vmem:[#allocation4 + $0xc8] sm:$0xff]
    %v697 = vld [vmem:[#allocation4 + $0xd0] sm:$0xff]
    %v698 = vld [vmem:[#allocation4 + $0xd8] sm:$0xff]
    %v699 = vld [vmem:[#allocation4 + $0xe0] sm:$0xff]
    %v700 = vld [vmem:[#allocation4 + $0xe8] sm:$0xff]
    %v701 = vld [vmem:[#allocation4 + $0xf0] sm:$0xff]
    %v702 = vld [vmem:[#allocation4 + $0xf8] sm:$0xff]
    %v703 = vld [vmem:[#allocation6] sm:$0xff]
    %v704 = vld [vmem:[#allocation6 + $0x8] sm:$0xff]
    %v705 = vld [vmem:[#allocation6 + $0x10] sm:$0xff]
    %v706 = vld [vmem:[#allocation6 + $0x18] sm:$0xff]
    %v707 = vld [vmem:[#allocation6 + $0x20] sm:$0xff]
    %v708 = vld [vmem:[#allocation6 + $0x28] sm:$0xff]
    %v709 = vld [vmem:[#allocation6 + $0x30] sm:$0xff]
    %v710 = vld [vmem:[#allocation6 + $0x38] sm:$0xff]
    %v711 = vld [vmem:[#allocation6 + $0x40] sm:$0xff]
    %v712 = vld [vmem:[#allocation6 + $0x48] sm:$0xff]
    %v713 = vld [vmem:[#allocation6 + $0x50] sm:$0xff]
    %v714 = vld [vmem:[#allocation6 + $0x58] sm:$0xff]
    %v715 = vld [vmem:[#allocation6 + $0x60] sm:$0xff]
    %v716 = vld [vmem:[#allocation6 + $0x68] sm:$0xff]
    %v717 = vld [vmem:[#allocation6 + $0x70] sm:$0xff]
    %v718 = vld [vmem:[#allocation6 + $0x78] sm:$0xff]
    %v719 = vld [vmem:[#allocation6 + $0x80] sm:$0xff]
    %v720 = vld [vmem:[#allocation6 + $0x88] sm:$0xff]
    %v721 = vld [vmem:[#allocation6 + $0x90] sm:$0xff]
    %v722 = vld [vmem:[#allocation6 + $0x98] sm:$0xff]
    %v723 = vld [vmem:[#allocation6 + $0xa0] sm:$0xff]
    %v724 = vld [vmem:[#allocation6 + $0xa8] sm:$0xff]
    %v725 = vld [vmem:[#allocation6 + $0xb0] sm:$0xff]
    %v726 = vld [vmem:[#allocation6 + $0xb8] sm:$0xff]
    %v727 = vld [vmem:[#allocation6 + $0xc0] sm:$0xff]
    %v728 = vld [vmem:[#allocation6 + $0xc8] sm:$0xff]
    %v729 = vld [vmem:[#allocation6 + $0xd0] sm:$0xff]
    %v730 = vld [vmem:[#allocation6 + $0xd8] sm:$0xff]
    %v731 = vld [vmem:[#allocation6 + $0xe0] sm:$0xff]
    %v732 = vld [vmem:[#allocation6 + $0xe8] sm:$0xff]
    %v733 = vld [vmem:[#allocation6 + $0xf0] sm:$0xff]
    %v734 = vld [vmem:[#allocation6 + $0xf8] sm:$0xff]
    %v767 = vunpack.c.l.b16 %v703
    %v768 = vunpack.c.h.b16 %v703
    %v769 = vunpack.c.l.b16 %v704
    %v770 = vunpack.c.h.b16 %v704
    %v771 = vunpack.c.l.b16 %v705
    %v772 = vunpack.c.h.b16 %v705
    %v773 = vunpack.c.l.b16 %v706
    %v774 = vunpack.c.h.b16 %v706
    %v775 = vunpack.c.l.b16 %v707
    %v776 = vunpack.c.h.b16 %v707
    %v777 = vunpack.c.l.b16 %v708
    %v778 = vunpack.c.h.b16 %v708
    %v779 = vunpack.c.l.b16 %v709
    %v780 = vunpack.c.h.b16 %v709
    %v781 = vunpack.c.l.b16 %v710
    %v782 = vunpack.c.h.b16 %v710
    %v783 = vunpack.c.l.b16 %v711
    %v784 = vunpack.c.h.b16 %v711
    %v785 = vunpack.c.l.b16 %v712
    %v786 = vunpack.c.h.b16 %v712
    %v787 = vunpack.c.l.b16 %v713
    %v788 = vunpack.c.h.b16 %v713
    %v789 = vunpack.c.l.b16 %v714
    %v790 = vunpack.c.h.b16 %v714
    %v791 = vunpack.c.l.b16 %v715
    %v792 = vunpack.c.h.b16 %v715
    %v793 = vunpack.c.l.b16 %v716
    %v794 = vunpack.c.h.b16 %v716
    %v795 = vunpack.c.l.b16 %v717
    %v796 = vunpack.c.h.b16 %v717
    %v797 = vunpack.c.l.b16 %v718
    %v798 = vunpack.c.h.b16 %v718
    %v799 = vunpack.c.l.b16 %v719
    %v800 = vunpack.c.h.b16 %v719
    %v801 = vunpack.c.l.b16 %v720
    %v802 = vunpack.c.h.b16 %v720
    %v803 = vunpack.c.l.b16 %v721
    %v804 = vunpack.c.h.b16 %v721
    %v805 = vunpack.c.l.b16 %v722
    %v806 = vunpack.c.h.b16 %v722
    %v807 = vunpack.c.l.b16 %v723
    %v808 = vunpack.c.h.b16 %v723
    %v809 = vunpack.c.l.b16 %v724
    %v810 = vunpack.c.h.b16 %v724
    %v811 = vunpack.c.l.b16 %v725
    %v812 = vunpack.c.h.b16 %v725
    %v813 = vunpack.c.l.b16 %v726
    %v814 = vunpack.c.h.b16 %v726
    %v815 = vunpack.c.l.b16 %v727
    %v816 = vunpack.c.h.b16 %v727
    %v817 = vunpack.c.l.b16 %v728
    %v818 = vunpack.c.h.b16 %v728
    %v819 = vunpack.c.l.b16 %v729
    %v820 = vunpack.c.h.b16 %v729
    %v821 = vunpack.c.l.b16 %v730
    %v822 = vunpack.c.h.b16 %v730
    %v823 = vunpack.c.l.b16 %v731
    %v824 = vunpack.c.h.b16 %v731
    %v825 = vunpack.c.l.b16 %v732
    %v826 = vunpack.c.h.b16 %v732
    %v827 = vunpack.c.l.b16 %v733
    %v828 = vunpack.c.h.b16 %v733
    %v829 = vunpack.c.l.b16 %v734
    %v830 = vunpack.c.h.b16 %v734
    %v831 = vpack.c.b16 %v771, %v767
    %v832 = vpack.c.b16 %v772, %v768
    %v833 = vpack.c.b16 %v773, %v769
    %v834 = vpack.c.b16 %v774, %v770
    %v835 = vpack.c.b16 %v779, %v775
    %v836 = vpack.c.b16 %v780, %v776
    %v837 = vpack.c.b16 %v781, %v777
    %v838 = vpack.c.b16 %v782, %v778
    %v839 = vpack.c.b16 %v787, %v783
    %v840 = vpack.c.b16 %v788, %v784
    %v841 = vpack.c.b16 %v789, %v785
    %v842 = vpack.c.b16 %v790, %v786
    %v843 = vpack.c.b16 %v795, %v791
    %v844 = vpack.c.b16 %v796, %v792
    %v845 = vpack.c.b16 %v797, %v793
    %v846 = vpack.c.b16 %v798, %v794
    %v847 = vpack.c.b16 %v803, %v799
    %v848 = vpack.c.b16 %v804, %v800
    %v849 = vpack.c.b16 %v805, %v801
    %v850 = vpack.c.b16 %v806, %v802
    %v851 = vpack.c.b16 %v811, %v807
    %v852 = vpack.c.b16 %v812, %v808
    %v853 = vpack.c.b16 %v813, %v809
    %v854 = vpack.c.b16 %v814, %v810
    %v855 = vpack.c.b16 %v819, %v815
    %v856 = vpack.c.b16 %v820, %v816
    %v857 = vpack.c.b16 %v821, %v817
    %v858 = vpack.c.b16 %v822, %v818
    %v859 = vpack.c.b16 %v827, %v823
    %v860 = vpack.c.b16 %v828, %v824
    %v861 = vpack.c.b16 %v829, %v825
    %v862 = vpack.c.b16 %v830, %v826
    %895 = vmatprep.subr.bf16.mxu0 %v860
    %896 = vmatpush1.bf16.msra.mxu0 %v859
    %897 = vmatprep.subr.bf16.mxu0 %v856
    %898 = vmatpush1.bf16.msra.mxu0 %v855
    %899 = vmatprep.subr.bf16.mxu0 %v852
    %900 = vmatpush1.bf16.msra.mxu0 %v851
    %901 = vmatprep.subr.bf16.mxu0 %v848
    %902 = vmatpush1.bf16.msra.mxu0 %v847
    %903 = vmatprep.subr.bf16.mxu0 %v844
    %904 = vmatpush1.bf16.msra.mxu0 %v843
    %905 = vmatprep.subr.bf16.mxu0 %v840
    %906 = vmatpush1.bf16.msra.mxu0 %v839
    %907 = vmatprep.subr.bf16.mxu0 %v836
    %908 = vmatpush1.bf16.msra.mxu0 %v835
    %909 = vmatprep.subr.bf16.mxu0 %v832
    %910 = vmatpush1.bf16.msra.mxu0 %v831
    %911 = vmatprep.subr.bf16.mxu0 0
    %912 = vmatpush2.bf16.msra.mxu0 0
    %913 = vmatprep.subr.bf16.mxu0 0
    %914 = vmatpush2.bf16.msra.mxu0 0
    %915 = vmatprep.subr.bf16.mxu0 0
    %916 = vmatpush2.bf16.msra.mxu0 0
    %917 = vmatprep.subr.bf16.mxu0 0
    %918 = vmatpush2.bf16.msra.mxu0 0
    %919 = vmatprep.subr.bf16.mxu0 0
    %920 = vmatpush2.bf16.msra.mxu0 0
    %921 = vmatprep.subr.bf16.mxu0 0
    %922 = vmatpush2.bf16.msra.mxu0 0
    %923 = vmatprep.subr.bf16.mxu0 0
    %924 = vmatpush2.bf16.msra.mxu0 0
    %925 = vmatprep.subr.bf16.mxu0 0
    %926 = vmatpush2.bf16.msra.mxu0 0
    %927 = vmatprep.mubr.bf16.mxu0 0
    %928 = vmatmul.mubr.bf16.gmra.mxu0 0
    %v929 = vpop.f32.mrf.mxu0
    %v930 = vadd.f32 0.0, %v929
    %v931 = vpop.f32.mrf.mxu0
    %v932 = vadd.f32 0.0, %v931
    %v933 = vpop.f32.mrf.mxu0
    %v934 = vpop.f32.mrf.mxu0
    %935 = vdwg.mxu0
    %936 = vmatprep.subr.bf16.mxu0 %v862
    %937 = vmatpush1.bf16.msra.mxu0 %v861
    %938 = vmatprep.subr.bf16.mxu0 %v858
    %939 = vmatpush1.bf16.msra.mxu0 %v857
    %940 = vmatprep.subr.bf16.mxu0 %v854
    %941 = vmatpush1.bf16.msra.mxu0 %v853
    %942 = vmatprep.subr.bf16.mxu0 %v850
    %943 = vmatpush1.bf16.msra.mxu0 %v849
    %944 = vmatprep.subr.bf16.mxu0 %v846
    %945 = vmatpush1.bf16.msra.mxu0 %v845
    %946 = vmatprep.subr.bf16.mxu0 %v842
    %947 = vmatpush1.bf16.msra.mxu0 %v841
    %948 = vmatprep.subr.bf16.mxu0 %v838
    %949 = vmatpush1.bf16.msra.mxu0 %v837
    %950 = vmatprep.subr.bf16.mxu0 %v834
    %951 = vmatpush1.bf16.msra.mxu0 %v833
    %952 = vmatprep.subr.bf16.mxu0 0
    %953 = vmatpush2.bf16.msra.mxu0 0
    %954 = vmatprep.subr.bf16.mxu0 0
    %955 = vmatpush2.bf16.msra.mxu0 0
    %956 = vmatprep.subr.bf16.mxu0 0
    %957 = vmatpush2.bf16.msra.mxu0 0
    %958 = vmatprep.subr.bf16.mxu0 0
    %959 = vmatpush2.bf16.msra.mxu0 0
    %960 = vmatprep.subr.bf16.mxu0 0
    %961 = vmatpush2.bf16.msra.mxu0 0
    %962 = vmatprep.subr.bf16.mxu0 0
    %963 = vmatpush2.bf16.msra.mxu0 0
    %964 = vmatprep.subr.bf16.mxu0 0
    %965 = vmatpush2.bf16.msra.mxu0 0
    %966 = vmatprep.subr.bf16.mxu0 0
    %967 = vmatpush2.bf16.msra.mxu0 0
    %968 = vmatprep.mubr.bf16.mxu0 0
    %969 = vmatmul.mubr.bf16.gmra.mxu0 0
    %v970 = vpop.f32.mrf.mxu0
    %v971 = vadd.f32 0.0, %v970
    %v972 = vpop.f32.mrf.mxu0
    %v973 = vadd.f32 0.0, %v972
    %v974 = vpop.f32.mrf.mxu0
    %v975 = vpop.f32.mrf.mxu0
    %976 = vdwg.mxu0
    %v1009 = vunpack.c.l.b16 %v671
    %v1010 = vunpack.c.h.b16 %v671
    %v1011 = vunpack.c.l.b16 %v672
    %v1012 = vunpack.c.h.b16 %v672
    %v1013 = vunpack.c.l.b16 %v673
    %v1014 = vunpack.c.h.b16 %v673
    %v1015 = vunpack.c.l.b16 %v674
    %v1016 = vunpack.c.h.b16 %v674
    %v1017 = vunpack.c.l.b16 %v675
    %v1018 = vunpack.c.h.b16 %v675
    %v1019 = vunpack.c.l.b16 %v676
    %v1020 = vunpack.c.h.b16 %v676
    %v1021 = vunpack.c.l.b16 %v677
    %v1022 = vunpack.c.h.b16 %v677
    %v1023 = vunpack.c.l.b16 %v678
    %v1024 = vunpack.c.h.b16 %v678
    %v1025 = vunpack.c.l.b16 %v679
    %v1026 = vunpack.c.h.b16 %v679
    %v1027 = vunpack.c.l.b16 %v680
    %v1028 = vunpack.c.h.b16 %v680
    %v1029 = vunpack.c.l.b16 %v681
    %v1030 = vunpack.c.h.b16 %v681
    %v1031 = vunpack.c.l.b16 %v682
    %v1032 = vunpack.c.h.b16 %v682
    %v1033 = vunpack.c.l.b16 %v683
    %v1034 = vunpack.c.h.b16 %v683
    %v1035 = vunpack.c.l.b16 %v684
    %v1036 = vunpack.c.h.b16 %v684
    %v1037 = vunpack.c.l.b16 %v685
    %v1038 = vunpack.c.h.b16 %v685
    %v1039 = vunpack.c.l.b16 %v686
    %v1040 = vunpack.c.h.b16 %v686
    %v1041 = vunpack.c.l.b16 %v687
    %v1042 = vunpack.c.h.b16 %v687
    %v1043 = vunpack.c.l.b16 %v688
    %v1044 = vunpack.c.h.b16 %v688
    %v1045 = vunpack.c.l.b16 %v689
    %v1046 = vunpack.c.h.b16 %v689
    %v1047 = vunpack.c.l.b16 %v690
    %v1048 = vunpack.c.h.b16 %v690
    %v1049 = vunpack.c.l.b16 %v691
    %v1050 = vunpack.c.h.b16 %v691
    %v1051 = vunpack.c.l.b16 %v692
    %v1052 = vunpack.c.h.b16 %v692
    %v1053 = vunpack.c.l.b16 %v693
    %v1054 = vunpack.c.h.b16 %v693
    %v1055 = vunpack.c.l.b16 %v694
    %v1056 = vunpack.c.h.b16 %v694
    %v1057 = vunpack.c.l.b16 %v695
    %v1058 = vunpack.c.h.b16 %v695
    %v1059 = vunpack.c.l.b16 %v696
    %v1060 = vunpack.c.h.b16 %v696
    %v1061 = vunpack.c.l.b16 %v697
    %v1062 = vunpack.c.h.b16 %v697
    %v1063 = vunpack.c.l.b16 %v698
    %v1064 = vunpack.c.h.b16 %v698
    %v1065 = vunpack.c.l.b16 %v699
    %v1066 = vunpack.c.h.b16 %v699
    %v1067 = vunpack.c.l.b16 %v700
    %v1068 = vunpack.c.h.b16 %v700
    %v1069 = vunpack.c.l.b16 %v701
    %v1070 = vunpack.c.h.b16 %v701
    %v1071 = vunpack.c.l.b16 %v702
    %v1072 = vunpack.c.h.b16 %v702
    %v1073 = vpack.c.b16 %v1013, %v1009
    %v1074 = vpack.c.b16 %v1014, %v1010
    %v1075 = vpack.c.b16 %v1015, %v1011
    %v1076 = vpack.c.b16 %v1016, %v1012
    %v1077 = vpack.c.b16 %v1021, %v1017
    %v1078 = vpack.c.b16 %v1022, %v1018
    %v1079 = vpack.c.b16 %v1023, %v1019
    %v1080 = vpack.c.b16 %v1024, %v1020
    %v1081 = vpack.c.b16 %v1029, %v1025
    %v1082 = vpack.c.b16 %v1030, %v1026
    %v1083 = vpack.c.b16 %v1031, %v1027
    %v1084 = vpack.c.b16 %v1032, %v1028
    %v1085 = vpack.c.b16 %v1037, %v1033
    %v1086 = vpack.c.b16 %v1038, %v1034
    %v1087 = vpack.c.b16 %v1039, %v1035
    %v1088 = vpack.c.b16 %v1040, %v1036
    %v1089 = vpack.c.b16 %v1045, %v1041
    %v1090 = vpack.c.b16 %v1046, %v1042
    %v1091 = vpack.c.b16 %v1047, %v1043
    %v1092 = vpack.c.b16 %v1048, %v1044
    %v1093 = vpack.c.b16 %v1053, %v1049
    %v1094 = vpack.c.b16 %v1054, %v1050
    %v1095 = vpack.c.b16 %v1055, %v1051
    %v1096 = vpack.c.b16 %v1056, %v1052
    %v1097 = vpack.c.b16 %v1061, %v1057
    %v1098 = vpack.c.b16 %v1062, %v1058
    %v1099 = vpack.c.b16 %v1063, %v1059
    %v1100 = vpack.c.b16 %v1064, %v1060
    %v1101 = vpack.c.b16 %v1069, %v1065
    %v1102 = vpack.c.b16 %v1070, %v1066
    %v1103 = vpack.c.b16 %v1071, %v1067
    %v1104 = vpack.c.b16 %v1072, %v1068
    %1137 = vmatprep.subr.bf16.mxu0 %v1102
    %1138 = vmatpush1.bf16.msra.mxu0 %v1101
    %1139 = vmatprep.subr.bf16.mxu0 %v1098
    %1140 = vmatpush1.bf16.msra.mxu0 %v1097
    %1141 = vmatprep.subr.bf16.mxu0 %v1094
    %1142 = vmatpush1.bf16.msra.mxu0 %v1093
    %1143 = vmatprep.subr.bf16.mxu0 %v1090
    %1144 = vmatpush1.bf16.msra.mxu0 %v1089
    %1145 = vmatprep.subr.bf16.mxu0 %v1086
    %1146 = vmatpush1.bf16.msra.mxu0 %v1085
    %1147 = vmatprep.subr.bf16.mxu0 %v1082
    %1148 = vmatpush1.bf16.msra.mxu0 %v1081
    %1149 = vmatprep.subr.bf16.mxu0 %v1078
    %1150 = vmatpush1.bf16.msra.mxu0 %v1077
    %1151 = vmatprep.subr.bf16.mxu0 %v1074
    %1152 = vmatpush1.bf16.msra.mxu0 %v1073
    %1153 = vmatprep.subr.bf16.mxu0 0
    %1154 = vmatpush2.bf16.msra.mxu0 0
    %1155 = vmatprep.subr.bf16.mxu0 0
    %1156 = vmatpush2.bf16.msra.mxu0 0
    %1157 = vmatprep.subr.bf16.mxu0 0
    %1158 = vmatpush2.bf16.msra.mxu0 0
    %1159 = vmatprep.subr.bf16.mxu0 0
    %1160 = vmatpush2.bf16.msra.mxu0 0
    %1161 = vmatprep.subr.bf16.mxu0 0
    %1162 = vmatpush2.bf16.msra.mxu0 0
    %1163 = vmatprep.subr.bf16.mxu0 0
    %1164 = vmatpush2.bf16.msra.mxu0 0
    %1165 = vmatprep.subr.bf16.mxu0 0
    %1166 = vmatpush2.bf16.msra.mxu0 0
    %1167 = vmatprep.subr.bf16.mxu0 0
    %1168 = vmatpush2.bf16.msra.mxu0 0
    %1169 = vmatprep.mubr.bf16.mxu0 0
    %1170 = vmatmul.mubr.bf16.gmra.mxu0 %v670
    %v1171 = vpop.f32.mrf.mxu0
    %v1172 = vadd.f32 %v930, %v1171
    %v1173 = vpop.f32.mrf.mxu0
    %v1174 = vadd.f32 %v932, %v1173
    %v1175 = vpop.f32.mrf.mxu0
    %v1176 = vpop.f32.mrf.mxu0
    %1177 = vdwg.mxu0
    %1178 = vmatprep.subr.bf16.mxu0 %v1104
    %1179 = vmatpush1.bf16.msra.mxu0 %v1103
    %1180 = vmatprep.subr.bf16.mxu0 %v1100
    %1181 = vmatpush1.bf16.msra.mxu0 %v1099
    %1182 = vmatprep.subr.bf16.mxu0 %v1096
    %1183 = vmatpush1.bf16.msra.mxu0 %v1095
    %1184 = vmatprep.subr.bf16.mxu0 %v1092
    %1185 = vmatpush1.bf16.msra.mxu0 %v1091
    %1186 = vmatprep.subr.bf16.mxu0 %v1088
    %1187 = vmatpush1.bf16.msra.mxu0 %v1087
    %1188 = vmatprep.subr.bf16.mxu0 %v1084
    %1189 = vmatpush1.bf16.msra.mxu0 %v1083
    %1190 = vmatprep.subr.bf16.mxu0 %v1080
    %1191 = vmatpush1.bf16.msra.mxu0 %v1079
    %1192 = vmatprep.subr.bf16.mxu0 %v1076
    %1193 = vmatpush1.bf16.msra.mxu0 %v1075
    %1194 = vmatprep.subr.bf16.mxu0 0
    %1195 = vmatpush2.bf16.msra.mxu0 0
    %1196 = vmatprep.subr.bf16.mxu0 0
    %1197 = vmatpush2.bf16.msra.mxu0 0
    %1198 = vmatprep.subr.bf16.mxu0 0
    %1199 = vmatpush2.bf16.msra.mxu0 0
    %1200 = vmatprep.subr.bf16.mxu0 0
    %1201 = vmatpush2.bf16.msra.mxu0 0
    %1202 = vmatprep.subr.bf16.mxu0 0
    %1203 = vmatpush2.bf16.msra.mxu0 0
    %1204 = vmatprep.subr.bf16.mxu0 0
    %1205 = vmatpush2.bf16.msra.mxu0 0
    %1206 = vmatprep.subr.bf16.mxu0 0
    %1207 = vmatpush2.bf16.msra.mxu0 0
    %1208 = vmatprep.subr.bf16.mxu0 0
    %1209 = vmatpush2.bf16.msra.mxu0 0
    %1210 = vmatprep.mubr.bf16.mxu0 0
    %1211 = vmatmul.mubr.bf16.gmra.mxu0 %v670
    %v1212 = vpop.f32.mrf.mxu0
    %v1213 = vadd.f32 %v971, %v1212
    %v1214 = vpop.f32.mrf.mxu0
    %v1215 = vadd.f32 %v973, %v1214
    %v1216 = vpop.f32.mrf.mxu0
    %v1217 = vpop.f32.mrf.mxu0
    %1218 = vdwg.mxu0
    %v1219 = vadd.f32 %v1172, %v344
    %v1220 = vadd.f32 %v1174, %v348
    %v1221 = vadd.f32 %v1213, %v352
    %v1222 = vadd.f32 %v1215, %v356
    %v1223 = vxor.u32 %v1219, 2147483648
    %v1224 = vxor.u32 %v1220, 2147483648
    %v1225 = vxor.u32 %v1221, 2147483648
    %v1226 = vmul.f32 %v1223, 1.442695
    %v1227 = vpow.pop %v1226
    %v1228 = vmul.f32 %v1224, 1.442695
    %v1229 = vpow.pop %v1228
    %v1230 = vmul.f32 %v1225, 1.442695
    %v1231 = vpow.pop %v1230
    %v1232 = vadd.f32 %v1227, 1.0
    %v1233 = vadd.f32 %v1229, 1.0
    %v1234 = vadd.f32 %v1231, 1.0
    %v1235 = vrcp.pop %v1232
    %v1236 = vmul.f32 1.0, %v1235
    %v1237 = vrcp.pop %v1233
    %v1238 = vmul.f32 1.0, %v1237
    %v1239 = vrcp.pop %v1234
    %v1240 = vmul.f32 1.0, %v1239
    %v1241 = vtanh.pop %v1222
    %v1242 = vmul.f32 %v1238, 0.0
    %v1243 = vmul.f32 %v1236, %v1241
    %v1244 = vadd.f32 %v1242, %v1243
    %v1245 = vtanh.pop %v1244
    %v1246 = vmul.f32 %v1240, %v1245
    %1247 = vst [vmem:[#allocation3] sm:$0xff] %v1246
    %s1248 = smul.u32 1, 4
    %s1249 = smul.addr %s1248, 8
    %s1250 = scalar_lea.vmem [#allocation2], %s1249
    %v1251 = vld [vmem:[%s1250] sm:$0xff]
    %v1252 = vld [vmem:[%s1250 + $0x8] sm:$0xff]
    %v1253 = vld [vmem:[%s1250 + $0x10] sm:$0xff]
    %v1254 = vld [vmem:[%s1250 + $0x18] sm:$0xff]
    %v1255 = vld [vmem:[%s3] sm:$0xff]
    %v1256 = vld [vmem:[%s3 + $0x8] sm:$0xff]
    %v1257 = vld [vmem:[%s3 + $0x10] sm:$0xff]
    %v1258 = vld [vmem:[%s3 + $0x18] sm:$0xff]
    %v1259 = vld [vmem:[%s3 + $0x20] sm:$0xff]
    %v1260 = vld [vmem:[%s3 + $0x28] sm:$0xff]
    %v1261 = vld [vmem:[%s3 + $0x30] sm:$0xff]
    %v1262 = vld [vmem:[%s3 + $0x38] sm:$0xff]
    %v1263 = vld [vmem:[%s3 + $0x40] sm:$0xff]
    %v1264 = vld [vmem:[%s3 + $0x48] sm:$0xff]
    %v1265 = vld [vmem:[%s3 + $0x50] sm:$0xff]
    %v1266 = vld [vmem:[%s3 + $0x58] sm:$0xff]
    %v1267 = vld [vmem:[%s3 + $0x60] sm:$0xff]
    %v1268 = vld [vmem:[%s3 + $0x68] sm:$0xff]
    %v1269 = vld [vmem:[%s3 + $0x70] sm:$0xff]
    %v1270 = vld [vmem:[%s3 + $0x78] sm:$0xff]
    %v1271 = vld [vmem:[%s3 + $0x80] sm:$0xff]
    %v1272 = vld [vmem:[%s3 + $0x88] sm:$0xff]
    %v1273 = vld [vmem:[%s3 + $0x90] sm:$0xff]
    %v1274 = vld [vmem:[%s3 + $0x98] sm:$0xff]
    %v1275 = vld [vmem:[%s3 + $0xa0] sm:$0xff]
    %v1276 = vld [vmem:[%s3 + $0xa8] sm:$0xff]
    %v1277 = vld [vmem:[%s3 + $0xb0] sm:$0xff]
    %v1278 = vld [vmem:[%s3 + $0xb8] sm:$0xff]
    %v1279 = vld [vmem:[%s3 + $0xc0] sm:$0xff]
    %v1280 = vld [vmem:[%s3 + $0xc8] sm:$0xff]
    %v1281 = vld [vmem:[%s3 + $0xd0] sm:$0xff]
    %v1282 = vld [vmem:[%s3 + $0xd8] sm:$0xff]
    %v1283 = vld [vmem:[%s3 + $0xe0] sm:$0xff]
    %v1284 = vld [vmem:[%s3 + $0xe8] sm:$0xff]
    %v1285 = vld [vmem:[%s3 + $0xf0] sm:$0xff]
    %v1286 = vld [vmem:[%s3 + $0xf8] sm:$0xff]
    %v1319 = vunpack.c.l.b16 %v1255
    %v1320 = vunpack.c.h.b16 %v1255
    %v1321 = vunpack.c.l.b16 %v1256
    %v1322 = vunpack.c.h.b16 %v1256
    %v1323 = vunpack.c.l.b16 %v1257
    %v1324 = vunpack.c.h.b16 %v1257
    %v1325 = vunpack.c.l.b16 %v1258
    %v1326 = vunpack.c.h.b16 %v1258
    %v1327 = vunpack.c.l.b16 %v1259
    %v1328 = vunpack.c.h.b16 %v1259
    %v1329 = vunpack.c.l.b16 %v1260
    %v1330 = vunpack.c.h.b16 %v1260
    %v1331 = vunpack.c.l.b16 %v1261
    %v1332 = vunpack.c.h.b16 %v1261
    %v1333 = vunpack.c.l.b16 %v1262
    %v1334 = vunpack.c.h.b16 %v1262
    %v1335 = vunpack.c.l.b16 %v1263
    %v1336 = vunpack.c.h.b16 %v1263
    %v1337 = vunpack.c.l.b16 %v1264
    %v1338 = vunpack.c.h.b16 %v1264
    %v1339 = vunpack.c.l.b16 %v1265
    %v1340 = vunpack.c.h.b16 %v1265
    %v1341 = vunpack.c.l.b16 %v1266
    %v1342 = vunpack.c.h.b16 %v1266
    %v1343 = vunpack.c.l.b16 %v1267
    %v1344 = vunpack.c.h.b16 %v1267
    %v1345 = vunpack.c.l.b16 %v1268
    %v1346 = vunpack.c.h.b16 %v1268
    %v1347 = vunpack.c.l.b16 %v1269
    %v1348 = vunpack.c.h.b16 %v1269
    %v1349 = vunpack.c.l.b16 %v1270
    %v1350 = vunpack.c.h.b16 %v1270
    %v1351 = vunpack.c.l.b16 %v1271
    %v1352 = vunpack.c.h.b16 %v1271
    %v1353 = vunpack.c.l.b16 %v1272
    %v1354 = vunpack.c.h.b16 %v1272
    %v1355 = vunpack.c.l.b16 %v1273
    %v1356 = vunpack.c.h.b16 %v1273
    %v1357 = vunpack.c.l.b16 %v1274
    %v1358 = vunpack.c.h.b16 %v1274
    %v1359 = vunpack.c.l.b16 %v1275
    %v1360 = vunpack.c.h.b16 %v1275
    %v1361 = vunpack.c.l.b16 %v1276
    %v1362 = vunpack.c.h.b16 %v1276
    %v1363 = vunpack.c.l.b16 %v1277
    %v1364 = vunpack.c.h.b16 %v1277
    %v1365 = vunpack.c.l.b16 %v1278
    %v1366 = vunpack.c.h.b16 %v1278
    %v1367 = vunpack.c.l.b16 %v1279
    %v1368 = vunpack.c.h.b16 %v1279
    %v1369 = vunpack.c.l.b16 %v1280
    %v1370 = vunpack.c.h.b16 %v1280
    %v1371 = vunpack.c.l.b16 %v1281
    %v1372 = vunpack.c.h.b16 %v1281
    %v1373 = vunpack.c.l.b16 %v1282
    %v1374 = vunpack.c.h.b16 %v1282
    %v1375 = vunpack.c.l.b16 %v1283
    %v1376 = vunpack.c.h.b16 %v1283
    %v1377 = vunpack.c.l.b16 %v1284
    %v1378 = vunpack.c.h.b16 %v1284
    %v1379 = vunpack.c.l.b16 %v1285
    %v1380 = vunpack.c.h.b16 %v1285
    %v1381 = vunpack.c.l.b16 %v1286
    %v1382 = vunpack.c.h.b16 %v1286
    %v1383 = vpack.c.b16 %v1323, %v1319
    %v1384 = vpack.c.b16 %v1324, %v1320
    %v1385 = vpack.c.b16 %v1325, %v1321
    %v1386 = vpack.c.b16 %v1326, %v1322
    %v1387 = vpack.c.b16 %v1331, %v1327
    %v1388 = vpack.c.b16 %v1332, %v1328
    %v1389 = vpack.c.b16 %v1333, %v1329
    %v1390 = vpack.c.b16 %v1334, %v1330
    %v1391 = vpack.c.b16 %v1339, %v1335
    %v1392 = vpack.c.b16 %v1340, %v1336
    %v1393 = vpack.c.b16 %v1341, %v1337
    %v1394 = vpack.c.b16 %v1342, %v1338
    %v1395 = vpack.c.b16 %v1347, %v1343
    %v1396 = vpack.c.b16 %v1348, %v1344
    %v1397 = vpack.c.b16 %v1349, %v1345
    %v1398 = vpack.c.b16 %v1350, %v1346
    %v1399 = vpack.c.b16 %v1355, %v1351
    %v1400 = vpack.c.b16 %v1356, %v1352
    %v1401 = vpack.c.b16 %v1357, %v1353
    %v1402 = vpack.c.b16 %v1358, %v1354
    %v1403 = vpack.c.b16 %v1363, %v1359
    %v1404 = vpack.c.b16 %v1364, %v1360
    %v1405 = vpack.c.b16 %v1365, %v1361
    %v1406 = vpack.c.b16 %v1366, %v1362
    %v1407 = vpack.c.b16 %v1371, %v1367
    %v1408 = vpack.c.b16 %v1372, %v1368
    %v1409 = vpack.c.b16 %v1373, %v1369
    %v1410 = vpack.c.b16 %v1374, %v1370
    %v1411 = vpack.c.b16 %v1379, %v1375
    %v1412 = vpack.c.b16 %v1380, %v1376
    %v1413 = vpack.c.b16 %v1381, %v1377
    %v1414 = vpack.c.b16 %v1382, %v1378
    %1447 = vmatprep.subr.bf16.mxu0 %v1412
    %1448 = vmatpush1.bf16.msra.mxu0 %v1411
    %1449 = vmatprep.subr.bf16.mxu0 %v1408
    %1450 = vmatpush1.bf16.msra.mxu0 %v1407
    %1451 = vmatprep.subr.bf16.mxu0 %v1404
    %1452 = vmatpush1.bf16.msra.mxu0 %v1403
    %1453 = vmatprep.subr.bf16.mxu0 %v1400
    %1454 = vmatpush1.bf16.msra.mxu0 %v1399
    %1455 = vmatprep.subr.bf16.mxu0 %v1396
    %1456 = vmatpush1.bf16.msra.mxu0 %v1395
    %1457 = vmatprep.subr.bf16.mxu0 %v1392
    %1458 = vmatpush1.bf16.msra.mxu0 %v1391
    %1459 = vmatprep.subr.bf16.mxu0 %v1388
    %1460 = vmatpush1.bf16.msra.mxu0 %v1387
    %1461 = vmatprep.subr.bf16.mxu0 %v1384
    %1462 = vmatpush1.bf16.msra.mxu0 %v1383
    %1463 = vmatprep.subr.bf16.mxu0 0
    %1464 = vmatpush2.bf16.msra.mxu0 0
    %1465 = vmatprep.subr.bf16.mxu0 0
    %1466 = vmatpush2.bf16.msra.mxu0 0
    %1467 = vmatprep.subr.bf16.mxu0 0
    %1468 = vmatpush2.bf16.msra.mxu0 0
    %1469 = vmatprep.subr.bf16.mxu0 0
    %1470 = vmatpush2.bf16.msra.mxu0 0
    %1471 = vmatprep.subr.bf16.mxu0 0
    %1472 = vmatpush2.bf16.msra.mxu0 0
    %1473 = vmatprep.subr.bf16.mxu0 0
    %1474 = vmatpush2.bf16.msra.mxu0 0
    %1475 = vmatprep.subr.bf16.mxu0 0
    %1476 = vmatpush2.bf16.msra.mxu0 0
    %1477 = vmatprep.subr.bf16.mxu0 0
    %1478 = vmatpush2.bf16.msra.mxu0 0
    %1479 = vmatprep.mubr.bf16.mxu0 0
    %1480 = vmatmul.mubr.bf16.gmra.mxu0 %v670
    %v1481 = vpop.f32.mrf.mxu0
    %v1482 = vadd.f32 0.0, %v1481
    %v1483 = vpop.f32.mrf.mxu0
    %v1484 = vadd.f32 0.0, %v1483
    %v1485 = vpop.f32.mrf.mxu0
    %v1486 = vpop.f32.mrf.mxu0
    %1487 = vdwg.mxu0
    %1488 = vmatprep.subr.bf16.mxu0 %v1414
    %1489 = vmatpush1.bf16.msra.mxu0 %v1413
    %1490 = vmatprep.subr.bf16.mxu0 %v1410
    %1491 = vmatpush1.bf16.msra.mxu0 %v1409
    %1492 = vmatprep.subr.bf16.mxu0 %v1406
    %1493 = vmatpush1.bf16.msra.mxu0 %v1405
    %1494 = vmatprep.subr.bf16.mxu0 %v1402
    %1495 = vmatpush1.bf16.msra.mxu0 %v1401
    %1496 = vmatprep.subr.bf16.mxu0 %v1398
    %1497 = vmatpush1.bf16.msra.mxu0 %v1397
    %1498 = vmatprep.subr.bf16.mxu0 %v1394
    %1499 = vmatpush1.bf16.msra.mxu0 %v1393
    %1500 = vmatprep.subr.bf16.mxu0 %v1390
    %1501 = vmatpush1.bf16.msra.mxu0 %v1389
    %1502 = vmatprep.subr.bf16.mxu0 %v1386
    %1503 = vmatpush1.bf16.msra.mxu0 %v1385
    %1504 = vmatprep.subr.bf16.mxu0 0
    %1505 = vmatpush2.bf16.msra.mxu0 0
    %1506 = vmatprep.subr.bf16.mxu0 0
    %1507 = vmatpush2.bf16.msra.mxu0 0
    %1508 = vmatprep.subr.bf16.mxu0 0
    %1509 = vmatpush2.bf16.msra.mxu0 0
    %1510 = vmatprep.subr.bf16.mxu0 0
    %1511 = vmatpush2.bf16.msra.mxu0 0
    %1512 = vmatprep.subr.bf16.mxu0 0
    %1513 = vmatpush2.bf16.msra.mxu0 0
    %1514 = vmatprep.subr.bf16.mxu0 0
    %1515 = vmatpush2.bf16.msra.mxu0 0
    %1516 = vmatprep.subr.bf16.mxu0 0
    %1517 = vmatpush2.bf16.msra.mxu0 0
    %1518 = vmatprep.subr.bf16.mxu0 0
    %1519 = vmatpush2.bf16.msra.mxu0 0
    %1520 = vmatprep.mubr.bf16.mxu0 0
    %1521 = vmatmul.mubr.bf16.gmra.mxu0 %v670
    %v1522 = vpop.f32.mrf.mxu0
    %v1523 = vadd.f32 0.0, %v1522
    %v1524 = vpop.f32.mrf.mxu0
    %v1525 = vadd.f32 0.0, %v1524
    %v1526 = vpop.f32.mrf.mxu0
    %v1527 = vpop.f32.mrf.mxu0
    %1528 = vdwg.mxu0
    %v1529 = vadd.f32 %v1251, %v1482
    %v1530 = vadd.f32 %v1252, %v1484
    %v1531 = vadd.f32 %v1253, %v1523
    %v1532 = vadd.f32 %v1254, %v1525
    %v1533 = vxor.u32 %v1529, 2147483648
    %v1534 = vxor.u32 %v1530, 2147483648
    %v1535 = vxor.u32 %v1531, 2147483648
    %v1536 = vmul.f32 %v1533, 1.442695
    %v1537 = vpow.pop %v1536
    %v1538 = vmul.f32 %v1534, 1.442695
    %v1539 = vpow.pop %v1538
    %v1540 = vmul.f32 %v1535, 1.442695
    %v1541 = vpow.pop %v1540
    %v1542 = vadd.f32 %v1537, 1.0
    %v1543 = vadd.f32 %v1539, 1.0
    %v1544 = vadd.f32 %v1541, 1.0
    %v1545 = vrcp.pop %v1542
    %v1546 = vmul.f32 1.0, %v1545
    %v1547 = vrcp.pop %v1543
    %v1548 = vmul.f32 1.0, %v1547
    %v1549 = vrcp.pop %v1544
    %v1550 = vmul.f32 1.0, %v1549
    %v1551 = vtanh.pop %v1532
    %v1552 = vmul.f32 %v1548, %v667
    %v1553 = vmul.f32 %v1546, %v1551
    %v1554 = vadd.f32 %v1552, %v1553
    %v1555 = vtanh.pop %v1554
    %v1556 = vmul.f32 %v1550, %v1555
    %v1557 = vpack.c.bf16 %v1556, %v1556
    %v1558 = vld [vmem:[#allocation4] sm:$0xff]
    %v1559 = vld [vmem:[#allocation4 + $0x8] sm:$0xff]
    %v1560 = vld [vmem:[#allocation4 + $0x10] sm:$0xff]
    %v1561 = vld [vmem:[#allocation4 + $0x18] sm:$0xff]
    %v1562 = vld [vmem:[#allocation4 + $0x20] sm:$0xff]
    %v1563 = vld [vmem:[#allocation4 + $0x28] sm:$0xff]
    %v1564 = vld [vmem:[#allocation4 + $0x30] sm:$0xff]
    %v1565 = vld [vmem:[#allocation4 + $0x38] sm:$0xff]
    %v1566 = vld [vmem:[#allocation4 + $0x40] sm:$0xff]
    %v1567 = vld [vmem:[#allocation4 + $0x48] sm:$0xff]
    %v1568 = vld [vmem:[#allocation4 + $0x50] sm:$0xff]
    %v1569 = vld [vmem:[#allocation4 + $0x58] sm:$0xff]
    %v1570 = vld [vmem:[#allocation4 + $0x60] sm:$0xff]
    %v1571 = vld [vmem:[#allocation4 + $0x68] sm:$0xff]
    %v1572 = vld [vmem:[#allocation4 + $0x70] sm:$0xff]
    %v1573 = vld [vmem:[#allocation4 + $0x78] sm:$0xff]
    %v1574 = vld [vmem:[#allocation4 + $0x80] sm:$0xff]
    %v1575 = vld [vmem:[#allocation4 + $0x88] sm:$0xff]
    %v1576 = vld [vmem:[#allocation4 + $0x90] sm:$0xff]
    %v1577 = vld [vmem:[#allocation4 + $0x98] sm:$0xff]
    %v1578 = vld [vmem:[#allocation4 + $0xa0] sm:$0xff]
    %v1579 = vld [vmem:[#allocation4 + $0xa8] sm:$0xff]
    %v1580 = vld [vmem:[#allocation4 + $0xb0] sm:$0xff]
    %v1581 = vld [vmem:[#allocation4 + $0xb8] sm:$0xff]
    %v1582 = vld [vmem:[#allocation4 + $0xc0] sm:$0xff]
    %v1583 = vld [vmem:[#allocation4 + $0xc8] sm:$0xff]
    %v1584 = vld [vmem:[#allocation4 + $0xd0] sm:$0xff]
    %v1585 = vld [vmem:[#allocation4 + $0xd8] sm:$0xff]
    %v1586 = vld [vmem:[#allocation4 + $0xe0] sm:$0xff]
    %v1587 = vld [vmem:[#allocation4 + $0xe8] sm:$0xff]
    %v1588 = vld [vmem:[#allocation4 + $0xf0] sm:$0xff]
    %v1589 = vld [vmem:[#allocation4 + $0xf8] sm:$0xff]
    %v1590 = vpack.c.bf16 %v1246, %v1246
    %v1591 = vld [vmem:[#allocation6] sm:$0xff]
    %v1592 = vld [vmem:[#allocation6 + $0x8] sm:$0xff]
    %v1593 = vld [vmem:[#allocation6 + $0x10] sm:$0xff]
    %v1594 = vld [vmem:[#allocation6 + $0x18] sm:$0xff]
    %v1595 = vld [vmem:[#allocation6 + $0x20] sm:$0xff]
    %v1596 = vld [vmem:[#allocation6 + $0x28] sm:$0xff]
    %v1597 = vld [vmem:[#allocation6 + $0x30] sm:$0xff]
    %v1598 = vld [vmem:[#allocation6 + $0x38] sm:$0xff]
    %v1599 = vld [vmem:[#allocation6 + $0x40] sm:$0xff]
    %v1600 = vld [vmem:[#allocation6 + $0x48] sm:$0xff]
    %v1601 = vld [vmem:[#allocation6 + $0x50] sm:$0xff]
    %v1602 = vld [vmem:[#allocation6 + $0x58] sm:$0xff]
    %v1603 = vld [vmem:[#allocation6 + $0x60] sm:$0xff]
    %v1604 = vld [vmem:[#allocation6 + $0x68] sm:$0xff]
    %v1605 = vld [vmem:[#allocation6 + $0x70] sm:$0xff]
    %v1606 = vld [vmem:[#allocation6 + $0x78] sm:$0xff]
    %v1607 = vld [vmem:[#allocation6 + $0x80] sm:$0xff]
    %v1608 = vld [vmem:[#allocation6 + $0x88] sm:$0xff]
    %v1609 = vld [vmem:[#allocation6 + $0x90] sm:$0xff]
    %v1610 = vld [vmem:[#allocation6 + $0x98] sm:$0xff]
    %v1611 = vld [vmem:[#allocation6 + $0xa0] sm:$0xff]
    %v1612 = vld [vmem:[#allocation6 + $0xa8] sm:$0xff]
    %v1613 = vld [vmem:[#allocation6 + $0xb0] sm:$0xff]
    %v1614 = vld [vmem:[#allocation6 + $0xb8] sm:$0xff]
    %v1615 = vld [vmem:[#allocation6 + $0xc0] sm:$0xff]
    %v1616 = vld [vmem:[#allocation6 + $0xc8] sm:$0xff]
    %v1617 = vld [vmem:[#allocation6 + $0xd0] sm:$0xff]
    %v1618 = vld [vmem:[#allocation6 + $0xd8] sm:$0xff]
    %v1619 = vld [vmem:[#allocation6 + $0xe0] sm:$0xff]
    %v1620 = vld [vmem:[#allocation6 + $0xe8] sm:$0xff]
    %v1621 = vld [vmem:[#allocation6 + $0xf0] sm:$0xff]
    %v1622 = vld [vmem:[#allocation6 + $0xf8] sm:$0xff]
    %v1655 = vunpack.c.l.b16 %v1591
    %v1656 = vunpack.c.h.b16 %v1591
    %v1657 = vunpack.c.l.b16 %v1592
    %v1658 = vunpack.c.h.b16 %v1592
    %v1659 = vunpack.c.l.b16 %v1593
    %v1660 = vunpack.c.h.b16 %v1593
    %v1661 = vunpack.c.l.b16 %v1594
    %v1662 = vunpack.c.h.b16 %v1594
    %v1663 = vunpack.c.l.b16 %v1595
    %v1664 = vunpack.c.h.b16 %v1595
    %v1665 = vunpack.c.l.b16 %v1596
    %v1666 = vunpack.c.h.b16 %v1596
    %v1667 = vunpack.c.l.b16 %v1597
    %v1668 = vunpack.c.h.b16 %v1597
    %v1669 = vunpack.c.l.b16 %v1598
    %v1670 = vunpack.c.h.b16 %v1598
    %v1671 = vunpack.c.l.b16 %v1599
    %v1672 = vunpack.c.h.b16 %v1599
    %v1673 = vunpack.c.l.b16 %v1600
    %v1674 = vunpack.c.h.b16 %v1600
    %v1675 = vunpack.c.l.b16 %v1601
    %v1676 = vunpack.c.h.b16 %v1601
    %v1677 = vunpack.c.l.b16 %v1602
    %v1678 = vunpack.c.h.b16 %v1602
    %v1679 = vunpack.c.l.b16 %v1603
    %v1680 = vunpack.c.h.b16 %v1603
    %v1681 = vunpack.c.l.b16 %v1604
    %v1682 = vunpack.c.h.b16 %v1604
    %v1683 = vunpack.c.l.b16 %v1605
    %v1684 = vunpack.c.h.b16 %v1605
    %v1685 = vunpack.c.l.b16 %v1606
    %v1686 = vunpack.c.h.b16 %v1606
    %v1687 = vunpack.c.l.b16 %v1607
    %v1688 = vunpack.c.h.b16 %v1607
    %v1689 = vunpack.c.l.b16 %v1608
    %v1690 = vunpack.c.h.b16 %v1608
    %v1691 = vunpack.c.l.b16 %v1609
    %v1692 = vunpack.c.h.b16 %v1609
    %v1693 = vunpack.c.l.b16 %v1610
    %v1694 = vunpack.c.h.b16 %v1610
    %v1695 = vunpack.c.l.b16 %v1611
    %v1696 = vunpack.c.h.b16 %v1611
    %v1697 = vunpack.c.l.b16 %v1612
    %v1698 = vunpack.c.h.b16 %v1612
    %v1699 = vunpack.c.l.b16 %v1613
    %v1700 = vunpack.c.h.b16 %v1613
    %v1701 = vunpack.c.l.b16 %v1614
    %v1702 = vunpack.c.h.b16 %v1614
    %v1703 = vunpack.c.l.b16 %v1615
    %v1704 = vunpack.c.h.b16 %v1615
    %v1705 = vunpack.c.l.b16 %v1616
    %v1706 = vunpack.c.h.b16 %v1616
    %v1707 = vunpack.c.l.b16 %v1617
    %v1708 = vunpack.c.h.b16 %v1617
    %v1709 = vunpack.c.l.b16 %v1618
    %v1710 = vunpack.c.h.b16 %v1618
    %v1711 = vunpack.c.l.b16 %v1619
    %v1712 = vunpack.c.h.b16 %v1619
    %v1713 = vunpack.c.l.b16 %v1620
    %v1714 = vunpack.c.h.b16 %v1620
    %v1715 = vunpack.c.l.b16 %v1621
    %v1716 = vunpack.c.h.b16 %v1621
    %v1717 = vunpack.c.l.b16 %v1622
    %v1718 = vunpack.c.h.b16 %v1622
    %v1719 = vpack.c.b16 %v1659, %v1655
    %v1720 = vpack.c.b16 %v1660, %v1656
    %v1721 = vpack.c.b16 %v1661, %v1657
    %v1722 = vpack.c.b16 %v1662, %v1658
    %v1723 = vpack.c.b16 %v1667, %v1663
    %v1724 = vpack.c.b16 %v1668, %v1664
    %v1725 = vpack.c.b16 %v1669, %v1665
    %v1726 = vpack.c.b16 %v1670, %v1666
    %v1727 = vpack.c.b16 %v1675, %v1671
    %v1728 = vpack.c.b16 %v1676, %v1672
    %v1729 = vpack.c.b16 %v1677, %v1673
    %v1730 = vpack.c.b16 %v1678, %v1674
    %v1731 = vpack.c.b16 %v1683, %v1679
    %v1732 = vpack.c.b16 %v1684, %v1680
    %v1733 = vpack.c.b16 %v1685, %v1681
    %v1734 = vpack.c.b16 %v1686, %v1682
    %v1735 = vpack.c.b16 %v1691, %v1687
    %v1736 = vpack.c.b16 %v1692, %v1688
    %v1737 = vpack.c.b16 %v1693, %v1689
    %v1738 = vpack.c.b16 %v1694, %v1690
    %v1739 = vpack.c.b16 %v1699, %v1695
    %v1740 = vpack.c.b16 %v1700, %v1696
    %v1741 = vpack.c.b16 %v1701, %v1697
    %v1742 = vpack.c.b16 %v1702, %v1698
    %v1743 = vpack.c.b16 %v1707, %v1703
    %v1744 = vpack.c.b16 %v1708, %v1704
    %v1745 = vpack.c.b16 %v1709, %v1705
    %v1746 = vpack.c.b16 %v1710, %v1706
    %v1747 = vpack.c.b16 %v1715, %v1711
    %v1748 = vpack.c.b16 %v1716, %v1712
    %v1749 = vpack.c.b16 %v1717, %v1713
    %v1750 = vpack.c.b16 %v1718, %v1714
    %1783 = vmatprep.subr.bf16.mxu0 %v1748
    %1784 = vmatpush1.bf16.msra.mxu0 %v1747
    %1785 = vmatprep.subr.bf16.mxu0 %v1744
    %1786 = vmatpush1.bf16.msra.mxu0 %v1743
    %1787 = vmatprep.subr.bf16.mxu0 %v1740
    %1788 = vmatpush1.bf16.msra.mxu0 %v1739
    %1789 = vmatprep.subr.bf16.mxu0 %v1736
    %1790 = vmatpush1.bf16.msra.mxu0 %v1735
    %1791 = vmatprep.subr.bf16.mxu0 %v1732
    %1792 = vmatpush1.bf16.msra.mxu0 %v1731
    %1793 = vmatprep.subr.bf16.mxu0 %v1728
    %1794 = vmatpush1.bf16.msra.mxu0 %v1727
    %1795 = vmatprep.subr.bf16.mxu0 %v1724
    %1796 = vmatpush1.bf16.msra.mxu0 %v1723
    %1797 = vmatprep.subr.bf16.mxu0 %v1720
    %1798 = vmatpush1.bf16.msra.mxu0 %v1719
    %1799 = vmatprep.subr.bf16.mxu0 0
    %1800 = vmatpush2.bf16.msra.mxu0 0
    %1801 = vmatprep.subr.bf16.mxu0 0
    %1802 = vmatpush2.bf16.msra.mxu0 0
    %1803 = vmatprep.subr.bf16.mxu0 0
    %1804 = vmatpush2.bf16.msra.mxu0 0
    %1805 = vmatprep.subr.bf16.mxu0 0
    %1806 = vmatpush2.bf16.msra.mxu0 0
    %1807 = vmatprep.subr.bf16.mxu0 0
    %1808 = vmatpush2.bf16.msra.mxu0 0
    %1809 = vmatprep.subr.bf16.mxu0 0
    %1810 = vmatpush2.bf16.msra.mxu0 0
    %1811 = vmatprep.subr.bf16.mxu0 0
    %1812 = vmatpush2.bf16.msra.mxu0 0
    %1813 = vmatprep.subr.bf16.mxu0 0
    %1814 = vmatpush2.bf16.msra.mxu0 0
    %1815 = vmatprep.mubr.bf16.mxu0 0
    %1816 = vmatmul.mubr.bf16.gmra.mxu0 %v1590
    %v1817 = vpop.f32.mrf.mxu0
    %v1818 = vadd.f32 0.0, %v1817
    %v1819 = vpop.f32.mrf.mxu0
    %v1820 = vadd.f32 0.0, %v1819
    %v1821 = vpop.f32.mrf.mxu0
    %v1822 = vpop.f32.mrf.mxu0
    %1823 = vdwg.mxu0
    %1824 = vmatprep.subr.bf16.mxu0 %v1750
    %1825 = vmatpush1.bf16.msra.mxu0 %v1749
    %1826 = vmatprep.subr.bf16.mxu0 %v1746
    %1827 = vmatpush1.bf16.msra.mxu0 %v1745
    %1828 = vmatprep.subr.bf16.mxu0 %v1742
    %1829 = vmatpush1.bf16.msra.mxu0 %v1741
    %1830 = vmatprep.subr.bf16.mxu0 %v1738
    %1831 = vmatpush1.bf16.msra.mxu0 %v1737
    %1832 = vmatprep.subr.bf16.mxu0 %v1734
    %1833 = vmatpush1.bf16.msra.mxu0 %v1733
    %1834 = vmatprep.subr.bf16.mxu0 %v1730
    %1835 = vmatpush1.bf16.msra.mxu0 %v1729
    %1836 = vmatprep.subr.bf16.mxu0 %v1726
    %1837 = vmatpush1.bf16.msra.mxu0 %v1725
    %1838 = vmatprep.subr.bf16.mxu0 %v1722
    %1839 = vmatpush1.bf16.msra.mxu0 %v1721
    %1840 = vmatprep.subr.bf16.mxu0 0
    %1841 = vmatpush2.bf16.msra.mxu0 0
    %1842 = vmatprep.subr.bf16.mxu0 0
    %1843 = vmatpush2.bf16.msra.mxu0 0
    %1844 = vmatprep.subr.bf16.mxu0 0
    %1845 = vmatpush2.bf16.msra.mxu0 0
    %1846 = vmatprep.subr.bf16.mxu0 0
    %1847 = vmatpush2.bf16.msra.mxu0 0
    %1848 = vmatprep.subr.bf16.mxu0 0
    %1849 = vmatpush2.bf16.msra.mxu0 0
    %1850 = vmatprep.subr.bf16.mxu0 0
    %1851 = vmatpush2.bf16.msra.mxu0 0
    %1852 = vmatprep.subr.bf16.mxu0 0
    %1853 = vmatpush2.bf16.msra.mxu0 0
    %1854 = vmatprep.subr.bf16.mxu0 0
    %1855 = vmatpush2.bf16.msra.mxu0 0
    %1856 = vmatprep.mubr.bf16.mxu0 0
    %1857 = vmatmul.mubr.bf16.gmra.mxu0 %v1590
    %v1858 = vpop.f32.mrf.mxu0
    %v1859 = vadd.f32 0.0, %v1858
    %v1860 = vpop.f32.mrf.mxu0
    %v1861 = vadd.f32 0.0, %v1860
    %v1862 = vpop.f32.mrf.mxu0
    %v1863 = vpop.f32.mrf.mxu0
    %1864 = vdwg.mxu0
    %v1897 = vunpack.c.l.b16 %v1558
    %v1898 = vunpack.c.h.b16 %v1558
    %v1899 = vunpack.c.l.b16 %v1559
    %v1900 = vunpack.c.h.b16 %v1559
    %v1901 = vunpack.c.l.b16 %v1560
    %v1902 = vunpack.c.h.b16 %v1560
    %v1903 = vunpack.c.l.b16 %v1561
    %v1904 = vunpack.c.h.b16 %v1561
    %v1905 = vunpack.c.l.b16 %v1562
    %v1906 = vunpack.c.h.b16 %v1562
    %v1907 = vunpack.c.l.b16 %v1563
    %v1908 = vunpack.c.h.b16 %v1563
    %v1909 = vunpack.c.l.b16 %v1564
    %v1910 = vunpack.c.h.b16 %v1564
    %v1911 = vunpack.c.l.b16 %v1565
    %v1912 = vunpack.c.h.b16 %v1565
    %v1913 = vunpack.c.l.b16 %v1566
    %v1914 = vunpack.c.h.b16 %v1566
    %v1915 = vunpack.c.l.b16 %v1567
    %v1916 = vunpack.c.h.b16 %v1567
    %v1917 = vunpack.c.l.b16 %v1568
    %v1918 = vunpack.c.h.b16 %v1568
    %v1919 = vunpack.c.l.b16 %v1569
    %v1920 = vunpack.c.h.b16 %v1569
    %v1921 = vunpack.c.l.b16 %v1570
    %v1922 = vunpack.c.h.b16 %v1570
    %v1923 = vunpack.c.l.b16 %v1571
    %v1924 = vunpack.c.h.b16 %v1571
    %v1925 = vunpack.c.l.b16 %v1572
    %v1926 = vunpack.c.h.b16 %v1572
    %v1927 = vunpack.c.l.b16 %v1573
    %v1928 = vunpack.c.h.b16 %v1573
    %v1929 = vunpack.c.l.b16 %v1574
    %v1930 = vunpack.c.h.b16 %v1574
    %v1931 = vunpack.c.l.b16 %v1575
    %v1932 = vunpack.c.h.b16 %v1575
    %v1933 = vunpack.c.l.b16 %v1576
    %v1934 = vunpack.c.h.b16 %v1576
    %v1935 = vunpack.c.l.b16 %v1577
    %v1936 = vunpack.c.h.b16 %v1577
    %v1937 = vunpack.c.l.b16 %v1578
    %v1938 = vunpack.c.h.b16 %v1578
    %v1939 = vunpack.c.l.b16 %v1579
    %v1940 = vunpack.c.h.b16 %v1579
    %v1941 = vunpack.c.l.b16 %v1580
    %v1942 = vunpack.c.h.b16 %v1580
    %v1943 = vunpack.c.l.b16 %v1581
    %v1944 = vunpack.c.h.b16 %v1581
    %v1945 = vunpack.c.l.b16 %v1582
    %v1946 = vunpack.c.h.b16 %v1582
    %v1947 = vunpack.c.l.b16 %v1583
    %v1948 = vunpack.c.h.b16 %v1583
    %v1949 = vunpack.c.l.b16 %v1584
    %v1950 = vunpack.c.h.b16 %v1584
    %v1951 = vunpack.c.l.b16 %v1585
    %v1952 = vunpack.c.h.b16 %v1585
    %v1953 = vunpack.c.l.b16 %v1586
    %v1954 = vunpack.c.h.b16 %v1586
    %v1955 = vunpack.c.l.b16 %v1587
    %v1956 = vunpack.c.h.b16 %v1587
    %v1957 = vunpack.c.l.b16 %v1588
    %v1958 = vunpack.c.h.b16 %v1588
    %v1959 = vunpack.c.l.b16 %v1589
    %v1960 = vunpack.c.h.b16 %v1589
    %v1961 = vpack.c.b16 %v1901, %v1897
    %v1962 = vpack.c.b16 %v1902, %v1898
    %v1963 = vpack.c.b16 %v1903, %v1899
    %v1964 = vpack.c.b16 %v1904, %v1900
    %v1965 = vpack.c.b16 %v1909, %v1905
    %v1966 = vpack.c.b16 %v1910, %v1906
    %v1967 = vpack.c.b16 %v1911, %v1907
    %v1968 = vpack.c.b16 %v1912, %v1908
    %v1969 = vpack.c.b16 %v1917, %v1913
    %v1970 = vpack.c.b16 %v1918, %v1914
    %v1971 = vpack.c.b16 %v1919, %v1915
    %v1972 = vpack.c.b16 %v1920, %v1916
    %v1973 = vpack.c.b16 %v1925, %v1921
    %v1974 = vpack.c.b16 %v1926, %v1922
    %v1975 = vpack.c.b16 %v1927, %v1923
    %v1976 = vpack.c.b16 %v1928, %v1924
    %v1977 = vpack.c.b16 %v1933, %v1929
    %v1978 = vpack.c.b16 %v1934, %v1930
    %v1979 = vpack.c.b16 %v1935, %v1931
    %v1980 = vpack.c.b16 %v1936, %v1932
    %v1981 = vpack.c.b16 %v1941, %v1937
    %v1982 = vpack.c.b16 %v1942, %v1938
    %v1983 = vpack.c.b16 %v1943, %v1939
    %v1984 = vpack.c.b16 %v1944, %v1940
    %v1985 = vpack.c.b16 %v1949, %v1945
    %v1986 = vpack.c.b16 %v1950, %v1946
    %v1987 = vpack.c.b16 %v1951, %v1947
    %v1988 = vpack.c.b16 %v1952, %v1948
    %v1989 = vpack.c.b16 %v1957, %v1953
    %v1990 = vpack.c.b16 %v1958, %v1954
    %v1991 = vpack.c.b16 %v1959, %v1955
    %v1992 = vpack.c.b16 %v1960, %v1956
    %2025 = vmatprep.subr.bf16.mxu0 %v1990
    %2026 = vmatpush1.bf16.msra.mxu0 %v1989
    %2027 = vmatprep.subr.bf16.mxu0 %v1986
    %2028 = vmatpush1.bf16.msra.mxu0 %v1985
    %2029 = vmatprep.subr.bf16.mxu0 %v1982
    %2030 = vmatpush1.bf16.msra.mxu0 %v1981
    %2031 = vmatprep.subr.bf16.mxu0 %v1978
    %2032 = vmatpush1.bf16.msra.mxu0 %v1977
    %2033 = vmatprep.subr.bf16.mxu0 %v1974
    %2034 = vmatpush1.bf16.msra.mxu0 %v1973
    %2035 = vmatprep.subr.bf16.mxu0 %v1970
    %2036 = vmatpush1.bf16.msra.mxu0 %v1969
    %2037 = vmatprep.subr.bf16.mxu0 %v1966
    %2038 = vmatpush1.bf16.msra.mxu0 %v1965
    %2039 = vmatprep.subr.bf16.mxu0 %v1962
    %2040 = vmatpush1.bf16.msra.mxu0 %v1961
    %2041 = vmatprep.subr.bf16.mxu0 0
    %2042 = vmatpush2.bf16.msra.mxu0 0
    %2043 = vmatprep.subr.bf16.mxu0 0
    %2044 = vmatpush2.bf16.msra.mxu0 0
    %2045 = vmatprep.subr.bf16.mxu0 0
    %2046 = vmatpush2.bf16.msra.mxu0 0
    %2047 = vmatprep.subr.bf16.mxu0 0
    %2048 = vmatpush2.bf16.msra.mxu0 0
    %2049 = vmatprep.subr.bf16.mxu0 0
    %2050 = vmatpush2.bf16.msra.mxu0 0
    %2051 = vmatprep.subr.bf16.mxu0 0
    %2052 = vmatpush2.bf16.msra.mxu0 0
    %2053 = vmatprep.subr.bf16.mxu0 0
    %2054 = vmatpush2.bf16.msra.mxu0 0
    %2055 = vmatprep.subr.bf16.mxu0 0
    %2056 = vmatpush2.bf16.msra.mxu0 0
    %2057 = vmatprep.mubr.bf16.mxu0 0
    %2058 = vmatmul.mubr.bf16.gmra.mxu0 %v1557
    %v2059 = vpop.f32.mrf.mxu0
    %v2060 = vadd.f32 %v1818, %v2059
    %v2061 = vpop.f32.mrf.mxu0
    %v2062 = vadd.f32 %v1820, %v2061
    %v2063 = vpop.f32.mrf.mxu0
    %v2064 = vpop.f32.mrf.mxu0
    %2065 = vdwg.mxu0
    %2066 = vmatprep.subr.bf16.mxu0 %v1992
    %2067 = vmatpush1.bf16.msra.mxu0 %v1991
    %2068 = vmatprep.subr.bf16.mxu0 %v1988
    %2069 = vmatpush1.bf16.msra.mxu0 %v1987
    %2070 = vmatprep.subr.bf16.mxu0 %v1984
    %2071 = vmatpush1.bf16.msra.mxu0 %v1983
    %2072 = vmatprep.subr.bf16.mxu0 %v1980
    %2073 = vmatpush1.bf16.msra.mxu0 %v1979
    %2074 = vmatprep.subr.bf16.mxu0 %v1976
    %2075 = vmatpush1.bf16.msra.mxu0 %v1975
    %2076 = vmatprep.subr.bf16.mxu0 %v1972
    %2077 = vmatpush1.bf16.msra.mxu0 %v1971
    %2078 = vmatprep.subr.bf16.mxu0 %v1968
    %2079 = vmatpush1.bf16.msra.mxu0 %v1967
    %2080 = vmatprep.subr.bf16.mxu0 %v1964
    %2081 = vmatpush1.bf16.msra.mxu0 %v1963
    %2082 = vmatprep.subr.bf16.mxu0 0
    %2083 = vmatpush2.bf16.msra.mxu0 0
    %2084 = vmatprep.subr.bf16.mxu0 0
    %2085 = vmatpush2.bf16.msra.mxu0 0
    %2086 = vmatprep.subr.bf16.mxu0 0
    %2087 = vmatpush2.bf16.msra.mxu0 0
    %2088 = vmatprep.subr.bf16.mxu0 0
    %2089 = vmatpush2.bf16.msra.mxu0 0
    %2090 = vmatprep.subr.bf16.mxu0 0
    %2091 = vmatpush2.bf16.msra.mxu0 0
    %2092 = vmatprep.subr.bf16.mxu0 0
    %2093 = vmatpush2.bf16.msra.mxu0 0
    %2094 = vmatprep.subr.bf16.mxu0 0
    %2095 = vmatpush2.bf16.msra.mxu0 0
    %2096 = vmatprep.subr.bf16.mxu0 0
    %2097 = vmatpush2.bf16.msra.mxu0 0
    %2098 = vmatprep.mubr.bf16.mxu0 0
    %2099 = vmatmul.mubr.bf16.gmra.mxu0 %v1557
    %v2100 = vpop.f32.mrf.mxu0
    %v2101 = vadd.f32 %v1859, %v2100
    %v2102 = vpop.f32.mrf.mxu0
    %v2103 = vadd.f32 %v1861, %v2102
    %v2104 = vpop.f32.mrf.mxu0
    %v2105 = vpop.f32.mrf.mxu0
    %2106 = vdwg.mxu0
    %v2107 = vadd.f32 %v2060, %v344
    %v2108 = vadd.f32 %v2062, %v348
    %v2109 = vadd.f32 %v2101, %v352
    %v2110 = vadd.f32 %v2103, %v356
    %v2111 = vxor.u32 %v2107, 2147483648
    %v2112 = vxor.u32 %v2108, 2147483648
    %v2113 = vxor.u32 %v2109, 2147483648
    %v2114 = vmul.f32 %v2111, 1.442695
    %v2115 = vpow.pop %v2114
    %v2116 = vmul.f32 %v2112, 1.442695
    %v2117 = vpow.pop %v2116
    %v2118 = vmul.f32 %v2113, 1.442695
    %v2119 = vpow.pop %v2118
    %v2120 = vadd.f32 %v2115, 1.0
    %v2121 = vadd.f32 %v2117, 1.0
    %v2122 = vadd.f32 %v2119, 1.0
    %v2123 = vrcp.pop %v2120
    %v2124 = vmul.f32 1.0, %v2123
    %v2125 = vrcp.pop %v2121
    %v2126 = vmul.f32 1.0, %v2125
    %v2127 = vrcp.pop %v2122
    %v2128 = vmul.f32 1.0, %v2127
    %v2129 = vtanh.pop %v2110
    %v2130 = vmul.f32 %v2126, %v1244
    %v2131 = vmul.f32 %v2124, %v2129
    %v2132 = vadd.f32 %v2130, %v2131
    %v2133 = vtanh.pop %v2132
    %v2134 = vmul.f32 %v2128, %v2133
    %s2135 = scalar_lea.vmem [#allocation3], 8
    %2136 = vst [vmem:[%s2135] sm:$0xff] %v2134
    %s2137 = smul.u32 2, 4
    %s2138 = smul.addr %s2137, 8
    %s2139 = scalar_lea.vmem [#allocation2], %s2138
    %v2140 = vld [vmem:[%s2139] sm:$0xff]
    %v2141 = vld [vmem:[%s2139 + $0x8] sm:$0xff]
    %v2142 = vld [vmem:[%s2139 + $0x10] sm:$0xff]
    %v2143 = vld [vmem:[%s2139 + $0x18] sm:$0xff]
    %v2144 = vld [vmem:[%s3] sm:$0xff]
    %v2145 = vld [vmem:[%s3 + $0x8] sm:$0xff]
    %v2146 = vld [vmem:[%s3 + $0x10] sm:$0xff]
    %v2147 = vld [vmem:[%s3 + $0x18] sm:$0xff]
    %v2148 = vld [vmem:[%s3 + $0x20] sm:$0xff]
    %v2149 = vld [vmem:[%s3 + $0x28] sm:$0xff]
    %v2150 = vld [vmem:[%s3 + $0x30] sm:$0xff]
    %v2151 = vld [vmem:[%s3 + $0x38] sm:$0xff]
    %v2152 = vld [vmem:[%s3 + $0x40] sm:$0xff]
    %v2153 = vld [vmem:[%s3 + $0x48] sm:$0xff]
    %v2154 = vld [vmem:[%s3 + $0x50] sm:$0xff]
    %v2155 = vld [vmem:[%s3 + $0x58] sm:$0xff]
    %v2156 = vld [vmem:[%s3 + $0x60] sm:$0xff]
    %v2157 = vld [vmem:[%s3 + $0x68] sm:$0xff]
    %v2158 = vld [vmem:[%s3 + $0x70] sm:$0xff]
    %v2159 = vld [vmem:[%s3 + $0x78] sm:$0xff]
    %v2160 = vld [vmem:[%s3 + $0x80] sm:$0xff]
    %v2161 = vld [vmem:[%s3 + $0x88] sm:$0xff]
    %v2162 = vld [vmem:[%s3 + $0x90] sm:$0xff]
    %v2163 = vld [vmem:[%s3 + $0x98] sm:$0xff]
    %v2164 = vld [vmem:[%s3 + $0xa0] sm:$0xff]
    %v2165 = vld [vmem:[%s3 + $0xa8] sm:$0xff]
    %v2166 = vld [vmem:[%s3 + $0xb0] sm:$0xff]
    %v2167 = vld [vmem:[%s3 + $0xb8] sm:$0xff]
    %v2168 = vld [vmem:[%s3 + $0xc0] sm:$0xff]
    %v2169 = vld [vmem:[%s3 + $0xc8] sm:$0xff]
    %v2170 = vld [vmem:[%s3 + $0xd0] sm:$0xff]
    %v2171 = vld [vmem:[%s3 + $0xd8] sm:$0xff]
    %v2172 = vld [vmem:[%s3 + $0xe0] sm:$0xff]
    %v2173 = vld [vmem:[%s3 + $0xe8] sm:$0xff]
    %v2174 = vld [vmem:[%s3 + $0xf0] sm:$0xff]
    %v2175 = vld [vmem:[%s3 + $0xf8] sm:$0xff]
    %v2208 = vunpack.c.l.b16 %v2144
    %v2209 = vunpack.c.h.b16 %v2144
    %v2210 = vunpack.c.l.b16 %v2145
    %v2211 = vunpack.c.h.b16 %v2145
    %v2212 = vunpack.c.l.b16 %v2146
    %v2213 = vunpack.c.h.b16 %v2146
    %v2214 = vunpack.c.l.b16 %v2147
    %v2215 = vunpack.c.h.b16 %v2147
    %v2216 = vunpack.c.l.b16 %v2148
    %v2217 = vunpack.c.h.b16 %v2148
    %v2218 = vunpack.c.l.b16 %v2149
    %v2219 = vunpack.c.h.b16 %v2149
    %v2220 = vunpack.c.l.b16 %v2150
    %v2221 = vunpack.c.h.b16 %v2150
    %v2222 = vunpack.c.l.b16 %v2151
    %v2223 = vunpack.c.h.b16 %v2151
    %v2224 = vunpack.c.l.b16 %v2152
    %v2225 = vunpack.c.h.b16 %v2152
    %v2226 = vunpack.c.l.b16 %v2153
    %v2227 = vunpack.c.h.b16 %v2153
    %v2228 = vunpack.c.l.b16 %v2154
    %v2229 = vunpack.c.h.b16 %v2154
    %v2230 = vunpack.c.l.b16 %v2155
    %v2231 = vunpack.c.h.b16 %v2155
    %v2232 = vunpack.c.l.b16 %v2156
    %v2233 = vunpack.c.h.b16 %v2156
    %v2234 = vunpack.c.l.b16 %v2157
    %v2235 = vunpack.c.h.b16 %v2157
    %v2236 = vunpack.c.l.b16 %v2158
    %v2237 = vunpack.c.h.b16 %v2158
    %v2238 = vunpack.c.l.b16 %v2159
    %v2239 = vunpack.c.h.b16 %v2159
    %v2240 = vunpack.c.l.b16 %v2160
    %v2241 = vunpack.c.h.b16 %v2160
    %v2242 = vunpack.c.l.b16 %v2161
    %v2243 = vunpack.c.h.b16 %v2161
    %v2244 = vunpack.c.l.b16 %v2162
    %v2245 = vunpack.c.h.b16 %v2162
    %v2246 = vunpack.c.l.b16 %v2163
    %v2247 = vunpack.c.h.b16 %v2163
    %v2248 = vunpack.c.l.b16 %v2164
    %v2249 = vunpack.c.h.b16 %v2164
    %v2250 = vunpack.c.l.b16 %v2165
    %v2251 = vunpack.c.h.b16 %v2165
    %v2252 = vunpack.c.l.b16 %v2166
    %v2253 = vunpack.c.h.b16 %v2166
    %v2254 = vunpack.c.l.b16 %v2167
    %v2255 = vunpack.c.h.b16 %v2167
    %v2256 = vunpack.c.l.b16 %v2168
    %v2257 = vunpack.c.h.b16 %v2168
    %v2258 = vunpack.c.l.b16 %v2169
    %v2259 = vunpack.c.h.b16 %v2169
    %v2260 = vunpack.c.l.b16 %v2170
    %v2261 = vunpack.c.h.b16 %v2170
    %v2262 = vunpack.c.l.b16 %v2171
    %v2263 = vunpack.c.h.b16 %v2171
    %v2264 = vunpack.c.l.b16 %v2172
    %v2265 = vunpack.c.h.b16 %v2172
    %v2266 = vunpack.c.l.b16 %v2173
    %v2267 = vunpack.c.h.b16 %v2173
    %v2268 = vunpack.c.l.b16 %v2174
    %v2269 = vunpack.c.h.b16 %v2174
    %v2270 = vunpack.c.l.b16 %v2175
    %v2271 = vunpack.c.h.b16 %v2175
    %v2272 = vpack.c.b16 %v2212, %v2208
    %v2273 = vpack.c.b16 %v2213, %v2209
    %v2274 = vpack.c.b16 %v2214, %v2210
    %v2275 = vpack.c.b16 %v2215, %v2211
    %v2276 = vpack.c.b16 %v2220, %v2216
    %v2277 = vpack.c.b16 %v2221, %v2217
    %v2278 = vpack.c.b16 %v2222, %v2218
    %v2279 = vpack.c.b16 %v2223, %v2219
    %v2280 = vpack.c.b16 %v2228, %v2224
    %v2281 = vpack.c.b16 %v2229, %v2225
    %v2282 = vpack.c.b16 %v2230, %v2226
    %v2283 = vpack.c.b16 %v2231, %v2227
    %v2284 = vpack.c.b16 %v2236, %v2232
    %v2285 = vpack.c.b16 %v2237, %v2233
    %v2286 = vpack.c.b16 %v2238, %v2234
    %v2287 = vpack.c.b16 %v2239, %v2235
    %v2288 = vpack.c.b16 %v2244, %v2240
    %v2289 = vpack.c.b16 %v2245, %v2241
    %v2290 = vpack.c.b16 %v2246, %v2242
    %v2291 = vpack.c.b16 %v2247, %v2243
    %v2292 = vpack.c.b16 %v2252, %v2248
    %v2293 = vpack.c.b16 %v2253, %v2249
    %v2294 = vpack.c.b16 %v2254, %v2250
    %v2295 = vpack.c.b16 %v2255, %v2251
    %v2296 = vpack.c.b16 %v2260, %v2256
    %v2297 = vpack.c.b16 %v2261, %v2257
    %v2298 = vpack.c.b16 %v2262, %v2258
    %v2299 = vpack.c.b16 %v2263, %v2259
    %v2300 = vpack.c.b16 %v2268, %v2264
    %v2301 = vpack.c.b16 %v2269, %v2265
    %v2302 = vpack.c.b16 %v2270, %v2266
    %v2303 = vpack.c.b16 %v2271, %v2267
    %2336 = vmatprep.subr.bf16.mxu0 %v2301
    %2337 = vmatpush1.bf16.msra.mxu0 %v2300
    %2338 = vmatprep.subr.bf16.mxu0 %v2297
    %2339 = vmatpush1.bf16.msra.mxu0 %v2296
    %2340 = vmatprep.subr.bf16.mxu0 %v2293
    %2341 = vmatpush1.bf16.msra.mxu0 %v2292
    %2342 = vmatprep.subr.bf16.mxu0 %v2289
    %2343 = vmatpush1.bf16.msra.mxu0 %v2288
    %2344 = vmatprep.subr.bf16.mxu0 %v2285
    %2345 = vmatpush1.bf16.msra.mxu0 %v2284
    %2346 = vmatprep.subr.bf16.mxu0 %v2281
    %2347 = vmatpush1.bf16.msra.mxu0 %v2280
    %2348 = vmatprep.subr.bf16.mxu0 %v2277
    %2349 = vmatpush1.bf16.msra.mxu0 %v2276
    %2350 = vmatprep.subr.bf16.mxu0 %v2273
    %2351 = vmatpush1.bf16.msra.mxu0 %v2272
    %2352 = vmatprep.subr.bf16.mxu0 0
    %2353 = vmatpush2.bf16.msra.mxu0 0
    %2354 = vmatprep.subr.bf16.mxu0 0
    %2355 = vmatpush2.bf16.msra.mxu0 0
    %2356 = vmatprep.subr.bf16.mxu0 0
    %2357 = vmatpush2.bf16.msra.mxu0 0
    %2358 = vmatprep.subr.bf16.mxu0 0
    %2359 = vmatpush2.bf16.msra.mxu0 0
    %2360 = vmatprep.subr.bf16.mxu0 0
    %2361 = vmatpush2.bf16.msra.mxu0 0
    %2362 = vmatprep.subr.bf16.mxu0 0
    %2363 = vmatpush2.bf16.msra.mxu0 0
    %2364 = vmatprep.subr.bf16.mxu0 0
    %2365 = vmatpush2.bf16.msra.mxu0 0
    %2366 = vmatprep.subr.bf16.mxu0 0
    %2367 = vmatpush2.bf16.msra.mxu0 0
    %2368 = vmatprep.mubr.bf16.mxu0 0
    %2369 = vmatmul.mubr.bf16.gmra.mxu0 %v1557
    %v2370 = vpop.f32.mrf.mxu0
    %v2371 = vadd.f32 0.0, %v2370
    %v2372 = vpop.f32.mrf.mxu0
    %v2373 = vadd.f32 0.0, %v2372
    %v2374 = vpop.f32.mrf.mxu0
    %v2375 = vpop.f32.mrf.mxu0
    %2376 = vdwg.mxu0
    %2377 = vmatprep.subr.bf16.mxu0 %v2303
    %2378 = vmatpush1.bf16.msra.mxu0 %v2302
    %2379 = vmatprep.subr.bf16.mxu0 %v2299
    %2380 = vmatpush1.bf16.msra.mxu0 %v2298
    %2381 = vmatprep.subr.bf16.mxu0 %v2295
    %2382 = vmatpush1.bf16.msra.mxu0 %v2294
    %2383 = vmatprep.subr.bf16.mxu0 %v2291
    %2384 = vmatpush1.bf16.msra.mxu0 %v2290
    %2385 = vmatprep.subr.bf16.mxu0 %v2287
    %2386 = vmatpush1.bf16.msra.mxu0 %v2286
    %2387 = vmatprep.subr.bf16.mxu0 %v2283
    %2388 = vmatpush1.bf16.msra.mxu0 %v2282
    %2389 = vmatprep.subr.bf16.mxu0 %v2279
    %2390 = vmatpush1.bf16.msra.mxu0 %v2278
    %2391 = vmatprep.subr.bf16.mxu0 %v2275
    %2392 = vmatpush1.bf16.msra.mxu0 %v2274
    %2393 = vmatprep.subr.bf16.mxu0 0
    %2394 = vmatpush2.bf16.msra.mxu0 0
    %2395 = vmatprep.subr.bf16.mxu0 0
    %2396 = vmatpush2.bf16.msra.mxu0 0
    %2397 = vmatprep.subr.bf16.mxu0 0
    %2398 = vmatpush2.bf16.msra.mxu0 0
    %2399 = vmatprep.subr.bf16.mxu0 0
    %2400 = vmatpush2.bf16.msra.mxu0 0
    %2401 = vmatprep.subr.bf16.mxu0 0
    %2402 = vmatpush2.bf16.msra.mxu0 0
    %2403 = vmatprep.subr.bf16.mxu0 0
    %2404 = vmatpush2.bf16.msra.mxu0 0
    %2405 = vmatprep.subr.bf16.mxu0 0
    %2406 = vmatpush2.bf16.msra.mxu0 0
    %2407 = vmatprep.subr.bf16.mxu0 0
    %2408 = vmatpush2.bf16.msra.mxu0 0
    %2409 = vmatprep.mubr.bf16.mxu0 0
    %2410 = vmatmul.mubr.bf16.gmra.mxu0 %v1557
    %v2411 = vpop.f32.mrf.mxu0
    %v2412 = vadd.f32 0.0, %v2411
    %v2413 = vpop.f32.mrf.mxu0
    %v2414 = vadd.f32 0.0, %v2413
    %v2415 = vpop.f32.mrf.mxu0
    %v2416 = vpop.f32.mrf.mxu0
    %2417 = vdwg.mxu0
    %v2418 = vadd.f32 %v2140, %v2371
    %v2419 = vadd.f32 %v2141, %v2373
    %v2420 = vadd.f32 %v2142, %v2412
    %v2421 = vadd.f32 %v2143, %v2414
    %v2422 = vxor.u32 %v2418, 2147483648
    %v2423 = vxor.u32 %v2419, 2147483648
    %v2424 = vxor.u32 %v2420, 2147483648
    %v2425 = vmul.f32 %v2422, 1.442695
    %v2426 = vpow.pop %v2425
    %v2427 = vmul.f32 %v2423, 1.442695
    %v2428 = vpow.pop %v2427
    %v2429 = vmul.f32 %v2424, 1.442695
    %v2430 = vpow.pop %v2429
    %v2431 = vadd.f32 %v2426, 1.0
    %v2432 = vadd.f32 %v2428, 1.0
    %v2433 = vadd.f32 %v2430, 1.0
    %v2434 = vrcp.pop %v2431
    %v2435 = vmul.f32 1.0, %v2434
    %v2436 = vrcp.pop %v2432
    %v2437 = vmul.f32 1.0, %v2436
    %v2438 = vrcp.pop %v2433
    %v2439 = vmul.f32 1.0, %v2438
    %v2440 = vtanh.pop %v2421
    %v2441 = vmul.f32 %v2437, %v1554
    %v2442 = vmul.f32 %v2435, %v2440
    %v2443 = vadd.f32 %v2441, %v2442
    %v2444 = vtanh.pop %v2443
    %v2445 = vmul.f32 %v2439, %v2444
    %v2446 = vpack.c.bf16 %v2445, %v2445
    %v2447 = vld [vmem:[#allocation4] sm:$0xff]
    %v2448 = vld [vmem:[#allocation4 + $0x8] sm:$0xff]
    %v2449 = vld [vmem:[#allocation4 + $0x10] sm:$0xff]
    %v2450 = vld [vmem:[#allocation4 + $0x18] sm:$0xff]
    %v2451 = vld [vmem:[#allocation4 + $0x20] sm:$0xff]
    %v2452 = vld [vmem:[#allocation4 + $0x28] sm:$0xff]
    %v2453 = vld [vmem:[#allocation4 + $0x30] sm:$0xff]
    %v2454 = vld [vmem:[#allocation4 + $0x38] sm:$0xff]
    %v2455 = vld [vmem:[#allocation4 + $0x40] sm:$0xff]
    %v2456 = vld [vmem:[#allocation4 + $0x48] sm:$0xff]
    %v2457 = vld [vmem:[#allocation4 + $0x50] sm:$0xff]
    %v2458 = vld [vmem:[#allocation4 + $0x58] sm:$0xff]
    %v2459 = vld [vmem:[#allocation4 + $0x60] sm:$0xff]
    %v2460 = vld [vmem:[#allocation4 + $0x68] sm:$0xff]
    %v2461 = vld [vmem:[#allocation4 + $0x70] sm:$0xff]
    %v2462 = vld [vmem:[#allocation4 + $0x78] sm:$0xff]
    %v2463 = vld [vmem:[#allocation4 + $0x80] sm:$0xff]
    %v2464 = vld [vmem:[#allocation4 + $0x88] sm:$0xff]
    %v2465 = vld [vmem:[#allocation4 + $0x90] sm:$0xff]
    %v2466 = vld [vmem:[#allocation4 + $0x98] sm:$0xff]
    %v2467 = vld [vmem:[#allocation4 + $0xa0] sm:$0xff]
    %v2468 = vld [vmem:[#allocation4 + $0xa8] sm:$0xff]
    %v2469 = vld [vmem:[#allocation4 + $0xb0] sm:$0xff]
    %v2470 = vld [vmem:[#allocation4 + $0xb8] sm:$0xff]
    %v2471 = vld [vmem:[#allocation4 + $0xc0] sm:$0xff]
    %v2472 = vld [vmem:[#allocation4 + $0xc8] sm:$0xff]
    %v2473 = vld [vmem:[#allocation4 + $0xd0] sm:$0xff]
    %v2474 = vld [vmem:[#allocation4 + $0xd8] sm:$0xff]
    %v2475 = vld [vmem:[#allocation4 + $0xe0] sm:$0xff]
    %v2476 = vld [vmem:[#allocation4 + $0xe8] sm:$0xff]
    %v2477 = vld [vmem:[#allocation4 + $0xf0] sm:$0xff]
    %v2478 = vld [vmem:[#allocation4 + $0xf8] sm:$0xff]
    %v2479 = vpack.c.bf16 %v2134, %v2134
    %v2480 = vld [vmem:[#allocation6] sm:$0xff]
    %v2481 = vld [vmem:[#allocation6 + $0x8] sm:$0xff]
    %v2482 = vld [vmem:[#allocation6 + $0x10] sm:$0xff]
    %v2483 = vld [vmem:[#allocation6 + $0x18] sm:$0xff]
    %v2484 = vld [vmem:[#allocation6 + $0x20] sm:$0xff]
    %v2485 = vld [vmem:[#allocation6 + $0x28] sm:$0xff]
    %v2486 = vld [vmem:[#allocation6 + $0x30] sm:$0xff]
    %v2487 = vld [vmem:[#allocation6 + $0x38] sm:$0xff]
    %v2488 = vld [vmem:[#allocation6 + $0x40] sm:$0xff]
    %v2489 = vld [vmem:[#allocation6 + $0x48] sm:$0xff]
    %v2490 = vld [vmem:[#allocation6 + $0x50] sm:$0xff]
    %v2491 = vld [vmem:[#allocation6 + $0x58] sm:$0xff]
    %v2492 = vld [vmem:[#allocation6 + $0x60] sm:$0xff]
    %v2493 = vld [vmem:[#allocation6 + $0x68] sm:$0xff]
    %v2494 = vld [vmem:[#allocation6 + $0x70] sm:$0xff]
    %v2495 = vld [vmem:[#allocation6 + $0x78] sm:$0xff]
    %v2496 = vld [vmem:[#allocation6 + $0x80] sm:$0xff]
    %v2497 = vld [vmem:[#allocation6 + $0x88] sm:$0xff]
    %v2498 = vld [vmem:[#allocation6 + $0x90] sm:$0xff]
    %v2499 = vld [vmem:[#allocation6 + $0x98] sm:$0xff]
    %v2500 = vld [vmem:[#allocation6 + $0xa0] sm:$0xff]
    %v2501 = vld [vmem:[#allocation6 + $0xa8] sm:$0xff]
    %v2502 = vld [vmem:[#allocation6 + $0xb0] sm:$0xff]
    %v2503 = vld [vmem:[#allocation6 + $0xb8] sm:$0xff]
    %v2504 = vld [vmem:[#allocation6 + $0xc0] sm:$0xff]
    %v2505 = vld [vmem:[#allocation6 + $0xc8] sm:$0xff]
    %v2506 = vld [vmem:[#allocation6 + $0xd0] sm:$0xff]
    %v2507 = vld [vmem:[#allocation6 + $0xd8] sm:$0xff]
    %v2508 = vld [vmem:[#allocation6 + $0xe0] sm:$0xff]
    %v2509 = vld [vmem:[#allocation6 + $0xe8] sm:$0xff]
    %v2510 = vld [vmem:[#allocation6 + $0xf0] sm:$0xff]
    %v2511 = vld [vmem:[#allocation6 + $0xf8] sm:$0xff]
    %v2544 = vunpack.c.l.b16 %v2480
    %v2545 = vunpack.c.h.b16 %v2480
    %v2546 = vunpack.c.l.b16 %v2481
    %v2547 = vunpack.c.h.b16 %v2481
    %v2548 = vunpack.c.l.b16 %v2482
    %v2549 = vunpack.c.h.b16 %v2482
    %v2550 = vunpack.c.l.b16 %v2483
    %v2551 = vunpack.c.h.b16 %v2483
    %v2552 = vunpack.c.l.b16 %v2484
    %v2553 = vunpack.c.h.b16 %v2484
    %v2554 = vunpack.c.l.b16 %v2485
    %v2555 = vunpack.c.h.b16 %v2485
    %v2556 = vunpack.c.l.b16 %v2486
    %v2557 = vunpack.c.h.b16 %v2486
    %v2558 = vunpack.c.l.b16 %v2487
    %v2559 = vunpack.c.h.b16 %v2487
    %v2560 = vunpack.c.l.b16 %v2488
    %v2561 = vunpack.c.h.b16 %v2488
    %v2562 = vunpack.c.l.b16 %v2489
    %v2563 = vunpack.c.h.b16 %v2489
    %v2564 = vunpack.c.l.b16 %v2490
    %v2565 = vunpack.c.h.b16 %v2490
    %v2566 = vunpack.c.l.b16 %v2491
    %v2567 = vunpack.c.h.b16 %v2491
    %v2568 = vunpack.c.l.b16 %v2492
    %v2569 = vunpack.c.h.b16 %v2492
    %v2570 = vunpack.c.l.b16 %v2493
    %v2571 = vunpack.c.h.b16 %v2493
    %v2572 = vunpack.c.l.b16 %v2494
    %v2573 = vunpack.c.h.b16 %v2494
    %v2574 = vunpack.c.l.b16 %v2495
    %v2575 = vunpack.c.h.b16 %v2495
    %v2576 = vunpack.c.l.b16 %v2496
    %v2577 = vunpack.c.h.b16 %v2496
    %v2578 = vunpack.c.l.b16 %v2497
    %v2579 = vunpack.c.h.b16 %v2497
    %v2580 = vunpack.c.l.b16 %v2498
    %v2581 = vunpack.c.h.b16 %v2498
    %v2582 = vunpack.c.l.b16 %v2499
    %v2583 = vunpack.c.h.b16 %v2499
    %v2584 = vunpack.c.l.b16 %v2500
    %v2585 = vunpack.c.h.b16 %v2500
    %v2586 = vunpack.c.l.b16 %v2501
    %v2587 = vunpack.c.h.b16 %v2501
    %v2588 = vunpack.c.l.b16 %v2502
    %v2589 = vunpack.c.h.b16 %v2502
    %v2590 = vunpack.c.l.b16 %v2503
    %v2591 = vunpack.c.h.b16 %v2503
    %v2592 = vunpack.c.l.b16 %v2504
    %v2593 = vunpack.c.h.b16 %v2504
    %v2594 = vunpack.c.l.b16 %v2505
    %v2595 = vunpack.c.h.b16 %v2505
    %v2596 = vunpack.c.l.b16 %v2506
    %v2597 = vunpack.c.h.b16 %v2506
    %v2598 = vunpack.c.l.b16 %v2507
    %v2599 = vunpack.c.h.b16 %v2507
    %v2600 = vunpack.c.l.b16 %v2508
    %v2601 = vunpack.c.h.b16 %v2508
    %v2602 = vunpack.c.l.b16 %v2509
    %v2603 = vunpack.c.h.b16 %v2509
    %v2604 = vunpack.c.l.b16 %v2510
    %v2605 = vunpack.c.h.b16 %v2510
    %v2606 = vunpack.c.l.b16 %v2511
    %v2607 = vunpack.c.h.b16 %v2511
    %v2608 = vpack.c.b16 %v2548, %v2544
    %v2609 = vpack.c.b16 %v2549, %v2545
    %v2610 = vpack.c.b16 %v2550, %v2546
    %v2611 = vpack.c.b16 %v2551, %v2547
    %v2612 = vpack.c.b16 %v2556, %v2552
    %v2613 = vpack.c.b16 %v2557, %v2553
    %v2614 = vpack.c.b16 %v2558, %v2554
    %v2615 = vpack.c.b16 %v2559, %v2555
    %v2616 = vpack.c.b16 %v2564, %v2560
    %v2617 = vpack.c.b16 %v2565, %v2561
    %v2618 = vpack.c.b16 %v2566, %v2562
    %v2619 = vpack.c.b16 %v2567, %v2563
    %v2620 = vpack.c.b16 %v2572, %v2568
    %v2621 = vpack.c.b16 %v2573, %v2569
    %v2622 = vpack.c.b16 %v2574, %v2570
    %v2623 = vpack.c.b16 %v2575, %v2571
    %v2624 = vpack.c.b16 %v2580, %v2576
    %v2625 = vpack.c.b16 %v2581, %v2577
    %v2626 = vpack.c.b16 %v2582, %v2578
    %v2627 = vpack.c.b16 %v2583, %v2579
    %v2628 = vpack.c.b16 %v2588, %v2584
    %v2629 = vpack.c.b16 %v2589, %v2585
    %v2630 = vpack.c.b16 %v2590, %v2586
    %v2631 = vpack.c.b16 %v2591, %v2587
    %v2632 = vpack.c.b16 %v2596, %v2592
    %v2633 = vpack.c.b16 %v2597, %v2593
    %v2634 = vpack.c.b16 %v2598, %v2594
    %v2635 = vpack.c.b16 %v2599, %v2595
    %v2636 = vpack.c.b16 %v2604, %v2600
    %v2637 = vpack.c.b16 %v2605, %v2601
    %v2638 = vpack.c.b16 %v2606, %v2602
    %v2639 = vpack.c.b16 %v2607, %v2603
    %2672 = vmatprep.subr.bf16.mxu0 %v2637
    %2673 = vmatpush1.bf16.msra.mxu0 %v2636
    %2674 = vmatprep.subr.bf16.mxu0 %v2633
    %2675 = vmatpush1.bf16.msra.mxu0 %v2632
    %2676 = vmatprep.subr.bf16.mxu0 %v2629
    %2677 = vmatpush1.bf16.msra.mxu0 %v2628
    %2678 = vmatprep.subr.bf16.mxu0 %v2625
    %2679 = vmatpush1.bf16.msra.mxu0 %v2624
    %2680 = vmatprep.subr.bf16.mxu0 %v2621
    %2681 = vmatpush1.bf16.msra.mxu0 %v2620
    %2682 = vmatprep.subr.bf16.mxu0 %v2617
    %2683 = vmatpush1.bf16.msra.mxu0 %v2616
    %2684 = vmatprep.subr.bf16.mxu0 %v2613
    %2685 = vmatpush1.bf16.msra.mxu0 %v2612
    %2686 = vmatprep.subr.bf16.mxu0 %v2609
    %2687 = vmatpush1.bf16.msra.mxu0 %v2608
    %2688 = vmatprep.subr.bf16.mxu0 0
    %2689 = vmatpush2.bf16.msra.mxu0 0
    %2690 = vmatprep.subr.bf16.mxu0 0
    %2691 = vmatpush2.bf16.msra.mxu0 0
    %2692 = vmatprep.subr.bf16.mxu0 0
    %2693 = vmatpush2.bf16.msra.mxu0 0
    %2694 = vmatprep.subr.bf16.mxu0 0
    %2695 = vmatpush2.bf16.msra.mxu0 0
    %2696 = vmatprep.subr.bf16.mxu0 0
    %2697 = vmatpush2.bf16.msra.mxu0 0
    %2698 = vmatprep.subr.bf16.mxu0 0
    %2699 = vmatpush2.bf16.msra.mxu0 0
    %2700 = vmatprep.subr.bf16.mxu0 0
    %2701 = vmatpush2.bf16.msra.mxu0 0
    %2702 = vmatprep.subr.bf16.mxu0 0
    %2703 = vmatpush2.bf16.msra.mxu0 0
    %2704 = vmatprep.mubr.bf16.mxu0 0
    %2705 = vmatmul.mubr.bf16.gmra.mxu0 %v2479
    %v2706 = vpop.f32.mrf.mxu0
    %v2707 = vadd.f32 0.0, %v2706
    %v2708 = vpop.f32.mrf.mxu0
    %v2709 = vadd.f32 0.0, %v2708
    %v2710 = vpop.f32.mrf.mxu0
    %v2711 = vpop.f32.mrf.mxu0
    %2712 = vdwg.mxu0
    %2713 = vmatprep.subr.bf16.mxu0 %v2639
    %2714 = vmatpush1.bf16.msra.mxu0 %v2638
    %2715 = vmatprep.subr.bf16.mxu0 %v2635
    %2716 = vmatpush1.bf16.msra.mxu0 %v2634
    %2717 = vmatprep.subr.bf16.mxu0 %v2631
    %2718 = vmatpush1.bf16.msra.mxu0 %v2630
    %2719 = vmatprep.subr.bf16.mxu0 %v2627
    %2720 = vmatpush1.bf16.msra.mxu0 %v2626
    %2721 = vmatprep.subr.bf16.mxu0 %v2623
    %2722 = vmatpush1.bf16.msra.mxu0 %v2622
    %2723 = vmatprep.subr.bf16.mxu0 %v2619
    %2724 = vmatpush1.bf16.msra.mxu0 %v2618
    %2725 = vmatprep.subr.bf16.mxu0 %v2615
    %2726 = vmatpush1.bf16.msra.mxu0 %v2614
    %2727 = vmatprep.subr.bf16.mxu0 %v2611
    %2728 = vmatpush1.bf16.msra.mxu0 %v2610
    %2729 = vmatprep.subr.bf16.mxu0 0
    %2730 = vmatpush2.bf16.msra.mxu0 0
    %2731 = vmatprep.subr.bf16.mxu0 0
    %2732 = vmatpush2.bf16.msra.mxu0 0
    %2733 = vmatprep.subr.bf16.mxu0 0
    %2734 = vmatpush2.bf16.msra.mxu0 0
    %2735 = vmatprep.subr.bf16.mxu0 0
    %2736 = vmatpush2.bf16.msra.mxu0 0
    %2737 = vmatprep.subr.bf16.mxu0 0
    %2738 = vmatpush2.bf16.msra.mxu0 0
    %2739 = vmatprep.subr.bf16.mxu0 0
    %2740 = vmatpush2.bf16.msra.mxu0 0
    %2741 = vmatprep.subr.bf16.mxu0 0
    %2742 = vmatpush2.bf16.msra.mxu0 0
    %2743 = vmatprep.subr.bf16.mxu0 0
    %2744 = vmatpush2.bf16.msra.mxu0 0
    %2745 = vmatprep.mubr.bf16.mxu0 0
    %2746 = vmatmul.mubr.bf16.gmra.mxu0 %v2479
    %v2747 = vpop.f32.mrf.mxu0
    %v2748 = vadd.f32 0.0, %v2747
    %v2749 = vpop.f32.mrf.mxu0
    %v2750 = vadd.f32 0.0, %v2749
    %v2751 = vpop.f32.mrf.mxu0
    %v2752 = vpop.f32.mrf.mxu0
    %2753 = vdwg.mxu0
    %v2786 = vunpack.c.l.b16 %v2447
    %v2787 = vunpack.c.h.b16 %v2447
    %v2788 = vunpack.c.l.b16 %v2448
    %v2789 = vunpack.c.h.b16 %v2448
    %v2790 = vunpack.c.l.b16 %v2449
    %v2791 = vunpack.c.h.b16 %v2449
    %v2792 = vunpack.c.l.b16 %v2450
    %v2793 = vunpack.c.h.b16 %v2450
    %v2794 = vunpack.c.l.b16 %v2451
    %v2795 = vunpack.c.h.b16 %v2451
    %v2796 = vunpack.c.l.b16 %v2452
    %v2797 = vunpack.c.h.b16 %v2452
    %v2798 = vunpack.c.l.b16 %v2453
    %v2799 = vunpack.c.h.b16 %v2453
    %v2800 = vunpack.c.l.b16 %v2454
    %v2801 = vunpack.c.h.b16 %v2454
    %v2802 = vunpack.c.l.b16 %v2455
    %v2803 = vunpack.c.h.b16 %v2455
    %v2804 = vunpack.c.l.b16 %v2456
    %v2805 = vunpack.c.h.b16 %v2456
    %v2806 = vunpack.c.l.b16 %v2457
    %v2807 = vunpack.c.h.b16 %v2457
    %v2808 = vunpack.c.l.b16 %v2458
    %v2809 = vunpack.c.h.b16 %v2458
    %v2810 = vunpack.c.l.b16 %v2459
    %v2811 = vunpack.c.h.b16 %v2459
    %v2812 = vunpack.c.l.b16 %v2460
    %v2813 = vunpack.c.h.b16 %v2460
    %v2814 = vunpack.c.l.b16 %v2461
    %v2815 = vunpack.c.h.b16 %v2461
    %v2816 = vunpack.c.l.b16 %v2462
    %v2817 = vunpack.c.h.b16 %v2462
    %v2818 = vunpack.c.l.b16 %v2463
    %v2819 = vunpack.c.h.b16 %v2463
    %v2820 = vunpack.c.l.b16 %v2464
    %v2821 = vunpack.c.h.b16 %v2464
    %v2822 = vunpack.c.l.b16 %v2465
    %v2823 = vunpack.c.h.b16 %v2465
    %v2824 = vunpack.c.l.b16 %v2466
    %v2825 = vunpack.c.h.b16 %v2466
    %v2826 = vunpack.c.l.b16 %v2467
    %v2827 = vunpack.c.h.b16 %v2467
    %v2828 = vunpack.c.l.b16 %v2468
    %v2829 = vunpack.c.h.b16 %v2468
    %v2830 = vunpack.c.l.b16 %v2469
    %v2831 = vunpack.c.h.b16 %v2469
    %v2832 = vunpack.c.l.b16 %v2470
    %v2833 = vunpack.c.h.b16 %v2470
    %v2834 = vunpack.c.l.b16 %v2471
    %v2835 = vunpack.c.h.b16 %v2471
    %v2836 = vunpack.c.l.b16 %v2472
    %v2837 = vunpack.c.h.b16 %v2472
    %v2838 = vunpack.c.l.b16 %v2473
    %v2839 = vunpack.c.h.b16 %v2473
    %v2840 = vunpack.c.l.b16 %v2474
    %v2841 = vunpack.c.h.b16 %v2474
    %v2842 = vunpack.c.l.b16 %v2475
    %v2843 = vunpack.c.h.b16 %v2475
    %v2844 = vunpack.c.l.b16 %v2476
    %v2845 = vunpack.c.h.b16 %v2476
    %v2846 = vunpack.c.l.b16 %v2477
    %v2847 = vunpack.c.h.b16 %v2477
    %v2848 = vunpack.c.l.b16 %v2478
    %v2849 = vunpack.c.h.b16 %v2478
    %v2850 = vpack.c.b16 %v2790, %v2786
    %v2851 = vpack.c.b16 %v2791, %v2787
    %v2852 = vpack.c.b16 %v2792, %v2788
    %v2853 = vpack.c.b16 %v2793, %v2789
    %v2854 = vpack.c.b16 %v2798, %v2794
    %v2855 = vpack.c.b16 %v2799, %v2795
    %v2856 = vpack.c.b16 %v2800, %v2796
    %v2857 = vpack.c.b16 %v2801, %v2797
    %v2858 = vpack.c.b16 %v2806, %v2802
    %v2859 = vpack.c.b16 %v2807, %v2803
    %v2860 = vpack.c.b16 %v2808, %v2804
    %v2861 = vpack.c.b16 %v2809, %v2805
    %v2862 = vpack.c.b16 %v2814, %v2810
    %v2863 = vpack.c.b16 %v2815, %v2811
    %v2864 = vpack.c.b16 %v2816, %v2812
    %v2865 = vpack.c.b16 %v2817, %v2813
    %v2866 = vpack.c.b16 %v2822, %v2818
    %v2867 = vpack.c.b16 %v2823, %v2819
    %v2868 = vpack.c.b16 %v2824, %v2820
    %v2869 = vpack.c.b16 %v2825, %v2821
    %v2870 = vpack.c.b16 %v2830, %v2826
    %v2871 = vpack.c.b16 %v2831, %v2827
    %v2872 = vpack.c.b16 %v2832, %v2828
    %v2873 = vpack.c.b16 %v2833, %v2829
    %v2874 = vpack.c.b16 %v2838, %v2834
    %v2875 = vpack.c.b16 %v2839, %v2835
    %v2876 = vpack.c.b16 %v2840, %v2836
    %v2877 = vpack.c.b16 %v2841, %v2837
    %v2878 = vpack.c.b16 %v2846, %v2842
    %v2879 = vpack.c.b16 %v2847, %v2843
    %v2880 = vpack.c.b16 %v2848, %v2844
    %v2881 = vpack.c.b16 %v2849, %v2845
    %2914 = vmatprep.subr.bf16.mxu0 %v2879
    %2915 = vmatpush1.bf16.msra.mxu0 %v2878
    %2916 = vmatprep.subr.bf16.mxu0 %v2875
    %2917 = vmatpush1.bf16.msra.mxu0 %v2874
    %2918 = vmatprep.subr.bf16.mxu0 %v2871
    %2919 = vmatpush1.bf16.msra.mxu0 %v2870
    %2920 = vmatprep.subr.bf16.mxu0 %v2867
    %2921 = vmatpush1.bf16.msra.mxu0 %v2866
    %2922 = vmatprep.subr.bf16.mxu0 %v2863
    %2923 = vmatpush1.bf16.msra.mxu0 %v2862
    %2924 = vmatprep.subr.bf16.mxu0 %v2859
    %2925 = vmatpush1.bf16.msra.mxu0 %v2858
    %2926 = vmatprep.subr.bf16.mxu0 %v2855
    %2927 = vmatpush1.bf16.msra.mxu0 %v2854
    %2928 = vmatprep.subr.bf16.mxu0 %v2851
    %2929 = vmatpush1.bf16.msra.mxu0 %v2850
    %2930 = vmatprep.subr.bf16.mxu0 0
    %2931 = vmatpush2.bf16.msra.mxu0 0
    %2932 = vmatprep.subr.bf16.mxu0 0
    %2933 = vmatpush2.bf16.msra.mxu0 0
    %2934 = vmatprep.subr.bf16.mxu0 0
    %2935 = vmatpush2.bf16.msra.mxu0 0
    %2936 = vmatprep.subr.bf16.mxu0 0
    %2937 = vmatpush2.bf16.msra.mxu0 0
    %2938 = vmatprep.subr.bf16.mxu0 0
    %2939 = vmatpush2.bf16.msra.mxu0 0
    %2940 = vmatprep.subr.bf16.mxu0 0
    %2941 = vmatpush2.bf16.msra.mxu0 0
    %2942 = vmatprep.subr.bf16.mxu0 0
    %2943 = vmatpush2.bf16.msra.mxu0 0
    %2944 = vmatprep.subr.bf16.mxu0 0
    %2945 = vmatpush2.bf16.msra.mxu0 0
    %2946 = vmatprep.mubr.bf16.mxu0 0
    %2947 = vmatmul.mubr.bf16.gmra.mxu0 %v2446
    %v2948 = vpop.f32.mrf.mxu0
    %v2949 = vadd.f32 %v2707, %v2948
    %v2950 = vpop.f32.mrf.mxu0
    %v2951 = vadd.f32 %v2709, %v2950
    %v2952 = vpop.f32.mrf.mxu0
    %v2953 = vpop.f32.mrf.mxu0
    %2954 = vdwg.mxu0
    %2955 = vmatprep.subr.bf16.mxu0 %v2881
    %2956 = vmatpush1.bf16.msra.mxu0 %v2880
    %2957 = vmatprep.subr.bf16.mxu0 %v2877
    %2958 = vmatpush1.bf16.msra.mxu0 %v2876
    %2959 = vmatprep.subr.bf16.mxu0 %v2873
    %2960 = vmatpush1.bf16.msra.mxu0 %v2872
    %2961 = vmatprep.subr.bf16.mxu0 %v2869
    %2962 = vmatpush1.bf16.msra.mxu0 %v2868
    %2963 = vmatprep.subr.bf16.mxu0 %v2865
    %2964 = vmatpush1.bf16.msra.mxu0 %v2864
    %2965 = vmatprep.subr.bf16.mxu0 %v2861
    %2966 = vmatpush1.bf16.msra.mxu0 %v2860
    %2967 = vmatprep.subr.bf16.mxu0 %v2857
    %2968 = vmatpush1.bf16.msra.mxu0 %v2856
    %2969 = vmatprep.subr.bf16.mxu0 %v2853
    %2970 = vmatpush1.bf16.msra.mxu0 %v2852
    %2971 = vmatprep.subr.bf16.mxu0 0
    %2972 = vmatpush2.bf16.msra.mxu0 0
    %2973 = vmatprep.subr.bf16.mxu0 0
    %2974 = vmatpush2.bf16.msra.mxu0 0
    %2975 = vmatprep.subr.bf16.mxu0 0
    %2976 = vmatpush2.bf16.msra.mxu0 0
    %2977 = vmatprep.subr.bf16.mxu0 0
    %2978 = vmatpush2.bf16.msra.mxu0 0
    %2979 = vmatprep.subr.bf16.mxu0 0
    %2980 = vmatpush2.bf16.msra.mxu0 0
    %2981 = vmatprep.subr.bf16.mxu0 0
    %2982 = vmatpush2.bf16.msra.mxu0 0
    %2983 = vmatprep.subr.bf16.mxu0 0
    %2984 = vmatpush2.bf16.msra.mxu0 0
    %2985 = vmatprep.subr.bf16.mxu0 0
    %2986 = vmatpush2.bf16.msra.mxu0 0
    %2987 = vmatprep.mubr.bf16.mxu0 0
    %2988 = vmatmul.mubr.bf16.gmra.mxu0 %v2446
    %v2989 = vpop.f32.mrf.mxu0
    %v2990 = vadd.f32 %v2748, %v2989
    %v2991 = vpop.f32.mrf.mxu0
    %v2992 = vadd.f32 %v2750, %v2991
    %v2993 = vpop.f32.mrf.mxu0
    %v2994 = vpop.f32.mrf.mxu0
    %2995 = vdwg.mxu0
    %v2996 = vadd.f32 %v2949, %v344
    %v2997 = vadd.f32 %v2951, %v348
    %v2998 = vadd.f32 %v2990, %v352
    %v2999 = vadd.f32 %v2992, %v356
    %v3000 = vxor.u32 %v2996, 2147483648
    %v3001 = vxor.u32 %v2997, 2147483648
    %v3002 = vxor.u32 %v2998, 2147483648
    %v3003 = vmul.f32 %v3000, 1.442695
    %v3004 = vpow.pop %v3003
    %v3005 = vmul.f32 %v3001, 1.442695
    %v3006 = vpow.pop %v3005
    %v3007 = vmul.f32 %v3002, 1.442695
    %v3008 = vpow.pop %v3007
    %v3009 = vadd.f32 %v3004, 1.0
    %v3010 = vadd.f32 %v3006, 1.0
    %v3011 = vadd.f32 %v3008, 1.0
    %v3012 = vrcp.pop %v3009
    %v3013 = vmul.f32 1.0, %v3012
    %v3014 = vrcp.pop %v3010
    %v3015 = vmul.f32 1.0, %v3014
    %v3016 = vrcp.pop %v3011
    %v3017 = vmul.f32 1.0, %v3016
    %v3018 = vtanh.pop %v2999
    %v3019 = vmul.f32 %v3015, %v2132
    %v3020 = vmul.f32 %v3013, %v3018
    %v3021 = vadd.f32 %v3019, %v3020
    %v3022 = vtanh.pop %v3021
    %v3023 = vmul.f32 %v3017, %v3022
    %s3024 = scalar_lea.vmem [#allocation3], 16
    %3025 = vst [vmem:[%s3024] sm:$0xff] %v3023
    %s3026 = smul.u32 3, 4
    %s3027 = smul.addr %s3026, 8
    %s3028 = scalar_lea.vmem [#allocation2], %s3027
    %v3029 = vld [vmem:[%s3028] sm:$0xff]
    %v3030 = vld [vmem:[%s3028 + $0x8] sm:$0xff]
    %v3031 = vld [vmem:[%s3028 + $0x10] sm:$0xff]
    %v3032 = vld [vmem:[%s3028 + $0x18] sm:$0xff]
    %v3033 = vld [vmem:[%s3] sm:$0xff]
    %v3034 = vld [vmem:[%s3 + $0x8] sm:$0xff]
    %v3035 = vld [vmem:[%s3 + $0x10] sm:$0xff]
    %v3036 = vld [vmem:[%s3 + $0x18] sm:$0xff]
    %v3037 = vld [vmem:[%s3 + $0x20] sm:$0xff]
    %v3038 = vld [vmem:[%s3 + $0x28] sm:$0xff]
    %v3039 = vld [vmem:[%s3 + $0x30] sm:$0xff]
    %v3040 = vld [vmem:[%s3 + $0x38] sm:$0xff]
    %v3041 = vld [vmem:[%s3 + $0x40] sm:$0xff]
    %v3042 = vld [vmem:[%s3 + $0x48] sm:$0xff]
    %v3043 = vld [vmem:[%s3 + $0x50] sm:$0xff]
    %v3044 = vld [vmem:[%s3 + $0x58] sm:$0xff]
    %v3045 = vld [vmem:[%s3 + $0x60] sm:$0xff]
    %v3046 = vld [vmem:[%s3 + $0x68] sm:$0xff]
    %v3047 = vld [vmem:[%s3 + $0x70] sm:$0xff]
    %v3048 = vld [vmem:[%s3 + $0x78] sm:$0xff]
    %v3049 = vld [vmem:[%s3 + $0x80] sm:$0xff]
    %v3050 = vld [vmem:[%s3 + $0x88] sm:$0xff]
    %v3051 = vld [vmem:[%s3 + $0x90] sm:$0xff]
    %v3052 = vld [vmem:[%s3 + $0x98] sm:$0xff]
    %v3053 = vld [vmem:[%s3 + $0xa0] sm:$0xff]
    %v3054 = vld [vmem:[%s3 + $0xa8] sm:$0xff]
    %v3055 = vld [vmem:[%s3 + $0xb0] sm:$0xff]
    %v3056 = vld [vmem:[%s3 + $0xb8] sm:$0xff]
    %v3057 = vld [vmem:[%s3 + $0xc0] sm:$0xff]
    %v3058 = vld [vmem:[%s3 + $0xc8] sm:$0xff]
    %v3059 = vld [vmem:[%s3 + $0xd0] sm:$0xff]
    %v3060 = vld [vmem:[%s3 + $0xd8] sm:$0xff]
    %v3061 = vld [vmem:[%s3 + $0xe0] sm:$0xff]
    %v3062 = vld [vmem:[%s3 + $0xe8] sm:$0xff]
    %v3063 = vld [vmem:[%s3 + $0xf0] sm:$0xff]
    %v3064 = vld [vmem:[%s3 + $0xf8] sm:$0xff]
    %v3097 = vunpack.c.l.b16 %v3033
    %v3098 = vunpack.c.h.b16 %v3033
    %v3099 = vunpack.c.l.b16 %v3034
    %v3100 = vunpack.c.h.b16 %v3034
    %v3101 = vunpack.c.l.b16 %v3035
    %v3102 = vunpack.c.h.b16 %v3035
    %v3103 = vunpack.c.l.b16 %v3036
    %v3104 = vunpack.c.h.b16 %v3036
    %v3105 = vunpack.c.l.b16 %v3037
    %v3106 = vunpack.c.h.b16 %v3037
    %v3107 = vunpack.c.l.b16 %v3038
    %v3108 = vunpack.c.h.b16 %v3038
    %v3109 = vunpack.c.l.b16 %v3039
    %v3110 = vunpack.c.h.b16 %v3039
    %v3111 = vunpack.c.l.b16 %v3040
    %v3112 = vunpack.c.h.b16 %v3040
    %v3113 = vunpack.c.l.b16 %v3041
    %v3114 = vunpack.c.h.b16 %v3041
    %v3115 = vunpack.c.l.b16 %v3042
    %v3116 = vunpack.c.h.b16 %v3042
    %v3117 = vunpack.c.l.b16 %v3043
    %v3118 = vunpack.c.h.b16 %v3043
    %v3119 = vunpack.c.l.b16 %v3044
    %v3120 = vunpack.c.h.b16 %v3044
    %v3121 = vunpack.c.l.b16 %v3045
    %v3122 = vunpack.c.h.b16 %v3045
    %v3123 = vunpack.c.l.b16 %v3046
    %v3124 = vunpack.c.h.b16 %v3046
    %v3125 = vunpack.c.l.b16 %v3047
    %v3126 = vunpack.c.h.b16 %v3047
    %v3127 = vunpack.c.l.b16 %v3048
    %v3128 = vunpack.c.h.b16 %v3048
    %v3129 = vunpack.c.l.b16 %v3049
    %v3130 = vunpack.c.h.b16 %v3049
    %v3131 = vunpack.c.l.b16 %v3050
    %v3132 = vunpack.c.h.b16 %v3050
    %v3133 = vunpack.c.l.b16 %v3051
    %v3134 = vunpack.c.h.b16 %v3051
    %v3135 = vunpack.c.l.b16 %v3052
    %v3136 = vunpack.c.h.b16 %v3052
    %v3137 = vunpack.c.l.b16 %v3053
    %v3138 = vunpack.c.h.b16 %v3053
    %v3139 = vunpack.c.l.b16 %v3054
    %v3140 = vunpack.c.h.b16 %v3054
    %v3141 = vunpack.c.l.b16 %v3055
    %v3142 = vunpack.c.h.b16 %v3055
    %v3143 = vunpack.c.l.b16 %v3056
    %v3144 = vunpack.c.h.b16 %v3056
    %v3145 = vunpack.c.l.b16 %v3057
    %v3146 = vunpack.c.h.b16 %v3057
    %v3147 = vunpack.c.l.b16 %v3058
    %v3148 = vunpack.c.h.b16 %v3058
    %v3149 = vunpack.c.l.b16 %v3059
    %v3150 = vunpack.c.h.b16 %v3059
    %v3151 = vunpack.c.l.b16 %v3060
    %v3152 = vunpack.c.h.b16 %v3060
    %v3153 = vunpack.c.l.b16 %v3061
    %v3154 = vunpack.c.h.b16 %v3061
    %v3155 = vunpack.c.l.b16 %v3062
    %v3156 = vunpack.c.h.b16 %v3062
    %v3157 = vunpack.c.l.b16 %v3063
    %v3158 = vunpack.c.h.b16 %v3063
    %v3159 = vunpack.c.l.b16 %v3064
    %v3160 = vunpack.c.h.b16 %v3064
    %v3161 = vpack.c.b16 %v3101, %v3097
    %v3162 = vpack.c.b16 %v3102, %v3098
    %v3163 = vpack.c.b16 %v3103, %v3099
    %v3164 = vpack.c.b16 %v3104, %v3100
    %v3165 = vpack.c.b16 %v3109, %v3105
    %v3166 = vpack.c.b16 %v3110, %v3106
    %v3167 = vpack.c.b16 %v3111, %v3107
    %v3168 = vpack.c.b16 %v3112, %v3108
    %v3169 = vpack.c.b16 %v3117, %v3113
    %v3170 = vpack.c.b16 %v3118, %v3114
    %v3171 = vpack.c.b16 %v3119, %v3115
    %v3172 = vpack.c.b16 %v3120, %v3116
    %v3173 = vpack.c.b16 %v3125, %v3121
    %v3174 = vpack.c.b16 %v3126, %v3122
    %v3175 = vpack.c.b16 %v3127, %v3123
    %v3176 = vpack.c.b16 %v3128, %v3124
    %v3177 = vpack.c.b16 %v3133, %v3129
    %v3178 = vpack.c.b16 %v3134, %v3130
    %v3179 = vpack.c.b16 %v3135, %v3131
    %v3180 = vpack.c.b16 %v3136, %v3132
    %v3181 = vpack.c.b16 %v3141, %v3137
    %v3182 = vpack.c.b16 %v3142, %v3138
    %v3183 = vpack.c.b16 %v3143, %v3139
    %v3184 = vpack.c.b16 %v3144, %v3140
    %v3185 = vpack.c.b16 %v3149, %v3145
    %v3186 = vpack.c.b16 %v3150, %v3146
    %v3187 = vpack.c.b16 %v3151, %v3147
    %v3188 = vpack.c.b16 %v3152, %v3148
    %v3189 = vpack.c.b16 %v3157, %v3153
    %v3190 = vpack.c.b16 %v3158, %v3154
    %v3191 = vpack.c.b16 %v3159, %v3155
    %v3192 = vpack.c.b16 %v3160, %v3156
    %3225 = vmatprep.subr.bf16.mxu0 %v3190
    %3226 = vmatpush1.bf16.msra.mxu0 %v3189
    %3227 = vmatprep.subr.bf16.mxu0 %v3186
    %3228 = vmatpush1.bf16.msra.mxu0 %v3185
    %3229 = vmatprep.subr.bf16.mxu0 %v3182
    %3230 = vmatpush1.bf16.msra.mxu0 %v3181
    %3231 = vmatprep.subr.bf16.mxu0 %v3178
    %3232 = vmatpush1.bf16.msra.mxu0 %v3177
    %3233 = vmatprep.subr.bf16.mxu0 %v3174
    %3234 = vmatpush1.bf16.msra.mxu0 %v3173
    %3235 = vmatprep.subr.bf16.mxu0 %v3170
    %3236 = vmatpush1.bf16.msra.mxu0 %v3169
    %3237 = vmatprep.subr.bf16.mxu0 %v3166
    %3238 = vmatpush1.bf16.msra.mxu0 %v3165
    %3239 = vmatprep.subr.bf16.mxu0 %v3162
    %3240 = vmatpush1.bf16.msra.mxu0 %v3161
    %3241 = vmatprep.subr.bf16.mxu0 0
    %3242 = vmatpush2.bf16.msra.mxu0 0
    %3243 = vmatprep.subr.bf16.mxu0 0
    %3244 = vmatpush2.bf16.msra.mxu0 0
    %3245 = vmatprep.subr.bf16.mxu0 0
    %3246 = vmatpush2.bf16.msra.mxu0 0
    %3247 = vmatprep.subr.bf16.mxu0 0
    %3248 = vmatpush2.bf16.msra.mxu0 0
    %3249 = vmatprep.subr.bf16.mxu0 0
    %3250 = vmatpush2.bf16.msra.mxu0 0
    %3251 = vmatprep.subr.bf16.mxu0 0
    %3252 = vmatpush2.bf16.msra.mxu0 0
    %3253 = vmatprep.subr.bf16.mxu0 0
    %3254 = vmatpush2.bf16.msra.mxu0 0
    %3255 = vmatprep.subr.bf16.mxu0 0
    %3256 = vmatpush2.bf16.msra.mxu0 0
    %3257 = vmatprep.mubr.bf16.mxu0 0
    %3258 = vmatmul.mubr.bf16.gmra.mxu0 %v2446
    %v3259 = vpop.f32.mrf.mxu0
    %v3260 = vadd.f32 0.0, %v3259
    %v3261 = vpop.f32.mrf.mxu0
    %v3262 = vadd.f32 0.0, %v3261
    %v3263 = vpop.f32.mrf.mxu0
    %v3264 = vpop.f32.mrf.mxu0
    %3265 = vdwg.mxu0
    %3266 = vmatprep.subr.bf16.mxu0 %v3192
    %3267 = vmatpush1.bf16.msra.mxu0 %v3191
    %3268 = vmatprep.subr.bf16.mxu0 %v3188
    %3269 = vmatpush1.bf16.msra.mxu0 %v3187
    %3270 = vmatprep.subr.bf16.mxu0 %v3184
    %3271 = vmatpush1.bf16.msra.mxu0 %v3183
    %3272 = vmatprep.subr.bf16.mxu0 %v3180
    %3273 = vmatpush1.bf16.msra.mxu0 %v3179
    %3274 = vmatprep.subr.bf16.mxu0 %v3176
    %3275 = vmatpush1.bf16.msra.mxu0 %v3175
    %3276 = vmatprep.subr.bf16.mxu0 %v3172
    %3277 = vmatpush1.bf16.msra.mxu0 %v3171
    %3278 = vmatprep.subr.bf16.mxu0 %v3168
    %3279 = vmatpush1.bf16.msra.mxu0 %v3167
    %3280 = vmatprep.subr.bf16.mxu0 %v3164
    %3281 = vmatpush1.bf16.msra.mxu0 %v3163
    %3282 = vmatprep.subr.bf16.mxu0 0
    %3283 = vmatpush2.bf16.msra.mxu0 0
    %3284 = vmatprep.subr.bf16.mxu0 0
    %3285 = vmatpush2.bf16.msra.mxu0 0
    %3286 = vmatprep.subr.bf16.mxu0 0
    %3287 = vmatpush2.bf16.msra.mxu0 0
    %3288 = vmatprep.subr.bf16.mxu0 0
    %3289 = vmatpush2.bf16.msra.mxu0 0
    %3290 = vmatprep.subr.bf16.mxu0 0
    %3291 = vmatpush2.bf16.msra.mxu0 0
    %3292 = vmatprep.subr.bf16.mxu0 0
    %3293 = vmatpush2.bf16.msra.mxu0 0
    %3294 = vmatprep.subr.bf16.mxu0 0
    %3295 = vmatpush2.bf16.msra.mxu0 0
    %3296 = vmatprep.subr.bf16.mxu0 0
    %3297 = vmatpush2.bf16.msra.mxu0 0
    %3298 = vmatprep.mubr.bf16.mxu0 0
    %3299 = vmatmul.mubr.bf16.gmra.mxu0 %v2446
    %v3300 = vpop.f32.mrf.mxu0
    %v3301 = vadd.f32 0.0, %v3300
    %v3302 = vpop.f32.mrf.mxu0
    %v3303 = vadd.f32 0.0, %v3302
    %v3304 = vpop.f32.mrf.mxu0
    %v3305 = vpop.f32.mrf.mxu0
    %3306 = vdwg.mxu0
    %v3307 = vadd.f32 %v3029, %v3260
    %v3308 = vadd.f32 %v3030, %v3262
    %v3309 = vadd.f32 %v3031, %v3301
    %v3310 = vadd.f32 %v3032, %v3303
    %v3311 = vxor.u32 %v3307, 2147483648
    %v3312 = vxor.u32 %v3308, 2147483648
    %v3313 = vxor.u32 %v3309, 2147483648
    %v3314 = vmul.f32 %v3311, 1.442695
    %v3315 = vpow.pop %v3314
    %v3316 = vmul.f32 %v3312, 1.442695
    %v3317 = vpow.pop %v3316
    %v3318 = vmul.f32 %v3313, 1.442695
    %v3319 = vpow.pop %v3318
    %v3320 = vadd.f32 %v3315, 1.0
    %v3321 = vadd.f32 %v3317, 1.0
    %v3322 = vadd.f32 %v3319, 1.0
    %v3323 = vrcp.pop %v3320
    %v3324 = vmul.f32 1.0, %v3323
    %v3325 = vrcp.pop %v3321
    %v3326 = vmul.f32 1.0, %v3325
    %v3327 = vrcp.pop %v3322
    %v3328 = vmul.f32 1.0, %v3327
    %v3329 = vtanh.pop %v3310
    %v3330 = vmul.f32 %v3326, %v2443
    %v3331 = vmul.f32 %v3324, %v3329
    %v3332 = vadd.f32 %v3330, %v3331
    %v3333 = vtanh.pop %v3332
    %v3334 = vmul.f32 %v3328, %v3333
    %v3335 = vpack.c.bf16 %v3334, %v3334
    %v3336 = vld [vmem:[#allocation4] sm:$0xff]
    %v3337 = vld [vmem:[#allocation4 + $0x8] sm:$0xff]
    %v3338 = vld [vmem:[#allocation4 + $0x10] sm:$0xff]
    %v3339 = vld [vmem:[#allocation4 + $0x18] sm:$0xff]
    %v3340 = vld [vmem:[#allocation4 + $0x20] sm:$0xff]
    %v3341 = vld [vmem:[#allocation4 + $0x28] sm:$0xff]
    %v3342 = vld [vmem:[#allocation4 + $0x30] sm:$0xff]
    %v3343 = vld [vmem:[#allocation4 + $0x38] sm:$0xff]
    %v3344 = vld [vmem:[#allocation4 + $0x40] sm:$0xff]
    %v3345 = vld [vmem:[#allocation4 + $0x48] sm:$0xff]
    %v3346 = vld [vmem:[#allocation4 + $0x50] sm:$0xff]
    %v3347 = vld [vmem:[#allocation4 + $0x58] sm:$0xff]
    %v3348 = vld [vmem:[#allocation4 + $0x60] sm:$0xff]
    %v3349 = vld [vmem:[#allocation4 + $0x68] sm:$0xff]
    %v3350 = vld [vmem:[#allocation4 + $0x70] sm:$0xff]
    %v3351 = vld [vmem:[#allocation4 + $0x78] sm:$0xff]
    %v3352 = vld [vmem:[#allocation4 + $0x80] sm:$0xff]
    %v3353 = vld [vmem:[#allocation4 + $0x88] sm:$0xff]
    %v3354 = vld [vmem:[#allocation4 + $0x90] sm:$0xff]
    %v3355 = vld [vmem:[#allocation4 + $0x98] sm:$0xff]
    %v3356 = vld [vmem:[#allocation4 + $0xa0] sm:$0xff]
    %v3357 = vld [vmem:[#allocation4 + $0xa8] sm:$0xff]
    %v3358 = vld [vmem:[#allocation4 + $0xb0] sm:$0xff]
    %v3359 = vld [vmem:[#allocation4 + $0xb8] sm:$0xff]
    %v3360 = vld [vmem:[#allocation4 + $0xc0] sm:$0xff]
    %v3361 = vld [vmem:[#allocation4 + $0xc8] sm:$0xff]
    %v3362 = vld [vmem:[#allocation4 + $0xd0] sm:$0xff]
    %v3363 = vld [vmem:[#allocation4 + $0xd8] sm:$0xff]
    %v3364 = vld [vmem:[#allocation4 + $0xe0] sm:$0xff]
    %v3365 = vld [vmem:[#allocation4 + $0xe8] sm:$0xff]
    %v3366 = vld [vmem:[#allocation4 + $0xf0] sm:$0xff]
    %v3367 = vld [vmem:[#allocation4 + $0xf8] sm:$0xff]
    %v3368 = vpack.c.bf16 %v3023, %v3023
    %v3369 = vld [vmem:[#allocation6] sm:$0xff]
    %v3370 = vld [vmem:[#allocation6 + $0x8] sm:$0xff]
    %v3371 = vld [vmem:[#allocation6 + $0x10] sm:$0xff]
    %v3372 = vld [vmem:[#allocation6 + $0x18] sm:$0xff]
    %v3373 = vld [vmem:[#allocation6 + $0x20] sm:$0xff]
    %v3374 = vld [vmem:[#allocation6 + $0x28] sm:$0xff]
    %v3375 = vld [vmem:[#allocation6 + $0x30] sm:$0xff]
    %v3376 = vld [vmem:[#allocation6 + $0x38] sm:$0xff]
    %v3377 = vld [vmem:[#allocation6 + $0x40] sm:$0xff]
    %v3378 = vld [vmem:[#allocation6 + $0x48] sm:$0xff]
    %v3379 = vld [vmem:[#allocation6 + $0x50] sm:$0xff]
    %v3380 = vld [vmem:[#allocation6 + $0x58] sm:$0xff]
    %v3381 = vld [vmem:[#allocation6 + $0x60] sm:$0xff]
    %v3382 = vld [vmem:[#allocation6 + $0x68] sm:$0xff]
    %v3383 = vld [vmem:[#allocation6 + $0x70] sm:$0xff]
    %v3384 = vld [vmem:[#allocation6 + $0x78] sm:$0xff]
    %v3385 = vld [vmem:[#allocation6 + $0x80] sm:$0xff]
    %v3386 = vld [vmem:[#allocation6 + $0x88] sm:$0xff]
    %v3387 = vld [vmem:[#allocation6 + $0x90] sm:$0xff]
    %v3388 = vld [vmem:[#allocation6 + $0x98] sm:$0xff]
    %v3389 = vld [vmem:[#allocation6 + $0xa0] sm:$0xff]
    %v3390 = vld [vmem:[#allocation6 + $0xa8] sm:$0xff]
    %v3391 = vld [vmem:[#allocation6 + $0xb0] sm:$0xff]
    %v3392 = vld [vmem:[#allocation6 + $0xb8] sm:$0xff]
    %v3393 = vld [vmem:[#allocation6 + $0xc0] sm:$0xff]
    %v3394 = vld [vmem:[#allocation6 + $0xc8] sm:$0xff]
    %v3395 = vld [vmem:[#allocation6 + $0xd0] sm:$0xff]
    %v3396 = vld [vmem:[#allocation6 + $0xd8] sm:$0xff]
    %v3397 = vld [vmem:[#allocation6 + $0xe0] sm:$0xff]
    %v3398 = vld [vmem:[#allocation6 + $0xe8] sm:$0xff]
    %v3399 = vld [vmem:[#allocation6 + $0xf0] sm:$0xff]
    %v3400 = vld [vmem:[#allocation6 + $0xf8] sm:$0xff]
    %v3433 = vunpack.c.l.b16 %v3369
    %v3434 = vunpack.c.h.b16 %v3369
    %v3435 = vunpack.c.l.b16 %v3370
    %v3436 = vunpack.c.h.b16 %v3370
    %v3437 = vunpack.c.l.b16 %v3371
    %v3438 = vunpack.c.h.b16 %v3371
    %v3439 = vunpack.c.l.b16 %v3372
    %v3440 = vunpack.c.h.b16 %v3372
    %v3441 = vunpack.c.l.b16 %v3373
    %v3442 = vunpack.c.h.b16 %v3373
    %v3443 = vunpack.c.l.b16 %v3374
    %v3444 = vunpack.c.h.b16 %v3374
    %v3445 = vunpack.c.l.b16 %v3375
    %v3446 = vunpack.c.h.b16 %v3375
    %v3447 = vunpack.c.l.b16 %v3376
    %v3448 = vunpack.c.h.b16 %v3376
    %v3449 = vunpack.c.l.b16 %v3377
    %v3450 = vunpack.c.h.b16 %v3377
    %v3451 = vunpack.c.l.b16 %v3378
    %v3452 = vunpack.c.h.b16 %v3378
    %v3453 = vunpack.c.l.b16 %v3379
    %v3454 = vunpack.c.h.b16 %v3379
    %v3455 = vunpack.c.l.b16 %v3380
    %v3456 = vunpack.c.h.b16 %v3380
    %v3457 = vunpack.c.l.b16 %v3381
    %v3458 = vunpack.c.h.b16 %v3381
    %v3459 = vunpack.c.l.b16 %v3382
    %v3460 = vunpack.c.h.b16 %v3382
    %v3461 = vunpack.c.l.b16 %v3383
    %v3462 = vunpack.c.h.b16 %v3383
    %v3463 = vunpack.c.l.b16 %v3384
    %v3464 = vunpack.c.h.b16 %v3384
    %v3465 = vunpack.c.l.b16 %v3385
    %v3466 = vunpack.c.h.b16 %v3385
    %v3467 = vunpack.c.l.b16 %v3386
    %v3468 = vunpack.c.h.b16 %v3386
    %v3469 = vunpack.c.l.b16 %v3387
    %v3470 = vunpack.c.h.b16 %v3387
    %v3471 = vunpack.c.l.b16 %v3388
    %v3472 = vunpack.c.h.b16 %v3388
    %v3473 = vunpack.c.l.b16 %v3389
    %v3474 = vunpack.c.h.b16 %v3389
    %v3475 = vunpack.c.l.b16 %v3390
    %v3476 = vunpack.c.h.b16 %v3390
    %v3477 = vunpack.c.l.b16 %v3391
    %v3478 = vunpack.c.h.b16 %v3391
    %v3479 = vunpack.c.l.b16 %v3392
    %v3480 = vunpack.c.h.b16 %v3392
    %v3481 = vunpack.c.l.b16 %v3393
    %v3482 = vunpack.c.h.b16 %v3393
    %v3483 = vunpack.c.l.b16 %v3394
    %v3484 = vunpack.c.h.b16 %v3394
    %v3485 = vunpack.c.l.b16 %v3395
    %v3486 = vunpack.c.h.b16 %v3395
    %v3487 = vunpack.c.l.b16 %v3396
    %v3488 = vunpack.c.h.b16 %v3396
    %v3489 = vunpack.c.l.b16 %v3397
    %v3490 = vunpack.c.h.b16 %v3397
    %v3491 = vunpack.c.l.b16 %v3398
    %v3492 = vunpack.c.h.b16 %v3398
    %v3493 = vunpack.c.l.b16 %v3399
    %v3494 = vunpack.c.h.b16 %v3399
    %v3495 = vunpack.c.l.b16 %v3400
    %v3496 = vunpack.c.h.b16 %v3400
    %v3497 = vpack.c.b16 %v3437, %v3433
    %v3498 = vpack.c.b16 %v3438, %v3434
    %v3499 = vpack.c.b16 %v3439, %v3435
    %v3500 = vpack.c.b16 %v3440, %v3436
    %v3501 = vpack.c.b16 %v3445, %v3441
    %v3502 = vpack.c.b16 %v3446, %v3442
    %v3503 = vpack.c.b16 %v3447, %v3443
    %v3504 = vpack.c.b16 %v3448, %v3444
    %v3505 = vpack.c.b16 %v3453, %v3449
    %v3506 = vpack.c.b16 %v3454, %v3450
    %v3507 = vpack.c.b16 %v3455, %v3451
    %v3508 = vpack.c.b16 %v3456, %v3452
    %v3509 = vpack.c.b16 %v3461, %v3457
    %v3510 = vpack.c.b16 %v3462, %v3458
    %v3511 = vpack.c.b16 %v3463, %v3459
    %v3512 = vpack.c.b16 %v3464, %v3460
    %v3513 = vpack.c.b16 %v3469, %v3465
    %v3514 = vpack.c.b16 %v3470, %v3466
    %v3515 = vpack.c.b16 %v3471, %v3467
    %v3516 = vpack.c.b16 %v3472, %v3468
    %v3517 = vpack.c.b16 %v3477, %v3473
    %v3518 = vpack.c.b16 %v3478, %v3474
    %v3519 = vpack.c.b16 %v3479, %v3475
    %v3520 = vpack.c.b16 %v3480, %v3476
    %v3521 = vpack.c.b16 %v3485, %v3481
    %v3522 = vpack.c.b16 %v3486, %v3482
    %v3523 = vpack.c.b16 %v3487, %v3483
    %v3524 = vpack.c.b16 %v3488, %v3484
    %v3525 = vpack.c.b16 %v3493, %v3489
    %v3526 = vpack.c.b16 %v3494, %v3490
    %v3527 = vpack.c.b16 %v3495, %v3491
    %v3528 = vpack.c.b16 %v3496, %v3492
    %3561 = vmatprep.subr.bf16.mxu0 %v3526
    %3562 = vmatpush1.bf16.msra.mxu0 %v3525
    %3563 = vmatprep.subr.bf16.mxu0 %v3522
    %3564 = vmatpush1.bf16.msra.mxu0 %v3521
    %3565 = vmatprep.subr.bf16.mxu0 %v3518
    %3566 = vmatpush1.bf16.msra.mxu0 %v3517
    %3567 = vmatprep.subr.bf16.mxu0 %v3514
    %3568 = vmatpush1.bf16.msra.mxu0 %v3513
    %3569 = vmatprep.subr.bf16.mxu0 %v3510
    %3570 = vmatpush1.bf16.msra.mxu0 %v3509
    %3571 = vmatprep.subr.bf16.mxu0 %v3506
    %3572 = vmatpush1.bf16.msra.mxu0 %v3505
    %3573 = vmatprep.subr.bf16.mxu0 %v3502
    %3574 = vmatpush1.bf16.msra.mxu0 %v3501
    %3575 = vmatprep.subr.bf16.mxu0 %v3498
    %3576 = vmatpush1.bf16.msra.mxu0 %v3497
    %3577 = vmatprep.subr.bf16.mxu0 0
    %3578 = vmatpush2.bf16.msra.mxu0 0
    %3579 = vmatprep.subr.bf16.mxu0 0
    %3580 = vmatpush2.bf16.msra.mxu0 0
    %3581 = vmatprep.subr.bf16.mxu0 0
    %3582 = vmatpush2.bf16.msra.mxu0 0
    %3583 = vmatprep.subr.bf16.mxu0 0
    %3584 = vmatpush2.bf16.msra.mxu0 0
    %3585 = vmatprep.subr.bf16.mxu0 0
    %3586 = vmatpush2.bf16.msra.mxu0 0
    %3587 = vmatprep.subr.bf16.mxu0 0
    %3588 = vmatpush2.bf16.msra.mxu0 0
    %3589 = vmatprep.subr.bf16.mxu0 0
    %3590 = vmatpush2.bf16.msra.mxu0 0
    %3591 = vmatprep.subr.bf16.mxu0 0
    %3592 = vmatpush2.bf16.msra.mxu0 0
    %3593 = vmatprep.mubr.bf16.mxu0 0
    %3594 = vmatmul.mubr.bf16.gmra.mxu0 %v3368
    %v3595 = vpop.f32.mrf.mxu0
    %v3596 = vadd.f32 0.0, %v3595
    %v3597 = vpop.f32.mrf.mxu0
    %v3598 = vadd.f32 0.0, %v3597
    %v3599 = vpop.f32.mrf.mxu0
    %v3600 = vpop.f32.mrf.mxu0
    %3601 = vdwg.mxu0
    %3602 = vmatprep.subr.bf16.mxu0 %v3528
    %3603 = vmatpush1.bf16.msra.mxu0 %v3527
    %3604 = vmatprep.subr.bf16.mxu0 %v3524
    %3605 = vmatpush1.bf16.msra.mxu0 %v3523
    %3606 = vmatprep.subr.bf16.mxu0 %v3520
    %3607 = vmatpush1.bf16.msra.mxu0 %v3519
    %3608 = vmatprep.subr.bf16.mxu0 %v3516
    %3609 = vmatpush1.bf16.msra.mxu0 %v3515
    %3610 = vmatprep.subr.bf16.mxu0 %v3512
    %3611 = vmatpush1.bf16.msra.mxu0 %v3511
    %3612 = vmatprep.subr.bf16.mxu0 %v3508
    %3613 = vmatpush1.bf16.msra.mxu0 %v3507
    %3614 = vmatprep.subr.bf16.mxu0 %v3504
    %3615 = vmatpush1.bf16.msra.mxu0 %v3503
    %3616 = vmatprep.subr.bf16.mxu0 %v3500
    %3617 = vmatpush1.bf16.msra.mxu0 %v3499
    %3618 = vmatprep.subr.bf16.mxu0 0
    %3619 = vmatpush2.bf16.msra.mxu0 0
    %3620 = vmatprep.subr.bf16.mxu0 0
    %3621 = vmatpush2.bf16.msra.mxu0 0
    %3622 = vmatprep.subr.bf16.mxu0 0
    %3623 = vmatpush2.bf16.msra.mxu0 0
    %3624 = vmatprep.subr.bf16.mxu0 0
    %3625 = vmatpush2.bf16.msra.mxu0 0
    %3626 = vmatprep.subr.bf16.mxu0 0
    %3627 = vmatpush2.bf16.msra.mxu0 0
    %3628 = vmatprep.subr.bf16.mxu0 0
    %3629 = vmatpush2.bf16.msra.mxu0 0
    %3630 = vmatprep.subr.bf16.mxu0 0
    %3631 = vmatpush2.bf16.msra.mxu0 0
    %3632 = vmatprep.subr.bf16.mxu0 0
    %3633 = vmatpush2.bf16.msra.mxu0 0
    %3634 = vmatprep.mubr.bf16.mxu0 0
    %3635 = vmatmul.mubr.bf16.gmra.mxu0 %v3368
    %v3636 = vpop.f32.mrf.mxu0
    %v3637 = vadd.f32 0.0, %v3636
    %v3638 = vpop.f32.mrf.mxu0
    %v3639 = vadd.f32 0.0, %v3638
    %v3640 = vpop.f32.mrf.mxu0
    %v3641 = vpop.f32.mrf.mxu0
    %3642 = vdwg.mxu0
    %v3675 = vunpack.c.l.b16 %v3336
    %v3676 = vunpack.c.h.b16 %v3336
    %v3677 = vunpack.c.l.b16 %v3337
    %v3678 = vunpack.c.h.b16 %v3337
    %v3679 = vunpack.c.l.b16 %v3338
    %v3680 = vunpack.c.h.b16 %v3338
    %v3681 = vunpack.c.l.b16 %v3339
    %v3682 = vunpack.c.h.b16 %v3339
    %v3683 = vunpack.c.l.b16 %v3340
    %v3684 = vunpack.c.h.b16 %v3340
    %v3685 = vunpack.c.l.b16 %v3341
    %v3686 = vunpack.c.h.b16 %v3341
    %v3687 = vunpack.c.l.b16 %v3342
    %v3688 = vunpack.c.h.b16 %v3342
    %v3689 = vunpack.c.l.b16 %v3343
    %v3690 = vunpack.c.h.b16 %v3343
    %v3691 = vunpack.c.l.b16 %v3344
    %v3692 = vunpack.c.h.b16 %v3344
    %v3693 = vunpack.c.l.b16 %v3345
    %v3694 = vunpack.c.h.b16 %v3345
    %v3695 = vunpack.c.l.b16 %v3346
    %v3696 = vunpack.c.h.b16 %v3346
    %v3697 = vunpack.c.l.b16 %v3347
    %v3698 = vunpack.c.h.b16 %v3347
    %v3699 = vunpack.c.l.b16 %v3348
    %v3700 = vunpack.c.h.b16 %v3348
    %v3701 = vunpack.c.l.b16 %v3349
    %v3702 = vunpack.c.h.b16 %v3349
    %v3703 = vunpack.c.l.b16 %v3350
    %v3704 = vunpack.c.h.b16 %v3350
    %v3705 = vunpack.c.l.b16 %v3351
    %v3706 = vunpack.c.h.b16 %v3351
    %v3707 = vunpack.c.l.b16 %v3352
    %v3708 = vunpack.c.h.b16 %v3352
    %v3709 = vunpack.c.l.b16 %v3353
    %v3710 = vunpack.c.h.b16 %v3353
    %v3711 = vunpack.c.l.b16 %v3354
    %v3712 = vunpack.c.h.b16 %v3354
    %v3713 = vunpack.c.l.b16 %v3355
    %v3714 = vunpack.c.h.b16 %v3355
    %v3715 = vunpack.c.l.b16 %v3356
    %v3716 = vunpack.c.h.b16 %v3356
    %v3717 = vunpack.c.l.b16 %v3357
    %v3718 = vunpack.c.h.b16 %v3357
    %v3719 = vunpack.c.l.b16 %v3358
    %v3720 = vunpack.c.h.b16 %v3358
    %v3721 = vunpack.c.l.b16 %v3359
    %v3722 = vunpack.c.h.b16 %v3359
    %v3723 = vunpack.c.l.b16 %v3360
    %v3724 = vunpack.c.h.b16 %v3360
    %v3725 = vunpack.c.l.b16 %v3361
    %v3726 = vunpack.c.h.b16 %v3361
    %v3727 = vunpack.c.l.b16 %v3362
    %v3728 = vunpack.c.h.b16 %v3362
    %v3729 = vunpack.c.l.b16 %v3363
    %v3730 = vunpack.c.h.b16 %v3363
    %v3731 = vunpack.c.l.b16 %v3364
    %v3732 = vunpack.c.h.b16 %v3364
    %v3733 = vunpack.c.l.b16 %v3365
    %v3734 = vunpack.c.h.b16 %v3365
    %v3735 = vunpack.c.l.b16 %v3366
    %v3736 = vunpack.c.h.b16 %v3366
    %v3737 = vunpack.c.l.b16 %v3367
    %v3738 = vunpack.c.h.b16 %v3367
    %v3739 = vpack.c.b16 %v3679, %v3675
    %v3740 = vpack.c.b16 %v3680, %v3676
    %v3741 = vpack.c.b16 %v3681, %v3677
    %v3742 = vpack.c.b16 %v3682, %v3678
    %v3743 = vpack.c.b16 %v3687, %v3683
    %v3744 = vpack.c.b16 %v3688, %v3684
    %v3745 = vpack.c.b16 %v3689, %v3685
    %v3746 = vpack.c.b16 %v3690, %v3686
    %v3747 = vpack.c.b16 %v3695, %v3691
    %v3748 = vpack.c.b16 %v3696, %v3692
    %v3749 = vpack.c.b16 %v3697, %v3693
    %v3750 = vpack.c.b16 %v3698, %v3694
    %v3751 = vpack.c.b16 %v3703, %v3699
    %v3752 = vpack.c.b16 %v3704, %v3700
    %v3753 = vpack.c.b16 %v3705, %v3701
    %v3754 = vpack.c.b16 %v3706, %v3702
    %v3755 = vpack.c.b16 %v3711, %v3707
    %v3756 = vpack.c.b16 %v3712, %v3708
    %v3757 = vpack.c.b16 %v3713, %v3709
    %v3758 = vpack.c.b16 %v3714, %v3710
    %v3759 = vpack.c.b16 %v3719, %v3715
    %v3760 = vpack.c.b16 %v3720, %v3716
    %v3761 = vpack.c.b16 %v3721, %v3717
    %v3762 = vpack.c.b16 %v3722, %v3718
    %v3763 = vpack.c.b16 %v3727, %v3723
    %v3764 = vpack.c.b16 %v3728, %v3724
    %v3765 = vpack.c.b16 %v3729, %v3725
    %v3766 = vpack.c.b16 %v3730, %v3726
    %v3767 = vpack.c.b16 %v3735, %v3731
    %v3768 = vpack.c.b16 %v3736, %v3732
    %v3769 = vpack.c.b16 %v3737, %v3733
    %v3770 = vpack.c.b16 %v3738, %v3734
    %3803 = vmatprep.subr.bf16.mxu0 %v3768
    %3804 = vmatpush1.bf16.msra.mxu0 %v3767
    %3805 = vmatprep.subr.bf16.mxu0 %v3764
    %3806 = vmatpush1.bf16.msra.mxu0 %v3763
    %3807 = vmatprep.subr.bf16.mxu0 %v3760
    %3808 = vmatpush1.bf16.msra.mxu0 %v3759
    %3809 = vmatprep.subr.bf16.mxu0 %v3756
    %3810 = vmatpush1.bf16.msra.mxu0 %v3755
    %3811 = vmatprep.subr.bf16.mxu0 %v3752
    %3812 = vmatpush1.bf16.msra.mxu0 %v3751
    %3813 = vmatprep.subr.bf16.mxu0 %v3748
    %3814 = vmatpush1.bf16.msra.mxu0 %v3747
    %3815 = vmatprep.subr.bf16.mxu0 %v3744
    %3816 = vmatpush1.bf16.msra.mxu0 %v3743
    %3817 = vmatprep.subr.bf16.mxu0 %v3740
    %3818 = vmatpush1.bf16.msra.mxu0 %v3739
    %3819 = vmatprep.subr.bf16.mxu0 0
    %3820 = vmatpush2.bf16.msra.mxu0 0
    %3821 = vmatprep.subr.bf16.mxu0 0
    %3822 = vmatpush2.bf16.msra.mxu0 0
    %3823 = vmatprep.subr.bf16.mxu0 0
    %3824 = vmatpush2.bf16.msra.mxu0 0
    %3825 = vmatprep.subr.bf16.mxu0 0
    %3826 = vmatpush2.bf16.msra.mxu0 0
    %3827 = vmatprep.subr.bf16.mxu0 0
    %3828 = vmatpush2.bf16.msra.mxu0 0
    %3829 = vmatprep.subr.bf16.mxu0 0
    %3830 = vmatpush2.bf16.msra.mxu0 0
    %3831 = vmatprep.subr.bf16.mxu0 0
    %3832 = vmatpush2.bf16.msra.mxu0 0
    %3833 = vmatprep.subr.bf16.mxu0 0
    %3834 = vmatpush2.bf16.msra.mxu0 0
    %3835 = vmatprep.mubr.bf16.mxu0 0
    %3836 = vmatmul.mubr.bf16.gmra.mxu0 %v3335
    %v3837 = vpop.f32.mrf.mxu0
    %v3838 = vadd.f32 %v3596, %v3837
    %v3839 = vpop.f32.mrf.mxu0
    %v3840 = vadd.f32 %v3598, %v3839
    %v3841 = vpop.f32.mrf.mxu0
    %v3842 = vpop.f32.mrf.mxu0
    %3843 = vdwg.mxu0
    %3844 = vmatprep.subr.bf16.mxu0 %v3770
    %3845 = vmatpush1.bf16.msra.mxu0 %v3769
    %3846 = vmatprep.subr.bf16.mxu0 %v3766
    %3847 = vmatpush1.bf16.msra.mxu0 %v3765
    %3848 = vmatprep.subr.bf16.mxu0 %v3762
    %3849 = vmatpush1.bf16.msra.mxu0 %v3761
    %3850 = vmatprep.subr.bf16.mxu0 %v3758
    %3851 = vmatpush1.bf16.msra.mxu0 %v3757
    %3852 = vmatprep.subr.bf16.mxu0 %v3754
    %3853 = vmatpush1.bf16.msra.mxu0 %v3753
    %3854 = vmatprep.subr.bf16.mxu0 %v3750
    %3855 = vmatpush1.bf16.msra.mxu0 %v3749
    %3856 = vmatprep.subr.bf16.mxu0 %v3746
    %3857 = vmatpush1.bf16.msra.mxu0 %v3745
    %3858 = vmatprep.subr.bf16.mxu0 %v3742
    %3859 = vmatpush1.bf16.msra.mxu0 %v3741
    %3860 = vmatprep.subr.bf16.mxu0 0
    %3861 = vmatpush2.bf16.msra.mxu0 0
    %3862 = vmatprep.subr.bf16.mxu0 0
    %3863 = vmatpush2.bf16.msra.mxu0 0
    %3864 = vmatprep.subr.bf16.mxu0 0
    %3865 = vmatpush2.bf16.msra.mxu0 0
    %3866 = vmatprep.subr.bf16.mxu0 0
    %3867 = vmatpush2.bf16.msra.mxu0 0
    %3868 = vmatprep.subr.bf16.mxu0 0
    %3869 = vmatpush2.bf16.msra.mxu0 0
    %3870 = vmatprep.subr.bf16.mxu0 0
    %3871 = vmatpush2.bf16.msra.mxu0 0
    %3872 = vmatprep.subr.bf16.mxu0 0
    %3873 = vmatpush2.bf16.msra.mxu0 0
    %3874 = vmatprep.subr.bf16.mxu0 0
    %3875 = vmatpush2.bf16.msra.mxu0 0
    %3876 = vmatprep.mubr.bf16.mxu0 0
    %3877 = vmatmul.mubr.bf16.gmra.mxu0 %v3335
    %v3878 = vpop.f32.mrf.mxu0
    %v3879 = vadd.f32 %v3637, %v3878
    %v3880 = vpop.f32.mrf.mxu0
    %v3881 = vadd.f32 %v3639, %v3880
    %v3882 = vpop.f32.mrf.mxu0
    %v3883 = vpop.f32.mrf.mxu0
    %3884 = vdwg.mxu0
    %v3885 = vadd.f32 %v3838, %v344
    %v3886 = vadd.f32 %v3840, %v348
    %v3887 = vadd.f32 %v3879, %v352
    %v3888 = vadd.f32 %v3881, %v356
    %v3889 = vxor.u32 %v3885, 2147483648
    %v3890 = vxor.u32 %v3886, 2147483648
    %v3891 = vxor.u32 %v3887, 2147483648
    %v3892 = vmul.f32 %v3889, 1.442695
    %v3893 = vpow.pop %v3892
    %v3894 = vmul.f32 %v3890, 1.442695
    %v3895 = vpow.pop %v3894
    %v3896 = vmul.f32 %v3891, 1.442695
    %v3897 = vpow.pop %v3896
    %v3898 = vadd.f32 %v3893, 1.0
    %v3899 = vadd.f32 %v3895, 1.0
    %v3900 = vadd.f32 %v3897, 1.0
    %v3901 = vrcp.pop %v3898
    %v3902 = vmul.f32 1.0, %v3901
    %v3903 = vrcp.pop %v3899
    %v3904 = vmul.f32 1.0, %v3903
    %v3905 = vrcp.pop %v3900
    %v3906 = vmul.f32 1.0, %v3905
    %v3907 = vtanh.pop %v3888
    %v3908 = vmul.f32 %v3904, %v3021
    %v3909 = vmul.f32 %v3902, %v3907
    %v3910 = vadd.f32 %v3908, %v3909
    %v3911 = vtanh.pop %v3910
    %v3912 = vmul.f32 %v3906, %v3911
    %s3913 = scalar_lea.vmem [#allocation3], 24
    %3914 = vst [vmem:[%s3913] sm:$0xff] %v3912
    %s3915 = smul.u32 4, 4
    %s3916 = smul.addr %s3915, 8
    %s3917 = scalar_lea.vmem [#allocation2], %s3916
    %v3918 = vld [vmem:[%s3917] sm:$0xff]
    %v3919 = vld [vmem:[%s3917 + $0x8] sm:$0xff]
    %v3920 = vld [vmem:[%s3917 + $0x10] sm:$0xff]
    %v3921 = vld [vmem:[%s3917 + $0x18] sm:$0xff]
    %v3922 = vld [vmem:[%s3] sm:$0xff]
    %v3923 = vld [vmem:[%s3 + $0x8] sm:$0xff]
    %v3924 = vld [vmem:[%s3 + $0x10] sm:$0xff]
    %v3925 = vld [vmem:[%s3 + $0x18] sm:$0xff]
    %v3926 = vld [vmem:[%s3 + $0x20] sm:$0xff]
    %v3927 = vld [vmem:[%s3 + $0x28] sm:$0xff]
    %v3928 = vld [vmem:[%s3 + $0x30] sm:$0xff]
    %v3929 = vld [vmem:[%s3 + $0x38] sm:$0xff]
    %v3930 = vld [vmem:[%s3 + $0x40] sm:$0xff]
    %v3931 = vld [vmem:[%s3 + $0x48] sm:$0xff]
    %v3932 = vld [vmem:[%s3 + $0x50] sm:$0xff]
    %v3933 = vld [vmem:[%s3 + $0x58] sm:$0xff]
    %v3934 = vld [vmem:[%s3 + $0x60] sm:$0xff]
    %v3935 = vld [vmem:[%s3 + $0x68] sm:$0xff]
    %v3936 = vld [vmem:[%s3 + $0x70] sm:$0xff]
    %v3937 = vld [vmem:[%s3 + $0x78] sm:$0xff]
    %v3938 = vld [vmem:[%s3 + $0x80] sm:$0xff]
    %v3939 = vld [vmem:[%s3 + $0x88] sm:$0xff]
    %v3940 = vld [vmem:[%s3 + $0x90] sm:$0xff]
    %v3941 = vld [vmem:[%s3 + $0x98] sm:$0xff]
    %v3942 = vld [vmem:[%s3 + $0xa0] sm:$0xff]
    %v3943 = vld [vmem:[%s3 + $0xa8] sm:$0xff]
    %v3944 = vld [vmem:[%s3 + $0xb0] sm:$0xff]
    %v3945 = vld [vmem:[%s3 + $0xb8] sm:$0xff]
    %v3946 = vld [vmem:[%s3 + $0xc0] sm:$0xff]
    %v3947 = vld [vmem:[%s3 + $0xc8] sm:$0xff]
    %v3948 = vld [vmem:[%s3 + $0xd0] sm:$0xff]
    %v3949 = vld [vmem:[%s3 + $0xd8] sm:$0xff]
    %v3950 = vld [vmem:[%s3 + $0xe0] sm:$0xff]
    %v3951 = vld [vmem:[%s3 + $0xe8] sm:$0xff]
    %v3952 = vld [vmem:[%s3 + $0xf0] sm:$0xff]
    %v3953 = vld [vmem:[%s3 + $0xf8] sm:$0xff]
    %v3986 = vunpack.c.l.b16 %v3922
    %v3987 = vunpack.c.h.b16 %v3922
    %v3988 = vunpack.c.l.b16 %v3923
    %v3989 = vunpack.c.h.b16 %v3923
    %v3990 = vunpack.c.l.b16 %v3924
    %v3991 = vunpack.c.h.b16 %v3924
    %v3992 = vunpack.c.l.b16 %v3925
    %v3993 = vunpack.c.h.b16 %v3925
    %v3994 = vunpack.c.l.b16 %v3926
    %v3995 = vunpack.c.h.b16 %v3926
    %v3996 = vunpack.c.l.b16 %v3927
    %v3997 = vunpack.c.h.b16 %v3927
    %v3998 = vunpack.c.l.b16 %v3928
    %v3999 = vunpack.c.h.b16 %v3928
    %v4000 = vunpack.c.l.b16 %v3929
    %v4001 = vunpack.c.h.b16 %v3929
    %v4002 = vunpack.c.l.b16 %v3930
    %v4003 = vunpack.c.h.b16 %v3930
    %v4004 = vunpack.c.l.b16 %v3931
    %v4005 = vunpack.c.h.b16 %v3931
    %v4006 = vunpack.c.l.b16 %v3932
    %v4007 = vunpack.c.h.b16 %v3932
    %v4008 = vunpack.c.l.b16 %v3933
    %v4009 = vunpack.c.h.b16 %v3933
    %v4010 = vunpack.c.l.b16 %v3934
    %v4011 = vunpack.c.h.b16 %v3934
    %v4012 = vunpack.c.l.b16 %v3935
    %v4013 = vunpack.c.h.b16 %v3935
    %v4014 = vunpack.c.l.b16 %v3936
    %v4015 = vunpack.c.h.b16 %v3936
    %v4016 = vunpack.c.l.b16 %v3937
    %v4017 = vunpack.c.h.b16 %v3937
    %v4018 = vunpack.c.l.b16 %v3938
    %v4019 = vunpack.c.h.b16 %v3938
    %v4020 = vunpack.c.l.b16 %v3939
    %v4021 = vunpack.c.h.b16 %v3939
    %v4022 = vunpack.c.l.b16 %v3940
    %v4023 = vunpack.c.h.b16 %v3940
    %v4024 = vunpack.c.l.b16 %v3941
    %v4025 = vunpack.c.h.b16 %v3941
    %v4026 = vunpack.c.l.b16 %v3942
    %v4027 = vunpack.c.h.b16 %v3942
    %v4028 = vunpack.c.l.b16 %v3943
    %v4029 = vunpack.c.h.b16 %v3943
    %v4030 = vunpack.c.l.b16 %v3944
    %v4031 = vunpack.c.h.b16 %v3944
    %v4032 = vunpack.c.l.b16 %v3945
    %v4033 = vunpack.c.h.b16 %v3945
    %v4034 = vunpack.c.l.b16 %v3946
    %v4035 = vunpack.c.h.b16 %v3946
    %v4036 = vunpack.c.l.b16 %v3947
    %v4037 = vunpack.c.h.b16 %v3947
    %v4038 = vunpack.c.l.b16 %v3948
    %v4039 = vunpack.c.h.b16 %v3948
    %v4040 = vunpack.c.l.b16 %v3949
    %v4041 = vunpack.c.h.b16 %v3949
    %v4042 = vunpack.c.l.b16 %v3950
    %v4043 = vunpack.c.h.b16 %v3950
    %v4044 = vunpack.c.l.b16 %v3951
    %v4045 = vunpack.c.h.b16 %v3951
    %v4046 = vunpack.c.l.b16 %v3952
    %v4047 = vunpack.c.h.b16 %v3952
    %v4048 = vunpack.c.l.b16 %v3953
    %v4049 = vunpack.c.h.b16 %v3953
    %v4050 = vpack.c.b16 %v3990, %v3986
    %v4051 = vpack.c.b16 %v3991, %v3987
    %v4052 = vpack.c.b16 %v3992, %v3988
    %v4053 = vpack.c.b16 %v3993, %v3989
    %v4054 = vpack.c.b16 %v3998, %v3994
    %v4055 = vpack.c.b16 %v3999, %v3995
    %v4056 = vpack.c.b16 %v4000, %v3996
    %v4057 = vpack.c.b16 %v4001, %v3997
    %v4058 = vpack.c.b16 %v4006, %v4002
    %v4059 = vpack.c.b16 %v4007, %v4003
    %v4060 = vpack.c.b16 %v4008, %v4004
    %v4061 = vpack.c.b16 %v4009, %v4005
    %v4062 = vpack.c.b16 %v4014, %v4010
    %v4063 = vpack.c.b16 %v4015, %v4011
    %v4064 = vpack.c.b16 %v4016, %v4012
    %v4065 = vpack.c.b16 %v4017, %v4013
    %v4066 = vpack.c.b16 %v4022, %v4018
    %v4067 = vpack.c.b16 %v4023, %v4019
    %v4068 = vpack.c.b16 %v4024, %v4020
    %v4069 = vpack.c.b16 %v4025, %v4021
    %v4070 = vpack.c.b16 %v4030, %v4026
    %v4071 = vpack.c.b16 %v4031, %v4027
    %v4072 = vpack.c.b16 %v4032, %v4028
    %v4073 = vpack.c.b16 %v4033, %v4029
    %v4074 = vpack.c.b16 %v4038, %v4034
    %v4075 = vpack.c.b16 %v4039, %v4035
    %v4076 = vpack.c.b16 %v4040, %v4036
    %v4077 = vpack.c.b16 %v4041, %v4037
    %v4078 = vpack.c.b16 %v4046, %v4042
    %v4079 = vpack.c.b16 %v4047, %v4043
    %v4080 = vpack.c.b16 %v4048, %v4044
    %v4081 = vpack.c.b16 %v4049, %v4045
    %4114 = vmatprep.subr.bf16.mxu0 %v4079
    %4115 = vmatpush1.bf16.msra.mxu0 %v4078
    %4116 = vmatprep.subr.bf16.mxu0 %v4075
    %4117 = vmatpush1.bf16.msra.mxu0 %v4074
    %4118 = vmatprep.subr.bf16.mxu0 %v4071
    %4119 = vmatpush1.bf16.msra.mxu0 %v4070
    %4120 = vmatprep.subr.bf16.mxu0 %v4067
    %4121 = vmatpush1.bf16.msra.mxu0 %v4066
    %4122 = vmatprep.subr.bf16.mxu0 %v4063
    %4123 = vmatpush1.bf16.msra.mxu0 %v4062
    %4124 = vmatprep.subr.bf16.mxu0 %v4059
    %4125 = vmatpush1.bf16.msra.mxu0 %v4058
    %4126 = vmatprep.subr.bf16.mxu0 %v4055
    %4127 = vmatpush1.bf16.msra.mxu0 %v4054
    %4128 = vmatprep.subr.bf16.mxu0 %v4051
    %4129 = vmatpush1.bf16.msra.mxu0 %v4050
    %4130 = vmatprep.subr.bf16.mxu0 0
    %4131 = vmatpush2.bf16.msra.mxu0 0
    %4132 = vmatprep.subr.bf16.mxu0 0
    %4133 = vmatpush2.bf16.msra.mxu0 0
    %4134 = vmatprep.subr.bf16.mxu0 0
    %4135 = vmatpush2.bf16.msra.mxu0 0
    %4136 = vmatprep.subr.bf16.mxu0 0
    %4137 = vmatpush2.bf16.msra.mxu0 0
    %4138 = vmatprep.subr.bf16.mxu0 0
    %4139 = vmatpush2.bf16.msra.mxu0 0
    %4140 = vmatprep.subr.bf16.mxu0 0
    %4141 = vmatpush2.bf16.msra.mxu0 0
    %4142 = vmatprep.subr.bf16.mxu0 0
    %4143 = vmatpush2.bf16.msra.mxu0 0
    %4144 = vmatprep.subr.bf16.mxu0 0
    %4145 = vmatpush2.bf16.msra.mxu0 0
    %4146 = vmatprep.mubr.bf16.mxu0 0
    %4147 = vmatmul.mubr.bf16.gmra.mxu0 %v3335
    %v4148 = vpop.f32.mrf.mxu0
    %v4149 = vadd.f32 0.0, %v4148
    %v4150 = vpop.f32.mrf.mxu0
    %v4151 = vadd.f32 0.0, %v4150
    %v4152 = vpop.f32.mrf.mxu0
    %v4153 = vpop.f32.mrf.mxu0
    %4154 = vdwg.mxu0
    %4155 = vmatprep.subr.bf16.mxu0 %v4081
    %4156 = vmatpush1.bf16.msra.mxu0 %v4080
    %4157 = vmatprep.subr.bf16.mxu0 %v4077
    %4158 = vmatpush1.bf16.msra.mxu0 %v4076
    %4159 = vmatprep.subr.bf16.mxu0 %v4073
    %4160 = vmatpush1.bf16.msra.mxu0 %v4072
    %4161 = vmatprep.subr.bf16.mxu0 %v4069
    %4162 = vmatpush1.bf16.msra.mxu0 %v4068
    %4163 = vmatprep.subr.bf16.mxu0 %v4065
    %4164 = vmatpush1.bf16.msra.mxu0 %v4064
    %4165 = vmatprep.subr.bf16.mxu0 %v4061
    %4166 = vmatpush1.bf16.msra.mxu0 %v4060
    %4167 = vmatprep.subr.bf16.mxu0 %v4057
    %4168 = vmatpush1.bf16.msra.mxu0 %v4056
    %4169 = vmatprep.subr.bf16.mxu0 %v4053
    %4170 = vmatpush1.bf16.msra.mxu0 %v4052
    %4171 = vmatprep.subr.bf16.mxu0 0
    %4172 = vmatpush2.bf16.msra.mxu0 0
    %4173 = vmatprep.subr.bf16.mxu0 0
    %4174 = vmatpush2.bf16.msra.mxu0 0
    %4175 = vmatprep.subr.bf16.mxu0 0
    %4176 = vmatpush2.bf16.msra.mxu0 0
    %4177 = vmatprep.subr.bf16.mxu0 0
    %4178 = vmatpush2.bf16.msra.mxu0 0
    %4179 = vmatprep.subr.bf16.mxu0 0
    %4180 = vmatpush2.bf16.msra.mxu0 0
    %4181 = vmatprep.subr.bf16.mxu0 0
    %4182 = vmatpush2.bf16.msra.mxu0 0
    %4183 = vmatprep.subr.bf16.mxu0 0
    %4184 = vmatpush2.bf16.msra.mxu0 0
    %4185 = vmatprep.subr.bf16.mxu0 0
    %4186 = vmatpush2.bf16.msra.mxu0 0
    %4187 = vmatprep.mubr.bf16.mxu0 0
    %4188 = vmatmul.mubr.bf16.gmra.mxu0 %v3335
    %v4189 = vpop.f32.mrf.mxu0
    %v4190 = vadd.f32 0.0, %v4189
    %v4191 = vpop.f32.mrf.mxu0
    %v4192 = vadd.f32 0.0, %v4191
    %v4193 = vpop.f32.mrf.mxu0
    %v4194 = vpop.f32.mrf.mxu0
    %4195 = vdwg.mxu0
    %v4196 = vadd.f32 %v3918, %v4149
    %v4197 = vadd.f32 %v3919, %v4151
    %v4198 = vadd.f32 %v3920, %v4190
    %v4199 = vadd.f32 %v3921, %v4192
    %v4200 = vxor.u32 %v4196, 2147483648
    %v4201 = vxor.u32 %v4197, 2147483648
    %v4202 = vxor.u32 %v4198, 2147483648
    %v4203 = vmul.f32 %v4200, 1.442695
    %v4204 = vpow.pop %v4203
    %v4205 = vmul.f32 %v4201, 1.442695
    %v4206 = vpow.pop %v4205
    %v4207 = vmul.f32 %v4202, 1.442695
    %v4208 = vpow.pop %v4207
    %v4209 = vadd.f32 %v4204, 1.0
    %v4210 = vadd.f32 %v4206, 1.0
    %v4211 = vadd.f32 %v4208, 1.0
    %v4212 = vrcp.pop %v4209
    %v4213 = vmul.f32 1.0, %v4212
    %v4214 = vrcp.pop %v4210
    %v4215 = vmul.f32 1.0, %v4214
    %v4216 = vrcp.pop %v4211
    %v4217 = vmul.f32 1.0, %v4216
    %v4218 = vtanh.pop %v4199
    %v4219 = vmul.f32 %v4215, %v3332
    %v4220 = vmul.f32 %v4213, %v4218
    %v4221 = vadd.f32 %v4219, %v4220
    %v4222 = vtanh.pop %v4221
    %v4223 = vmul.f32 %v4217, %v4222
    %v4224 = vpack.c.bf16 %v4223, %v4223
    %v4225 = vld [vmem:[#allocation4] sm:$0xff]
    %v4226 = vld [vmem:[#allocation4 + $0x8] sm:$0xff]
    %v4227 = vld [vmem:[#allocation4 + $0x10] sm:$0xff]
    %v4228 = vld [vmem:[#allocation4 + $0x18] sm:$0xff]
    %v4229 = vld [vmem:[#allocation4 + $0x20] sm:$0xff]
    %v4230 = vld [vmem:[#allocation4 + $0x28] sm:$0xff]
    %v4231 = vld [vmem:[#allocation4 + $0x30] sm:$0xff]
    %v4232 = vld [vmem:[#allocation4 + $0x38] sm:$0xff]
    %v4233 = vld [vmem:[#allocation4 + $0x40] sm:$0xff]
    %v4234 = vld [vmem:[#allocation4 + $0x48] sm:$0xff]
    %v4235 = vld [vmem:[#allocation4 + $0x50] sm:$0xff]
    %v4236 = vld [vmem:[#allocation4 + $0x58] sm:$0xff]
    %v4237 = vld [vmem:[#allocation4 + $0x60] sm:$0xff]
    %v4238 = vld [vmem:[#allocation4 + $0x68] sm:$0xff]
    %v4239 = vld [vmem:[#allocation4 + $0x70] sm:$0xff]
    %v4240 = vld [vmem:[#allocation4 + $0x78] sm:$0xff]
    %v4241 = vld [vmem:[#allocation4 + $0x80] sm:$0xff]
    %v4242 = vld [vmem:[#allocation4 + $0x88] sm:$0xff]
    %v4243 = vld [vmem:[#allocation4 + $0x90] sm:$0xff]
    %v4244 = vld [vmem:[#allocation4 + $0x98] sm:$0xff]
    %v4245 = vld [vmem:[#allocation4 + $0xa0] sm:$0xff]
    %v4246 = vld [vmem:[#allocation4 + $0xa8] sm:$0xff]
    %v4247 = vld [vmem:[#allocation4 + $0xb0] sm:$0xff]
    %v4248 = vld [vmem:[#allocation4 + $0xb8] sm:$0xff]
    %v4249 = vld [vmem:[#allocation4 + $0xc0] sm:$0xff]
    %v4250 = vld [vmem:[#allocation4 + $0xc8] sm:$0xff]
    %v4251 = vld [vmem:[#allocation4 + $0xd0] sm:$0xff]
    %v4252 = vld [vmem:[#allocation4 + $0xd8] sm:$0xff]
    %v4253 = vld [vmem:[#allocation4 + $0xe0] sm:$0xff]
    %v4254 = vld [vmem:[#allocation4 + $0xe8] sm:$0xff]
    %v4255 = vld [vmem:[#allocation4 + $0xf0] sm:$0xff]
    %v4256 = vld [vmem:[#allocation4 + $0xf8] sm:$0xff]
    %v4257 = vpack.c.bf16 %v3912, %v3912
    %v4258 = vld [vmem:[#allocation6] sm:$0xff]
    %v4259 = vld [vmem:[#allocation6 + $0x8] sm:$0xff]
    %v4260 = vld [vmem:[#allocation6 + $0x10] sm:$0xff]
    %v4261 = vld [vmem:[#allocation6 + $0x18] sm:$0xff]
    %v4262 = vld [vmem:[#allocation6 + $0x20] sm:$0xff]
    %v4263 = vld [vmem:[#allocation6 + $0x28] sm:$0xff]
    %v4264 = vld [vmem:[#allocation6 + $0x30] sm:$0xff]
    %v4265 = vld [vmem:[#allocation6 + $0x38] sm:$0xff]
    %v4266 = vld [vmem:[#allocation6 + $0x40] sm:$0xff]
    %v4267 = vld [vmem:[#allocation6 + $0x48] sm:$0xff]
    %v4268 = vld [vmem:[#allocation6 + $0x50] sm:$0xff]
    %v4269 = vld [vmem:[#allocation6 + $0x58] sm:$0xff]
    %v4270 = vld [vmem:[#allocation6 + $0x60] sm:$0xff]
    %v4271 = vld [vmem:[#allocation6 + $0x68] sm:$0xff]
    %v4272 = vld [vmem:[#allocation6 + $0x70] sm:$0xff]
    %v4273 = vld [vmem:[#allocation6 + $0x78] sm:$0xff]
    %v4274 = vld [vmem:[#allocation6 + $0x80] sm:$0xff]
    %v4275 = vld [vmem:[#allocation6 + $0x88] sm:$0xff]
    %v4276 = vld [vmem:[#allocation6 + $0x90] sm:$0xff]
    %v4277 = vld [vmem:[#allocation6 + $0x98] sm:$0xff]
    %v4278 = vld [vmem:[#allocation6 + $0xa0] sm:$0xff]
    %v4279 = vld [vmem:[#allocation6 + $0xa8] sm:$0xff]
    %v4280 = vld [vmem:[#allocation6 + $0xb0] sm:$0xff]
    %v4281 = vld [vmem:[#allocation6 + $0xb8] sm:$0xff]
    %v4282 = vld [vmem:[#allocation6 + $0xc0] sm:$0xff]
    %v4283 = vld [vmem:[#allocation6 + $0xc8] sm:$0xff]
    %v4284 = vld [vmem:[#allocation6 + $0xd0] sm:$0xff]
    %v4285 = vld [vmem:[#allocation6 + $0xd8] sm:$0xff]
    %v4286 = vld [vmem:[#allocation6 + $0xe0] sm:$0xff]
    %v4287 = vld [vmem:[#allocation6 + $0xe8] sm:$0xff]
    %v4288 = vld [vmem:[#allocation6 + $0xf0] sm:$0xff]
    %v4289 = vld [vmem:[#allocation6 + $0xf8] sm:$0xff]
    %v4322 = vunpack.c.l.b16 %v4258
    %v4323 = vunpack.c.h.b16 %v4258
    %v4324 = vunpack.c.l.b16 %v4259
    %v4325 = vunpack.c.h.b16 %v4259
    %v4326 = vunpack.c.l.b16 %v4260
    %v4327 = vunpack.c.h.b16 %v4260
    %v4328 = vunpack.c.l.b16 %v4261
    %v4329 = vunpack.c.h.b16 %v4261
    %v4330 = vunpack.c.l.b16 %v4262
    %v4331 = vunpack.c.h.b16 %v4262
    %v4332 = vunpack.c.l.b16 %v4263
    %v4333 = vunpack.c.h.b16 %v4263
    %v4334 = vunpack.c.l.b16 %v4264
    %v4335 = vunpack.c.h.b16 %v4264
    %v4336 = vunpack.c.l.b16 %v4265
    %v4337 = vunpack.c.h.b16 %v4265
    %v4338 = vunpack.c.l.b16 %v4266
    %v4339 = vunpack.c.h.b16 %v4266
    %v4340 = vunpack.c.l.b16 %v4267
    %v4341 = vunpack.c.h.b16 %v4267
    %v4342 = vunpack.c.l.b16 %v4268
    %v4343 = vunpack.c.h.b16 %v4268
    %v4344 = vunpack.c.l.b16 %v4269
    %v4345 = vunpack.c.h.b16 %v4269
    %v4346 = vunpack.c.l.b16 %v4270
    %v4347 = vunpack.c.h.b16 %v4270
    %v4348 = vunpack.c.l.b16 %v4271
    %v4349 = vunpack.c.h.b16 %v4271
    %v4350 = vunpack.c.l.b16 %v4272
    %v4351 = vunpack.c.h.b16 %v4272
    %v4352 = vunpack.c.l.b16 %v4273
    %v4353 = vunpack.c.h.b16 %v4273
    %v4354 = vunpack.c.l.b16 %v4274
    %v4355 = vunpack.c.h.b16 %v4274
    %v4356 = vunpack.c.l.b16 %v4275
    %v4357 = vunpack.c.h.b16 %v4275
    %v4358 = vunpack.c.l.b16 %v4276
    %v4359 = vunpack.c.h.b16 %v4276
    %v4360 = vunpack.c.l.b16 %v4277
    %v4361 = vunpack.c.h.b16 %v4277
    %v4362 = vunpack.c.l.b16 %v4278
    %v4363 = vunpack.c.h.b16 %v4278
    %v4364 = vunpack.c.l.b16 %v4279
    %v4365 = vunpack.c.h.b16 %v4279
    %v4366 = vunpack.c.l.b16 %v4280
    %v4367 = vunpack.c.h.b16 %v4280
    %v4368 = vunpack.c.l.b16 %v4281
    %v4369 = vunpack.c.h.b16 %v4281
    %v4370 = vunpack.c.l.b16 %v4282
    %v4371 = vunpack.c.h.b16 %v4282
    %v4372 = vunpack.c.l.b16 %v4283
    %v4373 = vunpack.c.h.b16 %v4283
    %v4374 = vunpack.c.l.b16 %v4284
    %v4375 = vunpack.c.h.b16 %v4284
    %v4376 = vunpack.c.l.b16 %v4285
    %v4377 = vunpack.c.h.b16 %v4285
    %v4378 = vunpack.c.l.b16 %v4286
    %v4379 = vunpack.c.h.b16 %v4286
    %v4380 = vunpack.c.l.b16 %v4287
    %v4381 = vunpack.c.h.b16 %v4287
    %v4382 = vunpack.c.l.b16 %v4288
    %v4383 = vunpack.c.h.b16 %v4288
    %v4384 = vunpack.c.l.b16 %v4289
    %v4385 = vunpack.c.h.b16 %v4289
    %v4386 = vpack.c.b16 %v4326, %v4322
    %v4387 = vpack.c.b16 %v4327, %v4323
    %v4388 = vpack.c.b16 %v4328, %v4324
    %v4389 = vpack.c.b16 %v4329, %v4325
    %v4390 = vpack.c.b16 %v4334, %v4330
    %v4391 = vpack.c.b16 %v4335, %v4331
    %v4392 = vpack.c.b16 %v4336, %v4332
    %v4393 = vpack.c.b16 %v4337, %v4333
    %v4394 = vpack.c.b16 %v4342, %v4338
    %v4395 = vpack.c.b16 %v4343, %v4339
    %v4396 = vpack.c.b16 %v4344, %v4340
    %v4397 = vpack.c.b16 %v4345, %v4341
    %v4398 = vpack.c.b16 %v4350, %v4346
    %v4399 = vpack.c.b16 %v4351, %v4347
    %v4400 = vpack.c.b16 %v4352, %v4348
    %v4401 = vpack.c.b16 %v4353, %v4349
    %v4402 = vpack.c.b16 %v4358, %v4354
    %v4403 = vpack.c.b16 %v4359, %v4355
    %v4404 = vpack.c.b16 %v4360, %v4356
    %v4405 = vpack.c.b16 %v4361, %v4357
    %v4406 = vpack.c.b16 %v4366, %v4362
    %v4407 = vpack.c.b16 %v4367, %v4363
    %v4408 = vpack.c.b16 %v4368, %v4364
    %v4409 = vpack.c.b16 %v4369, %v4365
    %v4410 = vpack.c.b16 %v4374, %v4370
    %v4411 = vpack.c.b16 %v4375, %v4371
    %v4412 = vpack.c.b16 %v4376, %v4372
    %v4413 = vpack.c.b16 %v4377, %v4373
    %v4414 = vpack.c.b16 %v4382, %v4378
    %v4415 = vpack.c.b16 %v4383, %v4379
    %v4416 = vpack.c.b16 %v4384, %v4380
    %v4417 = vpack.c.b16 %v4385, %v4381
    %4450 = vmatprep.subr.bf16.mxu0 %v4415
    %4451 = vmatpush1.bf16.msra.mxu0 %v4414
    %4452 = vmatprep.subr.bf16.mxu0 %v4411
    %4453 = vmatpush1.bf16.msra.mxu0 %v4410
    %4454 = vmatprep.subr.bf16.mxu0 %v4407
    %4455 = vmatpush1.bf16.msra.mxu0 %v4406
    %4456 = vmatprep.subr.bf16.mxu0 %v4403
    %4457 = vmatpush1.bf16.msra.mxu0 %v4402
    %4458 = vmatprep.subr.bf16.mxu0 %v4399
    %4459 = vmatpush1.bf16.msra.mxu0 %v4398
    %4460 = vmatprep.subr.bf16.mxu0 %v4395
    %4461 = vmatpush1.bf16.msra.mxu0 %v4394
    %4462 = vmatprep.subr.bf16.mxu0 %v4391
    %4463 = vmatpush1.bf16.msra.mxu0 %v4390
    %4464 = vmatprep.subr.bf16.mxu0 %v4387
    %4465 = vmatpush1.bf16.msra.mxu0 %v4386
    %4466 = vmatprep.subr.bf16.mxu0 0
    %4467 = vmatpush2.bf16.msra.mxu0 0
    %4468 = vmatprep.subr.bf16.mxu0 0
    %4469 = vmatpush2.bf16.msra.mxu0 0
    %4470 = vmatprep.subr.bf16.mxu0 0
    %4471 = vmatpush2.bf16.msra.mxu0 0
    %4472 = vmatprep.subr.bf16.mxu0 0
    %4473 = vmatpush2.bf16.msra.mxu0 0
    %4474 = vmatprep.subr.bf16.mxu0 0
    %4475 = vmatpush2.bf16.msra.mxu0 0
    %4476 = vmatprep.subr.bf16.mxu0 0
    %4477 = vmatpush2.bf16.msra.mxu0 0
    %4478 = vmatprep.subr.bf16.mxu0 0
    %4479 = vmatpush2.bf16.msra.mxu0 0
    %4480 = vmatprep.subr.bf16.mxu0 0
    %4481 = vmatpush2.bf16.msra.mxu0 0
    %4482 = vmatprep.mubr.bf16.mxu0 0
    %4483 = vmatmul.mubr.bf16.gmra.mxu0 %v4257
    %v4484 = vpop.f32.mrf.mxu0
    %v4485 = vadd.f32 0.0, %v4484
    %v4486 = vpop.f32.mrf.mxu0
    %v4487 = vadd.f32 0.0, %v4486
    %v4488 = vpop.f32.mrf.mxu0
    %v4489 = vpop.f32.mrf.mxu0
    %4490 = vdwg.mxu0
    %4491 = vmatprep.subr.bf16.mxu0 %v4417
    %4492 = vmatpush1.bf16.msra.mxu0 %v4416
    %4493 = vmatprep.subr.bf16.mxu0 %v4413
    %4494 = vmatpush1.bf16.msra.mxu0 %v4412
    %4495 = vmatprep.subr.bf16.mxu0 %v4409
    %4496 = vmatpush1.bf16.msra.mxu0 %v4408
    %4497 = vmatprep.subr.bf16.mxu0 %v4405
    %4498 = vmatpush1.bf16.msra.mxu0 %v4404
    %4499 = vmatprep.subr.bf16.mxu0 %v4401
    %4500 = vmatpush1.bf16.msra.mxu0 %v4400
    %4501 = vmatprep.subr.bf16.mxu0 %v4397
    %4502 = vmatpush1.bf16.msra.mxu0 %v4396
    %4503 = vmatprep.subr.bf16.mxu0 %v4393
    %4504 = vmatpush1.bf16.msra.mxu0 %v4392
    %4505 = vmatprep.subr.bf16.mxu0 %v4389
    %4506 = vmatpush1.bf16.msra.mxu0 %v4388
    %4507 = vmatprep.subr.bf16.mxu0 0
    %4508 = vmatpush2.bf16.msra.mxu0 0
    %4509 = vmatprep.subr.bf16.mxu0 0
    %4510 = vmatpush2.bf16.msra.mxu0 0
    %4511 = vmatprep.subr.bf16.mxu0 0
    %4512 = vmatpush2.bf16.msra.mxu0 0
    %4513 = vmatprep.subr.bf16.mxu0 0
    %4514 = vmatpush2.bf16.msra.mxu0 0
    %4515 = vmatprep.subr.bf16.mxu0 0
    %4516 = vmatpush2.bf16.msra.mxu0 0
    %4517 = vmatprep.subr.bf16.mxu0 0
    %4518 = vmatpush2.bf16.msra.mxu0 0
    %4519 = vmatprep.subr.bf16.mxu0 0
    %4520 = vmatpush2.bf16.msra.mxu0 0
    %4521 = vmatprep.subr.bf16.mxu0 0
    %4522 = vmatpush2.bf16.msra.mxu0 0
    %4523 = vmatprep.mubr.bf16.mxu0 0
    %4524 = vmatmul.mubr.bf16.gmra.mxu0 %v4257
    %v4525 = vpop.f32.mrf.mxu0
    %v4526 = vadd.f32 0.0, %v4525
    %v4527 = vpop.f32.mrf.mxu0
    %v4528 = vadd.f32 0.0, %v4527
    %v4529 = vpop.f32.mrf.mxu0
    %v4530 = vpop.f32.mrf.mxu0
    %4531 = vdwg.mxu0
    %v4564 = vunpack.c.l.b16 %v4225
    %v4565 = vunpack.c.h.b16 %v4225
    %v4566 = vunpack.c.l.b16 %v4226
    %v4567 = vunpack.c.h.b16 %v4226
    %v4568 = vunpack.c.l.b16 %v4227
    %v4569 = vunpack.c.h.b16 %v4227
    %v4570 = vunpack.c.l.b16 %v4228
    %v4571 = vunpack.c.h.b16 %v4228
    %v4572 = vunpack.c.l.b16 %v4229
    %v4573 = vunpack.c.h.b16 %v4229
    %v4574 = vunpack.c.l.b16 %v4230
    %v4575 = vunpack.c.h.b16 %v4230
    %v4576 = vunpack.c.l.b16 %v4231
    %v4577 = vunpack.c.h.b16 %v4231
    %v4578 = vunpack.c.l.b16 %v4232
    %v4579 = vunpack.c.h.b16 %v4232
    %v4580 = vunpack.c.l.b16 %v4233
    %v4581 = vunpack.c.h.b16 %v4233
    %v4582 = vunpack.c.l.b16 %v4234
    %v4583 = vunpack.c.h.b16 %v4234
    %v4584 = vunpack.c.l.b16 %v4235
    %v4585 = vunpack.c.h.b16 %v4235
    %v4586 = vunpack.c.l.b16 %v4236
    %v4587 = vunpack.c.h.b16 %v4236
    %v4588 = vunpack.c.l.b16 %v4237
    %v4589 = vunpack.c.h.b16 %v4237
    %v4590 = vunpack.c.l.b16 %v4238
    %v4591 = vunpack.c.h.b16 %v4238
    %v4592 = vunpack.c.l.b16 %v4239
    %v4593 = vunpack.c.h.b16 %v4239
    %v4594 = vunpack.c.l.b16 %v4240
    %v4595 = vunpack.c.h.b16 %v4240
    %v4596 = vunpack.c.l.b16 %v4241
    %v4597 = vunpack.c.h.b16 %v4241
    %v4598 = vunpack.c.l.b16 %v4242
    %v4599 = vunpack.c.h.b16 %v4242
    %v4600 = vunpack.c.l.b16 %v4243
    %v4601 = vunpack.c.h.b16 %v4243
    %v4602 = vunpack.c.l.b16 %v4244
    %v4603 = vunpack.c.h.b16 %v4244
    %v4604 = vunpack.c.l.b16 %v4245
    %v4605 = vunpack.c.h.b16 %v4245
    %v4606 = vunpack.c.l.b16 %v4246
    %v4607 = vunpack.c.h.b16 %v4246
    %v4608 = vunpack.c.l.b16 %v4247
    %v4609 = vunpack.c.h.b16 %v4247
    %v4610 = vunpack.c.l.b16 %v4248
    %v4611 = vunpack.c.h.b16 %v4248
    %v4612 = vunpack.c.l.b16 %v4249
    %v4613 = vunpack.c.h.b16 %v4249
    %v4614 = vunpack.c.l.b16 %v4250
    %v4615 = vunpack.c.h.b16 %v4250
    %v4616 = vunpack.c.l.b16 %v4251
    %v4617 = vunpack.c.h.b16 %v4251
    %v4618 = vunpack.c.l.b16 %v4252
    %v4619 = vunpack.c.h.b16 %v4252
    %v4620 = vunpack.c.l.b16 %v4253
    %v4621 = vunpack.c.h.b16 %v4253
    %v4622 = vunpack.c.l.b16 %v4254
    %v4623 = vunpack.c.h.b16 %v4254
    %v4624 = vunpack.c.l.b16 %v4255
    %v4625 = vunpack.c.h.b16 %v4255
    %v4626 = vunpack.c.l.b16 %v4256
    %v4627 = vunpack.c.h.b16 %v4256
    %v4628 = vpack.c.b16 %v4568, %v4564
    %v4629 = vpack.c.b16 %v4569, %v4565
    %v4630 = vpack.c.b16 %v4570, %v4566
    %v4631 = vpack.c.b16 %v4571, %v4567
    %v4632 = vpack.c.b16 %v4576, %v4572
    %v4633 = vpack.c.b16 %v4577, %v4573
    %v4634 = vpack.c.b16 %v4578, %v4574
    %v4635 = vpack.c.b16 %v4579, %v4575
    %v4636 = vpack.c.b16 %v4584, %v4580
    %v4637 = vpack.c.b16 %v4585, %v4581
    %v4638 = vpack.c.b16 %v4586, %v4582
    %v4639 = vpack.c.b16 %v4587, %v4583
    %v4640 = vpack.c.b16 %v4592, %v4588
    %v4641 = vpack.c.b16 %v4593, %v4589
    %v4642 = vpack.c.b16 %v4594, %v4590
    %v4643 = vpack.c.b16 %v4595, %v4591
    %v4644 = vpack.c.b16 %v4600, %v4596
    %v4645 = vpack.c.b16 %v4601, %v4597
    %v4646 = vpack.c.b16 %v4602, %v4598
    %v4647 = vpack.c.b16 %v4603, %v4599
    %v4648 = vpack.c.b16 %v4608, %v4604
    %v4649 = vpack.c.b16 %v4609, %v4605
    %v4650 = vpack.c.b16 %v4610, %v4606
    %v4651 = vpack.c.b16 %v4611, %v4607
    %v4652 = vpack.c.b16 %v4616, %v4612
    %v4653 = vpack.c.b16 %v4617, %v4613
    %v4654 = vpack.c.b16 %v4618, %v4614
    %v4655 = vpack.c.b16 %v4619, %v4615
    %v4656 = vpack.c.b16 %v4624, %v4620
    %v4657 = vpack.c.b16 %v4625, %v4621
    %v4658 = vpack.c.b16 %v4626, %v4622
    %v4659 = vpack.c.b16 %v4627, %v4623
    %4692 = vmatprep.subr.bf16.mxu0 %v4657
    %4693 = vmatpush1.bf16.msra.mxu0 %v4656
    %4694 = vmatprep.subr.bf16.mxu0 %v4653
    %4695 = vmatpush1.bf16.msra.mxu0 %v4652
    %4696 = vmatprep.subr.bf16.mxu0 %v4649
    %4697 = vmatpush1.bf16.msra.mxu0 %v4648
    %4698 = vmatprep.subr.bf16.mxu0 %v4645
    %4699 = vmatpush1.bf16.msra.mxu0 %v4644
    %4700 = vmatprep.subr.bf16.mxu0 %v4641
    %4701 = vmatpush1.bf16.msra.mxu0 %v4640
    %4702 = vmatprep.subr.bf16.mxu0 %v4637
    %4703 = vmatpush1.bf16.msra.mxu0 %v4636
    %4704 = vmatprep.subr.bf16.mxu0 %v4633
    %4705 = vmatpush1.bf16.msra.mxu0 %v4632
    %4706 = vmatprep.subr.bf16.mxu0 %v4629
    %4707 = vmatpush1.bf16.msra.mxu0 %v4628
    %4708 = vmatprep.subr.bf16.mxu0 0
    %4709 = vmatpush2.bf16.msra.mxu0 0
    %4710 = vmatprep.subr.bf16.mxu0 0
    %4711 = vmatpush2.bf16.msra.mxu0 0
    %4712 = vmatprep.subr.bf16.mxu0 0
    %4713 = vmatpush2.bf16.msra.mxu0 0
    %4714 = vmatprep.subr.bf16.mxu0 0
    %4715 = vmatpush2.bf16.msra.mxu0 0
    %4716 = vmatprep.subr.bf16.mxu0 0
    %4717 = vmatpush2.bf16.msra.mxu0 0
    %4718 = vmatprep.subr.bf16.mxu0 0
    %4719 = vmatpush2.bf16.msra.mxu0 0
    %4720 = vmatprep.subr.bf16.mxu0 0
    %4721 = vmatpush2.bf16.msra.mxu0 0
    %4722 = vmatprep.subr.bf16.mxu0 0
    %4723 = vmatpush2.bf16.msra.mxu0 0
    %4724 = vmatprep.mubr.bf16.mxu0 0
    %4725 = vmatmul.mubr.bf16.gmra.mxu0 %v4224
    %v4726 = vpop.f32.mrf.mxu0
    %v4727 = vadd.f32 %v4485, %v4726
    %v4728 = vpop.f32.mrf.mxu0
    %v4729 = vadd.f32 %v4487, %v4728
    %v4730 = vpop.f32.mrf.mxu0
    %v4731 = vpop.f32.mrf.mxu0
    %4732 = vdwg.mxu0
    %4733 = vmatprep.subr.bf16.mxu0 %v4659
    %4734 = vmatpush1.bf16.msra.mxu0 %v4658
    %4735 = vmatprep.subr.bf16.mxu0 %v4655
    %4736 = vmatpush1.bf16.msra.mxu0 %v4654
    %4737 = vmatprep.subr.bf16.mxu0 %v4651
    %4738 = vmatpush1.bf16.msra.mxu0 %v4650
    %4739 = vmatprep.subr.bf16.mxu0 %v4647
    %4740 = vmatpush1.bf16.msra.mxu0 %v4646
    %4741 = vmatprep.subr.bf16.mxu0 %v4643
    %4742 = vmatpush1.bf16.msra.mxu0 %v4642
    %4743 = vmatprep.subr.bf16.mxu0 %v4639
    %4744 = vmatpush1.bf16.msra.mxu0 %v4638
    %4745 = vmatprep.subr.bf16.mxu0 %v4635
    %4746 = vmatpush1.bf16.msra.mxu0 %v4634
    %4747 = vmatprep.subr.bf16.mxu0 %v4631
    %4748 = vmatpush1.bf16.msra.mxu0 %v4630
    %4749 = vmatprep.subr.bf16.mxu0 0
    %4750 = vmatpush2.bf16.msra.mxu0 0
    %4751 = vmatprep.subr.bf16.mxu0 0
    %4752 = vmatpush2.bf16.msra.mxu0 0
    %4753 = vmatprep.subr.bf16.mxu0 0
    %4754 = vmatpush2.bf16.msra.mxu0 0
    %4755 = vmatprep.subr.bf16.mxu0 0
    %4756 = vmatpush2.bf16.msra.mxu0 0
    %4757 = vmatprep.subr.bf16.mxu0 0
    %4758 = vmatpush2.bf16.msra.mxu0 0
    %4759 = vmatprep.subr.bf16.mxu0 0
    %4760 = vmatpush2.bf16.msra.mxu0 0
    %4761 = vmatprep.subr.bf16.mxu0 0
    %4762 = vmatpush2.bf16.msra.mxu0 0
    %4763 = vmatprep.subr.bf16.mxu0 0
    %4764 = vmatpush2.bf16.msra.mxu0 0
    %4765 = vmatprep.mubr.bf16.mxu0 0
    %4766 = vmatmul.mubr.bf16.gmra.mxu0 %v4224
    %v4767 = vpop.f32.mrf.mxu0
    %v4768 = vadd.f32 %v4526, %v4767
    %v4769 = vpop.f32.mrf.mxu0
    %v4770 = vadd.f32 %v4528, %v4769
    %v4771 = vpop.f32.mrf.mxu0
    %v4772 = vpop.f32.mrf.mxu0
    %4773 = vdwg.mxu0
    %v4774 = vadd.f32 %v4727, %v344
    %v4775 = vadd.f32 %v4729, %v348
    %v4776 = vadd.f32 %v4768, %v352
    %v4777 = vadd.f32 %v4770, %v356
    %v4778 = vxor.u32 %v4774, 2147483648
    %v4779 = vxor.u32 %v4775, 2147483648
    %v4780 = vxor.u32 %v4776, 2147483648
    %v4781 = vmul.f32 %v4778, 1.442695
    %v4782 = vpow.pop %v4781
    %v4783 = vmul.f32 %v4779, 1.442695
    %v4784 = vpow.pop %v4783
    %v4785 = vmul.f32 %v4780, 1.442695
    %v4786 = vpow.pop %v4785
    %v4787 = vadd.f32 %v4782, 1.0
    %v4788 = vadd.f32 %v4784, 1.0
    %v4789 = vadd.f32 %v4786, 1.0
    %v4790 = vrcp.pop %v4787
    %v4791 = vmul.f32 1.0, %v4790
    %v4792 = vrcp.pop %v4788
    %v4793 = vmul.f32 1.0, %v4792
    %v4794 = vrcp.pop %v4789
    %v4795 = vmul.f32 1.0, %v4794
    %v4796 = vtanh.pop %v4777
    %v4797 = vmul.f32 %v4793, %v3910
    %v4798 = vmul.f32 %v4791, %v4796
    %v4799 = vadd.f32 %v4797, %v4798
    %v4800 = vtanh.pop %v4799
    %v4801 = vmul.f32 %v4795, %v4800
    %s4802 = scalar_lea.vmem [#allocation3], 32
    %4803 = vst [vmem:[%s4802] sm:$0xff] %v4801
    %s4804 = smul.u32 5, 4
    %s4805 = smul.addr %s4804, 8
    %s4806 = scalar_lea.vmem [#allocation2], %s4805
    %v4807 = vld [vmem:[%s4806] sm:$0xff]
    %v4808 = vld [vmem:[%s4806 + $0x8] sm:$0xff]
    %v4809 = vld [vmem:[%s4806 + $0x10] sm:$0xff]
    %v4810 = vld [vmem:[%s4806 + $0x18] sm:$0xff]
    %v4811 = vld [vmem:[%s3] sm:$0xff]
    %v4812 = vld [vmem:[%s3 + $0x8] sm:$0xff]
    %v4813 = vld [vmem:[%s3 + $0x10] sm:$0xff]
    %v4814 = vld [vmem:[%s3 + $0x18] sm:$0xff]
    %v4815 = vld [vmem:[%s3 + $0x20] sm:$0xff]
    %v4816 = vld [vmem:[%s3 + $0x28] sm:$0xff]
    %v4817 = vld [vmem:[%s3 + $0x30] sm:$0xff]
    %v4818 = vld [vmem:[%s3 + $0x38] sm:$0xff]
    %v4819 = vld [vmem:[%s3 + $0x40] sm:$0xff]
    %v4820 = vld [vmem:[%s3 + $0x48] sm:$0xff]
    %v4821 = vld [vmem:[%s3 + $0x50] sm:$0xff]
    %v4822 = vld [vmem:[%s3 + $0x58] sm:$0xff]
    %v4823 = vld [vmem:[%s3 + $0x60] sm:$0xff]
    %v4824 = vld [vmem:[%s3 + $0x68] sm:$0xff]
    %v4825 = vld [vmem:[%s3 + $0x70] sm:$0xff]
    %v4826 = vld [vmem:[%s3 + $0x78] sm:$0xff]
    %v4827 = vld [vmem:[%s3 + $0x80] sm:$0xff]
    %v4828 = vld [vmem:[%s3 + $0x88] sm:$0xff]
    %v4829 = vld [vmem:[%s3 + $0x90] sm:$0xff]
    %v4830 = vld [vmem:[%s3 + $0x98] sm:$0xff]
    %v4831 = vld [vmem:[%s3 + $0xa0] sm:$0xff]
    %v4832 = vld [vmem:[%s3 + $0xa8] sm:$0xff]
    %v4833 = vld [vmem:[%s3 + $0xb0] sm:$0xff]
    %v4834 = vld [vmem:[%s3 + $0xb8] sm:$0xff]
    %v4835 = vld [vmem:[%s3 + $0xc0] sm:$0xff]
    %v4836 = vld [vmem:[%s3 + $0xc8] sm:$0xff]
    %v4837 = vld [vmem:[%s3 + $0xd0] sm:$0xff]
    %v4838 = vld [vmem:[%s3 + $0xd8] sm:$0xff]
    %v4839 = vld [vmem:[%s3 + $0xe0] sm:$0xff]
    %v4840 = vld [vmem:[%s3 + $0xe8] sm:$0xff]
    %v4841 = vld [vmem:[%s3 + $0xf0] sm:$0xff]
    %v4842 = vld [vmem:[%s3 + $0xf8] sm:$0xff]
    %v4875 = vunpack.c.l.b16 %v4811
    %v4876 = vunpack.c.h.b16 %v4811
    %v4877 = vunpack.c.l.b16 %v4812
    %v4878 = vunpack.c.h.b16 %v4812
    %v4879 = vunpack.c.l.b16 %v4813
    %v4880 = vunpack.c.h.b16 %v4813
    %v4881 = vunpack.c.l.b16 %v4814
    %v4882 = vunpack.c.h.b16 %v4814
    %v4883 = vunpack.c.l.b16 %v4815
    %v4884 = vunpack.c.h.b16 %v4815
    %v4885 = vunpack.c.l.b16 %v4816
    %v4886 = vunpack.c.h.b16 %v4816
    %v4887 = vunpack.c.l.b16 %v4817
    %v4888 = vunpack.c.h.b16 %v4817
    %v4889 = vunpack.c.l.b16 %v4818
    %v4890 = vunpack.c.h.b16 %v4818
    %v4891 = vunpack.c.l.b16 %v4819
    %v4892 = vunpack.c.h.b16 %v4819
    %v4893 = vunpack.c.l.b16 %v4820
    %v4894 = vunpack.c.h.b16 %v4820
    %v4895 = vunpack.c.l.b16 %v4821
    %v4896 = vunpack.c.h.b16 %v4821
    %v4897 = vunpack.c.l.b16 %v4822
    %v4898 = vunpack.c.h.b16 %v4822
    %v4899 = vunpack.c.l.b16 %v4823
    %v4900 = vunpack.c.h.b16 %v4823
    %v4901 = vunpack.c.l.b16 %v4824
    %v4902 = vunpack.c.h.b16 %v4824
    %v4903 = vunpack.c.l.b16 %v4825
    %v4904 = vunpack.c.h.b16 %v4825
    %v4905 = vunpack.c.l.b16 %v4826
    %v4906 = vunpack.c.h.b16 %v4826
    %v4907 = vunpack.c.l.b16 %v4827
    %v4908 = vunpack.c.h.b16 %v4827
    %v4909 = vunpack.c.l.b16 %v4828
    %v4910 = vunpack.c.h.b16 %v4828
    %v4911 = vunpack.c.l.b16 %v4829
    %v4912 = vunpack.c.h.b16 %v4829
    %v4913 = vunpack.c.l.b16 %v4830
    %v4914 = vunpack.c.h.b16 %v4830
    %v4915 = vunpack.c.l.b16 %v4831
    %v4916 = vunpack.c.h.b16 %v4831
    %v4917 = vunpack.c.l.b16 %v4832
    %v4918 = vunpack.c.h.b16 %v4832
    %v4919 = vunpack.c.l.b16 %v4833
    %v4920 = vunpack.c.h.b16 %v4833
    %v4921 = vunpack.c.l.b16 %v4834
    %v4922 = vunpack.c.h.b16 %v4834
    %v4923 = vunpack.c.l.b16 %v4835
    %v4924 = vunpack.c.h.b16 %v4835
    %v4925 = vunpack.c.l.b16 %v4836
    %v4926 = vunpack.c.h.b16 %v4836
    %v4927 = vunpack.c.l.b16 %v4837
    %v4928 = vunpack.c.h.b16 %v4837
    %v4929 = vunpack.c.l.b16 %v4838
    %v4930 = vunpack.c.h.b16 %v4838
    %v4931 = vunpack.c.l.b16 %v4839
    %v4932 = vunpack.c.h.b16 %v4839
    %v4933 = vunpack.c.l.b16 %v4840
    %v4934 = vunpack.c.h.b16 %v4840
    %v4935 = vunpack.c.l.b16 %v4841
    %v4936 = vunpack.c.h.b16 %v4841
    %v4937 = vunpack.c.l.b16 %v4842
    %v4938 = vunpack.c.h.b16 %v4842
    %v4939 = vpack.c.b16 %v4879, %v4875
    %v4940 = vpack.c.b16 %v4880, %v4876
    %v4941 = vpack.c.b16 %v4881, %v4877
    %v4942 = vpack.c.b16 %v4882, %v4878
    %v4943 = vpack.c.b16 %v4887, %v4883
    %v4944 = vpack.c.b16 %v4888, %v4884
    %v4945 = vpack.c.b16 %v4889, %v4885
    %v4946 = vpack.c.b16 %v4890, %v4886
    %v4947 = vpack.c.b16 %v4895, %v4891
    %v4948 = vpack.c.b16 %v4896, %v4892
    %v4949 = vpack.c.b16 %v4897, %v4893
    %v4950 = vpack.c.b16 %v4898, %v4894
    %v4951 = vpack.c.b16 %v4903, %v4899
    %v4952 = vpack.c.b16 %v4904, %v4900
    %v4953 = vpack.c.b16 %v4905, %v4901
    %v4954 = vpack.c.b16 %v4906, %v4902
    %v4955 = vpack.c.b16 %v4911, %v4907
    %v4956 = vpack.c.b16 %v4912, %v4908
    %v4957 = vpack.c.b16 %v4913, %v4909
    %v4958 = vpack.c.b16 %v4914, %v4910
    %v4959 = vpack.c.b16 %v4919, %v4915
    %v4960 = vpack.c.b16 %v4920, %v4916
    %v4961 = vpack.c.b16 %v4921, %v4917
    %v4962 = vpack.c.b16 %v4922, %v4918
    %v4963 = vpack.c.b16 %v4927, %v4923
    %v4964 = vpack.c.b16 %v4928, %v4924
    %v4965 = vpack.c.b16 %v4929, %v4925
    %v4966 = vpack.c.b16 %v4930, %v4926
    %v4967 = vpack.c.b16 %v4935, %v4931
    %v4968 = vpack.c.b16 %v4936, %v4932
    %v4969 = vpack.c.b16 %v4937, %v4933
    %v4970 = vpack.c.b16 %v4938, %v4934
    %5003 = vmatprep.subr.bf16.mxu0 %v4968
    %5004 = vmatpush1.bf16.msra.mxu0 %v4967
    %5005 = vmatprep.subr.bf16.mxu0 %v4964
    %5006 = vmatpush1.bf16.msra.mxu0 %v4963
    %5007 = vmatprep.subr.bf16.mxu0 %v4960
    %5008 = vmatpush1.bf16.msra.mxu0 %v4959
    %5009 = vmatprep.subr.bf16.mxu0 %v4956
    %5010 = vmatpush1.bf16.msra.mxu0 %v4955
    %5011 = vmatprep.subr.bf16.mxu0 %v4952
    %5012 = vmatpush1.bf16.msra.mxu0 %v4951
    %5013 = vmatprep.subr.bf16.mxu0 %v4948
    %5014 = vmatpush1.bf16.msra.mxu0 %v4947
    %5015 = vmatprep.subr.bf16.mxu0 %v4944
    %5016 = vmatpush1.bf16.msra.mxu0 %v4943
    %5017 = vmatprep.subr.bf16.mxu0 %v4940
    %5018 = vmatpush1.bf16.msra.mxu0 %v4939
    %5019 = vmatprep.subr.bf16.mxu0 0
    %5020 = vmatpush2.bf16.msra.mxu0 0
    %5021 = vmatprep.subr.bf16.mxu0 0
    %5022 = vmatpush2.bf16.msra.mxu0 0
    %5023 = vmatprep.subr.bf16.mxu0 0
    %5024 = vmatpush2.bf16.msra.mxu0 0
    %5025 = vmatprep.subr.bf16.mxu0 0
    %5026 = vmatpush2.bf16.msra.mxu0 0
    %5027 = vmatprep.subr.bf16.mxu0 0
    %5028 = vmatpush2.bf16.msra.mxu0 0
    %5029 = vmatprep.subr.bf16.mxu0 0
    %5030 = vmatpush2.bf16.msra.mxu0 0
    %5031 = vmatprep.subr.bf16.mxu0 0
    %5032 = vmatpush2.bf16.msra.mxu0 0
    %5033 = vmatprep.subr.bf16.mxu0 0
    %5034 = vmatpush2.bf16.msra.mxu0 0
    %5035 = vmatprep.mubr.bf16.mxu0 0
    %5036 = vmatmul.mubr.bf16.gmra.mxu0 %v4224
    %v5037 = vpop.f32.mrf.mxu0
    %v5038 = vadd.f32 0.0, %v5037
    %v5039 = vpop.f32.mrf.mxu0
    %v5040 = vadd.f32 0.0, %v5039
    %v5041 = vpop.f32.mrf.mxu0
    %v5042 = vpop.f32.mrf.mxu0
    %5043 = vdwg.mxu0
    %5044 = vmatprep.subr.bf16.mxu0 %v4970
    %5045 = vmatpush1.bf16.msra.mxu0 %v4969
    %5046 = vmatprep.subr.bf16.mxu0 %v4966
    %5047 = vmatpush1.bf16.msra.mxu0 %v4965
    %5048 = vmatprep.subr.bf16.mxu0 %v4962
    %5049 = vmatpush1.bf16.msra.mxu0 %v4961
    %5050 = vmatprep.subr.bf16.mxu0 %v4958
    %5051 = vmatpush1.bf16.msra.mxu0 %v4957
    %5052 = vmatprep.subr.bf16.mxu0 %v4954
    %5053 = vmatpush1.bf16.msra.mxu0 %v4953
    %5054 = vmatprep.subr.bf16.mxu0 %v4950
    %5055 = vmatpush1.bf16.msra.mxu0 %v4949
    %5056 = vmatprep.subr.bf16.mxu0 %v4946
    %5057 = vmatpush1.bf16.msra.mxu0 %v4945
    %5058 = vmatprep.subr.bf16.mxu0 %v4942
    %5059 = vmatpush1.bf16.msra.mxu0 %v4941
    %5060 = vmatprep.subr.bf16.mxu0 0
    %5061 = vmatpush2.bf16.msra.mxu0 0
    %5062 = vmatprep.subr.bf16.mxu0 0
    %5063 = vmatpush2.bf16.msra.mxu0 0
    %5064 = vmatprep.subr.bf16.mxu0 0
    %5065 = vmatpush2.bf16.msra.mxu0 0
    %5066 = vmatprep.subr.bf16.mxu0 0
    %5067 = vmatpush2.bf16.msra.mxu0 0
    %5068 = vmatprep.subr.bf16.mxu0 0
    %5069 = vmatpush2.bf16.msra.mxu0 0
    %5070 = vmatprep.subr.bf16.mxu0 0
    %5071 = vmatpush2.bf16.msra.mxu0 0
    %5072 = vmatprep.subr.bf16.mxu0 0
    %5073 = vmatpush2.bf16.msra.mxu0 0
    %5074 = vmatprep.subr.bf16.mxu0 0
    %5075 = vmatpush2.bf16.msra.mxu0 0
    %5076 = vmatprep.mubr.bf16.mxu0 0
    %5077 = vmatmul.mubr.bf16.gmra.mxu0 %v4224
    %v5078 = vpop.f32.mrf.mxu0
    %v5079 = vadd.f32 0.0, %v5078
    %v5080 = vpop.f32.mrf.mxu0
    %v5081 = vadd.f32 0.0, %v5080
    %v5082 = vpop.f32.mrf.mxu0
    %v5083 = vpop.f32.mrf.mxu0
    %5084 = vdwg.mxu0
    %v5085 = vadd.f32 %v4807, %v5038
    %v5086 = vadd.f32 %v4808, %v5040
    %v5087 = vadd.f32 %v4809, %v5079
    %v5088 = vadd.f32 %v4810, %v5081
    %v5089 = vxor.u32 %v5085, 2147483648
    %v5090 = vxor.u32 %v5086, 2147483648
    %v5091 = vxor.u32 %v5087, 2147483648
    %v5092 = vmul.f32 %v5089, 1.442695
    %v5093 = vpow.pop %v5092
    %v5094 = vmul.f32 %v5090, 1.442695
    %v5095 = vpow.pop %v5094
    %v5096 = vmul.f32 %v5091, 1.442695
    %v5097 = vpow.pop %v5096
    %v5098 = vadd.f32 %v5093, 1.0
    %v5099 = vadd.f32 %v5095, 1.0
    %v5100 = vadd.f32 %v5097, 1.0
    %v5101 = vrcp.pop %v5098
    %v5102 = vmul.f32 1.0, %v5101
    %v5103 = vrcp.pop %v5099
    %v5104 = vmul.f32 1.0, %v5103
    %v5105 = vrcp.pop %v5100
    %v5106 = vmul.f32 1.0, %v5105
    %v5107 = vtanh.pop %v5088
    %v5108 = vmul.f32 %v5104, %v4221
    %v5109 = vmul.f32 %v5102, %v5107
    %v5110 = vadd.f32 %v5108, %v5109
    %v5111 = vtanh.pop %v5110
    %v5112 = vmul.f32 %v5106, %v5111
    %v5113 = vpack.c.bf16 %v5112, %v5112
    %v5114 = vld [vmem:[#allocation4] sm:$0xff]
    %v5115 = vld [vmem:[#allocation4 + $0x8] sm:$0xff]
    %v5116 = vld [vmem:[#allocation4 + $0x10] sm:$0xff]
    %v5117 = vld [vmem:[#allocation4 + $0x18] sm:$0xff]
    %v5118 = vld [vmem:[#allocation4 + $0x20] sm:$0xff]
    %v5119 = vld [vmem:[#allocation4 + $0x28] sm:$0xff]
    %v5120 = vld [vmem:[#allocation4 + $0x30] sm:$0xff]
    %v5121 = vld [vmem:[#allocation4 + $0x38] sm:$0xff]
    %v5122 = vld [vmem:[#allocation4 + $0x40] sm:$0xff]
    %v5123 = vld [vmem:[#allocation4 + $0x48] sm:$0xff]
    %v5124 = vld [vmem:[#allocation4 + $0x50] sm:$0xff]
    %v5125 = vld [vmem:[#allocation4 + $0x58] sm:$0xff]
    %v5126 = vld [vmem:[#allocation4 + $0x60] sm:$0xff]
    %v5127 = vld [vmem:[#allocation4 + $0x68] sm:$0xff]
    %v5128 = vld [vmem:[#allocation4 + $0x70] sm:$0xff]
    %v5129 = vld [vmem:[#allocation4 + $0x78] sm:$0xff]
    %v5130 = vld [vmem:[#allocation4 + $0x80] sm:$0xff]
    %v5131 = vld [vmem:[#allocation4 + $0x88] sm:$0xff]
    %v5132 = vld [vmem:[#allocation4 + $0x90] sm:$0xff]
    %v5133 = vld [vmem:[#allocation4 + $0x98] sm:$0xff]
    %v5134 = vld [vmem:[#allocation4 + $0xa0] sm:$0xff]
    %v5135 = vld [vmem:[#allocation4 + $0xa8] sm:$0xff]
    %v5136 = vld [vmem:[#allocation4 + $0xb0] sm:$0xff]
    %v5137 = vld [vmem:[#allocation4 + $0xb8] sm:$0xff]
    %v5138 = vld [vmem:[#allocation4 + $0xc0] sm:$0xff]
    %v5139 = vld [vmem:[#allocation4 + $0xc8] sm:$0xff]
    %v5140 = vld [vmem:[#allocation4 + $0xd0] sm:$0xff]
    %v5141 = vld [vmem:[#allocation4 + $0xd8] sm:$0xff]
    %v5142 = vld [vmem:[#allocation4 + $0xe0] sm:$0xff]
    %v5143 = vld [vmem:[#allocation4 + $0xe8] sm:$0xff]
    %v5144 = vld [vmem:[#allocation4 + $0xf0] sm:$0xff]
    %v5145 = vld [vmem:[#allocation4 + $0xf8] sm:$0xff]
    %v5146 = vpack.c.bf16 %v4801, %v4801
    %v5147 = vld [vmem:[#allocation6] sm:$0xff]
    %v5148 = vld [vmem:[#allocation6 + $0x8] sm:$0xff]
    %v5149 = vld [vmem:[#allocation6 + $0x10] sm:$0xff]
    %v5150 = vld [vmem:[#allocation6 + $0x18] sm:$0xff]
    %v5151 = vld [vmem:[#allocation6 + $0x20] sm:$0xff]
    %v5152 = vld [vmem:[#allocation6 + $0x28] sm:$0xff]
    %v5153 = vld [vmem:[#allocation6 + $0x30] sm:$0xff]
    %v5154 = vld [vmem:[#allocation6 + $0x38] sm:$0xff]
    %v5155 = vld [vmem:[#allocation6 + $0x40] sm:$0xff]
    %v5156 = vld [vmem:[#allocation6 + $0x48] sm:$0xff]
    %v5157 = vld [vmem:[#allocation6 + $0x50] sm:$0xff]
    %v5158 = vld [vmem:[#allocation6 + $0x58] sm:$0xff]
    %v5159 = vld [vmem:[#allocation6 + $0x60] sm:$0xff]
    %v5160 = vld [vmem:[#allocation6 + $0x68] sm:$0xff]
    %v5161 = vld [vmem:[#allocation6 + $0x70] sm:$0xff]
    %v5162 = vld [vmem:[#allocation6 + $0x78] sm:$0xff]
    %v5163 = vld [vmem:[#allocation6 + $0x80] sm:$0xff]
    %v5164 = vld [vmem:[#allocation6 + $0x88] sm:$0xff]
    %v5165 = vld [vmem:[#allocation6 + $0x90] sm:$0xff]
    %v5166 = vld [vmem:[#allocation6 + $0x98] sm:$0xff]
    %v5167 = vld [vmem:[#allocation6 + $0xa0] sm:$0xff]
    %v5168 = vld [vmem:[#allocation6 + $0xa8] sm:$0xff]
    %v5169 = vld [vmem:[#allocation6 + $0xb0] sm:$0xff]
    %v5170 = vld [vmem:[#allocation6 + $0xb8] sm:$0xff]
    %v5171 = vld [vmem:[#allocation6 + $0xc0] sm:$0xff]
    %v5172 = vld [vmem:[#allocation6 + $0xc8] sm:$0xff]
    %v5173 = vld [vmem:[#allocation6 + $0xd0] sm:$0xff]
    %v5174 = vld [vmem:[#allocation6 + $0xd8] sm:$0xff]
    %v5175 = vld [vmem:[#allocation6 + $0xe0] sm:$0xff]
    %v5176 = vld [vmem:[#allocation6 + $0xe8] sm:$0xff]
    %v5177 = vld [vmem:[#allocation6 + $0xf0] sm:$0xff]
    %v5178 = vld [vmem:[#allocation6 + $0xf8] sm:$0xff]
    %v5211 = vunpack.c.l.b16 %v5147
    %v5212 = vunpack.c.h.b16 %v5147
    %v5213 = vunpack.c.l.b16 %v5148
    %v5214 = vunpack.c.h.b16 %v5148
    %v5215 = vunpack.c.l.b16 %v5149
    %v5216 = vunpack.c.h.b16 %v5149
    %v5217 = vunpack.c.l.b16 %v5150
    %v5218 = vunpack.c.h.b16 %v5150
    %v5219 = vunpack.c.l.b16 %v5151
    %v5220 = vunpack.c.h.b16 %v5151
    %v5221 = vunpack.c.l.b16 %v5152
    %v5222 = vunpack.c.h.b16 %v5152
    %v5223 = vunpack.c.l.b16 %v5153
    %v5224 = vunpack.c.h.b16 %v5153
    %v5225 = vunpack.c.l.b16 %v5154
    %v5226 = vunpack.c.h.b16 %v5154
    %v5227 = vunpack.c.l.b16 %v5155
    %v5228 = vunpack.c.h.b16 %v5155
    %v5229 = vunpack.c.l.b16 %v5156
    %v5230 = vunpack.c.h.b16 %v5156
    %v5231 = vunpack.c.l.b16 %v5157
    %v5232 = vunpack.c.h.b16 %v5157
    %v5233 = vunpack.c.l.b16 %v5158
    %v5234 = vunpack.c.h.b16 %v5158
    %v5235 = vunpack.c.l.b16 %v5159
    %v5236 = vunpack.c.h.b16 %v5159
    %v5237 = vunpack.c.l.b16 %v5160
    %v5238 = vunpack.c.h.b16 %v5160
    %v5239 = vunpack.c.l.b16 %v5161
    %v5240 = vunpack.c.h.b16 %v5161
    %v5241 = vunpack.c.l.b16 %v5162
    %v5242 = vunpack.c.h.b16 %v5162
    %v5243 = vunpack.c.l.b16 %v5163
    %v5244 = vunpack.c.h.b16 %v5163
    %v5245 = vunpack.c.l.b16 %v5164
    %v5246 = vunpack.c.h.b16 %v5164
    %v5247 = vunpack.c.l.b16 %v5165
    %v5248 = vunpack.c.h.b16 %v5165
    %v5249 = vunpack.c.l.b16 %v5166
    %v5250 = vunpack.c.h.b16 %v5166
    %v5251 = vunpack.c.l.b16 %v5167
    %v5252 = vunpack.c.h.b16 %v5167
    %v5253 = vunpack.c.l.b16 %v5168
    %v5254 = vunpack.c.h.b16 %v5168
    %v5255 = vunpack.c.l.b16 %v5169
    %v5256 = vunpack.c.h.b16 %v5169
    %v5257 = vunpack.c.l.b16 %v5170
    %v5258 = vunpack.c.h.b16 %v5170
    %v5259 = vunpack.c.l.b16 %v5171
    %v5260 = vunpack.c.h.b16 %v5171
    %v5261 = vunpack.c.l.b16 %v5172
    %v5262 = vunpack.c.h.b16 %v5172
    %v5263 = vunpack.c.l.b16 %v5173
    %v5264 = vunpack.c.h.b16 %v5173
    %v5265 = vunpack.c.l.b16 %v5174
    %v5266 = vunpack.c.h.b16 %v5174
    %v5267 = vunpack.c.l.b16 %v5175
    %v5268 = vunpack.c.h.b16 %v5175
    %v5269 = vunpack.c.l.b16 %v5176
    %v5270 = vunpack.c.h.b16 %v5176
    %v5271 = vunpack.c.l.b16 %v5177
    %v5272 = vunpack.c.h.b16 %v5177
    %v5273 = vunpack.c.l.b16 %v5178
    %v5274 = vunpack.c.h.b16 %v5178
    %v5275 = vpack.c.b16 %v5215, %v5211
    %v5276 = vpack.c.b16 %v5216, %v5212
    %v5277 = vpack.c.b16 %v5217, %v5213
    %v5278 = vpack.c.b16 %v5218, %v5214
    %v5279 = vpack.c.b16 %v5223, %v5219
    %v5280 = vpack.c.b16 %v5224, %v5220
    %v5281 = vpack.c.b16 %v5225, %v5221
    %v5282 = vpack.c.b16 %v5226, %v5222
    %v5283 = vpack.c.b16 %v5231, %v5227
    %v5284 = vpack.c.b16 %v5232, %v5228
    %v5285 = vpack.c.b16 %v5233, %v5229
    %v5286 = vpack.c.b16 %v5234, %v5230
    %v5287 = vpack.c.b16 %v5239, %v5235
    %v5288 = vpack.c.b16 %v5240, %v5236
    %v5289 = vpack.c.b16 %v5241, %v5237
    %v5290 = vpack.c.b16 %v5242, %v5238
    %v5291 = vpack.c.b16 %v5247, %v5243
    %v5292 = vpack.c.b16 %v5248, %v5244
    %v5293 = vpack.c.b16 %v5249, %v5245
    %v5294 = vpack.c.b16 %v5250, %v5246
    %v5295 = vpack.c.b16 %v5255, %v5251
    %v5296 = vpack.c.b16 %v5256, %v5252
    %v5297 = vpack.c.b16 %v5257, %v5253
    %v5298 = vpack.c.b16 %v5258, %v5254
    %v5299 = vpack.c.b16 %v5263, %v5259
    %v5300 = vpack.c.b16 %v5264, %v5260
    %v5301 = vpack.c.b16 %v5265, %v5261
    %v5302 = vpack.c.b16 %v5266, %v5262
    %v5303 = vpack.c.b16 %v5271, %v5267
    %v5304 = vpack.c.b16 %v5272, %v5268
    %v5305 = vpack.c.b16 %v5273, %v5269
    %v5306 = vpack.c.b16 %v5274, %v5270
    %5339 = vmatprep.subr.bf16.mxu0 %v5304
    %5340 = vmatpush1.bf16.msra.mxu0 %v5303
    %5341 = vmatprep.subr.bf16.mxu0 %v5300
    %5342 = vmatpush1.bf16.msra.mxu0 %v5299
    %5343 = vmatprep.subr.bf16.mxu0 %v5296
    %5344 = vmatpush1.bf16.msra.mxu0 %v5295
    %5345 = vmatprep.subr.bf16.mxu0 %v5292
    %5346 = vmatpush1.bf16.msra.mxu0 %v5291
    %5347 = vmatprep.subr.bf16.mxu0 %v5288
    %5348 = vmatpush1.bf16.msra.mxu0 %v5287
    %5349 = vmatprep.subr.bf16.mxu0 %v5284
    %5350 = vmatpush1.bf16.msra.mxu0 %v5283
    %5351 = vmatprep.subr.bf16.mxu0 %v5280
    %5352 = vmatpush1.bf16.msra.mxu0 %v5279
    %5353 = vmatprep.subr.bf16.mxu0 %v5276
    %5354 = vmatpush1.bf16.msra.mxu0 %v5275
    %5355 = vmatprep.subr.bf16.mxu0 0
    %5356 = vmatpush2.bf16.msra.mxu0 0
    %5357 = vmatprep.subr.bf16.mxu0 0
    %5358 = vmatpush2.bf16.msra.mxu0 0
    %5359 = vmatprep.subr.bf16.mxu0 0
    %5360 = vmatpush2.bf16.msra.mxu0 0
    %5361 = vmatprep.subr.bf16.mxu0 0
    %5362 = vmatpush2.bf16.msra.mxu0 0
    %5363 = vmatprep.subr.bf16.mxu0 0
    %5364 = vmatpush2.bf16.msra.mxu0 0
    %5365 = vmatprep.subr.bf16.mxu0 0
    %5366 = vmatpush2.bf16.msra.mxu0 0
    %5367 = vmatprep.subr.bf16.mxu0 0
    %5368 = vmatpush2.bf16.msra.mxu0 0
    %5369 = vmatprep.subr.bf16.mxu0 0
    %5370 = vmatpush2.bf16.msra.mxu0 0
    %5371 = vmatprep.mubr.bf16.mxu0 0
    %5372 = vmatmul.mubr.bf16.gmra.mxu0 %v5146
    %v5373 = vpop.f32.mrf.mxu0
    %v5374 = vadd.f32 0.0, %v5373
    %v5375 = vpop.f32.mrf.mxu0
    %v5376 = vadd.f32 0.0, %v5375
    %v5377 = vpop.f32.mrf.mxu0
    %v5378 = vpop.f32.mrf.mxu0
    %5379 = vdwg.mxu0
    %5380 = vmatprep.subr.bf16.mxu0 %v5306
    %5381 = vmatpush1.bf16.msra.mxu0 %v5305
    %5382 = vmatprep.subr.bf16.mxu0 %v5302
    %5383 = vmatpush1.bf16.msra.mxu0 %v5301
    %5384 = vmatprep.subr.bf16.mxu0 %v5298
    %5385 = vmatpush1.bf16.msra.mxu0 %v5297
    %5386 = vmatprep.subr.bf16.mxu0 %v5294
    %5387 = vmatpush1.bf16.msra.mxu0 %v5293
    %5388 = vmatprep.subr.bf16.mxu0 %v5290
    %5389 = vmatpush1.bf16.msra.mxu0 %v5289
    %5390 = vmatprep.subr.bf16.mxu0 %v5286
    %5391 = vmatpush1.bf16.msra.mxu0 %v5285
    %5392 = vmatprep.subr.bf16.mxu0 %v5282
    %5393 = vmatpush1.bf16.msra.mxu0 %v5281
    %5394 = vmatprep.subr.bf16.mxu0 %v5278
    %5395 = vmatpush1.bf16.msra.mxu0 %v5277
    %5396 = vmatprep.subr.bf16.mxu0 0
    %5397 = vmatpush2.bf16.msra.mxu0 0
    %5398 = vmatprep.subr.bf16.mxu0 0
    %5399 = vmatpush2.bf16.msra.mxu0 0
    %5400 = vmatprep.subr.bf16.mxu0 0
    %5401 = vmatpush2.bf16.msra.mxu0 0
    %5402 = vmatprep.subr.bf16.mxu0 0
    %5403 = vmatpush2.bf16.msra.mxu0 0
    %5404 = vmatprep.subr.bf16.mxu0 0
    %5405 = vmatpush2.bf16.msra.mxu0 0
    %5406 = vmatprep.subr.bf16.mxu0 0
    %5407 = vmatpush2.bf16.msra.mxu0 0
    %5408 = vmatprep.subr.bf16.mxu0 0
    %5409 = vmatpush2.bf16.msra.mxu0 0
    %5410 = vmatprep.subr.bf16.mxu0 0
    %5411 = vmatpush2.bf16.msra.mxu0 0
    %5412 = vmatprep.mubr.bf16.mxu0 0
    %5413 = vmatmul.mubr.bf16.gmra.mxu0 %v5146
    %v5414 = vpop.f32.mrf.mxu0
    %v5415 = vadd.f32 0.0, %v5414
    %v5416 = vpop.f32.mrf.mxu0
    %v5417 = vadd.f32 0.0, %v5416
    %v5418 = vpop.f32.mrf.mxu0
    %v5419 = vpop.f32.mrf.mxu0
    %5420 = vdwg.mxu0
    %v5453 = vunpack.c.l.b16 %v5114
    %v5454 = vunpack.c.h.b16 %v5114
    %v5455 = vunpack.c.l.b16 %v5115
    %v5456 = vunpack.c.h.b16 %v5115
    %v5457 = vunpack.c.l.b16 %v5116
    %v5458 = vunpack.c.h.b16 %v5116
    %v5459 = vunpack.c.l.b16 %v5117
    %v5460 = vunpack.c.h.b16 %v5117
    %v5461 = vunpack.c.l.b16 %v5118
    %v5462 = vunpack.c.h.b16 %v5118
    %v5463 = vunpack.c.l.b16 %v5119
    %v5464 = vunpack.c.h.b16 %v5119
    %v5465 = vunpack.c.l.b16 %v5120
    %v5466 = vunpack.c.h.b16 %v5120
    %v5467 = vunpack.c.l.b16 %v5121
    %v5468 = vunpack.c.h.b16 %v5121
    %v5469 = vunpack.c.l.b16 %v5122
    %v5470 = vunpack.c.h.b16 %v5122
    %v5471 = vunpack.c.l.b16 %v5123
    %v5472 = vunpack.c.h.b16 %v5123
    %v5473 = vunpack.c.l.b16 %v5124
    %v5474 = vunpack.c.h.b16 %v5124
    %v5475 = vunpack.c.l.b16 %v5125
    %v5476 = vunpack.c.h.b16 %v5125
    %v5477 = vunpack.c.l.b16 %v5126
    %v5478 = vunpack.c.h.b16 %v5126
    %v5479 = vunpack.c.l.b16 %v5127
    %v5480 = vunpack.c.h.b16 %v5127
    %v5481 = vunpack.c.l.b16 %v5128
    %v5482 = vunpack.c.h.b16 %v5128
    %v5483 = vunpack.c.l.b16 %v5129
    %v5484 = vunpack.c.h.b16 %v5129
    %v5485 = vunpack.c.l.b16 %v5130
    %v5486 = vunpack.c.h.b16 %v5130
    %v5487 = vunpack.c.l.b16 %v5131
    %v5488 = vunpack.c.h.b16 %v5131
    %v5489 = vunpack.c.l.b16 %v5132
    %v5490 = vunpack.c.h.b16 %v5132
    %v5491 = vunpack.c.l.b16 %v5133
    %v5492 = vunpack.c.h.b16 %v5133
    %v5493 = vunpack.c.l.b16 %v5134
    %v5494 = vunpack.c.h.b16 %v5134
    %v5495 = vunpack.c.l.b16 %v5135
    %v5496 = vunpack.c.h.b16 %v5135
    %v5497 = vunpack.c.l.b16 %v5136
    %v5498 = vunpack.c.h.b16 %v5136
    %v5499 = vunpack.c.l.b16 %v5137
    %v5500 = vunpack.c.h.b16 %v5137
    %v5501 = vunpack.c.l.b16 %v5138
    %v5502 = vunpack.c.h.b16 %v5138
    %v5503 = vunpack.c.l.b16 %v5139
    %v5504 = vunpack.c.h.b16 %v5139
    %v5505 = vunpack.c.l.b16 %v5140
    %v5506 = vunpack.c.h.b16 %v5140
    %v5507 = vunpack.c.l.b16 %v5141
    %v5508 = vunpack.c.h.b16 %v5141
    %v5509 = vunpack.c.l.b16 %v5142
    %v5510 = vunpack.c.h.b16 %v5142
    %v5511 = vunpack.c.l.b16 %v5143
    %v5512 = vunpack.c.h.b16 %v5143
    %v5513 = vunpack.c.l.b16 %v5144
    %v5514 = vunpack.c.h.b16 %v5144
    %v5515 = vunpack.c.l.b16 %v5145
    %v5516 = vunpack.c.h.b16 %v5145
    %v5517 = vpack.c.b16 %v5457, %v5453
    %v5518 = vpack.c.b16 %v5458, %v5454
    %v5519 = vpack.c.b16 %v5459, %v5455
    %v5520 = vpack.c.b16 %v5460, %v5456
    %v5521 = vpack.c.b16 %v5465, %v5461
    %v5522 = vpack.c.b16 %v5466, %v5462
    %v5523 = vpack.c.b16 %v5467, %v5463
    %v5524 = vpack.c.b16 %v5468, %v5464
    %v5525 = vpack.c.b16 %v5473, %v5469
    %v5526 = vpack.c.b16 %v5474, %v5470
    %v5527 = vpack.c.b16 %v5475, %v5471
    %v5528 = vpack.c.b16 %v5476, %v5472
    %v5529 = vpack.c.b16 %v5481, %v5477
    %v5530 = vpack.c.b16 %v5482, %v5478
    %v5531 = vpack.c.b16 %v5483, %v5479
    %v5532 = vpack.c.b16 %v5484, %v5480
    %v5533 = vpack.c.b16 %v5489, %v5485
    %v5534 = vpack.c.b16 %v5490, %v5486
    %v5535 = vpack.c.b16 %v5491, %v5487
    %v5536 = vpack.c.b16 %v5492, %v5488
    %v5537 = vpack.c.b16 %v5497, %v5493
    %v5538 = vpack.c.b16 %v5498, %v5494
    %v5539 = vpack.c.b16 %v5499, %v5495
    %v5540 = vpack.c.b16 %v5500, %v5496
    %v5541 = vpack.c.b16 %v5505, %v5501
    %v5542 = vpack.c.b16 %v5506, %v5502
    %v5543 = vpack.c.b16 %v5507, %v5503
    %v5544 = vpack.c.b16 %v5508, %v5504
    %v5545 = vpack.c.b16 %v5513, %v5509
    %v5546 = vpack.c.b16 %v5514, %v5510
    %v5547 = vpack.c.b16 %v5515, %v5511
    %v5548 = vpack.c.b16 %v5516, %v5512
    %5581 = vmatprep.subr.bf16.mxu0 %v5546
    %5582 = vmatpush1.bf16.msra.mxu0 %v5545
    %5583 = vmatprep.subr.bf16.mxu0 %v5542
    %5584 = vmatpush1.bf16.msra.mxu0 %v5541
    %5585 = vmatprep.subr.bf16.mxu0 %v5538
    %5586 = vmatpush1.bf16.msra.mxu0 %v5537
    %5587 = vmatprep.subr.bf16.mxu0 %v5534
    %5588 = vmatpush1.bf16.msra.mxu0 %v5533
    %5589 = vmatprep.subr.bf16.mxu0 %v5530
    %5590 = vmatpush1.bf16.msra.mxu0 %v5529
    %5591 = vmatprep.subr.bf16.mxu0 %v5526
    %5592 = vmatpush1.bf16.msra.mxu0 %v5525
    %5593 = vmatprep.subr.bf16.mxu0 %v5522
    %5594 = vmatpush1.bf16.msra.mxu0 %v5521
    %5595 = vmatprep.subr.bf16.mxu0 %v5518
    %5596 = vmatpush1.bf16.msra.mxu0 %v5517
    %5597 = vmatprep.subr.bf16.mxu0 0
    %5598 = vmatpush2.bf16.msra.mxu0 0
    %5599 = vmatprep.subr.bf16.mxu0 0
    %5600 = vmatpush2.bf16.msra.mxu0 0
    %5601 = vmatprep.subr.bf16.mxu0 0
    %5602 = vmatpush2.bf16.msra.mxu0 0
    %5603 = vmatprep.subr.bf16.mxu0 0
    %5604 = vmatpush2.bf16.msra.mxu0 0
    %5605 = vmatprep.subr.bf16.mxu0 0
    %5606 = vmatpush2.bf16.msra.mxu0 0
    %5607 = vmatprep.subr.bf16.mxu0 0
    %5608 = vmatpush2.bf16.msra.mxu0 0
    %5609 = vmatprep.subr.bf16.mxu0 0
    %5610 = vmatpush2.bf16.msra.mxu0 0
    %5611 = vmatprep.subr.bf16.mxu0 0
    %5612 = vmatpush2.bf16.msra.mxu0 0
    %5613 = vmatprep.mubr.bf16.mxu0 0
    %5614 = vmatmul.mubr.bf16.gmra.mxu0 %v5113
    %v5615 = vpop.f32.mrf.mxu0
    %v5616 = vadd.f32 %v5374, %v5615
    %v5617 = vpop.f32.mrf.mxu0
    %v5618 = vadd.f32 %v5376, %v5617
    %v5619 = vpop.f32.mrf.mxu0
    %v5620 = vpop.f32.mrf.mxu0
    %5621 = vdwg.mxu0
    %5622 = vmatprep.subr.bf16.mxu0 %v5548
    %5623 = vmatpush1.bf16.msra.mxu0 %v5547
    %5624 = vmatprep.subr.bf16.mxu0 %v5544
    %5625 = vmatpush1.bf16.msra.mxu0 %v5543
    %5626 = vmatprep.subr.bf16.mxu0 %v5540
    %5627 = vmatpush1.bf16.msra.mxu0 %v5539
    %5628 = vmatprep.subr.bf16.mxu0 %v5536
    %5629 = vmatpush1.bf16.msra.mxu0 %v5535
    %5630 = vmatprep.subr.bf16.mxu0 %v5532
    %5631 = vmatpush1.bf16.msra.mxu0 %v5531
    %5632 = vmatprep.subr.bf16.mxu0 %v5528
    %5633 = vmatpush1.bf16.msra.mxu0 %v5527
    %5634 = vmatprep.subr.bf16.mxu0 %v5524
    %5635 = vmatpush1.bf16.msra.mxu0 %v5523
    %5636 = vmatprep.subr.bf16.mxu0 %v5520
    %5637 = vmatpush1.bf16.msra.mxu0 %v5519
    %5638 = vmatprep.subr.bf16.mxu0 0
    %5639 = vmatpush2.bf16.msra.mxu0 0
    %5640 = vmatprep.subr.bf16.mxu0 0
    %5641 = vmatpush2.bf16.msra.mxu0 0
    %5642 = vmatprep.subr.bf16.mxu0 0
    %5643 = vmatpush2.bf16.msra.mxu0 0
    %5644 = vmatprep.subr.bf16.mxu0 0
    %5645 = vmatpush2.bf16.msra.mxu0 0
    %5646 = vmatprep.subr.bf16.mxu0 0
    %5647 = vmatpush2.bf16.msra.mxu0 0
    %5648 = vmatprep.subr.bf16.mxu0 0
    %5649 = vmatpush2.bf16.msra.mxu0 0
    %5650 = vmatprep.subr.bf16.mxu0 0
    %5651 = vmatpush2.bf16.msra.mxu0 0
    %5652 = vmatprep.subr.bf16.mxu0 0
    %5653 = vmatpush2.bf16.msra.mxu0 0
    %5654 = vmatprep.mubr.bf16.mxu0 0
    %5655 = vmatmul.mubr.bf16.gmra.mxu0 %v5113
    %v5656 = vpop.f32.mrf.mxu0
    %v5657 = vadd.f32 %v5415, %v5656
    %v5658 = vpop.f32.mrf.mxu0
    %v5659 = vadd.f32 %v5417, %v5658
    %v5660 = vpop.f32.mrf.mxu0
    %v5661 = vpop.f32.mrf.mxu0
    %5662 = vdwg.mxu0
    %v5663 = vadd.f32 %v5616, %v344
    %v5664 = vadd.f32 %v5618, %v348
    %v5665 = vadd.f32 %v5657, %v352
    %v5666 = vadd.f32 %v5659, %v356
    %v5667 = vxor.u32 %v5663, 2147483648
    %v5668 = vxor.u32 %v5664, 2147483648
    %v5669 = vxor.u32 %v5665, 2147483648
    %v5670 = vmul.f32 %v5667, 1.442695
    %v5671 = vpow.pop %v5670
    %v5672 = vmul.f32 %v5668, 1.442695
    %v5673 = vpow.pop %v5672
    %v5674 = vmul.f32 %v5669, 1.442695
    %v5675 = vpow.pop %v5674
    %v5676 = vadd.f32 %v5671, 1.0
    %v5677 = vadd.f32 %v5673, 1.0
    %v5678 = vadd.f32 %v5675, 1.0
    %v5679 = vrcp.pop %v5676
    %v5680 = vmul.f32 1.0, %v5679
    %v5681 = vrcp.pop %v5677
    %v5682 = vmul.f32 1.0, %v5681
    %v5683 = vrcp.pop %v5678
    %v5684 = vmul.f32 1.0, %v5683
    %v5685 = vtanh.pop %v5666
    %v5686 = vmul.f32 %v5682, %v4799
    %v5687 = vmul.f32 %v5680, %v5685
    %v5688 = vadd.f32 %v5686, %v5687
    %v5689 = vtanh.pop %v5688
    %v5690 = vmul.f32 %v5684, %v5689
    %s5691 = scalar_lea.vmem [#allocation3], 40
    %5692 = vst [vmem:[%s5691] sm:$0xff] %v5690
    %s5693 = smul.u32 6, 4
    %s5694 = smul.addr %s5693, 8
    %s5695 = scalar_lea.vmem [#allocation2], %s5694
    %v5696 = vld [vmem:[%s5695] sm:$0xff]
    %v5697 = vld [vmem:[%s5695 + $0x8] sm:$0xff]
    %v5698 = vld [vmem:[%s5695 + $0x10] sm:$0xff]
    %v5699 = vld [vmem:[%s5695 + $0x18] sm:$0xff]
    %v5700 = vld [vmem:[%s3] sm:$0xff]
    %v5701 = vld [vmem:[%s3 + $0x8] sm:$0xff]
    %v5702 = vld [vmem:[%s3 + $0x10] sm:$0xff]
    %v5703 = vld [vmem:[%s3 + $0x18] sm:$0xff]
    %v5704 = vld [vmem:[%s3 + $0x20] sm:$0xff]
    %v5705 = vld [vmem:[%s3 + $0x28] sm:$0xff]
    %v5706 = vld [vmem:[%s3 + $0x30] sm:$0xff]
    %v5707 = vld [vmem:[%s3 + $0x38] sm:$0xff]
    %v5708 = vld [vmem:[%s3 + $0x40] sm:$0xff]
    %v5709 = vld [vmem:[%s3 + $0x48] sm:$0xff]
    %v5710 = vld [vmem:[%s3 + $0x50] sm:$0xff]
    %v5711 = vld [vmem:[%s3 + $0x58] sm:$0xff]
    %v5712 = vld [vmem:[%s3 + $0x60] sm:$0xff]
    %v5713 = vld [vmem:[%s3 + $0x68] sm:$0xff]
    %v5714 = vld [vmem:[%s3 + $0x70] sm:$0xff]
    %v5715 = vld [vmem:[%s3 + $0x78] sm:$0xff]
    %v5716 = vld [vmem:[%s3 + $0x80] sm:$0xff]
    %v5717 = vld [vmem:[%s3 + $0x88] sm:$0xff]
    %v5718 = vld [vmem:[%s3 + $0x90] sm:$0xff]
    %v5719 = vld [vmem:[%s3 + $0x98] sm:$0xff]
    %v5720 = vld [vmem:[%s3 + $0xa0] sm:$0xff]
    %v5721 = vld [vmem:[%s3 + $0xa8] sm:$0xff]
    %v5722 = vld [vmem:[%s3 + $0xb0] sm:$0xff]
    %v5723 = vld [vmem:[%s3 + $0xb8] sm:$0xff]
    %v5724 = vld [vmem:[%s3 + $0xc0] sm:$0xff]
    %v5725 = vld [vmem:[%s3 + $0xc8] sm:$0xff]
    %v5726 = vld [vmem:[%s3 + $0xd0] sm:$0xff]
    %v5727 = vld [vmem:[%s3 + $0xd8] sm:$0xff]
    %v5728 = vld [vmem:[%s3 + $0xe0] sm:$0xff]
    %v5729 = vld [vmem:[%s3 + $0xe8] sm:$0xff]
    %v5730 = vld [vmem:[%s3 + $0xf0] sm:$0xff]
    %v5731 = vld [vmem:[%s3 + $0xf8] sm:$0xff]
    %v5764 = vunpack.c.l.b16 %v5700
    %v5765 = vunpack.c.h.b16 %v5700
    %v5766 = vunpack.c.l.b16 %v5701
    %v5767 = vunpack.c.h.b16 %v5701
    %v5768 = vunpack.c.l.b16 %v5702
    %v5769 = vunpack.c.h.b16 %v5702
    %v5770 = vunpack.c.l.b16 %v5703
    %v5771 = vunpack.c.h.b16 %v5703
    %v5772 = vunpack.c.l.b16 %v5704
    %v5773 = vunpack.c.h.b16 %v5704
    %v5774 = vunpack.c.l.b16 %v5705
    %v5775 = vunpack.c.h.b16 %v5705
    %v5776 = vunpack.c.l.b16 %v5706
    %v5777 = vunpack.c.h.b16 %v5706
    %v5778 = vunpack.c.l.b16 %v5707
    %v5779 = vunpack.c.h.b16 %v5707
    %v5780 = vunpack.c.l.b16 %v5708
    %v5781 = vunpack.c.h.b16 %v5708
    %v5782 = vunpack.c.l.b16 %v5709
    %v5783 = vunpack.c.h.b16 %v5709
    %v5784 = vunpack.c.l.b16 %v5710
    %v5785 = vunpack.c.h.b16 %v5710
    %v5786 = vunpack.c.l.b16 %v5711
    %v5787 = vunpack.c.h.b16 %v5711
    %v5788 = vunpack.c.l.b16 %v5712
    %v5789 = vunpack.c.h.b16 %v5712
    %v5790 = vunpack.c.l.b16 %v5713
    %v5791 = vunpack.c.h.b16 %v5713
    %v5792 = vunpack.c.l.b16 %v5714
    %v5793 = vunpack.c.h.b16 %v5714
    %v5794 = vunpack.c.l.b16 %v5715
    %v5795 = vunpack.c.h.b16 %v5715
    %v5796 = vunpack.c.l.b16 %v5716
    %v5797 = vunpack.c.h.b16 %v5716
    %v5798 = vunpack.c.l.b16 %v5717
    %v5799 = vunpack.c.h.b16 %v5717
    %v5800 = vunpack.c.l.b16 %v5718
    %v5801 = vunpack.c.h.b16 %v5718
    %v5802 = vunpack.c.l.b16 %v5719
    %v5803 = vunpack.c.h.b16 %v5719
    %v5804 = vunpack.c.l.b16 %v5720
    %v5805 = vunpack.c.h.b16 %v5720
    %v5806 = vunpack.c.l.b16 %v5721
    %v5807 = vunpack.c.h.b16 %v5721
    %v5808 = vunpack.c.l.b16 %v5722
    %v5809 = vunpack.c.h.b16 %v5722
    %v5810 = vunpack.c.l.b16 %v5723
    %v5811 = vunpack.c.h.b16 %v5723
    %v5812 = vunpack.c.l.b16 %v5724
    %v5813 = vunpack.c.h.b16 %v5724
    %v5814 = vunpack.c.l.b16 %v5725
    %v5815 = vunpack.c.h.b16 %v5725
    %v5816 = vunpack.c.l.b16 %v5726
    %v5817 = vunpack.c.h.b16 %v5726
    %v5818 = vunpack.c.l.b16 %v5727
    %v5819 = vunpack.c.h.b16 %v5727
    %v5820 = vunpack.c.l.b16 %v5728
    %v5821 = vunpack.c.h.b16 %v5728
    %v5822 = vunpack.c.l.b16 %v5729
    %v5823 = vunpack.c.h.b16 %v5729
    %v5824 = vunpack.c.l.b16 %v5730
    %v5825 = vunpack.c.h.b16 %v5730
    %v5826 = vunpack.c.l.b16 %v5731
    %v5827 = vunpack.c.h.b16 %v5731
    %v5828 = vpack.c.b16 %v5768, %v5764
    %v5829 = vpack.c.b16 %v5769, %v5765
    %v5830 = vpack.c.b16 %v5770, %v5766
    %v5831 = vpack.c.b16 %v5771, %v5767
    %v5832 = vpack.c.b16 %v5776, %v5772
    %v5833 = vpack.c.b16 %v5777, %v5773
    %v5834 = vpack.c.b16 %v5778, %v5774
    %v5835 = vpack.c.b16 %v5779, %v5775
    %v5836 = vpack.c.b16 %v5784, %v5780
    %v5837 = vpack.c.b16 %v5785, %v5781
    %v5838 = vpack.c.b16 %v5786, %v5782
    %v5839 = vpack.c.b16 %v5787, %v5783
    %v5840 = vpack.c.b16 %v5792, %v5788
    %v5841 = vpack.c.b16 %v5793, %v5789
    %v5842 = vpack.c.b16 %v5794, %v5790
    %v5843 = vpack.c.b16 %v5795, %v5791
    %v5844 = vpack.c.b16 %v5800, %v5796
    %v5845 = vpack.c.b16 %v5801, %v5797
    %v5846 = vpack.c.b16 %v5802, %v5798
    %v5847 = vpack.c.b16 %v5803, %v5799
    %v5848 = vpack.c.b16 %v5808, %v5804
    %v5849 = vpack.c.b16 %v5809, %v5805
    %v5850 = vpack.c.b16 %v5810, %v5806
    %v5851 = vpack.c.b16 %v5811, %v5807
    %v5852 = vpack.c.b16 %v5816, %v5812
    %v5853 = vpack.c.b16 %v5817, %v5813
    %v5854 = vpack.c.b16 %v5818, %v5814
    %v5855 = vpack.c.b16 %v5819, %v5815
    %v5856 = vpack.c.b16 %v5824, %v5820
    %v5857 = vpack.c.b16 %v5825, %v5821
    %v5858 = vpack.c.b16 %v5826, %v5822
    %v5859 = vpack.c.b16 %v5827, %v5823
    %5892 = vmatprep.subr.bf16.mxu0 %v5857
    %5893 = vmatpush1.bf16.msra.mxu0 %v5856
    %5894 = vmatprep.subr.bf16.mxu0 %v5853
    %5895 = vmatpush1.bf16.msra.mxu0 %v5852
    %5896 = vmatprep.subr.bf16.mxu0 %v5849
    %5897 = vmatpush1.bf16.msra.mxu0 %v5848
    %5898 = vmatprep.subr.bf16.mxu0 %v5845
    %5899 = vmatpush1.bf16.msra.mxu0 %v5844
    %5900 = vmatprep.subr.bf16.mxu0 %v5841
    %5901 = vmatpush1.bf16.msra.mxu0 %v5840
    %5902 = vmatprep.subr.bf16.mxu0 %v5837
    %5903 = vmatpush1.bf16.msra.mxu0 %v5836
    %5904 = vmatprep.subr.bf16.mxu0 %v5833
    %5905 = vmatpush1.bf16.msra.mxu0 %v5832
    %5906 = vmatprep.subr.bf16.mxu0 %v5829
    %5907 = vmatpush1.bf16.msra.mxu0 %v5828
    %5908 = vmatprep.subr.bf16.mxu0 0
    %5909 = vmatpush2.bf16.msra.mxu0 0
    %5910 = vmatprep.subr.bf16.mxu0 0
    %5911 = vmatpush2.bf16.msra.mxu0 0
    %5912 = vmatprep.subr.bf16.mxu0 0
    %5913 = vmatpush2.bf16.msra.mxu0 0
    %5914 = vmatprep.subr.bf16.mxu0 0
    %5915 = vmatpush2.bf16.msra.mxu0 0
    %5916 = vmatprep.subr.bf16.mxu0 0
    %5917 = vmatpush2.bf16.msra.mxu0 0
    %5918 = vmatprep.subr.bf16.mxu0 0
    %5919 = vmatpush2.bf16.msra.mxu0 0
    %5920 = vmatprep.subr.bf16.mxu0 0
    %5921 = vmatpush2.bf16.msra.mxu0 0
    %5922 = vmatprep.subr.bf16.mxu0 0
    %5923 = vmatpush2.bf16.msra.mxu0 0
    %5924 = vmatprep.mubr.bf16.mxu0 0
    %5925 = vmatmul.mubr.bf16.gmra.mxu0 %v5113
    %v5926 = vpop.f32.mrf.mxu0
    %v5927 = vadd.f32 0.0, %v5926
    %v5928 = vpop.f32.mrf.mxu0
    %v5929 = vadd.f32 0.0, %v5928
    %v5930 = vpop.f32.mrf.mxu0
    %v5931 = vpop.f32.mrf.mxu0
    %5932 = vdwg.mxu0
    %5933 = vmatprep.subr.bf16.mxu0 %v5859
    %5934 = vmatpush1.bf16.msra.mxu0 %v5858
    %5935 = vmatprep.subr.bf16.mxu0 %v5855
    %5936 = vmatpush1.bf16.msra.mxu0 %v5854
    %5937 = vmatprep.subr.bf16.mxu0 %v5851
    %5938 = vmatpush1.bf16.msra.mxu0 %v5850
    %5939 = vmatprep.subr.bf16.mxu0 %v5847
    %5940 = vmatpush1.bf16.msra.mxu0 %v5846
    %5941 = vmatprep.subr.bf16.mxu0 %v5843
    %5942 = vmatpush1.bf16.msra.mxu0 %v5842
    %5943 = vmatprep.subr.bf16.mxu0 %v5839
    %5944 = vmatpush1.bf16.msra.mxu0 %v5838
    %5945 = vmatprep.subr.bf16.mxu0 %v5835
    %5946 = vmatpush1.bf16.msra.mxu0 %v5834
    %5947 = vmatprep.subr.bf16.mxu0 %v5831
    %5948 = vmatpush1.bf16.msra.mxu0 %v5830
    %5949 = vmatprep.subr.bf16.mxu0 0
    %5950 = vmatpush2.bf16.msra.mxu0 0
    %5951 = vmatprep.subr.bf16.mxu0 0
    %5952 = vmatpush2.bf16.msra.mxu0 0
    %5953 = vmatprep.subr.bf16.mxu0 0
    %5954 = vmatpush2.bf16.msra.mxu0 0
    %5955 = vmatprep.subr.bf16.mxu0 0
    %5956 = vmatpush2.bf16.msra.mxu0 0
    %5957 = vmatprep.subr.bf16.mxu0 0
    %5958 = vmatpush2.bf16.msra.mxu0 0
    %5959 = vmatprep.subr.bf16.mxu0 0
    %5960 = vmatpush2.bf16.msra.mxu0 0
    %5961 = vmatprep.subr.bf16.mxu0 0
    %5962 = vmatpush2.bf16.msra.mxu0 0
    %5963 = vmatprep.subr.bf16.mxu0 0
    %5964 = vmatpush2.bf16.msra.mxu0 0
    %5965 = vmatprep.mubr.bf16.mxu0 0
    %5966 = vmatmul.mubr.bf16.gmra.mxu0 %v5113
    %v5967 = vpop.f32.mrf.mxu0
    %v5968 = vadd.f32 0.0, %v5967
    %v5969 = vpop.f32.mrf.mxu0
    %v5970 = vadd.f32 0.0, %v5969
    %v5971 = vpop.f32.mrf.mxu0
    %v5972 = vpop.f32.mrf.mxu0
    %5973 = vdwg.mxu0
    %v5974 = vadd.f32 %v5696, %v5927
    %v5975 = vadd.f32 %v5697, %v5929
    %v5976 = vadd.f32 %v5698, %v5968
    %v5977 = vadd.f32 %v5699, %v5970
    %v5978 = vxor.u32 %v5974, 2147483648
    %v5979 = vxor.u32 %v5975, 2147483648
    %v5980 = vxor.u32 %v5976, 2147483648
    %v5981 = vmul.f32 %v5978, 1.442695
    %v5982 = vpow.pop %v5981
    %v5983 = vmul.f32 %v5979, 1.442695
    %v5984 = vpow.pop %v5983
    %v5985 = vmul.f32 %v5980, 1.442695
    %v5986 = vpow.pop %v5985
    %v5987 = vadd.f32 %v5982, 1.0
    %v5988 = vadd.f32 %v5984, 1.0
    %v5989 = vadd.f32 %v5986, 1.0
    %v5990 = vrcp.pop %v5987
    %v5991 = vmul.f32 1.0, %v5990
    %v5992 = vrcp.pop %v5988
    %v5993 = vmul.f32 1.0, %v5992
    %v5994 = vrcp.pop %v5989
    %v5995 = vmul.f32 1.0, %v5994
    %v5996 = vtanh.pop %v5977
    %v5997 = vmul.f32 %v5993, %v5110
    %v5998 = vmul.f32 %v5991, %v5996
    %v5999 = vadd.f32 %v5997, %v5998
    %v6000 = vtanh.pop %v5999
    %v6001 = vmul.f32 %v5995, %v6000
    %v6002 = vpack.c.bf16 %v6001, %v6001
    %v6003 = vld [vmem:[#allocation4] sm:$0xff]
    %v6004 = vld [vmem:[#allocation4 + $0x8] sm:$0xff]
    %v6005 = vld [vmem:[#allocation4 + $0x10] sm:$0xff]
    %v6006 = vld [vmem:[#allocation4 + $0x18] sm:$0xff]
    %v6007 = vld [vmem:[#allocation4 + $0x20] sm:$0xff]
    %v6008 = vld [vmem:[#allocation4 + $0x28] sm:$0xff]
    %v6009 = vld [vmem:[#allocation4 + $0x30] sm:$0xff]
    %v6010 = vld [vmem:[#allocation4 + $0x38] sm:$0xff]
    %v6011 = vld [vmem:[#allocation4 + $0x40] sm:$0xff]
    %v6012 = vld [vmem:[#allocation4 + $0x48] sm:$0xff]
    %v6013 = vld [vmem:[#allocation4 + $0x50] sm:$0xff]
    %v6014 = vld [vmem:[#allocation4 + $0x58] sm:$0xff]
    %v6015 = vld [vmem:[#allocation4 + $0x60] sm:$0xff]
    %v6016 = vld [vmem:[#allocation4 + $0x68] sm:$0xff]
    %v6017 = vld [vmem:[#allocation4 + $0x70] sm:$0xff]
    %v6018 = vld [vmem:[#allocation4 + $0x78] sm:$0xff]
    %v6019 = vld [vmem:[#allocation4 + $0x80] sm:$0xff]
    %v6020 = vld [vmem:[#allocation4 + $0x88] sm:$0xff]
    %v6021 = vld [vmem:[#allocation4 + $0x90] sm:$0xff]
    %v6022 = vld [vmem:[#allocation4 + $0x98] sm:$0xff]
    %v6023 = vld [vmem:[#allocation4 + $0xa0] sm:$0xff]
    %v6024 = vld [vmem:[#allocation4 + $0xa8] sm:$0xff]
    %v6025 = vld [vmem:[#allocation4 + $0xb0] sm:$0xff]
    %v6026 = vld [vmem:[#allocation4 + $0xb8] sm:$0xff]
    %v6027 = vld [vmem:[#allocation4 + $0xc0] sm:$0xff]
    %v6028 = vld [vmem:[#allocation4 + $0xc8] sm:$0xff]
    %v6029 = vld [vmem:[#allocation4 + $0xd0] sm:$0xff]
    %v6030 = vld [vmem:[#allocation4 + $0xd8] sm:$0xff]
    %v6031 = vld [vmem:[#allocation4 + $0xe0] sm:$0xff]
    %v6032 = vld [vmem:[#allocation4 + $0xe8] sm:$0xff]
    %v6033 = vld [vmem:[#allocation4 + $0xf0] sm:$0xff]
    %v6034 = vld [vmem:[#allocation4 + $0xf8] sm:$0xff]
    %v6035 = vpack.c.bf16 %v5690, %v5690
    %v6036 = vld [vmem:[#allocation6] sm:$0xff]
    %v6037 = vld [vmem:[#allocation6 + $0x8] sm:$0xff]
    %v6038 = vld [vmem:[#allocation6 + $0x10] sm:$0xff]
    %v6039 = vld [vmem:[#allocation6 + $0x18] sm:$0xff]
    %v6040 = vld [vmem:[#allocation6 + $0x20] sm:$0xff]
    %v6041 = vld [vmem:[#allocation6 + $0x28] sm:$0xff]
    %v6042 = vld [vmem:[#allocation6 + $0x30] sm:$0xff]
    %v6043 = vld [vmem:[#allocation6 + $0x38] sm:$0xff]
    %v6044 = vld [vmem:[#allocation6 + $0x40] sm:$0xff]
    %v6045 = vld [vmem:[#allocation6 + $0x48] sm:$0xff]
    %v6046 = vld [vmem:[#allocation6 + $0x50] sm:$0xff]
    %v6047 = vld [vmem:[#allocation6 + $0x58] sm:$0xff]
    %v6048 = vld [vmem:[#allocation6 + $0x60] sm:$0xff]
    %v6049 = vld [vmem:[#allocation6 + $0x68] sm:$0xff]
    %v6050 = vld [vmem:[#allocation6 + $0x70] sm:$0xff]
    %v6051 = vld [vmem:[#allocation6 + $0x78] sm:$0xff]
    %v6052 = vld [vmem:[#allocation6 + $0x80] sm:$0xff]
    %v6053 = vld [vmem:[#allocation6 + $0x88] sm:$0xff]
    %v6054 = vld [vmem:[#allocation6 + $0x90] sm:$0xff]
    %v6055 = vld [vmem:[#allocation6 + $0x98] sm:$0xff]
    %v6056 = vld [vmem:[#allocation6 + $0xa0] sm:$0xff]
    %v6057 = vld [vmem:[#allocation6 + $0xa8] sm:$0xff]
    %v6058 = vld [vmem:[#allocation6 + $0xb0] sm:$0xff]
    %v6059 = vld [vmem:[#allocation6 + $0xb8] sm:$0xff]
    %v6060 = vld [vmem:[#allocation6 + $0xc0] sm:$0xff]
    %v6061 = vld [vmem:[#allocation6 + $0xc8] sm:$0xff]
    %v6062 = vld [vmem:[#allocation6 + $0xd0] sm:$0xff]
    %v6063 = vld [vmem:[#allocation6 + $0xd8] sm:$0xff]
    %v6064 = vld [vmem:[#allocation6 + $0xe0] sm:$0xff]
    %v6065 = vld [vmem:[#allocation6 + $0xe8] sm:$0xff]
    %v6066 = vld [vmem:[#allocation6 + $0xf0] sm:$0xff]
    %v6067 = vld [vmem:[#allocation6 + $0xf8] sm:$0xff]
    %v6100 = vunpack.c.l.b16 %v6036
    %v6101 = vunpack.c.h.b16 %v6036
    %v6102 = vunpack.c.l.b16 %v6037
    %v6103 = vunpack.c.h.b16 %v6037
    %v6104 = vunpack.c.l.b16 %v6038
    %v6105 = vunpack.c.h.b16 %v6038
    %v6106 = vunpack.c.l.b16 %v6039
    %v6107 = vunpack.c.h.b16 %v6039
    %v6108 = vunpack.c.l.b16 %v6040
    %v6109 = vunpack.c.h.b16 %v6040
    %v6110 = vunpack.c.l.b16 %v6041
    %v6111 = vunpack.c.h.b16 %v6041
    %v6112 = vunpack.c.l.b16 %v6042
    %v6113 = vunpack.c.h.b16 %v6042
    %v6114 = vunpack.c.l.b16 %v6043
    %v6115 = vunpack.c.h.b16 %v6043
    %v6116 = vunpack.c.l.b16 %v6044
    %v6117 = vunpack.c.h.b16 %v6044
    %v6118 = vunpack.c.l.b16 %v6045
    %v6119 = vunpack.c.h.b16 %v6045
    %v6120 = vunpack.c.l.b16 %v6046
    %v6121 = vunpack.c.h.b16 %v6046
    %v6122 = vunpack.c.l.b16 %v6047
    %v6123 = vunpack.c.h.b16 %v6047
    %v6124 = vunpack.c.l.b16 %v6048
    %v6125 = vunpack.c.h.b16 %v6048
    %v6126 = vunpack.c.l.b16 %v6049
    %v6127 = vunpack.c.h.b16 %v6049
    %v6128 = vunpack.c.l.b16 %v6050
    %v6129 = vunpack.c.h.b16 %v6050
    %v6130 = vunpack.c.l.b16 %v6051
    %v6131 = vunpack.c.h.b16 %v6051
    %v6132 = vunpack.c.l.b16 %v6052
    %v6133 = vunpack.c.h.b16 %v6052
    %v6134 = vunpack.c.l.b16 %v6053
    %v6135 = vunpack.c.h.b16 %v6053
    %v6136 = vunpack.c.l.b16 %v6054
    %v6137 = vunpack.c.h.b16 %v6054
    %v6138 = vunpack.c.l.b16 %v6055
    %v6139 = vunpack.c.h.b16 %v6055
    %v6140 = vunpack.c.l.b16 %v6056
    %v6141 = vunpack.c.h.b16 %v6056
    %v6142 = vunpack.c.l.b16 %v6057
    %v6143 = vunpack.c.h.b16 %v6057
    %v6144 = vunpack.c.l.b16 %v6058
    %v6145 = vunpack.c.h.b16 %v6058
    %v6146 = vunpack.c.l.b16 %v6059
    %v6147 = vunpack.c.h.b16 %v6059
    %v6148 = vunpack.c.l.b16 %v6060
    %v6149 = vunpack.c.h.b16 %v6060
    %v6150 = vunpack.c.l.b16 %v6061
    %v6151 = vunpack.c.h.b16 %v6061
    %v6152 = vunpack.c.l.b16 %v6062
    %v6153 = vunpack.c.h.b16 %v6062
    %v6154 = vunpack.c.l.b16 %v6063
    %v6155 = vunpack.c.h.b16 %v6063
    %v6156 = vunpack.c.l.b16 %v6064
    %v6157 = vunpack.c.h.b16 %v6064
    %v6158 = vunpack.c.l.b16 %v6065
    %v6159 = vunpack.c.h.b16 %v6065
    %v6160 = vunpack.c.l.b16 %v6066
    %v6161 = vunpack.c.h.b16 %v6066
    %v6162 = vunpack.c.l.b16 %v6067
    %v6163 = vunpack.c.h.b16 %v6067
    %v6164 = vpack.c.b16 %v6104, %v6100
    %v6165 = vpack.c.b16 %v6105, %v6101
    %v6166 = vpack.c.b16 %v6106, %v6102
    %v6167 = vpack.c.b16 %v6107, %v6103
    %v6168 = vpack.c.b16 %v6112, %v6108
    %v6169 = vpack.c.b16 %v6113, %v6109
    %v6170 = vpack.c.b16 %v6114, %v6110
    %v6171 = vpack.c.b16 %v6115, %v6111
    %v6172 = vpack.c.b16 %v6120, %v6116
    %v6173 = vpack.c.b16 %v6121, %v6117
    %v6174 = vpack.c.b16 %v6122, %v6118
    %v6175 = vpack.c.b16 %v6123, %v6119
    %v6176 = vpack.c.b16 %v6128, %v6124
    %v6177 = vpack.c.b16 %v6129, %v6125
    %v6178 = vpack.c.b16 %v6130, %v6126
    %v6179 = vpack.c.b16 %v6131, %v6127
    %v6180 = vpack.c.b16 %v6136, %v6132
    %v6181 = vpack.c.b16 %v6137, %v6133
    %v6182 = vpack.c.b16 %v6138, %v6134
    %v6183 = vpack.c.b16 %v6139, %v6135
    %v6184 = vpack.c.b16 %v6144, %v6140
    %v6185 = vpack.c.b16 %v6145, %v6141
    %v6186 = vpack.c.b16 %v6146, %v6142
    %v6187 = vpack.c.b16 %v6147, %v6143
    %v6188 = vpack.c.b16 %v6152, %v6148
    %v6189 = vpack.c.b16 %v6153, %v6149
    %v6190 = vpack.c.b16 %v6154, %v6150
    %v6191 = vpack.c.b16 %v6155, %v6151
    %v6192 = vpack.c.b16 %v6160, %v6156
    %v6193 = vpack.c.b16 %v6161, %v6157
    %v6194 = vpack.c.b16 %v6162, %v6158
    %v6195 = vpack.c.b16 %v6163, %v6159
    %6228 = vmatprep.subr.bf16.mxu0 %v6193
    %6229 = vmatpush1.bf16.msra.mxu0 %v6192
    %6230 = vmatprep.subr.bf16.mxu0 %v6189
    %6231 = vmatpush1.bf16.msra.mxu0 %v6188
    %6232 = vmatprep.subr.bf16.mxu0 %v6185
    %6233 = vmatpush1.bf16.msra.mxu0 %v6184
    %6234 = vmatprep.subr.bf16.mxu0 %v6181
    %6235 = vmatpush1.bf16.msra.mxu0 %v6180
    %6236 = vmatprep.subr.bf16.mxu0 %v6177
    %6237 = vmatpush1.bf16.msra.mxu0 %v6176
    %6238 = vmatprep.subr.bf16.mxu0 %v6173
    %6239 = vmatpush1.bf16.msra.mxu0 %v6172
    %6240 = vmatprep.subr.bf16.mxu0 %v6169
    %6241 = vmatpush1.bf16.msra.mxu0 %v6168
    %6242 = vmatprep.subr.bf16.mxu0 %v6165
    %6243 = vmatpush1.bf16.msra.mxu0 %v6164
    %6244 = vmatprep.subr.bf16.mxu0 0
    %6245 = vmatpush2.bf16.msra.mxu0 0
    %6246 = vmatprep.subr.bf16.mxu0 0
    %6247 = vmatpush2.bf16.msra.mxu0 0
    %6248 = vmatprep.subr.bf16.mxu0 0
    %6249 = vmatpush2.bf16.msra.mxu0 0
    %6250 = vmatprep.subr.bf16.mxu0 0
    %6251 = vmatpush2.bf16.msra.mxu0 0
    %6252 = vmatprep.subr.bf16.mxu0 0
    %6253 = vmatpush2.bf16.msra.mxu0 0
    %6254 = vmatprep.subr.bf16.mxu0 0
    %6255 = vmatpush2.bf16.msra.mxu0 0
    %6256 = vmatprep.subr.bf16.mxu0 0
    %6257 = vmatpush2.bf16.msra.mxu0 0
    %6258 = vmatprep.subr.bf16.mxu0 0
    %6259 = vmatpush2.bf16.msra.mxu0 0
    %6260 = vmatprep.mubr.bf16.mxu0 0
    %6261 = vmatmul.mubr.bf16.gmra.mxu0 %v6035
    %v6262 = vpop.f32.mrf.mxu0
    %v6263 = vadd.f32 0.0, %v6262
    %v6264 = vpop.f32.mrf.mxu0
    %v6265 = vadd.f32 0.0, %v6264
    %v6266 = vpop.f32.mrf.mxu0
    %v6267 = vpop.f32.mrf.mxu0
    %6268 = vdwg.mxu0
    %6269 = vmatprep.subr.bf16.mxu0 %v6195
    %6270 = vmatpush1.bf16.msra.mxu0 %v6194
    %6271 = vmatprep.subr.bf16.mxu0 %v6191
    %6272 = vmatpush1.bf16.msra.mxu0 %v6190
    %6273 = vmatprep.subr.bf16.mxu0 %v6187
    %6274 = vmatpush1.bf16.msra.mxu0 %v6186
    %6275 = vmatprep.subr.bf16.mxu0 %v6183
    %6276 = vmatpush1.bf16.msra.mxu0 %v6182
    %6277 = vmatprep.subr.bf16.mxu0 %v6179
    %6278 = vmatpush1.bf16.msra.mxu0 %v6178
    %6279 = vmatprep.subr.bf16.mxu0 %v6175
    %6280 = vmatpush1.bf16.msra.mxu0 %v6174
    %6281 = vmatprep.subr.bf16.mxu0 %v6171
    %6282 = vmatpush1.bf16.msra.mxu0 %v6170
    %6283 = vmatprep.subr.bf16.mxu0 %v6167
    %6284 = vmatpush1.bf16.msra.mxu0 %v6166
    %6285 = vmatprep.subr.bf16.mxu0 0
    %6286 = vmatpush2.bf16.msra.mxu0 0
    %6287 = vmatprep.subr.bf16.mxu0 0
    %6288 = vmatpush2.bf16.msra.mxu0 0
    %6289 = vmatprep.subr.bf16.mxu0 0
    %6290 = vmatpush2.bf16.msra.mxu0 0
    %6291 = vmatprep.subr.bf16.mxu0 0
    %6292 = vmatpush2.bf16.msra.mxu0 0
    %6293 = vmatprep.subr.bf16.mxu0 0
    %6294 = vmatpush2.bf16.msra.mxu0 0
    %6295 = vmatprep.subr.bf16.mxu0 0
    %6296 = vmatpush2.bf16.msra.mxu0 0
    %6297 = vmatprep.subr.bf16.mxu0 0
    %6298 = vmatpush2.bf16.msra.mxu0 0
    %6299 = vmatprep.subr.bf16.mxu0 0
    %6300 = vmatpush2.bf16.msra.mxu0 0
    %6301 = vmatprep.mubr.bf16.mxu0 0
    %6302 = vmatmul.mubr.bf16.gmra.mxu0 %v6035
    %v6303 = vpop.f32.mrf.mxu0
    %v6304 = vadd.f32 0.0, %v6303
    %v6305 = vpop.f32.mrf.mxu0
    %v6306 = vadd.f32 0.0, %v6305
    %v6307 = vpop.f32.mrf.mxu0
    %v6308 = vpop.f32.mrf.mxu0
    %6309 = vdwg.mxu0
    %v6342 = vunpack.c.l.b16 %v6003
    %v6343 = vunpack.c.h.b16 %v6003
    %v6344 = vunpack.c.l.b16 %v6004
    %v6345 = vunpack.c.h.b16 %v6004
    %v6346 = vunpack.c.l.b16 %v6005
    %v6347 = vunpack.c.h.b16 %v6005
    %v6348 = vunpack.c.l.b16 %v6006
    %v6349 = vunpack.c.h.b16 %v6006
    %v6350 = vunpack.c.l.b16 %v6007
    %v6351 = vunpack.c.h.b16 %v6007
    %v6352 = vunpack.c.l.b16 %v6008
    %v6353 = vunpack.c.h.b16 %v6008
    %v6354 = vunpack.c.l.b16 %v6009
    %v6355 = vunpack.c.h.b16 %v6009
    %v6356 = vunpack.c.l.b16 %v6010
    %v6357 = vunpack.c.h.b16 %v6010
    %v6358 = vunpack.c.l.b16 %v6011
    %v6359 = vunpack.c.h.b16 %v6011
    %v6360 = vunpack.c.l.b16 %v6012
    %v6361 = vunpack.c.h.b16 %v6012
    %v6362 = vunpack.c.l.b16 %v6013
    %v6363 = vunpack.c.h.b16 %v6013
    %v6364 = vunpack.c.l.b16 %v6014
    %v6365 = vunpack.c.h.b16 %v6014
    %v6366 = vunpack.c.l.b16 %v6015
    %v6367 = vunpack.c.h.b16 %v6015
    %v6368 = vunpack.c.l.b16 %v6016
    %v6369 = vunpack.c.h.b16 %v6016
    %v6370 = vunpack.c.l.b16 %v6017
    %v6371 = vunpack.c.h.b16 %v6017
    %v6372 = vunpack.c.l.b16 %v6018
    %v6373 = vunpack.c.h.b16 %v6018
    %v6374 = vunpack.c.l.b16 %v6019
    %v6375 = vunpack.c.h.b16 %v6019
    %v6376 = vunpack.c.l.b16 %v6020
    %v6377 = vunpack.c.h.b16 %v6020
    %v6378 = vunpack.c.l.b16 %v6021
    %v6379 = vunpack.c.h.b16 %v6021
    %v6380 = vunpack.c.l.b16 %v6022
    %v6381 = vunpack.c.h.b16 %v6022
    %v6382 = vunpack.c.l.b16 %v6023
    %v6383 = vunpack.c.h.b16 %v6023
    %v6384 = vunpack.c.l.b16 %v6024
    %v6385 = vunpack.c.h.b16 %v6024
    %v6386 = vunpack.c.l.b16 %v6025
    %v6387 = vunpack.c.h.b16 %v6025
    %v6388 = vunpack.c.l.b16 %v6026
    %v6389 = vunpack.c.h.b16 %v6026
    %v6390 = vunpack.c.l.b16 %v6027
    %v6391 = vunpack.c.h.b16 %v6027
    %v6392 = vunpack.c.l.b16 %v6028
    %v6393 = vunpack.c.h.b16 %v6028
    %v6394 = vunpack.c.l.b16 %v6029
    %v6395 = vunpack.c.h.b16 %v6029
    %v6396 = vunpack.c.l.b16 %v6030
    %v6397 = vunpack.c.h.b16 %v6030
    %v6398 = vunpack.c.l.b16 %v6031
    %v6399 = vunpack.c.h.b16 %v6031
    %v6400 = vunpack.c.l.b16 %v6032
    %v6401 = vunpack.c.h.b16 %v6032
    %v6402 = vunpack.c.l.b16 %v6033
    %v6403 = vunpack.c.h.b16 %v6033
    %v6404 = vunpack.c.l.b16 %v6034
    %v6405 = vunpack.c.h.b16 %v6034
    %v6406 = vpack.c.b16 %v6346, %v6342
    %v6407 = vpack.c.b16 %v6347, %v6343
    %v6408 = vpack.c.b16 %v6348, %v6344
    %v6409 = vpack.c.b16 %v6349, %v6345
    %v6410 = vpack.c.b16 %v6354, %v6350
    %v6411 = vpack.c.b16 %v6355, %v6351
    %v6412 = vpack.c.b16 %v6356, %v6352
    %v6413 = vpack.c.b16 %v6357, %v6353
    %v6414 = vpack.c.b16 %v6362, %v6358
    %v6415 = vpack.c.b16 %v6363, %v6359
    %v6416 = vpack.c.b16 %v6364, %v6360
    %v6417 = vpack.c.b16 %v6365, %v6361
    %v6418 = vpack.c.b16 %v6370, %v6366
    %v6419 = vpack.c.b16 %v6371, %v6367
    %v6420 = vpack.c.b16 %v6372, %v6368
    %v6421 = vpack.c.b16 %v6373, %v6369
    %v6422 = vpack.c.b16 %v6378, %v6374
    %v6423 = vpack.c.b16 %v6379, %v6375
    %v6424 = vpack.c.b16 %v6380, %v6376
    %v6425 = vpack.c.b16 %v6381, %v6377
    %v6426 = vpack.c.b16 %v6386, %v6382
    %v6427 = vpack.c.b16 %v6387, %v6383
    %v6428 = vpack.c.b16 %v6388, %v6384
    %v6429 = vpack.c.b16 %v6389, %v6385
    %v6430 = vpack.c.b16 %v6394, %v6390
    %v6431 = vpack.c.b16 %v6395, %v6391
    %v6432 = vpack.c.b16 %v6396, %v6392
    %v6433 = vpack.c.b16 %v6397, %v6393
    %v6434 = vpack.c.b16 %v6402, %v6398
    %v6435 = vpack.c.b16 %v6403, %v6399
    %v6436 = vpack.c.b16 %v6404, %v6400
    %v6437 = vpack.c.b16 %v6405, %v6401
    %6470 = vmatprep.subr.bf16.mxu0 %v6435
    %6471 = vmatpush1.bf16.msra.mxu0 %v6434
    %6472 = vmatprep.subr.bf16.mxu0 %v6431
    %6473 = vmatpush1.bf16.msra.mxu0 %v6430
    %6474 = vmatprep.subr.bf16.mxu0 %v6427
    %6475 = vmatpush1.bf16.msra.mxu0 %v6426
    %6476 = vmatprep.subr.bf16.mxu0 %v6423
    %6477 = vmatpush1.bf16.msra.mxu0 %v6422
    %6478 = vmatprep.subr.bf16.mxu0 %v6419
    %6479 = vmatpush1.bf16.msra.mxu0 %v6418
    %6480 = vmatprep.subr.bf16.mxu0 %v6415
    %6481 = vmatpush1.bf16.msra.mxu0 %v6414
    %6482 = vmatprep.subr.bf16.mxu0 %v6411
    %6483 = vmatpush1.bf16.msra.mxu0 %v6410
    %6484 = vmatprep.subr.bf16.mxu0 %v6407
    %6485 = vmatpush1.bf16.msra.mxu0 %v6406
    %6486 = vmatprep.subr.bf16.mxu0 0
    %6487 = vmatpush2.bf16.msra.mxu0 0
    %6488 = vmatprep.subr.bf16.mxu0 0
    %6489 = vmatpush2.bf16.msra.mxu0 0
    %6490 = vmatprep.subr.bf16.mxu0 0
    %6491 = vmatpush2.bf16.msra.mxu0 0
    %6492 = vmatprep.subr.bf16.mxu0 0
    %6493 = vmatpush2.bf16.msra.mxu0 0
    %6494 = vmatprep.subr.bf16.mxu0 0
    %6495 = vmatpush2.bf16.msra.mxu0 0
    %6496 = vmatprep.subr.bf16.mxu0 0
    %6497 = vmatpush2.bf16.msra.mxu0 0
    %6498 = vmatprep.subr.bf16.mxu0 0
    %6499 = vmatpush2.bf16.msra.mxu0 0
    %6500 = vmatprep.subr.bf16.mxu0 0
    %6501 = vmatpush2.bf16.msra.mxu0 0
    %6502 = vmatprep.mubr.bf16.mxu0 0
    %6503 = vmatmul.mubr.bf16.gmra.mxu0 %v6002
    %v6504 = vpop.f32.mrf.mxu0
    %v6505 = vadd.f32 %v6263, %v6504
    %v6506 = vpop.f32.mrf.mxu0
    %v6507 = vadd.f32 %v6265, %v6506
    %v6508 = vpop.f32.mrf.mxu0
    %v6509 = vpop.f32.mrf.mxu0
    %6510 = vdwg.mxu0
    %6511 = vmatprep.subr.bf16.mxu0 %v6437
    %6512 = vmatpush1.bf16.msra.mxu0 %v6436
    %6513 = vmatprep.subr.bf16.mxu0 %v6433
    %6514 = vmatpush1.bf16.msra.mxu0 %v6432
    %6515 = vmatprep.subr.bf16.mxu0 %v6429
    %6516 = vmatpush1.bf16.msra.mxu0 %v6428
    %6517 = vmatprep.subr.bf16.mxu0 %v6425
    %6518 = vmatpush1.bf16.msra.mxu0 %v6424
    %6519 = vmatprep.subr.bf16.mxu0 %v6421
    %6520 = vmatpush1.bf16.msra.mxu0 %v6420
    %6521 = vmatprep.subr.bf16.mxu0 %v6417
    %6522 = vmatpush1.bf16.msra.mxu0 %v6416
    %6523 = vmatprep.subr.bf16.mxu0 %v6413
    %6524 = vmatpush1.bf16.msra.mxu0 %v6412
    %6525 = vmatprep.subr.bf16.mxu0 %v6409
    %6526 = vmatpush1.bf16.msra.mxu0 %v6408
    %6527 = vmatprep.subr.bf16.mxu0 0
    %6528 = vmatpush2.bf16.msra.mxu0 0
    %6529 = vmatprep.subr.bf16.mxu0 0
    %6530 = vmatpush2.bf16.msra.mxu0 0
    %6531 = vmatprep.subr.bf16.mxu0 0
    %6532 = vmatpush2.bf16.msra.mxu0 0
    %6533 = vmatprep.subr.bf16.mxu0 0
    %6534 = vmatpush2.bf16.msra.mxu0 0
    %6535 = vmatprep.subr.bf16.mxu0 0
    %6536 = vmatpush2.bf16.msra.mxu0 0
    %6537 = vmatprep.subr.bf16.mxu0 0
    %6538 = vmatpush2.bf16.msra.mxu0 0
    %6539 = vmatprep.subr.bf16.mxu0 0
    %6540 = vmatpush2.bf16.msra.mxu0 0
    %6541 = vmatprep.subr.bf16.mxu0 0
    %6542 = vmatpush2.bf16.msra.mxu0 0
    %6543 = vmatprep.mubr.bf16.mxu0 0
    %6544 = vmatmul.mubr.bf16.gmra.mxu0 %v6002
    %v6545 = vpop.f32.mrf.mxu0
    %v6546 = vadd.f32 %v6304, %v6545
    %v6547 = vpop.f32.mrf.mxu0
    %v6548 = vadd.f32 %v6306, %v6547
    %v6549 = vpop.f32.mrf.mxu0
    %v6550 = vpop.f32.mrf.mxu0
    %6551 = vdwg.mxu0
    %v6552 = vadd.f32 %v6505, %v344
    %v6553 = vadd.f32 %v6507, %v348
    %v6554 = vadd.f32 %v6546, %v352
    %v6555 = vadd.f32 %v6548, %v356
    %v6556 = vxor.u32 %v6552, 2147483648
    %v6557 = vxor.u32 %v6553, 2147483648
    %v6558 = vxor.u32 %v6554, 2147483648
    %v6559 = vmul.f32 %v6556, 1.442695
    %v6560 = vpow.pop %v6559
    %v6561 = vmul.f32 %v6557, 1.442695
    %v6562 = vpow.pop %v6561
    %v6563 = vmul.f32 %v6558, 1.442695
    %v6564 = vpow.pop %v6563
    %v6565 = vadd.f32 %v6560, 1.0
    %v6566 = vadd.f32 %v6562, 1.0
    %v6567 = vadd.f32 %v6564, 1.0
    %v6568 = vrcp.pop %v6565
    %v6569 = vmul.f32 1.0, %v6568
    %v6570 = vrcp.pop %v6566
    %v6571 = vmul.f32 1.0, %v6570
    %v6572 = vrcp.pop %v6567
    %v6573 = vmul.f32 1.0, %v6572
    %v6574 = vtanh.pop %v6555
    %v6575 = vmul.f32 %v6571, %v5688
    %v6576 = vmul.f32 %v6569, %v6574
    %v6577 = vadd.f32 %v6575, %v6576
    %v6578 = vtanh.pop %v6577
    %v6579 = vmul.f32 %v6573, %v6578
    %s6580 = scalar_lea.vmem [#allocation3], 48
    %6581 = vst [vmem:[%s6580] sm:$0xff] %v6579
    %s6582 = smul.u32 7, 4
    %s6583 = smul.addr %s6582, 8
    %s6584 = scalar_lea.vmem [#allocation2], %s6583
    %v6585 = vld [vmem:[%s6584] sm:$0xff]
    %v6586 = vld [vmem:[%s6584 + $0x8] sm:$0xff]
    %v6587 = vld [vmem:[%s6584 + $0x10] sm:$0xff]
    %v6588 = vld [vmem:[%s6584 + $0x18] sm:$0xff]
    %v6589 = vld [vmem:[%s3] sm:$0xff]
    %v6590 = vld [vmem:[%s3 + $0x8] sm:$0xff]
    %v6591 = vld [vmem:[%s3 + $0x10] sm:$0xff]
    %v6592 = vld [vmem:[%s3 + $0x18] sm:$0xff]
    %v6593 = vld [vmem:[%s3 + $0x20] sm:$0xff]
    %v6594 = vld [vmem:[%s3 + $0x28] sm:$0xff]
    %v6595 = vld [vmem:[%s3 + $0x30] sm:$0xff]
    %v6596 = vld [vmem:[%s3 + $0x38] sm:$0xff]
    %v6597 = vld [vmem:[%s3 + $0x40] sm:$0xff]
    %v6598 = vld [vmem:[%s3 + $0x48] sm:$0xff]
    %v6599 = vld [vmem:[%s3 + $0x50] sm:$0xff]
    %v6600 = vld [vmem:[%s3 + $0x58] sm:$0xff]
    %v6601 = vld [vmem:[%s3 + $0x60] sm:$0xff]
    %v6602 = vld [vmem:[%s3 + $0x68] sm:$0xff]
    %v6603 = vld [vmem:[%s3 + $0x70] sm:$0xff]
    %v6604 = vld [vmem:[%s3 + $0x78] sm:$0xff]
    %v6605 = vld [vmem:[%s3 + $0x80] sm:$0xff]
    %v6606 = vld [vmem:[%s3 + $0x88] sm:$0xff]
    %v6607 = vld [vmem:[%s3 + $0x90] sm:$0xff]
    %v6608 = vld [vmem:[%s3 + $0x98] sm:$0xff]
    %v6609 = vld [vmem:[%s3 + $0xa0] sm:$0xff]
    %v6610 = vld [vmem:[%s3 + $0xa8] sm:$0xff]
    %v6611 = vld [vmem:[%s3 + $0xb0] sm:$0xff]
    %v6612 = vld [vmem:[%s3 + $0xb8] sm:$0xff]
    %v6613 = vld [vmem:[%s3 + $0xc0] sm:$0xff]
    %v6614 = vld [vmem:[%s3 + $0xc8] sm:$0xff]
    %v6615 = vld [vmem:[%s3 + $0xd0] sm:$0xff]
    %v6616 = vld [vmem:[%s3 + $0xd8] sm:$0xff]
    %v6617 = vld [vmem:[%s3 + $0xe0] sm:$0xff]
    %v6618 = vld [vmem:[%s3 + $0xe8] sm:$0xff]
    %v6619 = vld [vmem:[%s3 + $0xf0] sm:$0xff]
    %v6620 = vld [vmem:[%s3 + $0xf8] sm:$0xff]
    %v6653 = vunpack.c.l.b16 %v6589
    %v6654 = vunpack.c.h.b16 %v6589
    %v6655 = vunpack.c.l.b16 %v6590
    %v6656 = vunpack.c.h.b16 %v6590
    %v6657 = vunpack.c.l.b16 %v6591
    %v6658 = vunpack.c.h.b16 %v6591
    %v6659 = vunpack.c.l.b16 %v6592
    %v6660 = vunpack.c.h.b16 %v6592
    %v6661 = vunpack.c.l.b16 %v6593
    %v6662 = vunpack.c.h.b16 %v6593
    %v6663 = vunpack.c.l.b16 %v6594
    %v6664 = vunpack.c.h.b16 %v6594
    %v6665 = vunpack.c.l.b16 %v6595
    %v6666 = vunpack.c.h.b16 %v6595
    %v6667 = vunpack.c.l.b16 %v6596
    %v6668 = vunpack.c.h.b16 %v6596
    %v6669 = vunpack.c.l.b16 %v6597
    %v6670 = vunpack.c.h.b16 %v6597
    %v6671 = vunpack.c.l.b16 %v6598
    %v6672 = vunpack.c.h.b16 %v6598
    %v6673 = vunpack.c.l.b16 %v6599
    %v6674 = vunpack.c.h.b16 %v6599
    %v6675 = vunpack.c.l.b16 %v6600
    %v6676 = vunpack.c.h.b16 %v6600
    %v6677 = vunpack.c.l.b16 %v6601
    %v6678 = vunpack.c.h.b16 %v6601
    %v6679 = vunpack.c.l.b16 %v6602
    %v6680 = vunpack.c.h.b16 %v6602
    %v6681 = vunpack.c.l.b16 %v6603
    %v6682 = vunpack.c.h.b16 %v6603
    %v6683 = vunpack.c.l.b16 %v6604
    %v6684 = vunpack.c.h.b16 %v6604
    %v6685 = vunpack.c.l.b16 %v6605
    %v6686 = vunpack.c.h.b16 %v6605
    %v6687 = vunpack.c.l.b16 %v6606
    %v6688 = vunpack.c.h.b16 %v6606
    %v6689 = vunpack.c.l.b16 %v6607
    %v6690 = vunpack.c.h.b16 %v6607
    %v6691 = vunpack.c.l.b16 %v6608
    %v6692 = vunpack.c.h.b16 %v6608
    %v6693 = vunpack.c.l.b16 %v6609
    %v6694 = vunpack.c.h.b16 %v6609
    %v6695 = vunpack.c.l.b16 %v6610
    %v6696 = vunpack.c.h.b16 %v6610
    %v6697 = vunpack.c.l.b16 %v6611
    %v6698 = vunpack.c.h.b16 %v6611
    %v6699 = vunpack.c.l.b16 %v6612
    %v6700 = vunpack.c.h.b16 %v6612
    %v6701 = vunpack.c.l.b16 %v6613
    %v6702 = vunpack.c.h.b16 %v6613
    %v6703 = vunpack.c.l.b16 %v6614
    %v6704 = vunpack.c.h.b16 %v6614
    %v6705 = vunpack.c.l.b16 %v6615
    %v6706 = vunpack.c.h.b16 %v6615
    %v6707 = vunpack.c.l.b16 %v6616
    %v6708 = vunpack.c.h.b16 %v6616
    %v6709 = vunpack.c.l.b16 %v6617
    %v6710 = vunpack.c.h.b16 %v6617
    %v6711 = vunpack.c.l.b16 %v6618
    %v6712 = vunpack.c.h.b16 %v6618
    %v6713 = vunpack.c.l.b16 %v6619
    %v6714 = vunpack.c.h.b16 %v6619
    %v6715 = vunpack.c.l.b16 %v6620
    %v6716 = vunpack.c.h.b16 %v6620
    %v6717 = vpack.c.b16 %v6657, %v6653
    %v6718 = vpack.c.b16 %v6658, %v6654
    %v6719 = vpack.c.b16 %v6659, %v6655
    %v6720 = vpack.c.b16 %v6660, %v6656
    %v6721 = vpack.c.b16 %v6665, %v6661
    %v6722 = vpack.c.b16 %v6666, %v6662
    %v6723 = vpack.c.b16 %v6667, %v6663
    %v6724 = vpack.c.b16 %v6668, %v6664
    %v6725 = vpack.c.b16 %v6673, %v6669
    %v6726 = vpack.c.b16 %v6674, %v6670
    %v6727 = vpack.c.b16 %v6675, %v6671
    %v6728 = vpack.c.b16 %v6676, %v6672
    %v6729 = vpack.c.b16 %v6681, %v6677
    %v6730 = vpack.c.b16 %v6682, %v6678
    %v6731 = vpack.c.b16 %v6683, %v6679
    %v6732 = vpack.c.b16 %v6684, %v6680
    %v6733 = vpack.c.b16 %v6689, %v6685
    %v6734 = vpack.c.b16 %v6690, %v6686
    %v6735 = vpack.c.b16 %v6691, %v6687
    %v6736 = vpack.c.b16 %v6692, %v6688
    %v6737 = vpack.c.b16 %v6697, %v6693
    %v6738 = vpack.c.b16 %v6698, %v6694
    %v6739 = vpack.c.b16 %v6699, %v6695
    %v6740 = vpack.c.b16 %v6700, %v6696
    %v6741 = vpack.c.b16 %v6705, %v6701
    %v6742 = vpack.c.b16 %v6706, %v6702
    %v6743 = vpack.c.b16 %v6707, %v6703
    %v6744 = vpack.c.b16 %v6708, %v6704
    %v6745 = vpack.c.b16 %v6713, %v6709
    %v6746 = vpack.c.b16 %v6714, %v6710
    %v6747 = vpack.c.b16 %v6715, %v6711
    %v6748 = vpack.c.b16 %v6716, %v6712
    %6781 = vmatprep.subr.bf16.mxu0 %v6746
    %6782 = vmatpush1.bf16.msra.mxu0 %v6745
    %6783 = vmatprep.subr.bf16.mxu0 %v6742
    %6784 = vmatpush1.bf16.msra.mxu0 %v6741
    %6785 = vmatprep.subr.bf16.mxu0 %v6738
    %6786 = vmatpush1.bf16.msra.mxu0 %v6737
    %6787 = vmatprep.subr.bf16.mxu0 %v6734
    %6788 = vmatpush1.bf16.msra.mxu0 %v6733
    %6789 = vmatprep.subr.bf16.mxu0 %v6730
    %6790 = vmatpush1.bf16.msra.mxu0 %v6729
    %6791 = vmatprep.subr.bf16.mxu0 %v6726
    %6792 = vmatpush1.bf16.msra.mxu0 %v6725
    %6793 = vmatprep.subr.bf16.mxu0 %v6722
    %6794 = vmatpush1.bf16.msra.mxu0 %v6721
    %6795 = vmatprep.subr.bf16.mxu0 %v6718
    %6796 = vmatpush1.bf16.msra.mxu0 %v6717
    %6797 = vmatprep.subr.bf16.mxu0 0
    %6798 = vmatpush2.bf16.msra.mxu0 0
    %6799 = vmatprep.subr.bf16.mxu0 0
    %6800 = vmatpush2.bf16.msra.mxu0 0
    %6801 = vmatprep.subr.bf16.mxu0 0
    %6802 = vmatpush2.bf16.msra.mxu0 0
    %6803 = vmatprep.subr.bf16.mxu0 0
    %6804 = vmatpush2.bf16.msra.mxu0 0
    %6805 = vmatprep.subr.bf16.mxu0 0
    %6806 = vmatpush2.bf16.msra.mxu0 0
    %6807 = vmatprep.subr.bf16.mxu0 0
    %6808 = vmatpush2.bf16.msra.mxu0 0
    %6809 = vmatprep.subr.bf16.mxu0 0
    %6810 = vmatpush2.bf16.msra.mxu0 0
    %6811 = vmatprep.subr.bf16.mxu0 0
    %6812 = vmatpush2.bf16.msra.mxu0 0
    %6813 = vmatprep.mubr.bf16.mxu0 0
    %6814 = vmatmul.mubr.bf16.gmra.mxu0 %v6002
    %v6815 = vpop.f32.mrf.mxu0
    %v6816 = vadd.f32 0.0, %v6815
    %v6817 = vpop.f32.mrf.mxu0
    %v6818 = vadd.f32 0.0, %v6817
    %v6819 = vpop.f32.mrf.mxu0
    %v6820 = vpop.f32.mrf.mxu0
    %6821 = vdwg.mxu0
    %6822 = vmatprep.subr.bf16.mxu0 %v6748
    %6823 = vmatpush1.bf16.msra.mxu0 %v6747
    %6824 = vmatprep.subr.bf16.mxu0 %v6744
    %6825 = vmatpush1.bf16.msra.mxu0 %v6743
    %6826 = vmatprep.subr.bf16.mxu0 %v6740
    %6827 = vmatpush1.bf16.msra.mxu0 %v6739
    %6828 = vmatprep.subr.bf16.mxu0 %v6736
    %6829 = vmatpush1.bf16.msra.mxu0 %v6735
    %6830 = vmatprep.subr.bf16.mxu0 %v6732
    %6831 = vmatpush1.bf16.msra.mxu0 %v6731
    %6832 = vmatprep.subr.bf16.mxu0 %v6728
    %6833 = vmatpush1.bf16.msra.mxu0 %v6727
    %6834 = vmatprep.subr.bf16.mxu0 %v6724
    %6835 = vmatpush1.bf16.msra.mxu0 %v6723
    %6836 = vmatprep.subr.bf16.mxu0 %v6720
    %6837 = vmatpush1.bf16.msra.mxu0 %v6719
    %6838 = vmatprep.subr.bf16.mxu0 0
    %6839 = vmatpush2.bf16.msra.mxu0 0
    %6840 = vmatprep.subr.bf16.mxu0 0
    %6841 = vmatpush2.bf16.msra.mxu0 0
    %6842 = vmatprep.subr.bf16.mxu0 0
    %6843 = vmatpush2.bf16.msra.mxu0 0
    %6844 = vmatprep.subr.bf16.mxu0 0
    %6845 = vmatpush2.bf16.msra.mxu0 0
    %6846 = vmatprep.subr.bf16.mxu0 0
    %6847 = vmatpush2.bf16.msra.mxu0 0
    %6848 = vmatprep.subr.bf16.mxu0 0
    %6849 = vmatpush2.bf16.msra.mxu0 0
    %6850 = vmatprep.subr.bf16.mxu0 0
    %6851 = vmatpush2.bf16.msra.mxu0 0
    %6852 = vmatprep.subr.bf16.mxu0 0
    %6853 = vmatpush2.bf16.msra.mxu0 0
    %6854 = vmatprep.mubr.bf16.mxu0 0
    %6855 = vmatmul.mubr.bf16.gmra.mxu0 %v6002
    %v6856 = vpop.f32.mrf.mxu0
    %v6857 = vadd.f32 0.0, %v6856
    %v6858 = vpop.f32.mrf.mxu0
    %v6859 = vadd.f32 0.0, %v6858
    %v6860 = vpop.f32.mrf.mxu0
    %v6861 = vpop.f32.mrf.mxu0
    %6862 = vdwg.mxu0
    %v6863 = vadd.f32 %v6585, %v6816
    %v6864 = vadd.f32 %v6586, %v6818
    %v6865 = vadd.f32 %v6587, %v6857
    %v6866 = vadd.f32 %v6588, %v6859
    %v6867 = vxor.u32 %v6863, 2147483648
    %v6868 = vxor.u32 %v6864, 2147483648
    %v6869 = vxor.u32 %v6865, 2147483648
    %v6870 = vmul.f32 %v6867, 1.442695
    %v6871 = vpow.pop %v6870
    %v6872 = vmul.f32 %v6868, 1.442695
    %v6873 = vpow.pop %v6872
    %v6874 = vmul.f32 %v6869, 1.442695
    %v6875 = vpow.pop %v6874
    %v6876 = vadd.f32 %v6871, 1.0
    %v6877 = vadd.f32 %v6873, 1.0
    %v6878 = vadd.f32 %v6875, 1.0
    %v6879 = vrcp.pop %v6876
    %v6880 = vmul.f32 1.0, %v6879
    %v6881 = vrcp.pop %v6877
    %v6882 = vmul.f32 1.0, %v6881
    %v6883 = vrcp.pop %v6878
    %v6884 = vmul.f32 1.0, %v6883
    %v6885 = vtanh.pop %v6866
    %v6886 = vmul.f32 %v6882, %v5999
    %v6887 = vmul.f32 %v6880, %v6885
    %v6888 = vadd.f32 %v6886, %v6887
    %v6889 = vtanh.pop %v6888
    %v6890 = vmul.f32 %v6884, %v6889
    %v6891 = vpack.c.bf16 %v6890, %v6890
    %v6892 = vld [vmem:[#allocation4] sm:$0xff]
    %v6893 = vld [vmem:[#allocation4 + $0x8] sm:$0xff]
    %v6894 = vld [vmem:[#allocation4 + $0x10] sm:$0xff]
    %v6895 = vld [vmem:[#allocation4 + $0x18] sm:$0xff]
    %v6896 = vld [vmem:[#allocation4 + $0x20] sm:$0xff]
    %v6897 = vld [vmem:[#allocation4 + $0x28] sm:$0xff]
    %v6898 = vld [vmem:[#allocation4 + $0x30] sm:$0xff]
    %v6899 = vld [vmem:[#allocation4 + $0x38] sm:$0xff]
    %v6900 = vld [vmem:[#allocation4 + $0x40] sm:$0xff]
    %v6901 = vld [vmem:[#allocation4 + $0x48] sm:$0xff]
    %v6902 = vld [vmem:[#allocation4 + $0x50] sm:$0xff]
    %v6903 = vld [vmem:[#allocation4 + $0x58] sm:$0xff]
    %v6904 = vld [vmem:[#allocation4 + $0x60] sm:$0xff]
    %v6905 = vld [vmem:[#allocation4 + $0x68] sm:$0xff]
    %v6906 = vld [vmem:[#allocation4 + $0x70] sm:$0xff]
    %v6907 = vld [vmem:[#allocation4 + $0x78] sm:$0xff]
    %v6908 = vld [vmem:[#allocation4 + $0x80] sm:$0xff]
    %v6909 = vld [vmem:[#allocation4 + $0x88] sm:$0xff]
    %v6910 = vld [vmem:[#allocation4 + $0x90] sm:$0xff]
    %v6911 = vld [vmem:[#allocation4 + $0x98] sm:$0xff]
    %v6912 = vld [vmem:[#allocation4 + $0xa0] sm:$0xff]
    %v6913 = vld [vmem:[#allocation4 + $0xa8] sm:$0xff]
    %v6914 = vld [vmem:[#allocation4 + $0xb0] sm:$0xff]
    %v6915 = vld [vmem:[#allocation4 + $0xb8] sm:$0xff]
    %v6916 = vld [vmem:[#allocation4 + $0xc0] sm:$0xff]
    %v6917 = vld [vmem:[#allocation4 + $0xc8] sm:$0xff]
    %v6918 = vld [vmem:[#allocation4 + $0xd0] sm:$0xff]
    %v6919 = vld [vmem:[#allocation4 + $0xd8] sm:$0xff]
    %v6920 = vld [vmem:[#allocation4 + $0xe0] sm:$0xff]
    %v6921 = vld [vmem:[#allocation4 + $0xe8] sm:$0xff]
    %v6922 = vld [vmem:[#allocation4 + $0xf0] sm:$0xff]
    %v6923 = vld [vmem:[#allocation4 + $0xf8] sm:$0xff]
    %v6924 = vpack.c.bf16 %v6579, %v6579
    %v6925 = vld [vmem:[#allocation6] sm:$0xff]
    %v6926 = vld [vmem:[#allocation6 + $0x8] sm:$0xff]
    %v6927 = vld [vmem:[#allocation6 + $0x10] sm:$0xff]
    %v6928 = vld [vmem:[#allocation6 + $0x18] sm:$0xff]
    %v6929 = vld [vmem:[#allocation6 + $0x20] sm:$0xff]
    %v6930 = vld [vmem:[#allocation6 + $0x28] sm:$0xff]
    %v6931 = vld [vmem:[#allocation6 + $0x30] sm:$0xff]
    %v6932 = vld [vmem:[#allocation6 + $0x38] sm:$0xff]
    %v6933 = vld [vmem:[#allocation6 + $0x40] sm:$0xff]
    %v6934 = vld [vmem:[#allocation6 + $0x48] sm:$0xff]
    %v6935 = vld [vmem:[#allocation6 + $0x50] sm:$0xff]
    %v6936 = vld [vmem:[#allocation6 + $0x58] sm:$0xff]
    %v6937 = vld [vmem:[#allocation6 + $0x60] sm:$0xff]
    %v6938 = vld [vmem:[#allocation6 + $0x68] sm:$0xff]
    %v6939 = vld [vmem:[#allocation6 + $0x70] sm:$0xff]
    %v6940 = vld [vmem:[#allocation6 + $0x78] sm:$0xff]
    %v6941 = vld [vmem:[#allocation6 + $0x80] sm:$0xff]
    %v6942 = vld [vmem:[#allocation6 + $0x88] sm:$0xff]
    %v6943 = vld [vmem:[#allocation6 + $0x90] sm:$0xff]
    %v6944 = vld [vmem:[#allocation6 + $0x98] sm:$0xff]
    %v6945 = vld [vmem:[#allocation6 + $0xa0] sm:$0xff]
    %v6946 = vld [vmem:[#allocation6 + $0xa8] sm:$0xff]
    %v6947 = vld [vmem:[#allocation6 + $0xb0] sm:$0xff]
    %v6948 = vld [vmem:[#allocation6 + $0xb8] sm:$0xff]
    %v6949 = vld [vmem:[#allocation6 + $0xc0] sm:$0xff]
    %v6950 = vld [vmem:[#allocation6 + $0xc8] sm:$0xff]
    %v6951 = vld [vmem:[#allocation6 + $0xd0] sm:$0xff]
    %v6952 = vld [vmem:[#allocation6 + $0xd8] sm:$0xff]
    %v6953 = vld [vmem:[#allocation6 + $0xe0] sm:$0xff]
    %v6954 = vld [vmem:[#allocation6 + $0xe8] sm:$0xff]
    %v6955 = vld [vmem:[#allocation6 + $0xf0] sm:$0xff]
    %v6956 = vld [vmem:[#allocation6 + $0xf8] sm:$0xff]
    %v6989 = vunpack.c.l.b16 %v6925
    %v6990 = vunpack.c.h.b16 %v6925
    %v6991 = vunpack.c.l.b16 %v6926
    %v6992 = vunpack.c.h.b16 %v6926
    %v6993 = vunpack.c.l.b16 %v6927
    %v6994 = vunpack.c.h.b16 %v6927
    %v6995 = vunpack.c.l.b16 %v6928
    %v6996 = vunpack.c.h.b16 %v6928
    %v6997 = vunpack.c.l.b16 %v6929
    %v6998 = vunpack.c.h.b16 %v6929
    %v6999 = vunpack.c.l.b16 %v6930
    %v7000 = vunpack.c.h.b16 %v6930
    %v7001 = vunpack.c.l.b16 %v6931
    %v7002 = vunpack.c.h.b16 %v6931
    %v7003 = vunpack.c.l.b16 %v6932
    %v7004 = vunpack.c.h.b16 %v6932
    %v7005 = vunpack.c.l.b16 %v6933
    %v7006 = vunpack.c.h.b16 %v6933
    %v7007 = vunpack.c.l.b16 %v6934
    %v7008 = vunpack.c.h.b16 %v6934
    %v7009 = vunpack.c.l.b16 %v6935
    %v7010 = vunpack.c.h.b16 %v6935
    %v7011 = vunpack.c.l.b16 %v6936
    %v7012 = vunpack.c.h.b16 %v6936
    %v7013 = vunpack.c.l.b16 %v6937
    %v7014 = vunpack.c.h.b16 %v6937
    %v7015 = vunpack.c.l.b16 %v6938
    %v7016 = vunpack.c.h.b16 %v6938
    %v7017 = vunpack.c.l.b16 %v6939
    %v7018 = vunpack.c.h.b16 %v6939
    %v7019 = vunpack.c.l.b16 %v6940
    %v7020 = vunpack.c.h.b16 %v6940
    %v7021 = vunpack.c.l.b16 %v6941
    %v7022 = vunpack.c.h.b16 %v6941
    %v7023 = vunpack.c.l.b16 %v6942
    %v7024 = vunpack.c.h.b16 %v6942
    %v7025 = vunpack.c.l.b16 %v6943
    %v7026 = vunpack.c.h.b16 %v6943
    %v7027 = vunpack.c.l.b16 %v6944
    %v7028 = vunpack.c.h.b16 %v6944
    %v7029 = vunpack.c.l.b16 %v6945
    %v7030 = vunpack.c.h.b16 %v6945
    %v7031 = vunpack.c.l.b16 %v6946
    %v7032 = vunpack.c.h.b16 %v6946
    %v7033 = vunpack.c.l.b16 %v6947
    %v7034 = vunpack.c.h.b16 %v6947
    %v7035 = vunpack.c.l.b16 %v6948
    %v7036 = vunpack.c.h.b16 %v6948
    %v7037 = vunpack.c.l.b16 %v6949
    %v7038 = vunpack.c.h.b16 %v6949
    %v7039 = vunpack.c.l.b16 %v6950
    %v7040 = vunpack.c.h.b16 %v6950
    %v7041 = vunpack.c.l.b16 %v6951
    %v7042 = vunpack.c.h.b16 %v6951
    %v7043 = vunpack.c.l.b16 %v6952
    %v7044 = vunpack.c.h.b16 %v6952
    %v7045 = vunpack.c.l.b16 %v6953
    %v7046 = vunpack.c.h.b16 %v6953
    %v7047 = vunpack.c.l.b16 %v6954
    %v7048 = vunpack.c.h.b16 %v6954
    %v7049 = vunpack.c.l.b16 %v6955
    %v7050 = vunpack.c.h.b16 %v6955
    %v7051 = vunpack.c.l.b16 %v6956
    %v7052 = vunpack.c.h.b16 %v6956
    %v7053 = vpack.c.b16 %v6993, %v6989
    %v7054 = vpack.c.b16 %v6994, %v6990
    %v7055 = vpack.c.b16 %v6995, %v6991
    %v7056 = vpack.c.b16 %v6996, %v6992
    %v7057 = vpack.c.b16 %v7001, %v6997
    %v7058 = vpack.c.b16 %v7002, %v6998
    %v7059 = vpack.c.b16 %v7003, %v6999
    %v7060 = vpack.c.b16 %v7004, %v7000
    %v7061 = vpack.c.b16 %v7009, %v7005
    %v7062 = vpack.c.b16 %v7010, %v7006
    %v7063 = vpack.c.b16 %v7011, %v7007
    %v7064 = vpack.c.b16 %v7012, %v7008
    %v7065 = vpack.c.b16 %v7017, %v7013
    %v7066 = vpack.c.b16 %v7018, %v7014
    %v7067 = vpack.c.b16 %v7019, %v7015
    %v7068 = vpack.c.b16 %v7020, %v7016
    %v7069 = vpack.c.b16 %v7025, %v7021
    %v7070 = vpack.c.b16 %v7026, %v7022
    %v7071 = vpack.c.b16 %v7027, %v7023
    %v7072 = vpack.c.b16 %v7028, %v7024
    %v7073 = vpack.c.b16 %v7033, %v7029
    %v7074 = vpack.c.b16 %v7034, %v7030
    %v7075 = vpack.c.b16 %v7035, %v7031
    %v7076 = vpack.c.b16 %v7036, %v7032
    %v7077 = vpack.c.b16 %v7041, %v7037
    %v7078 = vpack.c.b16 %v7042, %v7038
    %v7079 = vpack.c.b16 %v7043, %v7039
    %v7080 = vpack.c.b16 %v7044, %v7040
    %v7081 = vpack.c.b16 %v7049, %v7045
    %v7082 = vpack.c.b16 %v7050, %v7046
    %v7083 = vpack.c.b16 %v7051, %v7047
    %v7084 = vpack.c.b16 %v7052, %v7048
    %7117 = vmatprep.subr.bf16.mxu0 %v7082
    %7118 = vmatpush1.bf16.msra.mxu0 %v7081
    %7119 = vmatprep.subr.bf16.mxu0 %v7078
    %7120 = vmatpush1.bf16.msra.mxu0 %v7077
    %7121 = vmatprep.subr.bf16.mxu0 %v7074
    %7122 = vmatpush1.bf16.msra.mxu0 %v7073
    %7123 = vmatprep.subr.bf16.mxu0 %v7070
    %7124 = vmatpush1.bf16.msra.mxu0 %v7069
    %7125 = vmatprep.subr.bf16.mxu0 %v7066
    %7126 = vmatpush1.bf16.msra.mxu0 %v7065
    %7127 = vmatprep.subr.bf16.mxu0 %v7062
    %7128 = vmatpush1.bf16.msra.mxu0 %v7061
    %7129 = vmatprep.subr.bf16.mxu0 %v7058
    %7130 = vmatpush1.bf16.msra.mxu0 %v7057
    %7131 = vmatprep.subr.bf16.mxu0 %v7054
    %7132 = vmatpush1.bf16.msra.mxu0 %v7053
    %7133 = vmatprep.subr.bf16.mxu0 0
    %7134 = vmatpush2.bf16.msra.mxu0 0
    %7135 = vmatprep.subr.bf16.mxu0 0
    %7136 = vmatpush2.bf16.msra.mxu0 0
    %7137 = vmatprep.subr.bf16.mxu0 0
    %7138 = vmatpush2.bf16.msra.mxu0 0
    %7139 = vmatprep.subr.bf16.mxu0 0
    %7140 = vmatpush2.bf16.msra.mxu0 0
    %7141 = vmatprep.subr.bf16.mxu0 0
    %7142 = vmatpush2.bf16.msra.mxu0 0
    %7143 = vmatprep.subr.bf16.mxu0 0
    %7144 = vmatpush2.bf16.msra.mxu0 0
    %7145 = vmatprep.subr.bf16.mxu0 0
    %7146 = vmatpush2.bf16.msra.mxu0 0
    %7147 = vmatprep.subr.bf16.mxu0 0
    %7148 = vmatpush2.bf16.msra.mxu0 0
    %7149 = vmatprep.mubr.bf16.mxu0 0
    %7150 = vmatmul.mubr.bf16.gmra.mxu0 %v6924
    %v7151 = vpop.f32.mrf.mxu0
    %v7152 = vadd.f32 0.0, %v7151
    %v7153 = vpop.f32.mrf.mxu0
    %v7154 = vadd.f32 0.0, %v7153
    %v7155 = vpop.f32.mrf.mxu0
    %v7156 = vpop.f32.mrf.mxu0
    %7157 = vdwg.mxu0
    %7158 = vmatprep.subr.bf16.mxu0 %v7084
    %7159 = vmatpush1.bf16.msra.mxu0 %v7083
    %7160 = vmatprep.subr.bf16.mxu0 %v7080
    %7161 = vmatpush1.bf16.msra.mxu0 %v7079
    %7162 = vmatprep.subr.bf16.mxu0 %v7076
    %7163 = vmatpush1.bf16.msra.mxu0 %v7075
    %7164 = vmatprep.subr.bf16.mxu0 %v7072
    %7165 = vmatpush1.bf16.msra.mxu0 %v7071
    %7166 = vmatprep.subr.bf16.mxu0 %v7068
    %7167 = vmatpush1.bf16.msra.mxu0 %v7067
    %7168 = vmatprep.subr.bf16.mxu0 %v7064
    %7169 = vmatpush1.bf16.msra.mxu0 %v7063
    %7170 = vmatprep.subr.bf16.mxu0 %v7060
    %7171 = vmatpush1.bf16.msra.mxu0 %v7059
    %7172 = vmatprep.subr.bf16.mxu0 %v7056
    %7173 = vmatpush1.bf16.msra.mxu0 %v7055
    %7174 = vmatprep.subr.bf16.mxu0 0
    %7175 = vmatpush2.bf16.msra.mxu0 0
    %7176 = vmatprep.subr.bf16.mxu0 0
    %7177 = vmatpush2.bf16.msra.mxu0 0
    %7178 = vmatprep.subr.bf16.mxu0 0
    %7179 = vmatpush2.bf16.msra.mxu0 0
    %7180 = vmatprep.subr.bf16.mxu0 0
    %7181 = vmatpush2.bf16.msra.mxu0 0
    %7182 = vmatprep.subr.bf16.mxu0 0
    %7183 = vmatpush2.bf16.msra.mxu0 0
    %7184 = vmatprep.subr.bf16.mxu0 0
    %7185 = vmatpush2.bf16.msra.mxu0 0
    %7186 = vmatprep.subr.bf16.mxu0 0
    %7187 = vmatpush2.bf16.msra.mxu0 0
    %7188 = vmatprep.subr.bf16.mxu0 0
    %7189 = vmatpush2.bf16.msra.mxu0 0
    %7190 = vmatprep.mubr.bf16.mxu0 0
    %7191 = vmatmul.mubr.bf16.gmra.mxu0 %v6924
    %v7192 = vpop.f32.mrf.mxu0
    %v7193 = vadd.f32 0.0, %v7192
    %v7194 = vpop.f32.mrf.mxu0
    %v7195 = vadd.f32 0.0, %v7194
    %v7196 = vpop.f32.mrf.mxu0
    %v7197 = vpop.f32.mrf.mxu0
    %7198 = vdwg.mxu0
    %v7231 = vunpack.c.l.b16 %v6892
    %v7232 = vunpack.c.h.b16 %v6892
    %v7233 = vunpack.c.l.b16 %v6893
    %v7234 = vunpack.c.h.b16 %v6893
    %v7235 = vunpack.c.l.b16 %v6894
    %v7236 = vunpack.c.h.b16 %v6894
    %v7237 = vunpack.c.l.b16 %v6895
    %v7238 = vunpack.c.h.b16 %v6895
    %v7239 = vunpack.c.l.b16 %v6896
    %v7240 = vunpack.c.h.b16 %v6896
    %v7241 = vunpack.c.l.b16 %v6897
    %v7242 = vunpack.c.h.b16 %v6897
    %v7243 = vunpack.c.l.b16 %v6898
    %v7244 = vunpack.c.h.b16 %v6898
    %v7245 = vunpack.c.l.b16 %v6899
    %v7246 = vunpack.c.h.b16 %v6899
    %v7247 = vunpack.c.l.b16 %v6900
    %v7248 = vunpack.c.h.b16 %v6900
    %v7249 = vunpack.c.l.b16 %v6901
    %v7250 = vunpack.c.h.b16 %v6901
    %v7251 = vunpack.c.l.b16 %v6902
    %v7252 = vunpack.c.h.b16 %v6902
    %v7253 = vunpack.c.l.b16 %v6903
    %v7254 = vunpack.c.h.b16 %v6903
    %v7255 = vunpack.c.l.b16 %v6904
    %v7256 = vunpack.c.h.b16 %v6904
    %v7257 = vunpack.c.l.b16 %v6905
    %v7258 = vunpack.c.h.b16 %v6905
    %v7259 = vunpack.c.l.b16 %v6906
    %v7260 = vunpack.c.h.b16 %v6906
    %v7261 = vunpack.c.l.b16 %v6907
    %v7262 = vunpack.c.h.b16 %v6907
    %v7263 = vunpack.c.l.b16 %v6908
    %v7264 = vunpack.c.h.b16 %v6908
    %v7265 = vunpack.c.l.b16 %v6909
    %v7266 = vunpack.c.h.b16 %v6909
    %v7267 = vunpack.c.l.b16 %v6910
    %v7268 = vunpack.c.h.b16 %v6910
    %v7269 = vunpack.c.l.b16 %v6911
    %v7270 = vunpack.c.h.b16 %v6911
    %v7271 = vunpack.c.l.b16 %v6912
    %v7272 = vunpack.c.h.b16 %v6912
    %v7273 = vunpack.c.l.b16 %v6913
    %v7274 = vunpack.c.h.b16 %v6913
    %v7275 = vunpack.c.l.b16 %v6914
    %v7276 = vunpack.c.h.b16 %v6914
    %v7277 = vunpack.c.l.b16 %v6915
    %v7278 = vunpack.c.h.b16 %v6915
    %v7279 = vunpack.c.l.b16 %v6916
    %v7280 = vunpack.c.h.b16 %v6916
    %v7281 = vunpack.c.l.b16 %v6917
    %v7282 = vunpack.c.h.b16 %v6917
    %v7283 = vunpack.c.l.b16 %v6918
    %v7284 = vunpack.c.h.b16 %v6918
    %v7285 = vunpack.c.l.b16 %v6919
    %v7286 = vunpack.c.h.b16 %v6919
    %v7287 = vunpack.c.l.b16 %v6920
    %v7288 = vunpack.c.h.b16 %v6920
    %v7289 = vunpack.c.l.b16 %v6921
    %v7290 = vunpack.c.h.b16 %v6921
    %v7291 = vunpack.c.l.b16 %v6922
    %v7292 = vunpack.c.h.b16 %v6922
    %v7293 = vunpack.c.l.b16 %v6923
    %v7294 = vunpack.c.h.b16 %v6923
    %v7295 = vpack.c.b16 %v7235, %v7231
    %v7296 = vpack.c.b16 %v7236, %v7232
    %v7297 = vpack.c.b16 %v7237, %v7233
    %v7298 = vpack.c.b16 %v7238, %v7234
    %v7299 = vpack.c.b16 %v7243, %v7239
    %v7300 = vpack.c.b16 %v7244, %v7240
    %v7301 = vpack.c.b16 %v7245, %v7241
    %v7302 = vpack.c.b16 %v7246, %v7242
    %v7303 = vpack.c.b16 %v7251, %v7247
    %v7304 = vpack.c.b16 %v7252, %v7248
    %v7305 = vpack.c.b16 %v7253, %v7249
    %v7306 = vpack.c.b16 %v7254, %v7250
    %v7307 = vpack.c.b16 %v7259, %v7255
    %v7308 = vpack.c.b16 %v7260, %v7256
    %v7309 = vpack.c.b16 %v7261, %v7257
    %v7310 = vpack.c.b16 %v7262, %v7258
    %v7311 = vpack.c.b16 %v7267, %v7263
    %v7312 = vpack.c.b16 %v7268, %v7264
    %v7313 = vpack.c.b16 %v7269, %v7265
    %v7314 = vpack.c.b16 %v7270, %v7266
    %v7315 = vpack.c.b16 %v7275, %v7271
    %v7316 = vpack.c.b16 %v7276, %v7272
    %v7317 = vpack.c.b16 %v7277, %v7273
    %v7318 = vpack.c.b16 %v7278, %v7274
    %v7319 = vpack.c.b16 %v7283, %v7279
    %v7320 = vpack.c.b16 %v7284, %v7280
    %v7321 = vpack.c.b16 %v7285, %v7281
    %v7322 = vpack.c.b16 %v7286, %v7282
    %v7323 = vpack.c.b16 %v7291, %v7287
    %v7324 = vpack.c.b16 %v7292, %v7288
    %v7325 = vpack.c.b16 %v7293, %v7289
    %v7326 = vpack.c.b16 %v7294, %v7290
    %7359 = vmatprep.subr.bf16.mxu0 %v7324
    %7360 = vmatpush1.bf16.msra.mxu0 %v7323
    %7361 = vmatprep.subr.bf16.mxu0 %v7320
    %7362 = vmatpush1.bf16.msra.mxu0 %v7319
    %7363 = vmatprep.subr.bf16.mxu0 %v7316
    %7364 = vmatpush1.bf16.msra.mxu0 %v7315
    %7365 = vmatprep.subr.bf16.mxu0 %v7312
    %7366 = vmatpush1.bf16.msra.mxu0 %v7311
    %7367 = vmatprep.subr.bf16.mxu0 %v7308
    %7368 = vmatpush1.bf16.msra.mxu0 %v7307
    %7369 = vmatprep.subr.bf16.mxu0 %v7304
    %7370 = vmatpush1.bf16.msra.mxu0 %v7303
    %7371 = vmatprep.subr.bf16.mxu0 %v7300
    %7372 = vmatpush1.bf16.msra.mxu0 %v7299
    %7373 = vmatprep.subr.bf16.mxu0 %v7296
    %7374 = vmatpush1.bf16.msra.mxu0 %v7295
    %7375 = vmatprep.subr.bf16.mxu0 0
    %7376 = vmatpush2.bf16.msra.mxu0 0
    %7377 = vmatprep.subr.bf16.mxu0 0
    %7378 = vmatpush2.bf16.msra.mxu0 0
    %7379 = vmatprep.subr.bf16.mxu0 0
    %7380 = vmatpush2.bf16.msra.mxu0 0
    %7381 = vmatprep.subr.bf16.mxu0 0
    %7382 = vmatpush2.bf16.msra.mxu0 0
    %7383 = vmatprep.subr.bf16.mxu0 0
    %7384 = vmatpush2.bf16.msra.mxu0 0
    %7385 = vmatprep.subr.bf16.mxu0 0
    %7386 = vmatpush2.bf16.msra.mxu0 0
    %7387 = vmatprep.subr.bf16.mxu0 0
    %7388 = vmatpush2.bf16.msra.mxu0 0
    %7389 = vmatprep.subr.bf16.mxu0 0
    %7390 = vmatpush2.bf16.msra.mxu0 0
    %7391 = vmatprep.mubr.bf16.mxu0 0
    %7392 = vmatmul.mubr.bf16.gmra.mxu0 %v6891
    %v7393 = vpop.f32.mrf.mxu0
    %v7394 = vadd.f32 %v7152, %v7393
    %v7395 = vpop.f32.mrf.mxu0
    %v7396 = vadd.f32 %v7154, %v7395
    %v7397 = vpop.f32.mrf.mxu0
    %v7398 = vpop.f32.mrf.mxu0
    %7399 = vdwg.mxu0
    %7400 = vmatprep.subr.bf16.mxu0 %v7326
    %7401 = vmatpush1.bf16.msra.mxu0 %v7325
    %7402 = vmatprep.subr.bf16.mxu0 %v7322
    %7403 = vmatpush1.bf16.msra.mxu0 %v7321
    %7404 = vmatprep.subr.bf16.mxu0 %v7318
    %7405 = vmatpush1.bf16.msra.mxu0 %v7317
    %7406 = vmatprep.subr.bf16.mxu0 %v7314
    %7407 = vmatpush1.bf16.msra.mxu0 %v7313
    %7408 = vmatprep.subr.bf16.mxu0 %v7310
    %7409 = vmatpush1.bf16.msra.mxu0 %v7309
    %7410 = vmatprep.subr.bf16.mxu0 %v7306
    %7411 = vmatpush1.bf16.msra.mxu0 %v7305
    %7412 = vmatprep.subr.bf16.mxu0 %v7302
    %7413 = vmatpush1.bf16.msra.mxu0 %v7301
    %7414 = vmatprep.subr.bf16.mxu0 %v7298
    %7415 = vmatpush1.bf16.msra.mxu0 %v7297
    %7416 = vmatprep.subr.bf16.mxu0 0
    %7417 = vmatpush2.bf16.msra.mxu0 0
    %7418 = vmatprep.subr.bf16.mxu0 0
    %7419 = vmatpush2.bf16.msra.mxu0 0
    %7420 = vmatprep.subr.bf16.mxu0 0
    %7421 = vmatpush2.bf16.msra.mxu0 0
    %7422 = vmatprep.subr.bf16.mxu0 0
    %7423 = vmatpush2.bf16.msra.mxu0 0
    %7424 = vmatprep.subr.bf16.mxu0 0
    %7425 = vmatpush2.bf16.msra.mxu0 0
    %7426 = vmatprep.subr.bf16.mxu0 0
    %7427 = vmatpush2.bf16.msra.mxu0 0
    %7428 = vmatprep.subr.bf16.mxu0 0
    %7429 = vmatpush2.bf16.msra.mxu0 0
    %7430 = vmatprep.subr.bf16.mxu0 0
    %7431 = vmatpush2.bf16.msra.mxu0 0
    %7432 = vmatprep.mubr.bf16.mxu0 0
    %7433 = vmatmul.mubr.bf16.gmra.mxu0 %v6891
    %v7434 = vpop.f32.mrf.mxu0
    %v7435 = vadd.f32 %v7193, %v7434
    %v7436 = vpop.f32.mrf.mxu0
    %v7437 = vadd.f32 %v7195, %v7436
    %v7438 = vpop.f32.mrf.mxu0
    %v7439 = vpop.f32.mrf.mxu0
    %7440 = vdwg.mxu0
    %v7441 = vadd.f32 %v7394, %v344
    %v7442 = vadd.f32 %v7396, %v348
    %v7443 = vadd.f32 %v7435, %v352
    %v7444 = vadd.f32 %v7437, %v356
    %v7445 = vxor.u32 %v7441, 2147483648
    %v7446 = vxor.u32 %v7442, 2147483648
    %v7447 = vxor.u32 %v7443, 2147483648
    %v7448 = vmul.f32 %v7445, 1.442695
    %v7449 = vpow.pop %v7448
    %v7450 = vmul.f32 %v7446, 1.442695
    %v7451 = vpow.pop %v7450
    %v7452 = vmul.f32 %v7447, 1.442695
    %v7453 = vpow.pop %v7452
    %v7454 = vadd.f32 %v7449, 1.0
    %v7455 = vadd.f32 %v7451, 1.0
    %v7456 = vadd.f32 %v7453, 1.0
    %v7457 = vrcp.pop %v7454
    %v7458 = vmul.f32 1.0, %v7457
    %v7459 = vrcp.pop %v7455
    %v7460 = vmul.f32 1.0, %v7459
    %v7461 = vrcp.pop %v7456
    %v7462 = vmul.f32 1.0, %v7461
    %v7463 = vtanh.pop %v7444
    %v7464 = vmul.f32 %v7460, %v6577
    %v7465 = vmul.f32 %v7458, %v7463
    %v7466 = vadd.f32 %v7464, %v7465
    %v7467 = vtanh.pop %v7466
    %v7468 = vmul.f32 %v7462, %v7467
    %s7469 = scalar_lea.vmem [#allocation3], 56
    %7470 = vst [vmem:[%s7469] sm:$0xff] %v7468
    %v7471 = vld [vmem:[#allocation3] sm:$0xff]
    %v7472 = vld [vmem:[#allocation3 + $0x8] sm:$0xff]
    %v7473 = vld [vmem:[#allocation3 + $0x10] sm:$0xff]
    %v7474 = vld [vmem:[#allocation3 + $0x18] sm:$0xff]
    %v7475 = vld [vmem:[#allocation3 + $0x20] sm:$0xff]
    %v7476 = vld [vmem:[#allocation3 + $0x28] sm:$0xff]
    %v7477 = vld [vmem:[#allocation3 + $0x30] sm:$0xff]
    %v7478 = vld [vmem:[#allocation3 + $0x38] sm:$0xff]
    %v7479 = vld [vmem:[#allocation8] sm:$0xff]
    %v7480 = vld [vmem:[#allocation8 + $0x8] sm:$0xff]
    %v7481 = vld [vmem:[#allocation8 + $0x10] sm:$0xff]
    %v7482 = vld [vmem:[#allocation8 + $0x18] sm:$0xff]
    %v7483 = vld [vmem:[#allocation8 + $0x20] sm:$0xff]
    %v7484 = vld [vmem:[#allocation8 + $0x28] sm:$0xff]
    %v7485 = vld [vmem:[#allocation8 + $0x30] sm:$0xff]
    %v7486 = vld [vmem:[#allocation8 + $0x38] sm:$0xff]
    %v7487 = vld [vmem:[#allocation8 + $0x40] sm:$0xff]
    %v7488 = vld [vmem:[#allocation8 + $0x48] sm:$0xff]
    %v7489 = vld [vmem:[#allocation8 + $0x50] sm:$0xff]
    %v7490 = vld [vmem:[#allocation8 + $0x58] sm:$0xff]
    %v7491 = vld [vmem:[#allocation8 + $0x60] sm:$0xff]
    %v7492 = vld [vmem:[#allocation8 + $0x68] sm:$0xff]
    %v7493 = vld [vmem:[#allocation8 + $0x70] sm:$0xff]
    %v7494 = vld [vmem:[#allocation8 + $0x78] sm:$0xff]
    %v7495 = vld [vmem:[%s8] sm:$0x1]
    %v7497 = vlaneseq
    %v7498 = vshrl.u32 %v7497, 7
    %v7499 = vsub.s32 0, %v7498
    %v7500 = vrot.slane %v7495, %v7499
    %7502 = vmatprep.subr.mxu0 0.0
    %7503 = vmatpush1.msra.mxu0 %v7494
    %7504 = vmatprep.subr.mxu0 0.0
    %7505 = vmatpush1.msra.mxu0 %v7493
    %7506 = vmatprep.subr.mxu0 0.0
    %7507 = vmatpush1.msra.mxu0 %v7492
    %7508 = vmatprep.subr.mxu0 0.0
    %7509 = vmatpush1.msra.mxu0 %v7491
    %7510 = vmatprep.subr.mxu0 0.0
    %7511 = vmatpush1.msra.mxu0 %v7490
    %7512 = vmatprep.subr.mxu0 0.0
    %7513 = vmatpush1.msra.mxu0 %v7489
    %7514 = vmatprep.subr.mxu0 0.0
    %7515 = vmatpush1.msra.mxu0 %v7488
    %7516 = vmatprep.subr.mxu0 0.0
    %7517 = vmatpush1.msra.mxu0 %v7487
    %7518 = vmatprep.subr.mxu0 0.0
    %7519 = vmatpush1.msra.mxu0 %v7486
    %7520 = vmatprep.subr.mxu0 0.0
    %7521 = vmatpush1.msra.mxu0 %v7485
    %7522 = vmatprep.subr.mxu0 0.0
    %7523 = vmatpush1.msra.mxu0 %v7484
    %7524 = vmatprep.subr.mxu0 0.0
    %7525 = vmatpush1.msra.mxu0 %v7483
    %7526 = vmatprep.subr.mxu0 0.0
    %7527 = vmatpush1.msra.mxu0 %v7482
    %7528 = vmatprep.subr.mxu0 0.0
    %7529 = vmatpush1.msra.mxu0 %v7481
    %7530 = vmatprep.subr.mxu0 0.0
    %7531 = vmatpush1.msra.mxu0 %v7480
    %7532 = vmatprep.subr.mxu0 0.0
    %7533 = vmatpush1.msra.mxu0 %v7479
    %7534 = vmatprep.subr.mxu0 0.0
    %7535 = vmatpush2.msra.mxu0 0.0
    %7536 = vmatprep.subr.mxu0 0.0
    %7537 = vmatpush2.msra.mxu0 0.0
    %7538 = vmatprep.subr.mxu0 0.0
    %7539 = vmatpush2.msra.mxu0 0.0
    %7540 = vmatprep.subr.mxu0 0.0
    %7541 = vmatpush2.msra.mxu0 0.0
    %7542 = vmatprep.subr.mxu0 0.0
    %7543 = vmatpush2.msra.mxu0 0.0
    %7544 = vmatprep.subr.mxu0 0.0
    %7545 = vmatpush2.msra.mxu0 0.0
    %7546 = vmatprep.subr.mxu0 0.0
    %7547 = vmatpush2.msra.mxu0 0.0
    %7548 = vmatprep.subr.mxu0 0.0
    %7549 = vmatpush2.msra.mxu0 0.0
    %7550 = vmatprep.subr.mxu0 0.0
    %7551 = vmatpush2.msra.mxu0 0.0
    %7552 = vmatprep.subr.mxu0 0.0
    %7553 = vmatpush2.msra.mxu0 0.0
    %7554 = vmatprep.subr.mxu0 0.0
    %7555 = vmatpush2.msra.mxu0 0.0
    %7556 = vmatprep.subr.mxu0 0.0
    %7557 = vmatpush2.msra.mxu0 0.0
    %7558 = vmatprep.subr.mxu0 0.0
    %7559 = vmatpush2.msra.mxu0 0.0
    %7560 = vmatprep.subr.mxu0 0.0
    %7561 = vmatpush2.msra.mxu0 0.0
    %7562 = vmatprep.subr.mxu0 0.0
    %7563 = vmatpush2.msra.mxu0 0.0
    %7564 = vmatprep.subr.mxu0 0.0
    %7565 = vmatpush2.msra.mxu0 0.0
    %7566 = vmatprep.mubr.f32.mxu0 0.0
    %7567 = vmatmul.mubr.f32.gmra.mxu0 %v7471
    %v7568 = vpop.f32.mrf.mxu0
    %v7569 = vadd.f32 %v7500, %v7568
    %v7570 = vpop.f32.mrf.mxu0
    %7571 = vmatprep.mubr.f32.mxu0 0.0
    %7572 = vmatmul.mubr.f32.gmra.mxu0 %v7472
    %v7573 = vpop.f32.mrf.mxu0
    %v7574 = vadd.f32 %v7500, %v7573
    %v7575 = vpop.f32.mrf.mxu0
    %7576 = vmatprep.mubr.f32.mxu0 0.0
    %7577 = vmatmul.mubr.f32.gmra.mxu0 %v7473
    %v7578 = vpop.f32.mrf.mxu0
    %v7579 = vadd.f32 %v7500, %v7578
    %v7580 = vpop.f32.mrf.mxu0
    %7581 = vmatprep.mubr.f32.mxu0 0.0
    %7582 = vmatmul.mubr.f32.gmra.mxu0 %v7474
    %v7583 = vpop.f32.mrf.mxu0
    %v7584 = vadd.f32 %v7500, %v7583
    %v7585 = vpop.f32.mrf.mxu0
    %7586 = vmatprep.mubr.f32.mxu0 0.0
    %7587 = vmatmul.mubr.f32.gmra.mxu0 %v7475
    %v7588 = vpop.f32.mrf.mxu0
    %v7589 = vadd.f32 %v7500, %v7588
    %v7590 = vpop.f32.mrf.mxu0
    %7591 = vmatprep.mubr.f32.mxu0 0.0
    %7592 = vmatmul.mubr.f32.gmra.mxu0 %v7476
    %v7593 = vpop.f32.mrf.mxu0
    %v7594 = vadd.f32 %v7500, %v7593
    %v7595 = vpop.f32.mrf.mxu0
    %7596 = vmatprep.mubr.f32.mxu0 0.0
    %7597 = vmatmul.mubr.f32.gmra.mxu0 %v7477
    %v7598 = vpop.f32.mrf.mxu0
    %v7599 = vadd.f32 %v7500, %v7598
    %v7600 = vpop.f32.mrf.mxu0
    %7601 = vmatprep.mubr.f32.mxu0 0.0
    %7602 = vmatmul.mubr.f32.gmra.mxu0 %v7478
    %v7603 = vpop.f32.mrf.mxu0
    %v7604 = vadd.f32 %v7500, %v7603
    %v7605 = vpop.f32.mrf.mxu0
    %7606 = vdwg.mxu0
    %7607 = vst [vmem:[%s9] sm:$0xff] %v7569
    %7608 = vst [vmem:[%s9 + $0x8] sm:$0xff] %v7574
    %7609 = vst [vmem:[%s9 + $0x10] sm:$0xff] %v7579
    %7610 = vst [vmem:[%s9 + $0x18] sm:$0xff] %v7584
    %7611 = vst [vmem:[%s9 + $0x20] sm:$0xff] %v7589
    %7612 = vst [vmem:[%s9 + $0x28] sm:$0xff] %v7594
    %7613 = vst [vmem:[%s9 + $0x30] sm:$0xff] %v7599
    %7614 = vst [vmem:[%s9 + $0x38] sm:$0xff] %v7604
    // Predicated region
    $region50: #{rnn_original_fedavg_forward.1} parent=1 // pred_check
      _
    $region51: #{rnn_original_fedavg_forward.1} parent=1 // pred_check_branch
      %7616 = sbr.rel (0) target = $region53
    $region52: #{rnn_original_fedavg_forward.1} parent=1 // pred_region
      _
    $region53: #{rnn_original_fedavg_forward.1} parent=1 // pred_fallthru
      _
    // Predicated region
    $region54: #{rnn_original_fedavg_forward.1} parent=1 // pred_check
      _
    $region55: #{rnn_original_fedavg_forward.1} parent=1 // pred_check_branch
      %7618 = sbr.rel (0) target = $region57
    $region56: #{rnn_original_fedavg_forward.1} parent=1 // pred_region
      _
    $region57: #{rnn_original_fedavg_forward.1} parent=1 // pred_fallthru
      _
    %7619 = vsyncpa [#allocation5], 1
    %7620 = vsyncpa [#allocation7], 1

</llo_original>
